<compile_context>
chip_gen: v7x
topology: tpu7x:2x2x1
jax: 0.10.0
libtpu: 0.0.40
codegen_flags: <defaults>
</compile_context>

<pallas_src>
import functools

import jax
import jax.numpy as jnp
from jax import lax
from jax.experimental import pallas as pl
from jax.experimental.pallas import tpu as pltpu


# Architecture constants implied by the PyTorch module (fc1 = n_feature*9*9):
#   input 48x48 -> conv1(5) 44 -> pool 22 -> conv2(5) 18 -> pool 9
KSIZE = 5
HSUB = WSUB = 24          # mod-2 phase-split sub-image size (48/2)
P2 = 9                    # conv2 pooled spatial
STRIDE = 24               # flat row stride of all in-kernel activations
WX = 896                  # padded flat width of each phase sub-image (>= 768+50)
WA = 768                  # conv1 pooled-activation width (stride-24 flat)
WY = 512                  # conv2 output width (lattice max 48*8+2*8=400, +25 pool)
WP = 448                  # pooled conv2 width fed to the compaction GEMM (> 400)
HID = 128                 # fc1 hidden 100 -> 128
NCLS = 128                # classes 33 -> 128


# ------------------------------ fused kernel --------------------------------

def _fused_cnn_kernel(xs_ref, w1_ref, b1_ref, w2_ref, b2_ref, g_ref,
                      wf1_ref, bf1_ref, wf2_ref, bf2_ref, o_ref, a1_scr):
    F = wf1_ref.shape[0]
    wa = a1_scr.shape[1]
    wp = g_ref.shape[0]

    # ---------------- conv1 + 2x2 max-pool (VPU, f32) -----------------------
    # xs_ref holds the 4 mod-2 phase planes of the image, flattened with row
    # stride 24 and zero padded.  Conv output pixel (2i+dy, 2j+dx) at kernel
    # offset (kh,kw) reads phase plane ((dy+kh)%2, (dx+kw)%2) at flat index
    # (24*i + j) + 24*((dy+kh)//2) + (dx+kw)//2  -> a static lane-shifted load.
    w1 = w1_ref[...]                                        # (F, 32) f32

    slice_cache = {}

    def xslice(row, shift):
        key = (row, shift)
        if key not in slice_cache:
            slice_cache[key] = xs_ref[0, row:row + 1, shift:shift + wa]  # (1, wa)
        return slice_cache[key]

    m = None
    for dy in range(2):
        for dx in range(2):
            acc = None
            for kh in range(KSIZE):
                for kw in range(KSIZE):
                    rh, cw = dy + kh, dx + kw
                    row = (rh % 2) * 2 + (cw % 2)
                    shift = (rh // 2) * STRIDE + (cw // 2)
                    k = kh * KSIZE + kw
                    term = w1[:, k:k + 1] * xslice(row, shift)   # (F, wa) f32
                    acc = term if acc is None else acc + term
            m = acc if m is None else jnp.maximum(m, acc)
    # bias + ReLU after the pool max (ReLU(x+b) is monotone in x).
    a1_scr[...] = jnp.maximum(m + b1_ref[...], 0.0).astype(jnp.bfloat16)

    # ---------------- conv2: 25 accumulating MXU dots ------------------------
    y2 = None
    for kh in range(KSIZE):
        for kw in range(KSIZE):
            shift = kh * STRIDE + kw
            asl = a1_scr[:, shift:shift + WY]                    # (F, WY) bf16
            t = jnp.dot(w2_ref[kh * KSIZE + kw], asl,
                        preferred_element_type=jnp.float32)      # (F, WY) f32
            y2 = t if y2 is None else y2 + t

    # ---------------- 2x2 max-pool + bias + ReLU ----------------------------
    pooled = jnp.maximum(
        jnp.maximum(y2[:, 0:wp], y2[:, 1:1 + wp]),
        jnp.maximum(y2[:, STRIDE:STRIDE + wp], y2[:, STRIDE + 1:STRIDE + 1 + wp]))
    pooled = jnp.maximum(pooled + b2_ref[...], 0.0).astype(jnp.bfloat16)   # (F, wp)

    # ------ lane compaction: sparse pool lattice -> dense 81 (->128) --------
    pd = jnp.dot(pooled, g_ref[...], preferred_element_type=jnp.float32)   # (F, HID)

    # ---------------- fc1: exact per-channel dots, tree-summed --------------
    parts = [jnp.dot(pd[c:c + 1, :].astype(jnp.bfloat16), wf1_ref[c],
                     preferred_element_type=jnp.float32) for c in range(F)]
    while len(parts) > 1:
        parts = [parts[i] + parts[i + 1] if i + 1 < len(parts) else parts[i]
                 for i in range(0, len(parts), 2)]
    h = jnp.maximum(parts[0] + bf1_ref[...], 0.0).astype(jnp.bfloat16)     # (1, HID)

    # ---------------- fc2 + log_softmax (f32) -------------------------------
    logits = jnp.dot(h, wf2_ref[...], preferred_element_type=jnp.float32) + bf2_ref[...]
    mx = jnp.max(logits, axis=-1, keepdims=True)
    s = logits - mx
    lse = jnp.log(jnp.sum(jnp.exp(s), axis=-1, keepdims=True))
    o_ref[0] = s - lse


# ------------------------------ JAX-side glue --------------------------------

def pack_params(p):
    """One-time repack of the torch-layout weights into kernel layouts."""
    F = p['conv1_b'].shape[0]
    n_hidden = p['fc1_b'].shape[0]
    n_classes = p['fc2_b'].shape[0]
    np2 = P2 * P2

    w1 = p['conv1_w'].reshape(F, KSIZE * KSIZE).astype(jnp.float32)
    w1 = jnp.pad(w1, ((0, 0), (0, 32 - KSIZE * KSIZE)))
    b1 = p['conv1_b'].reshape(F, 1).astype(jnp.float32)

    w2 = jnp.transpose(p['conv2_w'], (2, 3, 0, 1)).reshape(KSIZE * KSIZE, F, F)
    w2 = w2.astype(jnp.bfloat16)                             # [kh*5+kw, f_out, c_in]
    b2 = p['conv2_b'].reshape(F, 1).astype(jnp.float32)

    # 0/1 compaction matrix: lattice lane 48*pi + 2*pj  ->  dense lane 9*pi + pj
    mm = jnp.arange(np2)
    rows = 2 * STRIDE * (mm // P2) + 2 * (mm % P2)
    g = jnp.zeros((WP, HID), jnp.float32).at[rows, mm].set(1.0).astype(jnp.bfloat16)

    # fc1 as per-conv-channel slabs in torch NCHW-flatten order.
    wf1 = p['fc1_w'].T.reshape(F, np2, n_hidden)             # [c, m, n]
    wf1 = jnp.pad(wf1, ((0, 0), (0, HID - np2), (0, HID - n_hidden)))
    wf1 = wf1.astype(jnp.bfloat16)
    bf1 = jnp.pad(p['fc1_b'], (0, HID - n_hidden)).reshape(1, HID).astype(jnp.float32)

    wf2 = jnp.pad(p['fc2_w'].T, ((0, HID - n_hidden), (0, NCLS - n_classes)))
    wf2 = wf2.astype(jnp.bfloat16)
    bf2 = jnp.concatenate([p['fc2_b'].astype(jnp.float32),
                           jnp.full((NCLS - n_classes,), -1e30, jnp.float32)])
    bf2 = bf2.reshape(1, NCLS)

    return dict(w1=w1, b1=b1, w2=w2, b2=b2, g=g,
                wf1=wf1, bf1=bf1, wf2=wf2, bf2=bf2)


@functools.partial(jax.jit, static_argnames=("n_classes",))
def cnn_forward(x_nchw, q, n_classes=33):
    """Equivalent of CNN.forward for NCHW float32 input (B, 1, 48, 48)."""
    B = x_nchw.shape[0]
    F = q['b1'].shape[0]

    # mod-2 pooling phase split (stays in XLA: lane-strided gather), flattened
    # with row stride 24 and zero padded to the kernel's slice window.
    xs = jnp.stack([x_nchw[:, 0, r::2, s::2].reshape(B, HSUB * WSUB)
                    for r in (0, 1) for s in (0, 1)], axis=1)          # (B, 4, 576)
    xs = jnp.pad(xs, ((0, 0), (0, 0), (0, WX - HSUB * WSUB))).astype(jnp.float32)

    out = pl.pallas_call(
        _fused_cnn_kernel,
        out_shape=jax.ShapeDtypeStruct((B, 1, NCLS), jnp.float32),
        grid=(B,),
        in_specs=[
            pl.BlockSpec((1, 4, WX), lambda i: (i, 0, 0)),
            pl.BlockSpec((F, 32), lambda i: (0, 0)),
            pl.BlockSpec((F, 1), lambda i: (0, 0)),
            pl.BlockSpec((KSIZE * KSIZE, F, F), lambda i: (0, 0, 0)),
            pl.BlockSpec((F, 1), lambda i: (0, 0)),
            pl.BlockSpec((WP, HID), lambda i: (0, 0)),
            pl.BlockSpec((F, HID, HID), lambda i: (0, 0, 0)),
            pl.BlockSpec((1, HID), lambda i: (0, 0)),
            pl.BlockSpec((HID, NCLS), lambda i: (0, 0)),
            pl.BlockSpec((1, NCLS), lambda i: (0, 0)),
        ],
        out_specs=pl.BlockSpec((1, 1, NCLS), lambda i: (i, 0, 0)),
        scratch_shapes=[pltpu.VMEM((F, WA), jnp.bfloat16)],
        compiler_params=pltpu.CompilerParams(dimension_semantics=("parallel",)),
    )(xs, q['w1'], q['b1'], q['w2'], q['b2'], q['g'],
      q['wf1'], q['bf1'], q['wf2'], q['bf2'])

    return out.reshape(B, NCLS)[:, :n_classes]


# ------------------------- pure-JAX reference check --------------------------

def cnn_reference(x, p):
    def conv(x, w, b):
        y = lax.conv_general_dilated(x, w, (1, 1), 'VALID',
                                     dimension_numbers=('NCHW', 'OIHW', 'NCHW'))
        return y + b[None, :, None, None]

    def pool(y):
        B, C, H, W = y.shape
        return y.reshape(B, C, H // 2, 2, W // 2, 2).max(axis=(3, 5))

    y = pool(jnp.maximum(conv(x, p['conv1_w'], p['conv1_b']), 0.0))
    y = pool(jnp.maximum(conv(y, p['conv2_w'], p['conv2_b']), 0.0))
    y = y.reshape(y.shape[0], -1)
    y = jnp.maximum(y @ p['fc1_w'].T + p['fc1_b'], 0.0)
    logits = y @ p['fc2_w'].T + p['fc2_b']
    return jax.nn.log_softmax(logits, axis=1)


# ----------------------------------- main ------------------------------------

if __name__ == "__main__":
    key = jax.random.PRNGKey(0)
    B, n_feature, n_classes = 2, 8, 33
    H = W = 48  # spatial size implied by fc1 = n_feature*9*9: ((48-4)/2 - 4)/2 = 9

    ks = jax.random.split(key, 9)

    def u(k, shape, fan_in):
        lim = 1.0 / (fan_in ** 0.5)
        return jax.random.uniform(k, shape, jnp.float32, -lim, lim)

    params = {
        'conv1_w': u(ks[0], (n_feature, 1, 5, 5), 25),
        'conv1_b': u(ks[1], (n_feature,), 25),
        'conv2_w': u(ks[2], (n_feature, n_feature, 5, 5), 25 * n_feature),
        'conv2_b': u(ks[3], (n_feature,), 25 * n_feature),
        'fc1_w':   u(ks[4], (100, n_feature * 9 * 9), n_feature * 81),
        'fc1_b':   u(ks[5], (100,), n_feature * 81),
        'fc2_w':   u(ks[6], (n_classes, 100), 100),
        'fc2_b':   u(ks[7], (n_classes,), 100),
    }
    x = jax.random.normal(ks[8], (B, 1, H, W), jnp.float32)

    packed = pack_params(params)
    out = jax.block_until_ready(cnn_forward(x, packed, n_classes=n_classes))
    ref = jax.block_until_ready(cnn_reference(x, params))

    assert out.shape == (B, n_classes)
    max_err = float(jnp.max(jnp.abs(out - ref)))
    assert bool(jnp.allclose(out, ref, atol=3e-2, rtol=3e-2)), max_err
    print("KERNEL_OK")
</pallas_src>

<mosaic_0001>
module attributes {stable_mosaic.version = 11 : i64} {
  func.func @_fused_cnn_kernel(%arg0: i32, %arg1: memref<1x4x896xf32, #tpu.memory_space<vmem>>, %arg2: memref<8x32xf32, #tpu.memory_space<vmem>>, %arg3: memref<8x1xf32, #tpu.memory_space<vmem>>, %arg4: memref<25x8x8xbf16, #tpu.memory_space<vmem>>, %arg5: memref<8x1xf32, #tpu.memory_space<vmem>>, %arg6: memref<448x128xbf16, #tpu.memory_space<vmem>>, %arg7: memref<8x128x128xbf16, #tpu.memory_space<vmem>>, %arg8: memref<1x128xf32, #tpu.memory_space<vmem>>, %arg9: memref<128x128xbf16, #tpu.memory_space<vmem>>, %arg10: memref<1x128xf32, #tpu.memory_space<vmem>>, %arg11: memref<1x1x128xf32, #tpu.memory_space<vmem>>, %arg12: memref<8x768xbf16, #tpu.memory_space<vmem>>) attributes {dimension_semantics = [#tpu.dimension_semantics<parallel>], iteration_bounds = array<i64: 2>, scalar_prefetch = 0 : i64, scratch_operands = 1 : i64, tpu.core_type = #tpu.core_type<tc>, window_params = [{transform_indices = @transform_0, window_bounds = array<i64: 1, 4, 896>}, {pipeline_mode = #tpu.pipeline_mode<synchronous>, transform_indices = @transform_1, window_bounds = array<i64: 8, 32>}, {pipeline_mode = #tpu.pipeline_mode<synchronous>, transform_indices = @transform_2, window_bounds = array<i64: 8, 1>}, {pipeline_mode = #tpu.pipeline_mode<synchronous>, transform_indices = @transform_3, window_bounds = array<i64: 25, 8, 8>}, {pipeline_mode = #tpu.pipeline_mode<synchronous>, transform_indices = @transform_4, window_bounds = array<i64: 8, 1>}, {pipeline_mode = #tpu.pipeline_mode<synchronous>, transform_indices = @transform_5, window_bounds = array<i64: 448, 128>}, {pipeline_mode = #tpu.pipeline_mode<synchronous>, transform_indices = @transform_6, window_bounds = array<i64: 8, 128, 128>}, {pipeline_mode = #tpu.pipeline_mode<synchronous>, transform_indices = @transform_7, window_bounds = array<i64: 1, 128>}, {pipeline_mode = #tpu.pipeline_mode<synchronous>, transform_indices = @transform_8, window_bounds = array<i64: 128, 128>}, {pipeline_mode = #tpu.pipeline_mode<synchronous>, transform_indices = @transform_9, window_bounds = array<i64: 1, 128>}, {transform_indices = @transform_10, window_bounds = array<i64: 1, 1, 128>}]} {
    %c0 = arith.constant 0 : index
    %c0_0 = arith.constant 0 : index
    %0 = vector.load %arg2[%c0, %c0_0] : memref<8x32xf32, #tpu.memory_space<vmem>>, vector<8x32xf32>
    %1 = vector.extract_strided_slice %0 {offsets = [0, 0], sizes = [8, 1], strides = [1, 1]} : vector<8x32xf32> to vector<8x1xf32>
    %c0_1 = arith.constant 0 : index
    %c0_2 = arith.constant 0 : index
    %c0_3 = arith.constant 0 : index
    %2 = vector.load %arg1[%c0_1, %c0_2, %c0_3] : memref<1x4x896xf32, #tpu.memory_space<vmem>>, vector<1x1x768xf32>
    %3 = vector.shape_cast %2 : vector<1x1x768xf32> to vector<1x768xf32>
    %4 = vector.broadcast %1 : vector<8x1xf32> to vector<8x768xf32>
    %5 = vector.broadcast %3 : vector<1x768xf32> to vector<8x768xf32>
    %6 = arith.mulf %4, %5 : vector<8x768xf32>
    %7 = vector.extract_strided_slice %0 {offsets = [0, 1], sizes = [8, 1], strides = [1, 1]} : vector<8x32xf32> to vector<8x1xf32>
    %c0_4 = arith.constant 0 : index
    %c1 = arith.constant 1 : index
    %c0_5 = arith.constant 0 : index
    %8 = vector.load %arg1[%c0_4, %c1, %c0_5] : memref<1x4x896xf32, #tpu.memory_space<vmem>>, vector<1x1x768xf32>
    %9 = vector.shape_cast %8 : vector<1x1x768xf32> to vector<1x768xf32>
    %10 = vector.broadcast %7 : vector<8x1xf32> to vector<8x768xf32>
    %11 = vector.broadcast %9 : vector<1x768xf32> to vector<8x768xf32>
    %12 = arith.mulf %10, %11 : vector<8x768xf32>
    %13 = arith.addf %6, %12 : vector<8x768xf32>
    %14 = vector.extract_strided_slice %0 {offsets = [0, 2], sizes = [8, 1], strides = [1, 1]} : vector<8x32xf32> to vector<8x1xf32>
    %c0_6 = arith.constant 0 : index
    %c0_7 = arith.constant 0 : index
    %c1_8 = arith.constant 1 : index
    %15 = vector.load %arg1[%c0_6, %c0_7, %c1_8] : memref<1x4x896xf32, #tpu.memory_space<vmem>>, vector<1x1x768xf32>
    %16 = vector.shape_cast %15 : vector<1x1x768xf32> to vector<1x768xf32>
    %17 = vector.broadcast %14 : vector<8x1xf32> to vector<8x768xf32>
    %18 = vector.broadcast %16 : vector<1x768xf32> to vector<8x768xf32>
    %19 = arith.mulf %17, %18 : vector<8x768xf32>
    %20 = arith.addf %13, %19 : vector<8x768xf32>
    %21 = vector.extract_strided_slice %0 {offsets = [0, 3], sizes = [8, 1], strides = [1, 1]} : vector<8x32xf32> to vector<8x1xf32>
    %c0_9 = arith.constant 0 : index
    %c1_10 = arith.constant 1 : index
    %c1_11 = arith.constant 1 : index
    %22 = vector.load %arg1[%c0_9, %c1_10, %c1_11] : memref<1x4x896xf32, #tpu.memory_space<vmem>>, vector<1x1x768xf32>
    %23 = vector.shape_cast %22 : vector<1x1x768xf32> to vector<1x768xf32>
    %24 = vector.broadcast %21 : vector<8x1xf32> to vector<8x768xf32>
    %25 = vector.broadcast %23 : vector<1x768xf32> to vector<8x768xf32>
    %26 = arith.mulf %24, %25 : vector<8x768xf32>
    %27 = arith.addf %20, %26 : vector<8x768xf32>
    %28 = vector.extract_strided_slice %0 {offsets = [0, 4], sizes = [8, 1], strides = [1, 1]} : vector<8x32xf32> to vector<8x1xf32>
    %c0_12 = arith.constant 0 : index
    %c0_13 = arith.constant 0 : index
    %c2 = arith.constant 2 : index
    %29 = vector.load %arg1[%c0_12, %c0_13, %c2] : memref<1x4x896xf32, #tpu.memory_space<vmem>>, vector<1x1x768xf32>
    %30 = vector.shape_cast %29 : vector<1x1x768xf32> to vector<1x768xf32>
    %31 = vector.broadcast %28 : vector<8x1xf32> to vector<8x768xf32>
    %32 = vector.broadcast %30 : vector<1x768xf32> to vector<8x768xf32>
    %33 = arith.mulf %31, %32 : vector<8x768xf32>
    %34 = arith.addf %27, %33 : vector<8x768xf32>
    %35 = vector.extract_strided_slice %0 {offsets = [0, 5], sizes = [8, 1], strides = [1, 1]} : vector<8x32xf32> to vector<8x1xf32>
    %c0_14 = arith.constant 0 : index
    %c2_15 = arith.constant 2 : index
    %c0_16 = arith.constant 0 : index
    %36 = vector.load %arg1[%c0_14, %c2_15, %c0_16] : memref<1x4x896xf32, #tpu.memory_space<vmem>>, vector<1x1x768xf32>
    %37 = vector.shape_cast %36 : vector<1x1x768xf32> to vector<1x768xf32>
    %38 = vector.broadcast %35 : vector<8x1xf32> to vector<8x768xf32>
    %39 = vector.broadcast %37 : vector<1x768xf32> to vector<8x768xf32>
    %40 = arith.mulf %38, %39 : vector<8x768xf32>
    %41 = arith.addf %34, %40 : vector<8x768xf32>
    %42 = vector.extract_strided_slice %0 {offsets = [0, 6], sizes = [8, 1], strides = [1, 1]} : vector<8x32xf32> to vector<8x1xf32>
    %c0_17 = arith.constant 0 : index
    %c3 = arith.constant 3 : index
    %c0_18 = arith.constant 0 : index
    %43 = vector.load %arg1[%c0_17, %c3, %c0_18] : memref<1x4x896xf32, #tpu.memory_space<vmem>>, vector<1x1x768xf32>
    %44 = vector.shape_cast %43 : vector<1x1x768xf32> to vector<1x768xf32>
    %45 = vector.broadcast %42 : vector<8x1xf32> to vector<8x768xf32>
    %46 = vector.broadcast %44 : vector<1x768xf32> to vector<8x768xf32>
    %47 = arith.mulf %45, %46 : vector<8x768xf32>
    %48 = arith.addf %41, %47 : vector<8x768xf32>
    %49 = vector.extract_strided_slice %0 {offsets = [0, 7], sizes = [8, 1], strides = [1, 1]} : vector<8x32xf32> to vector<8x1xf32>
    %c0_19 = arith.constant 0 : index
    %c2_20 = arith.constant 2 : index
    %c1_21 = arith.constant 1 : index
    %50 = vector.load %arg1[%c0_19, %c2_20, %c1_21] : memref<1x4x896xf32, #tpu.memory_space<vmem>>, vector<1x1x768xf32>
    %51 = vector.shape_cast %50 : vector<1x1x768xf32> to vector<1x768xf32>
    %52 = vector.broadcast %49 : vector<8x1xf32> to vector<8x768xf32>
    %53 = vector.broadcast %51 : vector<1x768xf32> to vector<8x768xf32>
    %54 = arith.mulf %52, %53 : vector<8x768xf32>
    %55 = arith.addf %48, %54 : vector<8x768xf32>
    %56 = vector.extract_strided_slice %0 {offsets = [0, 8], sizes = [8, 1], strides = [1, 1]} : vector<8x32xf32> to vector<8x1xf32>
    %c0_22 = arith.constant 0 : index
    %c3_23 = arith.constant 3 : index
    %c1_24 = arith.constant 1 : index
    %57 = vector.load %arg1[%c0_22, %c3_23, %c1_24] : memref<1x4x896xf32, #tpu.memory_space<vmem>>, vector<1x1x768xf32>
    %58 = vector.shape_cast %57 : vector<1x1x768xf32> to vector<1x768xf32>
    %59 = vector.broadcast %56 : vector<8x1xf32> to vector<8x768xf32>
    %60 = vector.broadcast %58 : vector<1x768xf32> to vector<8x768xf32>
    %61 = arith.mulf %59, %60 : vector<8x768xf32>
    %62 = arith.addf %55, %61 : vector<8x768xf32>
    %63 = vector.extract_strided_slice %0 {offsets = [0, 9], sizes = [8, 1], strides = [1, 1]} : vector<8x32xf32> to vector<8x1xf32>
    %c0_25 = arith.constant 0 : index
    %c2_26 = arith.constant 2 : index
    %c2_27 = arith.constant 2 : index
    %64 = vector.load %arg1[%c0_25, %c2_26, %c2_27] : memref<1x4x896xf32, #tpu.memory_space<vmem>>, vector<1x1x768xf32>
    %65 = vector.shape_cast %64 : vector<1x1x768xf32> to vector<1x768xf32>
    %66 = vector.broadcast %63 : vector<8x1xf32> to vector<8x768xf32>
    %67 = vector.broadcast %65 : vector<1x768xf32> to vector<8x768xf32>
    %68 = arith.mulf %66, %67 : vector<8x768xf32>
    %69 = arith.addf %62, %68 : vector<8x768xf32>
    %70 = vector.extract_strided_slice %0 {offsets = [0, 10], sizes = [8, 1], strides = [1, 1]} : vector<8x32xf32> to vector<8x1xf32>
    %c0_28 = arith.constant 0 : index
    %c0_29 = arith.constant 0 : index
    %c24 = arith.constant 24 : index
    %71 = vector.load %arg1[%c0_28, %c0_29, %c24] : memref<1x4x896xf32, #tpu.memory_space<vmem>>, vector<1x1x768xf32>
    %72 = vector.shape_cast %71 : vector<1x1x768xf32> to vector<1x768xf32>
    %73 = vector.broadcast %70 : vector<8x1xf32> to vector<8x768xf32>
    %74 = vector.broadcast %72 : vector<1x768xf32> to vector<8x768xf32>
    %75 = arith.mulf %73, %74 : vector<8x768xf32>
    %76 = arith.addf %69, %75 : vector<8x768xf32>
    %77 = vector.extract_strided_slice %0 {offsets = [0, 11], sizes = [8, 1], strides = [1, 1]} : vector<8x32xf32> to vector<8x1xf32>
    %c0_30 = arith.constant 0 : index
    %c1_31 = arith.constant 1 : index
    %c24_32 = arith.constant 24 : index
    %78 = vector.load %arg1[%c0_30, %c1_31, %c24_32] : memref<1x4x896xf32, #tpu.memory_space<vmem>>, vector<1x1x768xf32>
    %79 = vector.shape_cast %78 : vector<1x1x768xf32> to vector<1x768xf32>
    %80 = vector.broadcast %77 : vector<8x1xf32> to vector<8x768xf32>
    %81 = vector.broadcast %79 : vector<1x768xf32> to vector<8x768xf32>
    %82 = arith.mulf %80, %81 : vector<8x768xf32>
    %83 = arith.addf %76, %82 : vector<8x768xf32>
    %84 = vector.extract_strided_slice %0 {offsets = [0, 12], sizes = [8, 1], strides = [1, 1]} : vector<8x32xf32> to vector<8x1xf32>
    %c0_33 = arith.constant 0 : index
    %c0_34 = arith.constant 0 : index
    %c25 = arith.constant 25 : index
    %85 = vector.load %arg1[%c0_33, %c0_34, %c25] : memref<1x4x896xf32, #tpu.memory_space<vmem>>, vector<1x1x768xf32>
    %86 = vector.shape_cast %85 : vector<1x1x768xf32> to vector<1x768xf32>
    %87 = vector.broadcast %84 : vector<8x1xf32> to vector<8x768xf32>
    %88 = vector.broadcast %86 : vector<1x768xf32> to vector<8x768xf32>
    %89 = arith.mulf %87, %88 : vector<8x768xf32>
    %90 = arith.addf %83, %89 : vector<8x768xf32>
    %91 = vector.extract_strided_slice %0 {offsets = [0, 13], sizes = [8, 1], strides = [1, 1]} : vector<8x32xf32> to vector<8x1xf32>
    %c0_35 = arith.constant 0 : index
    %c1_36 = arith.constant 1 : index
    %c25_37 = arith.constant 25 : index
    %92 = vector.load %arg1[%c0_35, %c1_36, %c25_37] : memref<1x4x896xf32, #tpu.memory_space<vmem>>, vector<1x1x768xf32>
    %93 = vector.shape_cast %92 : vector<1x1x768xf32> to vector<1x768xf32>
    %94 = vector.broadcast %91 : vector<8x1xf32> to vector<8x768xf32>
    %95 = vector.broadcast %93 : vector<1x768xf32> to vector<8x768xf32>
    %96 = arith.mulf %94, %95 : vector<8x768xf32>
    %97 = arith.addf %90, %96 : vector<8x768xf32>
    %98 = vector.extract_strided_slice %0 {offsets = [0, 14], sizes = [8, 1], strides = [1, 1]} : vector<8x32xf32> to vector<8x1xf32>
    %c0_38 = arith.constant 0 : index
    %c0_39 = arith.constant 0 : index
    %c26 = arith.constant 26 : index
    %99 = vector.load %arg1[%c0_38, %c0_39, %c26] : memref<1x4x896xf32, #tpu.memory_space<vmem>>, vector<1x1x768xf32>
    %100 = vector.shape_cast %99 : vector<1x1x768xf32> to vector<1x768xf32>
    %101 = vector.broadcast %98 : vector<8x1xf32> to vector<8x768xf32>
    %102 = vector.broadcast %100 : vector<1x768xf32> to vector<8x768xf32>
    %103 = arith.mulf %101, %102 : vector<8x768xf32>
    %104 = arith.addf %97, %103 : vector<8x768xf32>
    %105 = vector.extract_strided_slice %0 {offsets = [0, 15], sizes = [8, 1], strides = [1, 1]} : vector<8x32xf32> to vector<8x1xf32>
    %c0_40 = arith.constant 0 : index
    %c2_41 = arith.constant 2 : index
    %c24_42 = arith.constant 24 : index
    %106 = vector.load %arg1[%c0_40, %c2_41, %c24_42] : memref<1x4x896xf32, #tpu.memory_space<vmem>>, vector<1x1x768xf32>
    %107 = vector.shape_cast %106 : vector<1x1x768xf32> to vector<1x768xf32>
    %108 = vector.broadcast %105 : vector<8x1xf32> to vector<8x768xf32>
    %109 = vector.broadcast %107 : vector<1x768xf32> to vector<8x768xf32>
    %110 = arith.mulf %108, %109 : vector<8x768xf32>
    %111 = arith.addf %104, %110 : vector<8x768xf32>
    %112 = vector.extract_strided_slice %0 {offsets = [0, 16], sizes = [8, 1], strides = [1, 1]} : vector<8x32xf32> to vector<8x1xf32>
    %c0_43 = arith.constant 0 : index
    %c3_44 = arith.constant 3 : index
    %c24_45 = arith.constant 24 : index
    %113 = vector.load %arg1[%c0_43, %c3_44, %c24_45] : memref<1x4x896xf32, #tpu.memory_space<vmem>>, vector<1x1x768xf32>
    %114 = vector.shape_cast %113 : vector<1x1x768xf32> to vector<1x768xf32>
    %115 = vector.broadcast %112 : vector<8x1xf32> to vector<8x768xf32>
    %116 = vector.broadcast %114 : vector<1x768xf32> to vector<8x768xf32>
    %117 = arith.mulf %115, %116 : vector<8x768xf32>
    %118 = arith.addf %111, %117 : vector<8x768xf32>
    %119 = vector.extract_strided_slice %0 {offsets = [0, 17], sizes = [8, 1], strides = [1, 1]} : vector<8x32xf32> to vector<8x1xf32>
    %c0_46 = arith.constant 0 : index
    %c2_47 = arith.constant 2 : index
    %c25_48 = arith.constant 25 : index
    %120 = vector.load %arg1[%c0_46, %c2_47, %c25_48] : memref<1x4x896xf32, #tpu.memory_space<vmem>>, vector<1x1x768xf32>
    %121 = vector.shape_cast %120 : vector<1x1x768xf32> to vector<1x768xf32>
    %122 = vector.broadcast %119 : vector<8x1xf32> to vector<8x768xf32>
    %123 = vector.broadcast %121 : vector<1x768xf32> to vector<8x768xf32>
    %124 = arith.mulf %122, %123 : vector<8x768xf32>
    %125 = arith.addf %118, %124 : vector<8x768xf32>
    %126 = vector.extract_strided_slice %0 {offsets = [0, 18], sizes = [8, 1], strides = [1, 1]} : vector<8x32xf32> to vector<8x1xf32>
    %c0_49 = arith.constant 0 : index
    %c3_50 = arith.constant 3 : index
    %c25_51 = arith.constant 25 : index
    %127 = vector.load %arg1[%c0_49, %c3_50, %c25_51] : memref<1x4x896xf32, #tpu.memory_space<vmem>>, vector<1x1x768xf32>
    %128 = vector.shape_cast %127 : vector<1x1x768xf32> to vector<1x768xf32>
    %129 = vector.broadcast %126 : vector<8x1xf32> to vector<8x768xf32>
    %130 = vector.broadcast %128 : vector<1x768xf32> to vector<8x768xf32>
    %131 = arith.mulf %129, %130 : vector<8x768xf32>
    %132 = arith.addf %125, %131 : vector<8x768xf32>
    %133 = vector.extract_strided_slice %0 {offsets = [0, 19], sizes = [8, 1], strides = [1, 1]} : vector<8x32xf32> to vector<8x1xf32>
    %c0_52 = arith.constant 0 : index
    %c2_53 = arith.constant 2 : index
    %c26_54 = arith.constant 26 : index
    %134 = vector.load %arg1[%c0_52, %c2_53, %c26_54] : memref<1x4x896xf32, #tpu.memory_space<vmem>>, vector<1x1x768xf32>
    %135 = vector.shape_cast %134 : vector<1x1x768xf32> to vector<1x768xf32>
    %136 = vector.broadcast %133 : vector<8x1xf32> to vector<8x768xf32>
    %137 = vector.broadcast %135 : vector<1x768xf32> to vector<8x768xf32>
    %138 = arith.mulf %136, %137 : vector<8x768xf32>
    %139 = arith.addf %132, %138 : vector<8x768xf32>
    %140 = vector.extract_strided_slice %0 {offsets = [0, 20], sizes = [8, 1], strides = [1, 1]} : vector<8x32xf32> to vector<8x1xf32>
    %c0_55 = arith.constant 0 : index
    %c0_56 = arith.constant 0 : index
    %c48 = arith.constant 48 : index
    %141 = vector.load %arg1[%c0_55, %c0_56, %c48] : memref<1x4x896xf32, #tpu.memory_space<vmem>>, vector<1x1x768xf32>
    %142 = vector.shape_cast %141 : vector<1x1x768xf32> to vector<1x768xf32>
    %143 = vector.broadcast %140 : vector<8x1xf32> to vector<8x768xf32>
    %144 = vector.broadcast %142 : vector<1x768xf32> to vector<8x768xf32>
    %145 = arith.mulf %143, %144 : vector<8x768xf32>
    %146 = arith.addf %139, %145 : vector<8x768xf32>
    %147 = vector.extract_strided_slice %0 {offsets = [0, 21], sizes = [8, 1], strides = [1, 1]} : vector<8x32xf32> to vector<8x1xf32>
    %c0_57 = arith.constant 0 : index
    %c1_58 = arith.constant 1 : index
    %c48_59 = arith.constant 48 : index
    %148 = vector.load %arg1[%c0_57, %c1_58, %c48_59] : memref<1x4x896xf32, #tpu.memory_space<vmem>>, vector<1x1x768xf32>
    %149 = vector.shape_cast %148 : vector<1x1x768xf32> to vector<1x768xf32>
    %150 = vector.broadcast %147 : vector<8x1xf32> to vector<8x768xf32>
    %151 = vector.broadcast %149 : vector<1x768xf32> to vector<8x768xf32>
    %152 = arith.mulf %150, %151 : vector<8x768xf32>
    %153 = arith.addf %146, %152 : vector<8x768xf32>
    %154 = vector.extract_strided_slice %0 {offsets = [0, 22], sizes = [8, 1], strides = [1, 1]} : vector<8x32xf32> to vector<8x1xf32>
    %c0_60 = arith.constant 0 : index
    %c0_61 = arith.constant 0 : index
    %c49 = arith.constant 49 : index
    %155 = vector.load %arg1[%c0_60, %c0_61, %c49] : memref<1x4x896xf32, #tpu.memory_space<vmem>>, vector<1x1x768xf32>
    %156 = vector.shape_cast %155 : vector<1x1x768xf32> to vector<1x768xf32>
    %157 = vector.broadcast %154 : vector<8x1xf32> to vector<8x768xf32>
    %158 = vector.broadcast %156 : vector<1x768xf32> to vector<8x768xf32>
    %159 = arith.mulf %157, %158 : vector<8x768xf32>
    %160 = arith.addf %153, %159 : vector<8x768xf32>
    %161 = vector.extract_strided_slice %0 {offsets = [0, 23], sizes = [8, 1], strides = [1, 1]} : vector<8x32xf32> to vector<8x1xf32>
    %c0_62 = arith.constant 0 : index
    %c1_63 = arith.constant 1 : index
    %c49_64 = arith.constant 49 : index
    %162 = vector.load %arg1[%c0_62, %c1_63, %c49_64] : memref<1x4x896xf32, #tpu.memory_space<vmem>>, vector<1x1x768xf32>
    %163 = vector.shape_cast %162 : vector<1x1x768xf32> to vector<1x768xf32>
    %164 = vector.broadcast %161 : vector<8x1xf32> to vector<8x768xf32>
    %165 = vector.broadcast %163 : vector<1x768xf32> to vector<8x768xf32>
    %166 = arith.mulf %164, %165 : vector<8x768xf32>
    %167 = arith.addf %160, %166 : vector<8x768xf32>
    %168 = vector.extract_strided_slice %0 {offsets = [0, 24], sizes = [8, 1], strides = [1, 1]} : vector<8x32xf32> to vector<8x1xf32>
    %c0_65 = arith.constant 0 : index
    %c0_66 = arith.constant 0 : index
    %c50 = arith.constant 50 : index
    %169 = vector.load %arg1[%c0_65, %c0_66, %c50] : memref<1x4x896xf32, #tpu.memory_space<vmem>>, vector<1x1x768xf32>
    %170 = vector.shape_cast %169 : vector<1x1x768xf32> to vector<1x768xf32>
    %171 = vector.broadcast %168 : vector<8x1xf32> to vector<8x768xf32>
    %172 = vector.broadcast %170 : vector<1x768xf32> to vector<8x768xf32>
    %173 = arith.mulf %171, %172 : vector<8x768xf32>
    %174 = arith.addf %167, %173 : vector<8x768xf32>
    %175 = vector.extract_strided_slice %0 {offsets = [0, 0], sizes = [8, 1], strides = [1, 1]} : vector<8x32xf32> to vector<8x1xf32>
    %176 = vector.broadcast %175 : vector<8x1xf32> to vector<8x768xf32>
    %177 = vector.broadcast %9 : vector<1x768xf32> to vector<8x768xf32>
    %178 = arith.mulf %176, %177 : vector<8x768xf32>
    %179 = vector.extract_strided_slice %0 {offsets = [0, 1], sizes = [8, 1], strides = [1, 1]} : vector<8x32xf32> to vector<8x1xf32>
    %180 = vector.broadcast %179 : vector<8x1xf32> to vector<8x768xf32>
    %181 = vector.broadcast %16 : vector<1x768xf32> to vector<8x768xf32>
    %182 = arith.mulf %180, %181 : vector<8x768xf32>
    %183 = arith.addf %178, %182 : vector<8x768xf32>
    %184 = vector.extract_strided_slice %0 {offsets = [0, 2], sizes = [8, 1], strides = [1, 1]} : vector<8x32xf32> to vector<8x1xf32>
    %185 = vector.broadcast %184 : vector<8x1xf32> to vector<8x768xf32>
    %186 = vector.broadcast %23 : vector<1x768xf32> to vector<8x768xf32>
    %187 = arith.mulf %185, %186 : vector<8x768xf32>
    %188 = arith.addf %183, %187 : vector<8x768xf32>
    %189 = vector.extract_strided_slice %0 {offsets = [0, 3], sizes = [8, 1], strides = [1, 1]} : vector<8x32xf32> to vector<8x1xf32>
    %190 = vector.broadcast %189 : vector<8x1xf32> to vector<8x768xf32>
    %191 = vector.broadcast %30 : vector<1x768xf32> to vector<8x768xf32>
    %192 = arith.mulf %190, %191 : vector<8x768xf32>
    %193 = arith.addf %188, %192 : vector<8x768xf32>
    %194 = vector.extract_strided_slice %0 {offsets = [0, 4], sizes = [8, 1], strides = [1, 1]} : vector<8x32xf32> to vector<8x1xf32>
    %c0_67 = arith.constant 0 : index
    %c1_68 = arith.constant 1 : index
    %c2_69 = arith.constant 2 : index
    %195 = vector.load %arg1[%c0_67, %c1_68, %c2_69] : memref<1x4x896xf32, #tpu.memory_space<vmem>>, vector<1x1x768xf32>
    %196 = vector.shape_cast %195 : vector<1x1x768xf32> to vector<1x768xf32>
    %197 = vector.broadcast %194 : vector<8x1xf32> to vector<8x768xf32>
    %198 = vector.broadcast %196 : vector<1x768xf32> to vector<8x768xf32>
    %199 = arith.mulf %197, %198 : vector<8x768xf32>
    %200 = arith.addf %193, %199 : vector<8x768xf32>
    %201 = vector.extract_strided_slice %0 {offsets = [0, 5], sizes = [8, 1], strides = [1, 1]} : vector<8x32xf32> to vector<8x1xf32>
    %202 = vector.broadcast %201 : vector<8x1xf32> to vector<8x768xf32>
    %203 = vector.broadcast %44 : vector<1x768xf32> to vector<8x768xf32>
    %204 = arith.mulf %202, %203 : vector<8x768xf32>
    %205 = arith.addf %200, %204 : vector<8x768xf32>
    %206 = vector.extract_strided_slice %0 {offsets = [0, 6], sizes = [8, 1], strides = [1, 1]} : vector<8x32xf32> to vector<8x1xf32>
    %207 = vector.broadcast %206 : vector<8x1xf32> to vector<8x768xf32>
    %208 = vector.broadcast %51 : vector<1x768xf32> to vector<8x768xf32>
    %209 = arith.mulf %207, %208 : vector<8x768xf32>
    %210 = arith.addf %205, %209 : vector<8x768xf32>
    %211 = vector.extract_strided_slice %0 {offsets = [0, 7], sizes = [8, 1], strides = [1, 1]} : vector<8x32xf32> to vector<8x1xf32>
    %212 = vector.broadcast %211 : vector<8x1xf32> to vector<8x768xf32>
    %213 = vector.broadcast %58 : vector<1x768xf32> to vector<8x768xf32>
    %214 = arith.mulf %212, %213 : vector<8x768xf32>
    %215 = arith.addf %210, %214 : vector<8x768xf32>
    %216 = vector.extract_strided_slice %0 {offsets = [0, 8], sizes = [8, 1], strides = [1, 1]} : vector<8x32xf32> to vector<8x1xf32>
    %217 = vector.broadcast %216 : vector<8x1xf32> to vector<8x768xf32>
    %218 = vector.broadcast %65 : vector<1x768xf32> to vector<8x768xf32>
    %219 = arith.mulf %217, %218 : vector<8x768xf32>
    %220 = arith.addf %215, %219 : vector<8x768xf32>
    %221 = vector.extract_strided_slice %0 {offsets = [0, 9], sizes = [8, 1], strides = [1, 1]} : vector<8x32xf32> to vector<8x1xf32>
    %c0_70 = arith.constant 0 : index
    %c3_71 = arith.constant 3 : index
    %c2_72 = arith.constant 2 : index
    %222 = vector.load %arg1[%c0_70, %c3_71, %c2_72] : memref<1x4x896xf32, #tpu.memory_space<vmem>>, vector<1x1x768xf32>
    %223 = vector.shape_cast %222 : vector<1x1x768xf32> to vector<1x768xf32>
    %224 = vector.broadcast %221 : vector<8x1xf32> to vector<8x768xf32>
    %225 = vector.broadcast %223 : vector<1x768xf32> to vector<8x768xf32>
    %226 = arith.mulf %224, %225 : vector<8x768xf32>
    %227 = arith.addf %220, %226 : vector<8x768xf32>
    %228 = vector.extract_strided_slice %0 {offsets = [0, 10], sizes = [8, 1], strides = [1, 1]} : vector<8x32xf32> to vector<8x1xf32>
    %229 = vector.broadcast %228 : vector<8x1xf32> to vector<8x768xf32>
    %230 = vector.broadcast %79 : vector<1x768xf32> to vector<8x768xf32>
    %231 = arith.mulf %229, %230 : vector<8x768xf32>
    %232 = arith.addf %227, %231 : vector<8x768xf32>
    %233 = vector.extract_strided_slice %0 {offsets = [0, 11], sizes = [8, 1], strides = [1, 1]} : vector<8x32xf32> to vector<8x1xf32>
    %234 = vector.broadcast %233 : vector<8x1xf32> to vector<8x768xf32>
    %235 = vector.broadcast %86 : vector<1x768xf32> to vector<8x768xf32>
    %236 = arith.mulf %234, %235 : vector<8x768xf32>
    %237 = arith.addf %232, %236 : vector<8x768xf32>
    %238 = vector.extract_strided_slice %0 {offsets = [0, 12], sizes = [8, 1], strides = [1, 1]} : vector<8x32xf32> to vector<8x1xf32>
    %239 = vector.broadcast %238 : vector<8x1xf32> to vector<8x768xf32>
    %240 = vector.broadcast %93 : vector<1x768xf32> to vector<8x768xf32>
    %241 = arith.mulf %239, %240 : vector<8x768xf32>
    %242 = arith.addf %237, %241 : vector<8x768xf32>
    %243 = vector.extract_strided_slice %0 {offsets = [0, 13], sizes = [8, 1], strides = [1, 1]} : vector<8x32xf32> to vector<8x1xf32>
    %244 = vector.broadcast %243 : vector<8x1xf32> to vector<8x768xf32>
    %245 = vector.broadcast %100 : vector<1x768xf32> to vector<8x768xf32>
    %246 = arith.mulf %244, %245 : vector<8x768xf32>
    %247 = arith.addf %242, %246 : vector<8x768xf32>
    %248 = vector.extract_strided_slice %0 {offsets = [0, 14], sizes = [8, 1], strides = [1, 1]} : vector<8x32xf32> to vector<8x1xf32>
    %c0_73 = arith.constant 0 : index
    %c1_74 = arith.constant 1 : index
    %c26_75 = arith.constant 26 : index
    %249 = vector.load %arg1[%c0_73, %c1_74, %c26_75] : memref<1x4x896xf32, #tpu.memory_space<vmem>>, vector<1x1x768xf32>
    %250 = vector.shape_cast %249 : vector<1x1x768xf32> to vector<1x768xf32>
    %251 = vector.broadcast %248 : vector<8x1xf32> to vector<8x768xf32>
    %252 = vector.broadcast %250 : vector<1x768xf32> to vector<8x768xf32>
    %253 = arith.mulf %251, %252 : vector<8x768xf32>
    %254 = arith.addf %247, %253 : vector<8x768xf32>
    %255 = vector.extract_strided_slice %0 {offsets = [0, 15], sizes = [8, 1], strides = [1, 1]} : vector<8x32xf32> to vector<8x1xf32>
    %256 = vector.broadcast %255 : vector<8x1xf32> to vector<8x768xf32>
    %257 = vector.broadcast %114 : vector<1x768xf32> to vector<8x768xf32>
    %258 = arith.mulf %256, %257 : vector<8x768xf32>
    %259 = arith.addf %254, %258 : vector<8x768xf32>
    %260 = vector.extract_strided_slice %0 {offsets = [0, 16], sizes = [8, 1], strides = [1, 1]} : vector<8x32xf32> to vector<8x1xf32>
    %261 = vector.broadcast %260 : vector<8x1xf32> to vector<8x768xf32>
    %262 = vector.broadcast %121 : vector<1x768xf32> to vector<8x768xf32>
    %263 = arith.mulf %261, %262 : vector<8x768xf32>
    %264 = arith.addf %259, %263 : vector<8x768xf32>
    %265 = vector.extract_strided_slice %0 {offsets = [0, 17], sizes = [8, 1], strides = [1, 1]} : vector<8x32xf32> to vector<8x1xf32>
    %266 = vector.broadcast %265 : vector<8x1xf32> to vector<8x768xf32>
    %267 = vector.broadcast %128 : vector<1x768xf32> to vector<8x768xf32>
    %268 = arith.mulf %266, %267 : vector<8x768xf32>
    %269 = arith.addf %264, %268 : vector<8x768xf32>
    %270 = vector.extract_strided_slice %0 {offsets = [0, 18], sizes = [8, 1], strides = [1, 1]} : vector<8x32xf32> to vector<8x1xf32>
    %271 = vector.broadcast %270 : vector<8x1xf32> to vector<8x768xf32>
    %272 = vector.broadcast %135 : vector<1x768xf32> to vector<8x768xf32>
    %273 = arith.mulf %271, %272 : vector<8x768xf32>
    %274 = arith.addf %269, %273 : vector<8x768xf32>
    %275 = vector.extract_strided_slice %0 {offsets = [0, 19], sizes = [8, 1], strides = [1, 1]} : vector<8x32xf32> to vector<8x1xf32>
    %c0_76 = arith.constant 0 : index
    %c3_77 = arith.constant 3 : index
    %c26_78 = arith.constant 26 : index
    %276 = vector.load %arg1[%c0_76, %c3_77, %c26_78] : memref<1x4x896xf32, #tpu.memory_space<vmem>>, vector<1x1x768xf32>
    %277 = vector.shape_cast %276 : vector<1x1x768xf32> to vector<1x768xf32>
    %278 = vector.broadcast %275 : vector<8x1xf32> to vector<8x768xf32>
    %279 = vector.broadcast %277 : vector<1x768xf32> to vector<8x768xf32>
    %280 = arith.mulf %278, %279 : vector<8x768xf32>
    %281 = arith.addf %274, %280 : vector<8x768xf32>
    %282 = vector.extract_strided_slice %0 {offsets = [0, 20], sizes = [8, 1], strides = [1, 1]} : vector<8x32xf32> to vector<8x1xf32>
    %283 = vector.broadcast %282 : vector<8x1xf32> to vector<8x768xf32>
    %284 = vector.broadcast %149 : vector<1x768xf32> to vector<8x768xf32>
    %285 = arith.mulf %283, %284 : vector<8x768xf32>
    %286 = arith.addf %281, %285 : vector<8x768xf32>
    %287 = vector.extract_strided_slice %0 {offsets = [0, 21], sizes = [8, 1], strides = [1, 1]} : vector<8x32xf32> to vector<8x1xf32>
    %288 = vector.broadcast %287 : vector<8x1xf32> to vector<8x768xf32>
    %289 = vector.broadcast %156 : vector<1x768xf32> to vector<8x768xf32>
    %290 = arith.mulf %288, %289 : vector<8x768xf32>
    %291 = arith.addf %286, %290 : vector<8x768xf32>
    %292 = vector.extract_strided_slice %0 {offsets = [0, 22], sizes = [8, 1], strides = [1, 1]} : vector<8x32xf32> to vector<8x1xf32>
    %293 = vector.broadcast %292 : vector<8x1xf32> to vector<8x768xf32>
    %294 = vector.broadcast %163 : vector<1x768xf32> to vector<8x768xf32>
    %295 = arith.mulf %293, %294 : vector<8x768xf32>
    %296 = arith.addf %291, %295 : vector<8x768xf32>
    %297 = vector.extract_strided_slice %0 {offsets = [0, 23], sizes = [8, 1], strides = [1, 1]} : vector<8x32xf32> to vector<8x1xf32>
    %298 = vector.broadcast %297 : vector<8x1xf32> to vector<8x768xf32>
    %299 = vector.broadcast %170 : vector<1x768xf32> to vector<8x768xf32>
    %300 = arith.mulf %298, %299 : vector<8x768xf32>
    %301 = arith.addf %296, %300 : vector<8x768xf32>
    %302 = vector.extract_strided_slice %0 {offsets = [0, 24], sizes = [8, 1], strides = [1, 1]} : vector<8x32xf32> to vector<8x1xf32>
    %c0_79 = arith.constant 0 : index
    %c1_80 = arith.constant 1 : index
    %c50_81 = arith.constant 50 : index
    %303 = vector.load %arg1[%c0_79, %c1_80, %c50_81] : memref<1x4x896xf32, #tpu.memory_space<vmem>>, vector<1x1x768xf32>
    %304 = vector.shape_cast %303 : vector<1x1x768xf32> to vector<1x768xf32>
    %305 = vector.broadcast %302 : vector<8x1xf32> to vector<8x768xf32>
    %306 = vector.broadcast %304 : vector<1x768xf32> to vector<8x768xf32>
    %307 = arith.mulf %305, %306 : vector<8x768xf32>
    %308 = arith.addf %301, %307 : vector<8x768xf32>
    %309 = arith.maximumf %174, %308 : vector<8x768xf32>
    %310 = vector.extract_strided_slice %0 {offsets = [0, 0], sizes = [8, 1], strides = [1, 1]} : vector<8x32xf32> to vector<8x1xf32>
    %311 = vector.broadcast %310 : vector<8x1xf32> to vector<8x768xf32>
    %312 = vector.broadcast %37 : vector<1x768xf32> to vector<8x768xf32>
    %313 = arith.mulf %311, %312 : vector<8x768xf32>
    %314 = vector.extract_strided_slice %0 {offsets = [0, 1], sizes = [8, 1], strides = [1, 1]} : vector<8x32xf32> to vector<8x1xf32>
    %315 = vector.broadcast %314 : vector<8x1xf32> to vector<8x768xf32>
    %316 = vector.broadcast %44 : vector<1x768xf32> to vector<8x768xf32>
    %317 = arith.mulf %315, %316 : vector<8x768xf32>
    %318 = arith.addf %313, %317 : vector<8x768xf32>
    %319 = vector.extract_strided_slice %0 {offsets = [0, 2], sizes = [8, 1], strides = [1, 1]} : vector<8x32xf32> to vector<8x1xf32>
    %320 = vector.broadcast %319 : vector<8x1xf32> to vector<8x768xf32>
    %321 = vector.broadcast %51 : vector<1x768xf32> to vector<8x768xf32>
    %322 = arith.mulf %320, %321 : vector<8x768xf32>
    %323 = arith.addf %318, %322 : vector<8x768xf32>
    %324 = vector.extract_strided_slice %0 {offsets = [0, 3], sizes = [8, 1], strides = [1, 1]} : vector<8x32xf32> to vector<8x1xf32>
    %325 = vector.broadcast %324 : vector<8x1xf32> to vector<8x768xf32>
    %326 = vector.broadcast %58 : vector<1x768xf32> to vector<8x768xf32>
    %327 = arith.mulf %325, %326 : vector<8x768xf32>
    %328 = arith.addf %323, %327 : vector<8x768xf32>
    %329 = vector.extract_strided_slice %0 {offsets = [0, 4], sizes = [8, 1], strides = [1, 1]} : vector<8x32xf32> to vector<8x1xf32>
    %330 = vector.broadcast %329 : vector<8x1xf32> to vector<8x768xf32>
    %331 = vector.broadcast %65 : vector<1x768xf32> to vector<8x768xf32>
    %332 = arith.mulf %330, %331 : vector<8x768xf32>
    %333 = arith.addf %328, %332 : vector<8x768xf32>
    %334 = vector.extract_strided_slice %0 {offsets = [0, 5], sizes = [8, 1], strides = [1, 1]} : vector<8x32xf32> to vector<8x1xf32>
    %335 = vector.broadcast %334 : vector<8x1xf32> to vector<8x768xf32>
    %336 = vector.broadcast %72 : vector<1x768xf32> to vector<8x768xf32>
    %337 = arith.mulf %335, %336 : vector<8x768xf32>
    %338 = arith.addf %333, %337 : vector<8x768xf32>
    %339 = vector.extract_strided_slice %0 {offsets = [0, 6], sizes = [8, 1], strides = [1, 1]} : vector<8x32xf32> to vector<8x1xf32>
    %340 = vector.broadcast %339 : vector<8x1xf32> to vector<8x768xf32>
    %341 = vector.broadcast %79 : vector<1x768xf32> to vector<8x768xf32>
    %342 = arith.mulf %340, %341 : vector<8x768xf32>
    %343 = arith.addf %338, %342 : vector<8x768xf32>
    %344 = vector.extract_strided_slice %0 {offsets = [0, 7], sizes = [8, 1], strides = [1, 1]} : vector<8x32xf32> to vector<8x1xf32>
    %345 = vector.broadcast %344 : vector<8x1xf32> to vector<8x768xf32>
    %346 = vector.broadcast %86 : vector<1x768xf32> to vector<8x768xf32>
    %347 = arith.mulf %345, %346 : vector<8x768xf32>
    %348 = arith.addf %343, %347 : vector<8x768xf32>
    %349 = vector.extract_strided_slice %0 {offsets = [0, 8], sizes = [8, 1], strides = [1, 1]} : vector<8x32xf32> to vector<8x1xf32>
    %350 = vector.broadcast %349 : vector<8x1xf32> to vector<8x768xf32>
    %351 = vector.broadcast %93 : vector<1x768xf32> to vector<8x768xf32>
    %352 = arith.mulf %350, %351 : vector<8x768xf32>
    %353 = arith.addf %348, %352 : vector<8x768xf32>
    %354 = vector.extract_strided_slice %0 {offsets = [0, 9], sizes = [8, 1], strides = [1, 1]} : vector<8x32xf32> to vector<8x1xf32>
    %355 = vector.broadcast %354 : vector<8x1xf32> to vector<8x768xf32>
    %356 = vector.broadcast %100 : vector<1x768xf32> to vector<8x768xf32>
    %357 = arith.mulf %355, %356 : vector<8x768xf32>
    %358 = arith.addf %353, %357 : vector<8x768xf32>
    %359 = vector.extract_strided_slice %0 {offsets = [0, 10], sizes = [8, 1], strides = [1, 1]} : vector<8x32xf32> to vector<8x1xf32>
    %360 = vector.broadcast %359 : vector<8x1xf32> to vector<8x768xf32>
    %361 = vector.broadcast %107 : vector<1x768xf32> to vector<8x768xf32>
    %362 = arith.mulf %360, %361 : vector<8x768xf32>
    %363 = arith.addf %358, %362 : vector<8x768xf32>
    %364 = vector.extract_strided_slice %0 {offsets = [0, 11], sizes = [8, 1], strides = [1, 1]} : vector<8x32xf32> to vector<8x1xf32>
    %365 = vector.broadcast %364 : vector<8x1xf32> to vector<8x768xf32>
    %366 = vector.broadcast %114 : vector<1x768xf32> to vector<8x768xf32>
    %367 = arith.mulf %365, %366 : vector<8x768xf32>
    %368 = arith.addf %363, %367 : vector<8x768xf32>
    %369 = vector.extract_strided_slice %0 {offsets = [0, 12], sizes = [8, 1], strides = [1, 1]} : vector<8x32xf32> to vector<8x1xf32>
    %370 = vector.broadcast %369 : vector<8x1xf32> to vector<8x768xf32>
    %371 = vector.broadcast %121 : vector<1x768xf32> to vector<8x768xf32>
    %372 = arith.mulf %370, %371 : vector<8x768xf32>
    %373 = arith.addf %368, %372 : vector<8x768xf32>
    %374 = vector.extract_strided_slice %0 {offsets = [0, 13], sizes = [8, 1], strides = [1, 1]} : vector<8x32xf32> to vector<8x1xf32>
    %375 = vector.broadcast %374 : vector<8x1xf32> to vector<8x768xf32>
    %376 = vector.broadcast %128 : vector<1x768xf32> to vector<8x768xf32>
    %377 = arith.mulf %375, %376 : vector<8x768xf32>
    %378 = arith.addf %373, %377 : vector<8x768xf32>
    %379 = vector.extract_strided_slice %0 {offsets = [0, 14], sizes = [8, 1], strides = [1, 1]} : vector<8x32xf32> to vector<8x1xf32>
    %380 = vector.broadcast %379 : vector<8x1xf32> to vector<8x768xf32>
    %381 = vector.broadcast %135 : vector<1x768xf32> to vector<8x768xf32>
    %382 = arith.mulf %380, %381 : vector<8x768xf32>
    %383 = arith.addf %378, %382 : vector<8x768xf32>
    %384 = vector.extract_strided_slice %0 {offsets = [0, 15], sizes = [8, 1], strides = [1, 1]} : vector<8x32xf32> to vector<8x1xf32>
    %385 = vector.broadcast %384 : vector<8x1xf32> to vector<8x768xf32>
    %386 = vector.broadcast %142 : vector<1x768xf32> to vector<8x768xf32>
    %387 = arith.mulf %385, %386 : vector<8x768xf32>
    %388 = arith.addf %383, %387 : vector<8x768xf32>
    %389 = vector.extract_strided_slice %0 {offsets = [0, 16], sizes = [8, 1], strides = [1, 1]} : vector<8x32xf32> to vector<8x1xf32>
    %390 = vector.broadcast %389 : vector<8x1xf32> to vector<8x768xf32>
    %391 = vector.broadcast %149 : vector<1x768xf32> to vector<8x768xf32>
    %392 = arith.mulf %390, %391 : vector<8x768xf32>
    %393 = arith.addf %388, %392 : vector<8x768xf32>
    %394 = vector.extract_strided_slice %0 {offsets = [0, 17], sizes = [8, 1], strides = [1, 1]} : vector<8x32xf32> to vector<8x1xf32>
    %395 = vector.broadcast %394 : vector<8x1xf32> to vector<8x768xf32>
    %396 = vector.broadcast %156 : vector<1x768xf32> to vector<8x768xf32>
    %397 = arith.mulf %395, %396 : vector<8x768xf32>
    %398 = arith.addf %393, %397 : vector<8x768xf32>
    %399 = vector.extract_strided_slice %0 {offsets = [0, 18], sizes = [8, 1], strides = [1, 1]} : vector<8x32xf32> to vector<8x1xf32>
    %400 = vector.broadcast %399 : vector<8x1xf32> to vector<8x768xf32>
    %401 = vector.broadcast %163 : vector<1x768xf32> to vector<8x768xf32>
    %402 = arith.mulf %400, %401 : vector<8x768xf32>
    %403 = arith.addf %398, %402 : vector<8x768xf32>
    %404 = vector.extract_strided_slice %0 {offsets = [0, 19], sizes = [8, 1], strides = [1, 1]} : vector<8x32xf32> to vector<8x1xf32>
    %405 = vector.broadcast %404 : vector<8x1xf32> to vector<8x768xf32>
    %406 = vector.broadcast %170 : vector<1x768xf32> to vector<8x768xf32>
    %407 = arith.mulf %405, %406 : vector<8x768xf32>
    %408 = arith.addf %403, %407 : vector<8x768xf32>
    %409 = vector.extract_strided_slice %0 {offsets = [0, 20], sizes = [8, 1], strides = [1, 1]} : vector<8x32xf32> to vector<8x1xf32>
    %c0_82 = arith.constant 0 : index
    %c2_83 = arith.constant 2 : index
    %c48_84 = arith.constant 48 : index
    %410 = vector.load %arg1[%c0_82, %c2_83, %c48_84] : memref<1x4x896xf32, #tpu.memory_space<vmem>>, vector<1x1x768xf32>
    %411 = vector.shape_cast %410 : vector<1x1x768xf32> to vector<1x768xf32>
    %412 = vector.broadcast %409 : vector<8x1xf32> to vector<8x768xf32>
    %413 = vector.broadcast %411 : vector<1x768xf32> to vector<8x768xf32>
    %414 = arith.mulf %412, %413 : vector<8x768xf32>
    %415 = arith.addf %408, %414 : vector<8x768xf32>
    %416 = vector.extract_strided_slice %0 {offsets = [0, 21], sizes = [8, 1], strides = [1, 1]} : vector<8x32xf32> to vector<8x1xf32>
    %c0_85 = arith.constant 0 : index
    %c3_86 = arith.constant 3 : index
    %c48_87 = arith.constant 48 : index
    %417 = vector.load %arg1[%c0_85, %c3_86, %c48_87] : memref<1x4x896xf32, #tpu.memory_space<vmem>>, vector<1x1x768xf32>
    %418 = vector.shape_cast %417 : vector<1x1x768xf32> to vector<1x768xf32>
    %419 = vector.broadcast %416 : vector<8x1xf32> to vector<8x768xf32>
    %420 = vector.broadcast %418 : vector<1x768xf32> to vector<8x768xf32>
    %421 = arith.mulf %419, %420 : vector<8x768xf32>
    %422 = arith.addf %415, %421 : vector<8x768xf32>
    %423 = vector.extract_strided_slice %0 {offsets = [0, 22], sizes = [8, 1], strides = [1, 1]} : vector<8x32xf32> to vector<8x1xf32>
    %c0_88 = arith.constant 0 : index
    %c2_89 = arith.constant 2 : index
    %c49_90 = arith.constant 49 : index
    %424 = vector.load %arg1[%c0_88, %c2_89, %c49_90] : memref<1x4x896xf32, #tpu.memory_space<vmem>>, vector<1x1x768xf32>
    %425 = vector.shape_cast %424 : vector<1x1x768xf32> to vector<1x768xf32>
    %426 = vector.broadcast %423 : vector<8x1xf32> to vector<8x768xf32>
    %427 = vector.broadcast %425 : vector<1x768xf32> to vector<8x768xf32>
    %428 = arith.mulf %426, %427 : vector<8x768xf32>
    %429 = arith.addf %422, %428 : vector<8x768xf32>
    %430 = vector.extract_strided_slice %0 {offsets = [0, 23], sizes = [8, 1], strides = [1, 1]} : vector<8x32xf32> to vector<8x1xf32>
    %c0_91 = arith.constant 0 : index
    %c3_92 = arith.constant 3 : index
    %c49_93 = arith.constant 49 : index
    %431 = vector.load %arg1[%c0_91, %c3_92, %c49_93] : memref<1x4x896xf32, #tpu.memory_space<vmem>>, vector<1x1x768xf32>
    %432 = vector.shape_cast %431 : vector<1x1x768xf32> to vector<1x768xf32>
    %433 = vector.broadcast %430 : vector<8x1xf32> to vector<8x768xf32>
    %434 = vector.broadcast %432 : vector<1x768xf32> to vector<8x768xf32>
    %435 = arith.mulf %433, %434 : vector<8x768xf32>
    %436 = arith.addf %429, %435 : vector<8x768xf32>
    %437 = vector.extract_strided_slice %0 {offsets = [0, 24], sizes = [8, 1], strides = [1, 1]} : vector<8x32xf32> to vector<8x1xf32>
    %c0_94 = arith.constant 0 : index
    %c2_95 = arith.constant 2 : index
    %c50_96 = arith.constant 50 : index
    %438 = vector.load %arg1[%c0_94, %c2_95, %c50_96] : memref<1x4x896xf32, #tpu.memory_space<vmem>>, vector<1x1x768xf32>
    %439 = vector.shape_cast %438 : vector<1x1x768xf32> to vector<1x768xf32>
    %440 = vector.broadcast %437 : vector<8x1xf32> to vector<8x768xf32>
    %441 = vector.broadcast %439 : vector<1x768xf32> to vector<8x768xf32>
    %442 = arith.mulf %440, %441 : vector<8x768xf32>
    %443 = arith.addf %436, %442 : vector<8x768xf32>
    %444 = arith.maximumf %309, %443 : vector<8x768xf32>
    %445 = vector.extract_strided_slice %0 {offsets = [0, 0], sizes = [8, 1], strides = [1, 1]} : vector<8x32xf32> to vector<8x1xf32>
    %446 = vector.broadcast %445 : vector<8x1xf32> to vector<8x768xf32>
    %447 = vector.broadcast %44 : vector<1x768xf32> to vector<8x768xf32>
    %448 = arith.mulf %446, %447 : vector<8x768xf32>
    %449 = vector.extract_strided_slice %0 {offsets = [0, 1], sizes = [8, 1], strides = [1, 1]} : vector<8x32xf32> to vector<8x1xf32>
    %450 = vector.broadcast %449 : vector<8x1xf32> to vector<8x768xf32>
    %451 = vector.broadcast %51 : vector<1x768xf32> to vector<8x768xf32>
    %452 = arith.mulf %450, %451 : vector<8x768xf32>
    %453 = arith.addf %448, %452 : vector<8x768xf32>
    %454 = vector.extract_strided_slice %0 {offsets = [0, 2], sizes = [8, 1], strides = [1, 1]} : vector<8x32xf32> to vector<8x1xf32>
    %455 = vector.broadcast %454 : vector<8x1xf32> to vector<8x768xf32>
    %456 = vector.broadcast %58 : vector<1x768xf32> to vector<8x768xf32>
    %457 = arith.mulf %455, %456 : vector<8x768xf32>
    %458 = arith.addf %453, %457 : vector<8x768xf32>
    %459 = vector.extract_strided_slice %0 {offsets = [0, 3], sizes = [8, 1], strides = [1, 1]} : vector<8x32xf32> to vector<8x1xf32>
    %460 = vector.broadcast %459 : vector<8x1xf32> to vector<8x768xf32>
    %461 = vector.broadcast %65 : vector<1x768xf32> to vector<8x768xf32>
    %462 = arith.mulf %460, %461 : vector<8x768xf32>
    %463 = arith.addf %458, %462 : vector<8x768xf32>
    %464 = vector.extract_strided_slice %0 {offsets = [0, 4], sizes = [8, 1], strides = [1, 1]} : vector<8x32xf32> to vector<8x1xf32>
    %465 = vector.broadcast %464 : vector<8x1xf32> to vector<8x768xf32>
    %466 = vector.broadcast %223 : vector<1x768xf32> to vector<8x768xf32>
    %467 = arith.mulf %465, %466 : vector<8x768xf32>
    %468 = arith.addf %463, %467 : vector<8x768xf32>
    %469 = vector.extract_strided_slice %0 {offsets = [0, 5], sizes = [8, 1], strides = [1, 1]} : vector<8x32xf32> to vector<8x1xf32>
    %470 = vector.broadcast %469 : vector<8x1xf32> to vector<8x768xf32>
    %471 = vector.broadcast %79 : vector<1x768xf32> to vector<8x768xf32>
    %472 = arith.mulf %470, %471 : vector<8x768xf32>
    %473 = arith.addf %468, %472 : vector<8x768xf32>
    %474 = vector.extract_strided_slice %0 {offsets = [0, 6], sizes = [8, 1], strides = [1, 1]} : vector<8x32xf32> to vector<8x1xf32>
    %475 = vector.broadcast %474 : vector<8x1xf32> to vector<8x768xf32>
    %476 = vector.broadcast %86 : vector<1x768xf32> to vector<8x768xf32>
    %477 = arith.mulf %475, %476 : vector<8x768xf32>
    %478 = arith.addf %473, %477 : vector<8x768xf32>
    %479 = vector.extract_strided_slice %0 {offsets = [0, 7], sizes = [8, 1], strides = [1, 1]} : vector<8x32xf32> to vector<8x1xf32>
    %480 = vector.broadcast %479 : vector<8x1xf32> to vector<8x768xf32>
    %481 = vector.broadcast %93 : vector<1x768xf32> to vector<8x768xf32>
    %482 = arith.mulf %480, %481 : vector<8x768xf32>
    %483 = arith.addf %478, %482 : vector<8x768xf32>
    %484 = vector.extract_strided_slice %0 {offsets = [0, 8], sizes = [8, 1], strides = [1, 1]} : vector<8x32xf32> to vector<8x1xf32>
    %485 = vector.broadcast %484 : vector<8x1xf32> to vector<8x768xf32>
    %486 = vector.broadcast %100 : vector<1x768xf32> to vector<8x768xf32>
    %487 = arith.mulf %485, %486 : vector<8x768xf32>
    %488 = arith.addf %483, %487 : vector<8x768xf32>
    %489 = vector.extract_strided_slice %0 {offsets = [0, 9], sizes = [8, 1], strides = [1, 1]} : vector<8x32xf32> to vector<8x1xf32>
    %490 = vector.broadcast %489 : vector<8x1xf32> to vector<8x768xf32>
    %491 = vector.broadcast %250 : vector<1x768xf32> to vector<8x768xf32>
    %492 = arith.mulf %490, %491 : vector<8x768xf32>
    %493 = arith.addf %488, %492 : vector<8x768xf32>
    %494 = vector.extract_strided_slice %0 {offsets = [0, 10], sizes = [8, 1], strides = [1, 1]} : vector<8x32xf32> to vector<8x1xf32>
    %495 = vector.broadcast %494 : vector<8x1xf32> to vector<8x768xf32>
    %496 = vector.broadcast %114 : vector<1x768xf32> to vector<8x768xf32>
    %497 = arith.mulf %495, %496 : vector<8x768xf32>
    %498 = arith.addf %493, %497 : vector<8x768xf32>
    %499 = vector.extract_strided_slice %0 {offsets = [0, 11], sizes = [8, 1], strides = [1, 1]} : vector<8x32xf32> to vector<8x1xf32>
    %500 = vector.broadcast %499 : vector<8x1xf32> to vector<8x768xf32>
    %501 = vector.broadcast %121 : vector<1x768xf32> to vector<8x768xf32>
    %502 = arith.mulf %500, %501 : vector<8x768xf32>
    %503 = arith.addf %498, %502 : vector<8x768xf32>
    %504 = vector.extract_strided_slice %0 {offsets = [0, 12], sizes = [8, 1], strides = [1, 1]} : vector<8x32xf32> to vector<8x1xf32>
    %505 = vector.broadcast %504 : vector<8x1xf32> to vector<8x768xf32>
    %506 = vector.broadcast %128 : vector<1x768xf32> to vector<8x768xf32>
    %507 = arith.mulf %505, %506 : vector<8x768xf32>
    %508 = arith.addf %503, %507 : vector<8x768xf32>
    %509 = vector.extract_strided_slice %0 {offsets = [0, 13], sizes = [8, 1], strides = [1, 1]} : vector<8x32xf32> to vector<8x1xf32>
    %510 = vector.broadcast %509 : vector<8x1xf32> to vector<8x768xf32>
    %511 = vector.broadcast %135 : vector<1x768xf32> to vector<8x768xf32>
    %512 = arith.mulf %510, %511 : vector<8x768xf32>
    %513 = arith.addf %508, %512 : vector<8x768xf32>
    %514 = vector.extract_strided_slice %0 {offsets = [0, 14], sizes = [8, 1], strides = [1, 1]} : vector<8x32xf32> to vector<8x1xf32>
    %515 = vector.broadcast %514 : vector<8x1xf32> to vector<8x768xf32>
    %516 = vector.broadcast %277 : vector<1x768xf32> to vector<8x768xf32>
    %517 = arith.mulf %515, %516 : vector<8x768xf32>
    %518 = arith.addf %513, %517 : vector<8x768xf32>
    %519 = vector.extract_strided_slice %0 {offsets = [0, 15], sizes = [8, 1], strides = [1, 1]} : vector<8x32xf32> to vector<8x1xf32>
    %520 = vector.broadcast %519 : vector<8x1xf32> to vector<8x768xf32>
    %521 = vector.broadcast %149 : vector<1x768xf32> to vector<8x768xf32>
    %522 = arith.mulf %520, %521 : vector<8x768xf32>
    %523 = arith.addf %518, %522 : vector<8x768xf32>
    %524 = vector.extract_strided_slice %0 {offsets = [0, 16], sizes = [8, 1], strides = [1, 1]} : vector<8x32xf32> to vector<8x1xf32>
    %525 = vector.broadcast %524 : vector<8x1xf32> to vector<8x768xf32>
    %526 = vector.broadcast %156 : vector<1x768xf32> to vector<8x768xf32>
    %527 = arith.mulf %525, %526 : vector<8x768xf32>
    %528 = arith.addf %523, %527 : vector<8x768xf32>
    %529 = vector.extract_strided_slice %0 {offsets = [0, 17], sizes = [8, 1], strides = [1, 1]} : vector<8x32xf32> to vector<8x1xf32>
    %530 = vector.broadcast %529 : vector<8x1xf32> to vector<8x768xf32>
    %531 = vector.broadcast %163 : vector<1x768xf32> to vector<8x768xf32>
    %532 = arith.mulf %530, %531 : vector<8x768xf32>
    %533 = arith.addf %528, %532 : vector<8x768xf32>
    %534 = vector.extract_strided_slice %0 {offsets = [0, 18], sizes = [8, 1], strides = [1, 1]} : vector<8x32xf32> to vector<8x1xf32>
    %535 = vector.broadcast %534 : vector<8x1xf32> to vector<8x768xf32>
    %536 = vector.broadcast %170 : vector<1x768xf32> to vector<8x768xf32>
    %537 = arith.mulf %535, %536 : vector<8x768xf32>
    %538 = arith.addf %533, %537 : vector<8x768xf32>
    %539 = vector.extract_strided_slice %0 {offsets = [0, 19], sizes = [8, 1], strides = [1, 1]} : vector<8x32xf32> to vector<8x1xf32>
    %540 = vector.broadcast %539 : vector<8x1xf32> to vector<8x768xf32>
    %541 = vector.broadcast %304 : vector<1x768xf32> to vector<8x768xf32>
    %542 = arith.mulf %540, %541 : vector<8x768xf32>
    %543 = arith.addf %538, %542 : vector<8x768xf32>
    %544 = vector.extract_strided_slice %0 {offsets = [0, 20], sizes = [8, 1], strides = [1, 1]} : vector<8x32xf32> to vector<8x1xf32>
    %545 = vector.broadcast %544 : vector<8x1xf32> to vector<8x768xf32>
    %546 = vector.broadcast %418 : vector<1x768xf32> to vector<8x768xf32>
    %547 = arith.mulf %545, %546 : vector<8x768xf32>
    %548 = arith.addf %543, %547 : vector<8x768xf32>
    %549 = vector.extract_strided_slice %0 {offsets = [0, 21], sizes = [8, 1], strides = [1, 1]} : vector<8x32xf32> to vector<8x1xf32>
    %550 = vector.broadcast %549 : vector<8x1xf32> to vector<8x768xf32>
    %551 = vector.broadcast %425 : vector<1x768xf32> to vector<8x768xf32>
    %552 = arith.mulf %550, %551 : vector<8x768xf32>
    %553 = arith.addf %548, %552 : vector<8x768xf32>
    %554 = vector.extract_strided_slice %0 {offsets = [0, 22], sizes = [8, 1], strides = [1, 1]} : vector<8x32xf32> to vector<8x1xf32>
    %555 = vector.broadcast %554 : vector<8x1xf32> to vector<8x768xf32>
    %556 = vector.broadcast %432 : vector<1x768xf32> to vector<8x768xf32>
    %557 = arith.mulf %555, %556 : vector<8x768xf32>
    %558 = arith.addf %553, %557 : vector<8x768xf32>
    %559 = vector.extract_strided_slice %0 {offsets = [0, 23], sizes = [8, 1], strides = [1, 1]} : vector<8x32xf32> to vector<8x1xf32>
    %560 = vector.broadcast %559 : vector<8x1xf32> to vector<8x768xf32>
    %561 = vector.broadcast %439 : vector<1x768xf32> to vector<8x768xf32>
    %562 = arith.mulf %560, %561 : vector<8x768xf32>
    %563 = arith.addf %558, %562 : vector<8x768xf32>
    %564 = vector.extract_strided_slice %0 {offsets = [0, 24], sizes = [8, 1], strides = [1, 1]} : vector<8x32xf32> to vector<8x1xf32>
    %c0_97 = arith.constant 0 : index
    %c3_98 = arith.constant 3 : index
    %c50_99 = arith.constant 50 : index
    %565 = vector.load %arg1[%c0_97, %c3_98, %c50_99] : memref<1x4x896xf32, #tpu.memory_space<vmem>>, vector<1x1x768xf32>
    %566 = vector.shape_cast %565 : vector<1x1x768xf32> to vector<1x768xf32>
    %567 = vector.broadcast %564 : vector<8x1xf32> to vector<8x768xf32>
    %568 = vector.broadcast %566 : vector<1x768xf32> to vector<8x768xf32>
    %569 = arith.mulf %567, %568 : vector<8x768xf32>
    %570 = arith.addf %563, %569 : vector<8x768xf32>
    %571 = arith.maximumf %444, %570 : vector<8x768xf32>
    %c0_100 = arith.constant 0 : index
    %c0_101 = arith.constant 0 : index
    %572 = vector.load %arg3[%c0_100, %c0_101] : memref<8x1xf32, #tpu.memory_space<vmem>>, vector<8x1xf32>
    %573 = vector.broadcast %572 : vector<8x1xf32> to vector<8x768xf32>
    %574 = arith.addf %571, %573 : vector<8x768xf32>
    %cst = arith.constant 0.000000e+00 : f32
    %575 = vector.broadcast %cst : f32 to vector<8x768xf32>
    %576 = arith.maximumf %574, %575 : vector<8x768xf32>
    %577 = arith.truncf %576 : vector<8x768xf32> to vector<8x768xbf16>
    %c0_102 = arith.constant 0 : index
    %c0_103 = arith.constant 0 : index
    %578 = vector.load %arg12[%c0_102, %c0_103] : memref<8x768xbf16, #tpu.memory_space<vmem>>, vector<8x768xbf16>
    tpu.vector_store %arg12[%c0_102, %c0_103], %577 {strides = array<i32>} : memref<8x768xbf16, #tpu.memory_space<vmem>>, vector<8x768xbf16>,
    %c0_104 = arith.constant 0 : index
    %c0_105 = arith.constant 0 : index
    %579 = vector.load %arg12[%c0_104, %c0_105] : memref<8x768xbf16, #tpu.memory_space<vmem>>, vector<8x512xbf16>
    %c0_106 = arith.constant 0 : index
    %c0_107 = arith.constant 0 : index
    %c0_108 = arith.constant 0 : index
    %580 = vector.load %arg4[%c0_106, %c0_107, %c0_108] : memref<25x8x8xbf16, #tpu.memory_space<vmem>>, vector<1x8x8xbf16>
    %581 = vector.shape_cast %580 : vector<1x8x8xbf16> to vector<8x8xbf16>
    %cst_109 = arith.constant dense<0.000000e+00> : vector<8x512xf32>
    %582 = tpu.matmul %581, %579, %cst_109 {dimension_numbers = #tpu.dot_dimension_numbers<[1], [0], [0], [1], [0, 0, 1, 1], [], []>} : vector<8x8xbf16>, vector<8x512xbf16>, vector<8x512xf32> -> vector<8x512xf32>
    %c0_110 = arith.constant 0 : index
    %c1_111 = arith.constant 1 : index
    %583 = vector.load %arg12[%c0_110, %c1_111] : memref<8x768xbf16, #tpu.memory_space<vmem>>, vector<8x512xbf16>
    %c1_112 = arith.constant 1 : index
    %c0_113 = arith.constant 0 : index
    %c0_114 = arith.constant 0 : index
    %584 = vector.load %arg4[%c1_112, %c0_113, %c0_114] : memref<25x8x8xbf16, #tpu.memory_space<vmem>>, vector<1x8x8xbf16>
    %585 = vector.shape_cast %584 : vector<1x8x8xbf16> to vector<8x8xbf16>
    %cst_115 = arith.constant dense<0.000000e+00> : vector<8x512xf32>
    %586 = tpu.matmul %585, %583, %cst_115 {dimension_numbers = #tpu.dot_dimension_numbers<[1], [0], [0], [1], [0, 0, 1, 1], [], []>} : vector<8x8xbf16>, vector<8x512xbf16>, vector<8x512xf32> -> vector<8x512xf32>
    %587 = arith.addf %582, %586 : vector<8x512xf32>
    %c0_116 = arith.constant 0 : index
    %c2_117 = arith.constant 2 : index
    %588 = vector.load %arg12[%c0_116, %c2_117] : memref<8x768xbf16, #tpu.memory_space<vmem>>, vector<8x512xbf16>
    %c2_118 = arith.constant 2 : index
    %c0_119 = arith.constant 0 : index
    %c0_120 = arith.constant 0 : index
    %589 = vector.load %arg4[%c2_118, %c0_119, %c0_120] : memref<25x8x8xbf16, #tpu.memory_space<vmem>>, vector<1x8x8xbf16>
    %590 = vector.shape_cast %589 : vector<1x8x8xbf16> to vector<8x8xbf16>
    %cst_121 = arith.constant dense<0.000000e+00> : vector<8x512xf32>
    %591 = tpu.matmul %590, %588, %cst_121 {dimension_numbers = #tpu.dot_dimension_numbers<[1], [0], [0], [1], [0, 0, 1, 1], [], []>} : vector<8x8xbf16>, vector<8x512xbf16>, vector<8x512xf32> -> vector<8x512xf32>
    %592 = arith.addf %587, %591 : vector<8x512xf32>
    %c0_122 = arith.constant 0 : index
    %c3_123 = arith.constant 3 : index
    %593 = vector.load %arg12[%c0_122, %c3_123] : memref<8x768xbf16, #tpu.memory_space<vmem>>, vector<8x512xbf16>
    %c3_124 = arith.constant 3 : index
    %c0_125 = arith.constant 0 : index
    %c0_126 = arith.constant 0 : index
    %594 = vector.load %arg4[%c3_124, %c0_125, %c0_126] : memref<25x8x8xbf16, #tpu.memory_space<vmem>>, vector<1x8x8xbf16>
    %595 = vector.shape_cast %594 : vector<1x8x8xbf16> to vector<8x8xbf16>
    %cst_127 = arith.constant dense<0.000000e+00> : vector<8x512xf32>
    %596 = tpu.matmul %595, %593, %cst_127 {dimension_numbers = #tpu.dot_dimension_numbers<[1], [0], [0], [1], [0, 0, 1, 1], [], []>} : vector<8x8xbf16>, vector<8x512xbf16>, vector<8x512xf32> -> vector<8x512xf32>
    %597 = arith.addf %592, %596 : vector<8x512xf32>
    %c0_128 = arith.constant 0 : index
    %c4 = arith.constant 4 : index
    %598 = vector.load %arg12[%c0_128, %c4] : memref<8x768xbf16, #tpu.memory_space<vmem>>, vector<8x512xbf16>
    %c4_129 = arith.constant 4 : index
    %c0_130 = arith.constant 0 : index
    %c0_131 = arith.constant 0 : index
    %599 = vector.load %arg4[%c4_129, %c0_130, %c0_131] : memref<25x8x8xbf16, #tpu.memory_space<vmem>>, vector<1x8x8xbf16>
    %600 = vector.shape_cast %599 : vector<1x8x8xbf16> to vector<8x8xbf16>
    %cst_132 = arith.constant dense<0.000000e+00> : vector<8x512xf32>
    %601 = tpu.matmul %600, %598, %cst_132 {dimension_numbers = #tpu.dot_dimension_numbers<[1], [0], [0], [1], [0, 0, 1, 1], [], []>} : vector<8x8xbf16>, vector<8x512xbf16>, vector<8x512xf32> -> vector<8x512xf32>
    %602 = arith.addf %597, %601 : vector<8x512xf32>
    %c0_133 = arith.constant 0 : index
    %c24_134 = arith.constant 24 : index
    %603 = vector.load %arg12[%c0_133, %c24_134] : memref<8x768xbf16, #tpu.memory_space<vmem>>, vector<8x512xbf16>
    %c5 = arith.constant 5 : index
    %c0_135 = arith.constant 0 : index
    %c0_136 = arith.constant 0 : index
    %604 = vector.load %arg4[%c5, %c0_135, %c0_136] : memref<25x8x8xbf16, #tpu.memory_space<vmem>>, vector<1x8x8xbf16>
    %605 = vector.shape_cast %604 : vector<1x8x8xbf16> to vector<8x8xbf16>
    %cst_137 = arith.constant dense<0.000000e+00> : vector<8x512xf32>
    %606 = tpu.matmul %605, %603, %cst_137 {dimension_numbers = #tpu.dot_dimension_numbers<[1], [0], [0], [1], [0, 0, 1, 1], [], []>} : vector<8x8xbf16>, vector<8x512xbf16>, vector<8x512xf32> -> vector<8x512xf32>
    %607 = arith.addf %602, %606 : vector<8x512xf32>
    %c0_138 = arith.constant 0 : index
    %c25_139 = arith.constant 25 : index
    %608 = vector.load %arg12[%c0_138, %c25_139] : memref<8x768xbf16, #tpu.memory_space<vmem>>, vector<8x512xbf16>
    %c6 = arith.constant 6 : index
    %c0_140 = arith.constant 0 : index
    %c0_141 = arith.constant 0 : index
    %609 = vector.load %arg4[%c6, %c0_140, %c0_141] : memref<25x8x8xbf16, #tpu.memory_space<vmem>>, vector<1x8x8xbf16>
    %610 = vector.shape_cast %609 : vector<1x8x8xbf16> to vector<8x8xbf16>
    %cst_142 = arith.constant dense<0.000000e+00> : vector<8x512xf32>
    %611 = tpu.matmul %610, %608, %cst_142 {dimension_numbers = #tpu.dot_dimension_numbers<[1], [0], [0], [1], [0, 0, 1, 1], [], []>} : vector<8x8xbf16>, vector<8x512xbf16>, vector<8x512xf32> -> vector<8x512xf32>
    %612 = arith.addf %607, %611 : vector<8x512xf32>
    %c0_143 = arith.constant 0 : index
    %c26_144 = arith.constant 26 : index
    %613 = vector.load %arg12[%c0_143, %c26_144] : memref<8x768xbf16, #tpu.memory_space<vmem>>, vector<8x512xbf16>
    %c7 = arith.constant 7 : index
    %c0_145 = arith.constant 0 : index
    %c0_146 = arith.constant 0 : index
    %614 = vector.load %arg4[%c7, %c0_145, %c0_146] : memref<25x8x8xbf16, #tpu.memory_space<vmem>>, vector<1x8x8xbf16>
    %615 = vector.shape_cast %614 : vector<1x8x8xbf16> to vector<8x8xbf16>
    %cst_147 = arith.constant dense<0.000000e+00> : vector<8x512xf32>
    %616 = tpu.matmul %615, %613, %cst_147 {dimension_numbers = #tpu.dot_dimension_numbers<[1], [0], [0], [1], [0, 0, 1, 1], [], []>} : vector<8x8xbf16>, vector<8x512xbf16>, vector<8x512xf32> -> vector<8x512xf32>
    %617 = arith.addf %612, %616 : vector<8x512xf32>
    %c0_148 = arith.constant 0 : index
    %c27 = arith.constant 27 : index
    %618 = vector.load %arg12[%c0_148, %c27] : memref<8x768xbf16, #tpu.memory_space<vmem>>, vector<8x512xbf16>
    %c8 = arith.constant 8 : index
    %c0_149 = arith.constant 0 : index
    %c0_150 = arith.constant 0 : index
    %619 = vector.load %arg4[%c8, %c0_149, %c0_150] : memref<25x8x8xbf16, #tpu.memory_space<vmem>>, vector<1x8x8xbf16>
    %620 = vector.shape_cast %619 : vector<1x8x8xbf16> to vector<8x8xbf16>
    %cst_151 = arith.constant dense<0.000000e+00> : vector<8x512xf32>
    %621 = tpu.matmul %620, %618, %cst_151 {dimension_numbers = #tpu.dot_dimension_numbers<[1], [0], [0], [1], [0, 0, 1, 1], [], []>} : vector<8x8xbf16>, vector<8x512xbf16>, vector<8x512xf32> -> vector<8x512xf32>
    %622 = arith.addf %617, %621 : vector<8x512xf32>
    %c0_152 = arith.constant 0 : index
    %c28 = arith.constant 28 : index
    %623 = vector.load %arg12[%c0_152, %c28] : memref<8x768xbf16, #tpu.memory_space<vmem>>, vector<8x512xbf16>
    %c9 = arith.constant 9 : index
    %c0_153 = arith.constant 0 : index
    %c0_154 = arith.constant 0 : index
    %624 = vector.load %arg4[%c9, %c0_153, %c0_154] : memref<25x8x8xbf16, #tpu.memory_space<vmem>>, vector<1x8x8xbf16>
    %625 = vector.shape_cast %624 : vector<1x8x8xbf16> to vector<8x8xbf16>
    %cst_155 = arith.constant dense<0.000000e+00> : vector<8x512xf32>
    %626 = tpu.matmul %625, %623, %cst_155 {dimension_numbers = #tpu.dot_dimension_numbers<[1], [0], [0], [1], [0, 0, 1, 1], [], []>} : vector<8x8xbf16>, vector<8x512xbf16>, vector<8x512xf32> -> vector<8x512xf32>
    %627 = arith.addf %622, %626 : vector<8x512xf32>
    %c0_156 = arith.constant 0 : index
    %c48_157 = arith.constant 48 : index
    %628 = vector.load %arg12[%c0_156, %c48_157] : memref<8x768xbf16, #tpu.memory_space<vmem>>, vector<8x512xbf16>
    %c10 = arith.constant 10 : index
    %c0_158 = arith.constant 0 : index
    %c0_159 = arith.constant 0 : index
    %629 = vector.load %arg4[%c10, %c0_158, %c0_159] : memref<25x8x8xbf16, #tpu.memory_space<vmem>>, vector<1x8x8xbf16>
    %630 = vector.shape_cast %629 : vector<1x8x8xbf16> to vector<8x8xbf16>
    %cst_160 = arith.constant dense<0.000000e+00> : vector<8x512xf32>
    %631 = tpu.matmul %630, %628, %cst_160 {dimension_numbers = #tpu.dot_dimension_numbers<[1], [0], [0], [1], [0, 0, 1, 1], [], []>} : vector<8x8xbf16>, vector<8x512xbf16>, vector<8x512xf32> -> vector<8x512xf32>
    %632 = arith.addf %627, %631 : vector<8x512xf32>
    %c0_161 = arith.constant 0 : index
    %c49_162 = arith.constant 49 : index
    %633 = vector.load %arg12[%c0_161, %c49_162] : memref<8x768xbf16, #tpu.memory_space<vmem>>, vector<8x512xbf16>
    %c11 = arith.constant 11 : index
    %c0_163 = arith.constant 0 : index
    %c0_164 = arith.constant 0 : index
    %634 = vector.load %arg4[%c11, %c0_163, %c0_164] : memref<25x8x8xbf16, #tpu.memory_space<vmem>>, vector<1x8x8xbf16>
    %635 = vector.shape_cast %634 : vector<1x8x8xbf16> to vector<8x8xbf16>
    %cst_165 = arith.constant dense<0.000000e+00> : vector<8x512xf32>
    %636 = tpu.matmul %635, %633, %cst_165 {dimension_numbers = #tpu.dot_dimension_numbers<[1], [0], [0], [1], [0, 0, 1, 1], [], []>} : vector<8x8xbf16>, vector<8x512xbf16>, vector<8x512xf32> -> vector<8x512xf32>
    %637 = arith.addf %632, %636 : vector<8x512xf32>
    %c0_166 = arith.constant 0 : index
    %c50_167 = arith.constant 50 : index
    %638 = vector.load %arg12[%c0_166, %c50_167] : memref<8x768xbf16, #tpu.memory_space<vmem>>, vector<8x512xbf16>
    %c12 = arith.constant 12 : index
    %c0_168 = arith.constant 0 : index
    %c0_169 = arith.constant 0 : index
    %639 = vector.load %arg4[%c12, %c0_168, %c0_169] : memref<25x8x8xbf16, #tpu.memory_space<vmem>>, vector<1x8x8xbf16>
    %640 = vector.shape_cast %639 : vector<1x8x8xbf16> to vector<8x8xbf16>
    %cst_170 = arith.constant dense<0.000000e+00> : vector<8x512xf32>
    %641 = tpu.matmul %640, %638, %cst_170 {dimension_numbers = #tpu.dot_dimension_numbers<[1], [0], [0], [1], [0, 0, 1, 1], [], []>} : vector<8x8xbf16>, vector<8x512xbf16>, vector<8x512xf32> -> vector<8x512xf32>
    %642 = arith.addf %637, %641 : vector<8x512xf32>
    %c0_171 = arith.constant 0 : index
    %c51 = arith.constant 51 : index
    %643 = vector.load %arg12[%c0_171, %c51] : memref<8x768xbf16, #tpu.memory_space<vmem>>, vector<8x512xbf16>
    %c13 = arith.constant 13 : index
    %c0_172 = arith.constant 0 : index
    %c0_173 = arith.constant 0 : index
    %644 = vector.load %arg4[%c13, %c0_172, %c0_173] : memref<25x8x8xbf16, #tpu.memory_space<vmem>>, vector<1x8x8xbf16>
    %645 = vector.shape_cast %644 : vector<1x8x8xbf16> to vector<8x8xbf16>
    %cst_174 = arith.constant dense<0.000000e+00> : vector<8x512xf32>
    %646 = tpu.matmul %645, %643, %cst_174 {dimension_numbers = #tpu.dot_dimension_numbers<[1], [0], [0], [1], [0, 0, 1, 1], [], []>} : vector<8x8xbf16>, vector<8x512xbf16>, vector<8x512xf32> -> vector<8x512xf32>
    %647 = arith.addf %642, %646 : vector<8x512xf32>
    %c0_175 = arith.constant 0 : index
    %c52 = arith.constant 52 : index
    %648 = vector.load %arg12[%c0_175, %c52] : memref<8x768xbf16, #tpu.memory_space<vmem>>, vector<8x512xbf16>
    %c14 = arith.constant 14 : index
    %c0_176 = arith.constant 0 : index
    %c0_177 = arith.constant 0 : index
    %649 = vector.load %arg4[%c14, %c0_176, %c0_177] : memref<25x8x8xbf16, #tpu.memory_space<vmem>>, vector<1x8x8xbf16>
    %650 = vector.shape_cast %649 : vector<1x8x8xbf16> to vector<8x8xbf16>
    %cst_178 = arith.constant dense<0.000000e+00> : vector<8x512xf32>
    %651 = tpu.matmul %650, %648, %cst_178 {dimension_numbers = #tpu.dot_dimension_numbers<[1], [0], [0], [1], [0, 0, 1, 1], [], []>} : vector<8x8xbf16>, vector<8x512xbf16>, vector<8x512xf32> -> vector<8x512xf32>
    %652 = arith.addf %647, %651 : vector<8x512xf32>
    %c0_179 = arith.constant 0 : index
    %c72 = arith.constant 72 : index
    %653 = vector.load %arg12[%c0_179, %c72] : memref<8x768xbf16, #tpu.memory_space<vmem>>, vector<8x512xbf16>
    %c15 = arith.constant 15 : index
    %c0_180 = arith.constant 0 : index
    %c0_181 = arith.constant 0 : index
    %654 = vector.load %arg4[%c15, %c0_180, %c0_181] : memref<25x8x8xbf16, #tpu.memory_space<vmem>>, vector<1x8x8xbf16>
    %655 = vector.shape_cast %654 : vector<1x8x8xbf16> to vector<8x8xbf16>
    %cst_182 = arith.constant dense<0.000000e+00> : vector<8x512xf32>
    %656 = tpu.matmul %655, %653, %cst_182 {dimension_numbers = #tpu.dot_dimension_numbers<[1], [0], [0], [1], [0, 0, 1, 1], [], []>} : vector<8x8xbf16>, vector<8x512xbf16>, vector<8x512xf32> -> vector<8x512xf32>
    %657 = arith.addf %652, %656 : vector<8x512xf32>
    %c0_183 = arith.constant 0 : index
    %c73 = arith.constant 73 : index
    %658 = vector.load %arg12[%c0_183, %c73] : memref<8x768xbf16, #tpu.memory_space<vmem>>, vector<8x512xbf16>
    %c16 = arith.constant 16 : index
    %c0_184 = arith.constant 0 : index
    %c0_185 = arith.constant 0 : index
    %659 = vector.load %arg4[%c16, %c0_184, %c0_185] : memref<25x8x8xbf16, #tpu.memory_space<vmem>>, vector<1x8x8xbf16>
    %660 = vector.shape_cast %659 : vector<1x8x8xbf16> to vector<8x8xbf16>
    %cst_186 = arith.constant dense<0.000000e+00> : vector<8x512xf32>
    %661 = tpu.matmul %660, %658, %cst_186 {dimension_numbers = #tpu.dot_dimension_numbers<[1], [0], [0], [1], [0, 0, 1, 1], [], []>} : vector<8x8xbf16>, vector<8x512xbf16>, vector<8x512xf32> -> vector<8x512xf32>
    %662 = arith.addf %657, %661 : vector<8x512xf32>
    %c0_187 = arith.constant 0 : index
    %c74 = arith.constant 74 : index
    %663 = vector.load %arg12[%c0_187, %c74] : memref<8x768xbf16, #tpu.memory_space<vmem>>, vector<8x512xbf16>
    %c17 = arith.constant 17 : index
    %c0_188 = arith.constant 0 : index
    %c0_189 = arith.constant 0 : index
    %664 = vector.load %arg4[%c17, %c0_188, %c0_189] : memref<25x8x8xbf16, #tpu.memory_space<vmem>>, vector<1x8x8xbf16>
    %665 = vector.shape_cast %664 : vector<1x8x8xbf16> to vector<8x8xbf16>
    %cst_190 = arith.constant dense<0.000000e+00> : vector<8x512xf32>
    %666 = tpu.matmul %665, %663, %cst_190 {dimension_numbers = #tpu.dot_dimension_numbers<[1], [0], [0], [1], [0, 0, 1, 1], [], []>} : vector<8x8xbf16>, vector<8x512xbf16>, vector<8x512xf32> -> vector<8x512xf32>
    %667 = arith.addf %662, %666 : vector<8x512xf32>
    %c0_191 = arith.constant 0 : index
    %c75 = arith.constant 75 : index
    %668 = vector.load %arg12[%c0_191, %c75] : memref<8x768xbf16, #tpu.memory_space<vmem>>, vector<8x512xbf16>
    %c18 = arith.constant 18 : index
    %c0_192 = arith.constant 0 : index
    %c0_193 = arith.constant 0 : index
    %669 = vector.load %arg4[%c18, %c0_192, %c0_193] : memref<25x8x8xbf16, #tpu.memory_space<vmem>>, vector<1x8x8xbf16>
    %670 = vector.shape_cast %669 : vector<1x8x8xbf16> to vector<8x8xbf16>
    %cst_194 = arith.constant dense<0.000000e+00> : vector<8x512xf32>
    %671 = tpu.matmul %670, %668, %cst_194 {dimension_numbers = #tpu.dot_dimension_numbers<[1], [0], [0], [1], [0, 0, 1, 1], [], []>} : vector<8x8xbf16>, vector<8x512xbf16>, vector<8x512xf32> -> vector<8x512xf32>
    %672 = arith.addf %667, %671 : vector<8x512xf32>
    %c0_195 = arith.constant 0 : index
    %c76 = arith.constant 76 : index
    %673 = vector.load %arg12[%c0_195, %c76] : memref<8x768xbf16, #tpu.memory_space<vmem>>, vector<8x512xbf16>
    %c19 = arith.constant 19 : index
    %c0_196 = arith.constant 0 : index
    %c0_197 = arith.constant 0 : index
    %674 = vector.load %arg4[%c19, %c0_196, %c0_197] : memref<25x8x8xbf16, #tpu.memory_space<vmem>>, vector<1x8x8xbf16>
    %675 = vector.shape_cast %674 : vector<1x8x8xbf16> to vector<8x8xbf16>
    %cst_198 = arith.constant dense<0.000000e+00> : vector<8x512xf32>
    %676 = tpu.matmul %675, %673, %cst_198 {dimension_numbers = #tpu.dot_dimension_numbers<[1], [0], [0], [1], [0, 0, 1, 1], [], []>} : vector<8x8xbf16>, vector<8x512xbf16>, vector<8x512xf32> -> vector<8x512xf32>
    %677 = arith.addf %672, %676 : vector<8x512xf32>
    %c0_199 = arith.constant 0 : index
    %c96 = arith.constant 96 : index
    %678 = vector.load %arg12[%c0_199, %c96] : memref<8x768xbf16, #tpu.memory_space<vmem>>, vector<8x512xbf16>
    %c20 = arith.constant 20 : index
    %c0_200 = arith.constant 0 : index
    %c0_201 = arith.constant 0 : index
    %679 = vector.load %arg4[%c20, %c0_200, %c0_201] : memref<25x8x8xbf16, #tpu.memory_space<vmem>>, vector<1x8x8xbf16>
    %680 = vector.shape_cast %679 : vector<1x8x8xbf16> to vector<8x8xbf16>
    %cst_202 = arith.constant dense<0.000000e+00> : vector<8x512xf32>
    %681 = tpu.matmul %680, %678, %cst_202 {dimension_numbers = #tpu.dot_dimension_numbers<[1], [0], [0], [1], [0, 0, 1, 1], [], []>} : vector<8x8xbf16>, vector<8x512xbf16>, vector<8x512xf32> -> vector<8x512xf32>
    %682 = arith.addf %677, %681 : vector<8x512xf32>
    %c0_203 = arith.constant 0 : index
    %c97 = arith.constant 97 : index
    %683 = vector.load %arg12[%c0_203, %c97] : memref<8x768xbf16, #tpu.memory_space<vmem>>, vector<8x512xbf16>
    %c21 = arith.constant 21 : index
    %c0_204 = arith.constant 0 : index
    %c0_205 = arith.constant 0 : index
    %684 = vector.load %arg4[%c21, %c0_204, %c0_205] : memref<25x8x8xbf16, #tpu.memory_space<vmem>>, vector<1x8x8xbf16>
    %685 = vector.shape_cast %684 : vector<1x8x8xbf16> to vector<8x8xbf16>
    %cst_206 = arith.constant dense<0.000000e+00> : vector<8x512xf32>
    %686 = tpu.matmul %685, %683, %cst_206 {dimension_numbers = #tpu.dot_dimension_numbers<[1], [0], [0], [1], [0, 0, 1, 1], [], []>} : vector<8x8xbf16>, vector<8x512xbf16>, vector<8x512xf32> -> vector<8x512xf32>
    %687 = arith.addf %682, %686 : vector<8x512xf32>
    %c0_207 = arith.constant 0 : index
    %c98 = arith.constant 98 : index
    %688 = vector.load %arg12[%c0_207, %c98] : memref<8x768xbf16, #tpu.memory_space<vmem>>, vector<8x512xbf16>
    %c22 = arith.constant 22 : index
    %c0_208 = arith.constant 0 : index
    %c0_209 = arith.constant 0 : index
    %689 = vector.load %arg4[%c22, %c0_208, %c0_209] : memref<25x8x8xbf16, #tpu.memory_space<vmem>>, vector<1x8x8xbf16>
    %690 = vector.shape_cast %689 : vector<1x8x8xbf16> to vector<8x8xbf16>
    %cst_210 = arith.constant dense<0.000000e+00> : vector<8x512xf32>
    %691 = tpu.matmul %690, %688, %cst_210 {dimension_numbers = #tpu.dot_dimension_numbers<[1], [0], [0], [1], [0, 0, 1, 1], [], []>} : vector<8x8xbf16>, vector<8x512xbf16>, vector<8x512xf32> -> vector<8x512xf32>
    %692 = arith.addf %687, %691 : vector<8x512xf32>
    %c0_211 = arith.constant 0 : index
    %c99 = arith.constant 99 : index
    %693 = vector.load %arg12[%c0_211, %c99] : memref<8x768xbf16, #tpu.memory_space<vmem>>, vector<8x512xbf16>
    %c23 = arith.constant 23 : index
    %c0_212 = arith.constant 0 : index
    %c0_213 = arith.constant 0 : index
    %694 = vector.load %arg4[%c23, %c0_212, %c0_213] : memref<25x8x8xbf16, #tpu.memory_space<vmem>>, vector<1x8x8xbf16>
    %695 = vector.shape_cast %694 : vector<1x8x8xbf16> to vector<8x8xbf16>
    %cst_214 = arith.constant dense<0.000000e+00> : vector<8x512xf32>
    %696 = tpu.matmul %695, %693, %cst_214 {dimension_numbers = #tpu.dot_dimension_numbers<[1], [0], [0], [1], [0, 0, 1, 1], [], []>} : vector<8x8xbf16>, vector<8x512xbf16>, vector<8x512xf32> -> vector<8x512xf32>
    %697 = arith.addf %692, %696 : vector<8x512xf32>
    %c0_215 = arith.constant 0 : index
    %c100 = arith.constant 100 : index
    %698 = vector.load %arg12[%c0_215, %c100] : memref<8x768xbf16, #tpu.memory_space<vmem>>, vector<8x512xbf16>
    %c24_216 = arith.constant 24 : index
    %c0_217 = arith.constant 0 : index
    %c0_218 = arith.constant 0 : index
    %699 = vector.load %arg4[%c24_216, %c0_217, %c0_218] : memref<25x8x8xbf16, #tpu.memory_space<vmem>>, vector<1x8x8xbf16>
    %700 = vector.shape_cast %699 : vector<1x8x8xbf16> to vector<8x8xbf16>
    %cst_219 = arith.constant dense<0.000000e+00> : vector<8x512xf32>
    %701 = tpu.matmul %700, %698, %cst_219 {dimension_numbers = #tpu.dot_dimension_numbers<[1], [0], [0], [1], [0, 0, 1, 1], [], []>} : vector<8x8xbf16>, vector<8x512xbf16>, vector<8x512xf32> -> vector<8x512xf32>
    %702 = arith.addf %697, %701 : vector<8x512xf32>
    %703 = vector.extract_strided_slice %702 {offsets = [0, 0], sizes = [8, 448], strides = [1, 1]} : vector<8x512xf32> to vector<8x448xf32>
    %704 = vector.extract_strided_slice %702 {offsets = [0, 1], sizes = [8, 448], strides = [1, 1]} : vector<8x512xf32> to vector<8x448xf32>
    %705 = arith.maximumf %703, %704 : vector<8x448xf32>
    %706 = vector.extract_strided_slice %702 {offsets = [0, 24], sizes = [8, 448], strides = [1, 1]} : vector<8x512xf32> to vector<8x448xf32>
    %707 = vector.extract_strided_slice %702 {offsets = [0, 25], sizes = [8, 448], strides = [1, 1]} : vector<8x512xf32> to vector<8x448xf32>
    %708 = arith.maximumf %706, %707 : vector<8x448xf32>
    %709 = arith.maximumf %705, %708 : vector<8x448xf32>
    %c0_220 = arith.constant 0 : index
    %c0_221 = arith.constant 0 : index
    %710 = vector.load %arg5[%c0_220, %c0_221] : memref<8x1xf32, #tpu.memory_space<vmem>>, vector<8x1xf32>
    %711 = vector.broadcast %710 : vector<8x1xf32> to vector<8x448xf32>
    %712 = arith.addf %709, %711 : vector<8x448xf32>
    %cst_222 = arith.constant 0.000000e+00 : f32
    %713 = vector.broadcast %cst_222 : f32 to vector<8x448xf32>
    %714 = arith.maximumf %712, %713 : vector<8x448xf32>
    %715 = arith.truncf %714 : vector<8x448xf32> to vector<8x448xbf16>
    %c0_223 = arith.constant 0 : index
    %c0_224 = arith.constant 0 : index
    %716 = vector.load %arg6[%c0_223, %c0_224] : memref<448x128xbf16, #tpu.memory_space<vmem>>, vector<448x128xbf16>
    %cst_225 = arith.constant dense<0.000000e+00> : vector<8x128xf32>
    %717 = tpu.matmul %715, %716, %cst_225 {dimension_numbers = #tpu.dot_dimension_numbers<[1], [0], [0], [1], [0, 0, 1, 1], [], []>} : vector<8x448xbf16>, vector<448x128xbf16>, vector<8x128xf32> -> vector<8x128xf32>
    %718 = vector.extract_strided_slice %717 {offsets = [0, 0], sizes = [1, 128], strides = [1, 1]} : vector<8x128xf32> to vector<1x128xf32>
    %719 = arith.truncf %718 : vector<1x128xf32> to vector<1x128xbf16>
    %c0_226 = arith.constant 0 : index
    %c0_227 = arith.constant 0 : index
    %c0_228 = arith.constant 0 : index
    %720 = vector.load %arg7[%c0_226, %c0_227, %c0_228] : memref<8x128x128xbf16, #tpu.memory_space<vmem>>, vector<1x128x128xbf16>
    %721 = vector.shape_cast %720 : vector<1x128x128xbf16> to vector<128x128xbf16>
    %cst_229 = arith.constant dense<0.000000e+00> : vector<1x128xf32>
    %722 = tpu.matmul %719, %721, %cst_229 {dimension_numbers = #tpu.dot_dimension_numbers<[1], [0], [0], [1], [0, 0, 1, 1], [], []>} : vector<1x128xbf16>, vector<128x128xbf16>, vector<1x128xf32> -> vector<1x128xf32>
    %723 = vector.extract_strided_slice %717 {offsets = [1, 0], sizes = [1, 128], strides = [1, 1]} : vector<8x128xf32> to vector<1x128xf32>
    %724 = arith.truncf %723 : vector<1x128xf32> to vector<1x128xbf16>
    %c1_230 = arith.constant 1 : index
    %c0_231 = arith.constant 0 : index
    %c0_232 = arith.constant 0 : index
    %725 = vector.load %arg7[%c1_230, %c0_231, %c0_232] : memref<8x128x128xbf16, #tpu.memory_space<vmem>>, vector<1x128x128xbf16>
    %726 = vector.shape_cast %725 : vector<1x128x128xbf16> to vector<128x128xbf16>
    %cst_233 = arith.constant dense<0.000000e+00> : vector<1x128xf32>
    %727 = tpu.matmul %724, %726, %cst_233 {dimension_numbers = #tpu.dot_dimension_numbers<[1], [0], [0], [1], [0, 0, 1, 1], [], []>} : vector<1x128xbf16>, vector<128x128xbf16>, vector<1x128xf32> -> vector<1x128xf32>
    %728 = vector.extract_strided_slice %717 {offsets = [2, 0], sizes = [1, 128], strides = [1, 1]} : vector<8x128xf32> to vector<1x128xf32>
    %729 = arith.truncf %728 : vector<1x128xf32> to vector<1x128xbf16>
    %c2_234 = arith.constant 2 : index
    %c0_235 = arith.constant 0 : index
    %c0_236 = arith.constant 0 : index
    %730 = vector.load %arg7[%c2_234, %c0_235, %c0_236] : memref<8x128x128xbf16, #tpu.memory_space<vmem>>, vector<1x128x128xbf16>
    %731 = vector.shape_cast %730 : vector<1x128x128xbf16> to vector<128x128xbf16>
    %cst_237 = arith.constant dense<0.000000e+00> : vector<1x128xf32>
    %732 = tpu.matmul %729, %731, %cst_237 {dimension_numbers = #tpu.dot_dimension_numbers<[1], [0], [0], [1], [0, 0, 1, 1], [], []>} : vector<1x128xbf16>, vector<128x128xbf16>, vector<1x128xf32> -> vector<1x128xf32>
    %733 = vector.extract_strided_slice %717 {offsets = [3, 0], sizes = [1, 128], strides = [1, 1]} : vector<8x128xf32> to vector<1x128xf32>
    %734 = arith.truncf %733 : vector<1x128xf32> to vector<1x128xbf16>
    %c3_238 = arith.constant 3 : index
    %c0_239 = arith.constant 0 : index
    %c0_240 = arith.constant 0 : index
    %735 = vector.load %arg7[%c3_238, %c0_239, %c0_240] : memref<8x128x128xbf16, #tpu.memory_space<vmem>>, vector<1x128x128xbf16>
    %736 = vector.shape_cast %735 : vector<1x128x128xbf16> to vector<128x128xbf16>
    %cst_241 = arith.constant dense<0.000000e+00> : vector<1x128xf32>
    %737 = tpu.matmul %734, %736, %cst_241 {dimension_numbers = #tpu.dot_dimension_numbers<[1], [0], [0], [1], [0, 0, 1, 1], [], []>} : vector<1x128xbf16>, vector<128x128xbf16>, vector<1x128xf32> -> vector<1x128xf32>
    %738 = vector.extract_strided_slice %717 {offsets = [4, 0], sizes = [1, 128], strides = [1, 1]} : vector<8x128xf32> to vector<1x128xf32>
    %739 = arith.truncf %738 : vector<1x128xf32> to vector<1x128xbf16>
    %c4_242 = arith.constant 4 : index
    %c0_243 = arith.constant 0 : index
    %c0_244 = arith.constant 0 : index
    %740 = vector.load %arg7[%c4_242, %c0_243, %c0_244] : memref<8x128x128xbf16, #tpu.memory_space<vmem>>, vector<1x128x128xbf16>
    %741 = vector.shape_cast %740 : vector<1x128x128xbf16> to vector<128x128xbf16>
    %cst_245 = arith.constant dense<0.000000e+00> : vector<1x128xf32>
    %742 = tpu.matmul %739, %741, %cst_245 {dimension_numbers = #tpu.dot_dimension_numbers<[1], [0], [0], [1], [0, 0, 1, 1], [], []>} : vector<1x128xbf16>, vector<128x128xbf16>, vector<1x128xf32> -> vector<1x128xf32>
    %743 = vector.extract_strided_slice %717 {offsets = [5, 0], sizes = [1, 128], strides = [1, 1]} : vector<8x128xf32> to vector<1x128xf32>
    %744 = arith.truncf %743 : vector<1x128xf32> to vector<1x128xbf16>
    %c5_246 = arith.constant 5 : index
    %c0_247 = arith.constant 0 : index
    %c0_248 = arith.constant 0 : index
    %745 = vector.load %arg7[%c5_246, %c0_247, %c0_248] : memref<8x128x128xbf16, #tpu.memory_space<vmem>>, vector<1x128x128xbf16>
    %746 = vector.shape_cast %745 : vector<1x128x128xbf16> to vector<128x128xbf16>
    %cst_249 = arith.constant dense<0.000000e+00> : vector<1x128xf32>
    %747 = tpu.matmul %744, %746, %cst_249 {dimension_numbers = #tpu.dot_dimension_numbers<[1], [0], [0], [1], [0, 0, 1, 1], [], []>} : vector<1x128xbf16>, vector<128x128xbf16>, vector<1x128xf32> -> vector<1x128xf32>
    %748 = vector.extract_strided_slice %717 {offsets = [6, 0], sizes = [1, 128], strides = [1, 1]} : vector<8x128xf32> to vector<1x128xf32>
    %749 = arith.truncf %748 : vector<1x128xf32> to vector<1x128xbf16>
    %c6_250 = arith.constant 6 : index
    %c0_251 = arith.constant 0 : index
    %c0_252 = arith.constant 0 : index
    %750 = vector.load %arg7[%c6_250, %c0_251, %c0_252] : memref<8x128x128xbf16, #tpu.memory_space<vmem>>, vector<1x128x128xbf16>
    %751 = vector.shape_cast %750 : vector<1x128x128xbf16> to vector<128x128xbf16>
    %cst_253 = arith.constant dense<0.000000e+00> : vector<1x128xf32>
    %752 = tpu.matmul %749, %751, %cst_253 {dimension_numbers = #tpu.dot_dimension_numbers<[1], [0], [0], [1], [0, 0, 1, 1], [], []>} : vector<1x128xbf16>, vector<128x128xbf16>, vector<1x128xf32> -> vector<1x128xf32>
    %753 = vector.extract_strided_slice %717 {offsets = [7, 0], sizes = [1, 128], strides = [1, 1]} : vector<8x128xf32> to vector<1x128xf32>
    %754 = arith.truncf %753 : vector<1x128xf32> to vector<1x128xbf16>
    %c7_254 = arith.constant 7 : index
    %c0_255 = arith.constant 0 : index
    %c0_256 = arith.constant 0 : index
    %755 = vector.load %arg7[%c7_254, %c0_255, %c0_256] : memref<8x128x128xbf16, #tpu.memory_space<vmem>>, vector<1x128x128xbf16>
    %756 = vector.shape_cast %755 : vector<1x128x128xbf16> to vector<128x128xbf16>
    %cst_257 = arith.constant dense<0.000000e+00> : vector<1x128xf32>
    %757 = tpu.matmul %754, %756, %cst_257 {dimension_numbers = #tpu.dot_dimension_numbers<[1], [0], [0], [1], [0, 0, 1, 1], [], []>} : vector<1x128xbf16>, vector<128x128xbf16>, vector<1x128xf32> -> vector<1x128xf32>
    %758 = arith.addf %722, %727 : vector<1x128xf32>
    %759 = arith.addf %732, %737 : vector<1x128xf32>
    %760 = arith.addf %742, %747 : vector<1x128xf32>
    %761 = arith.addf %752, %757 : vector<1x128xf32>
    %762 = arith.addf %758, %759 : vector<1x128xf32>
    %763 = arith.addf %760, %761 : vector<1x128xf32>
    %764 = arith.addf %762, %763 : vector<1x128xf32>
    %c0_258 = arith.constant 0 : index
    %c0_259 = arith.constant 0 : index
    %765 = vector.load %arg8[%c0_258, %c0_259] : memref<1x128xf32, #tpu.memory_space<vmem>>, vector<1x128xf32>
    %766 = arith.addf %764, %765 : vector<1x128xf32>
    %cst_260 = arith.constant 0.000000e+00 : f32
    %767 = vector.broadcast %cst_260 : f32 to vector<1x128xf32>
    %768 = arith.maximumf %766, %767 : vector<1x128xf32>
    %769 = arith.truncf %768 : vector<1x128xf32> to vector<1x128xbf16>
    %c0_261 = arith.constant 0 : index
    %c0_262 = arith.constant 0 : index
    %770 = vector.load %arg9[%c0_261, %c0_262] : memref<128x128xbf16, #tpu.memory_space<vmem>>, vector<128x128xbf16>
    %cst_263 = arith.constant dense<0.000000e+00> : vector<1x128xf32>
    %771 = tpu.matmul %769, %770, %cst_263 {dimension_numbers = #tpu.dot_dimension_numbers<[1], [0], [0], [1], [0, 0, 1, 1], [], []>} : vector<1x128xbf16>, vector<128x128xbf16>, vector<1x128xf32> -> vector<1x128xf32>
    %c0_264 = arith.constant 0 : index
    %c0_265 = arith.constant 0 : index
    %772 = vector.load %arg10[%c0_264, %c0_265] : memref<1x128xf32, #tpu.memory_space<vmem>>, vector<1x128xf32>
    %773 = arith.addf %771, %772 : vector<1x128xf32>
    %cst_266 = arith.constant dense<0xFF800000> : vector<1xf32>
    %774 = vector.multi_reduction <maximumf>, %773, %cst_266 [1] : vector<1x128xf32> to vector<1xf32>
    %775 = vector.shape_cast %774 : vector<1xf32> to vector<1x1xf32>
    %776 = vector.broadcast %775 : vector<1x1xf32> to vector<1x128xf32>
    %777 = arith.subf %773, %776 : vector<1x128xf32>
    %778 = math.exp %777 : vector<1x128xf32>
    %cst_267 = arith.constant dense<0.000000e+00> : vector<1xf32>
    %779 = vector.multi_reduction <add>, %778, %cst_267 [1] : vector<1x128xf32> to vector<1xf32>
    %780 = vector.shape_cast %779 : vector<1xf32> to vector<1x1xf32>
    %781 = math.log %780 : vector<1x1xf32>
    %782 = vector.broadcast %781 : vector<1x1xf32> to vector<1x128xf32>
    %783 = arith.subf %777, %782 : vector<1x128xf32>
    %c0_268 = arith.constant 0 : index
    %c0_269 = arith.constant 0 : index
    %c0_270 = arith.constant 0 : index
    %784 = vector.load %arg11[%c0_268, %c0_269, %c0_270] : memref<1x1x128xf32, #tpu.memory_space<vmem>>, vector<1x1x128xf32>
    %785 = vector.shape_cast %784 : vector<1x1x128xf32> to vector<1x128xf32>
    %786 = vector.shape_cast %783 : vector<1x128xf32> to vector<1x1x128xf32>
    tpu.vector_store %arg11[%c0_268, %c0_269, %c0_270], %786 {strides = array<i32>} : memref<1x1x128xf32, #tpu.memory_space<vmem>>, vector<1x1x128xf32>,
    return
  }
  func.func @transform_0(%arg0: i32) -> (i32, i32, i32) {
    %c0_i32 = arith.constant 0 : i32
    %c0_i32_0 = arith.constant 0 : i32
    %c0_i32_1 = arith.constant 0 : i32
    return %arg0, %c0_i32, %c0_i32_0 : i32, i32, i32
  }
  func.func @transform_1(%arg0: i32) -> (i32, i32) {
    %c0_i32 = arith.constant 0 : i32
    %c0_i32_0 = arith.constant 0 : i32
    %c0_i32_1 = arith.constant 0 : i32
    return %c0_i32, %c0_i32_0 : i32, i32
  }
  func.func @transform_2(%arg0: i32) -> (i32, i32) {
    %c0_i32 = arith.constant 0 : i32
    %c0_i32_0 = arith.constant 0 : i32
    %c0_i32_1 = arith.constant 0 : i32
    return %c0_i32, %c0_i32_0 : i32, i32
  }
  func.func @transform_3(%arg0: i32) -> (i32, i32, i32) {
    %c0_i32 = arith.constant 0 : i32
    %c0_i32_0 = arith.constant 0 : i32
    %c0_i32_1 = arith.constant 0 : i32
    %c0_i32_2 = arith.constant 0 : i32
    return %c0_i32, %c0_i32_0, %c0_i32_1 : i32, i32, i32
  }
  func.func @transform_4(%arg0: i32) -> (i32, i32) {
    %c0_i32 = arith.constant 0 : i32
    %c0_i32_0 = arith.constant 0 : i32
    %c0_i32_1 = arith.constant 0 : i32
    return %c0_i32, %c0_i32_0 : i32, i32
  }
  func.func @transform_5(%arg0: i32) -> (i32, i32) {
    %c0_i32 = arith.constant 0 : i32
    %c0_i32_0 = arith.constant 0 : i32
    %c0_i32_1 = arith.constant 0 : i32
    return %c0_i32, %c0_i32_0 : i32, i32
  }
  func.func @transform_6(%arg0: i32) -> (i32, i32, i32) {
    %c0_i32 = arith.constant 0 : i32
    %c0_i32_0 = arith.constant 0 : i32
    %c0_i32_1 = arith.constant 0 : i32
    %c0_i32_2 = arith.constant 0 : i32
    return %c0_i32, %c0_i32_0, %c0_i32_1 : i32, i32, i32
  }
  func.func @transform_7(%arg0: i32) -> (i32, i32) {
    %c0_i32 = arith.constant 0 : i32
    %c0_i32_0 = arith.constant 0 : i32
    %c0_i32_1 = arith.constant 0 : i32
    return %c0_i32, %c0_i32_0 : i32, i32
  }
  func.func @transform_8(%arg0: i32) -> (i32, i32) {
    %c0_i32 = arith.constant 0 : i32
    %c0_i32_0 = arith.constant 0 : i32
    %c0_i32_1 = arith.constant 0 : i32
    return %c0_i32, %c0_i32_0 : i32, i32
  }
  func.func @transform_9(%arg0: i32) -> (i32, i32) {
    %c0_i32 = arith.constant 0 : i32
    %c0_i32_0 = arith.constant 0 : i32
    %c0_i32_1 = arith.constant 0 : i32
    return %c0_i32, %c0_i32_0 : i32, i32
  }
  func.func @transform_10(%arg0: i32) -> (i32, i32, i32) {
    %c0_i32 = arith.constant 0 : i32
    %c0_i32_0 = arith.constant 0 : i32
    %c0_i32_1 = arith.constant 0 : i32
    return %arg0, %c0_i32, %c0_i32_0 : i32, i32, i32
  }
}

</mosaic_0001>

<llo_original>
// kernel: squeeze.7
$region0: #{squeeze.7}
  %s0 = inlined_call_operand.vmem [shape: f32[2,1,24,24], index: 0, kind: input, shape index: {}]
  %s1 = inlined_call_operand.vmem [shape: f32[2,1,576], index: 1, kind: output, shape index: {}]
  $region1: #{squeeze.7} parent=0
    #allocation0 [shape = 'u8[40960]{0}', space=vmem, size = 0xa000, scoped, tag = 'scoped mem for output reshape']
    %s2 = smov 3
    %v3 = vld [vmem:[%s0] ss:$16 sm:%s2]
    %vm4 = vcmask 195584
    %5 = vst.msk [vmem:[#allocation0] ss:$24 sm:$0x3] %vm4, %v3
    %s6 = scalar_lea.vmem %s0, 24
    %s7 = smov 3
    %v8 = vld [vmem:[%s6] ss:$16 sm:%s7]
    %vm9 = vcmask 195584
    %s10 = scalar_lea.vmem [#allocation0], 40
    %11 = vst.msk [vmem:[%s10] ss:$24 sm:$0x3] %vm9, %v8
    %s12 = scalar_lea.vmem %s0, 21
    %s13 = smov 3
    %v14 = vld [vmem:[%s12] ss:$-16 sm:%s13]
    %s15 = scalar_lea.vmem %s0, 4294967293
    %s16 = smov 12
    %v17 = vld [vmem:[%s15] ss:$16 sm:%s16]
    %vm18 = vcmask 1043458
    %v19 = vsel %vm18, %v17, %v14
    %s20 = scalar_lea.vmem %s0, 5
    %s21 = smov 3
    %v22 = vld [vmem:[%s20] ss:$24 sm:%s21]
    %s23 = scalar_lea.vmem %s0, 4294967269
    %s24 = smov 12
    %v25 = vld [vmem:[%s23] ss:$24 sm:%s24]
    %vm26 = vcmask 1043458
    %v27 = vsel %vm26, %v25, %v22
    %vm28 = vcmask 64512
    %v29 = vsel %vm28, %v27, %v19
    %30 = vrot.lane.b32.xlu0 %v29, 120
    %v31 = vpop.permute.xlu0 %30
    %vm32 = vcmask 130048
    %s33 = scalar_lea.vmem [#allocation0], 32
    %34 = vst.msk [vmem:[%s33] ss:$-24 sm:$0x3] %vm32, %v31
    %35 = vst.msk [vmem:[#allocation0] ss:$24 sm:$0xc] %vm32, %v31
    %vm36 = vcmask 1048512
    %37 = vst.msk [vmem:[#allocation0] ss:$40 sm:$0x3] %vm36, %v31
    %s38 = scalar_lea.vmem [#allocation0], 4294967240
    %39 = vst.msk [vmem:[%s38] ss:$40 sm:$0xc] %vm36, %v31
    %s40 = scalar_lea.vmem %s0, 10
    %s41 = smov 3
    %v42 = vld [vmem:[%s40] ss:$24 sm:%s41]
    %s43 = scalar_lea.vmem %s0, 10
    %s44 = smov 3
    %v45 = vld [vmem:[%s43] ss:$24 sm:%s44]
    %vm46 = vcmask 130048
    %v47 = vsel %vm46, %v45, %v42
    %48 = vrot.lane.b32.xlu0 %v47, 112
    %v49 = vpop.permute.xlu0 %48
    %vm50 = vcmask 64512
    %s51 = scalar_lea.vmem [#allocation0], 16
    %52 = vst.msk [vmem:[%s51] ss:$40 sm:$0x3] %vm50, %v49
    %vm53 = vcmask 1048448
    %s54 = scalar_lea.vmem [#allocation0], 8
    %55 = vst.msk [vmem:[%s54] ss:$40 sm:$0x3] %vm53, %v49
    %s56 = scalar_lea.vmem %s0, 15
    %s57 = smov 3
    %v58 = vld [vmem:[%s56] ss:$24 sm:%s57]
    %59 = vrot.lane.b32.xlu0 %v58, 104
    %v60 = vpop.permute.xlu0 %59
    %vm61 = vcmask 1048384
    %s62 = scalar_lea.vmem [#allocation0], 16
    %63 = vst.msk [vmem:[%s62] ss:$40 sm:$0x3] %vm61, %v60
    %s64 = scalar_lea.vmem %s0, 4
    %s65 = smov 3
    %v66 = vld [vmem:[%s64] ss:$24 sm:%s65]
    %s67 = scalar_lea.vmem %s0, 4294967268
    %s68 = smov 12
    %v69 = vld [vmem:[%s67] ss:$24 sm:%s68]
    %vm70 = vcmask 1043458
    %v71 = vsel %vm70, %v69, %v66
    %72 = vrot.lane.b32.xlu0 %v71, 96
    %v73 = vpop.permute.xlu0 %72
    %vm74 = vcmask 982784
    %75 = vst.msk [vmem:[#allocation0] ss:$40 sm:$0x3] %vm74, %v73
    %s76 = scalar_lea.vmem [#allocation0], 4294967240
    %77 = vst.msk [vmem:[%s76] ss:$40 sm:$0xc] %vm74, %v73
    %s78 = scalar_lea.vmem %s0, 9
    %s79 = smov 3
    %v80 = vld [vmem:[%s78] ss:$24 sm:%s79]
    %81 = vrot.lane.b32.xlu0 %v80, 88
    %v82 = vpop.permute.xlu0 %81
    %vm83 = vcmask 917184
    %s84 = scalar_lea.vmem [#allocation0], 8
    %85 = vst.msk [vmem:[%s84] ss:$40 sm:$0x3] %vm83, %v82
    %s86 = scalar_lea.vmem %s0, 14
    %s87 = smov 3
    %v88 = vld [vmem:[%s86] ss:$24 sm:%s87]
    %89 = vrot.lane.b32.xlu0 %v88, 80
    %v90 = vpop.permute.xlu0 %89
    %vm91 = vcmask 851584
    %s92 = scalar_lea.vmem [#allocation0], 16
    %93 = vst.msk [vmem:[%s92] ss:$40 sm:$0x3] %vm91, %v90
    %s94 = scalar_lea.vmem %s0, 3
    %s95 = smov 3
    %v96 = vld [vmem:[%s94] ss:$24 sm:%s95]
    %s97 = scalar_lea.vmem %s0, 4294967267
    %s98 = smov 12
    %v99 = vld [vmem:[%s97] ss:$24 sm:%s98]
    %vm100 = vcmask 1043458
    %v101 = vsel %vm100, %v99, %v96
    %102 = vrot.lane.b32.xlu0 %v101, 72
    %v103 = vpop.permute.xlu0 %102
    %vm104 = vcmask 785984
    %105 = vst.msk [vmem:[#allocation0] ss:$40 sm:$0x3] %vm104, %v103
    %s106 = scalar_lea.vmem [#allocation0], 4294967240
    %107 = vst.msk [vmem:[%s106] ss:$40 sm:$0xc] %vm104, %v103
    %s108 = scalar_lea.vmem %s0, 8
    %s109 = smov 3
    %v110 = vld [vmem:[%s108] ss:$24 sm:%s109]
    %111 = vrot.lane.b32.xlu0 %v110, 64
    %v112 = vpop.permute.xlu0 %111
    %vm113 = vcmask 720384
    %s114 = scalar_lea.vmem [#allocation0], 8
    %115 = vst.msk [vmem:[%s114] ss:$40 sm:$0x3] %vm113, %v112
    %s116 = scalar_lea.vmem %s0, 13
    %s117 = smov 3
    %v118 = vld [vmem:[%s116] ss:$24 sm:%s117]
    %119 = vrot.lane.b32.xlu0 %v118, 56
    %v120 = vpop.permute.xlu0 %119
    %vm121 = vcmask 654784
    %s122 = scalar_lea.vmem [#allocation0], 16
    %123 = vst.msk [vmem:[%s122] ss:$40 sm:$0x3] %vm121, %v120
    %s124 = scalar_lea.vmem %s0, 2
    %s125 = smov 3
    %v126 = vld [vmem:[%s124] ss:$24 sm:%s125]
    %s127 = scalar_lea.vmem %s0, 4294967266
    %s128 = smov 12
    %v129 = vld [vmem:[%s127] ss:$24 sm:%s128]
    %vm130 = vcmask 1043458
    %v131 = vsel %vm130, %v129, %v126
    %132 = vrot.lane.b32.xlu0 %v131, 48
    %v133 = vpop.permute.xlu0 %132
    %vm134 = vcmask 589184
    %135 = vst.msk [vmem:[#allocation0] ss:$40 sm:$0x3] %vm134, %v133
    %s136 = scalar_lea.vmem [#allocation0], 4294967240
    %137 = vst.msk [vmem:[%s136] ss:$40 sm:$0xc] %vm134, %v133
    %s138 = scalar_lea.vmem %s0, 23
    %s139 = smov 3
    %v140 = vld [vmem:[%s138] ss:$-16 sm:%s139]
    %s141 = scalar_lea.vmem %s0, 4294967295
    %s142 = smov 12
    %v143 = vld [vmem:[%s141] ss:$16 sm:%s142]
    %vm144 = vcmask 1043458
    %v145 = vsel %vm144, %v143, %v140
    %146 = vrot.lane.b32.xlu0 %v145, 40
    %v147 = vpop.permute.xlu0 %146
    %vm148 = vcmask 523584
    %s149 = scalar_lea.vmem [#allocation0], 32
    %150 = vst.msk [vmem:[%s149] ss:$-24 sm:$0x3] %vm148, %v147
    %151 = vst.msk [vmem:[#allocation0] ss:$24 sm:$0xc] %vm148, %v147
    %s152 = scalar_lea.vmem %s0, 12
    %s153 = smov 3
    %v154 = vld [vmem:[%s152] ss:$24 sm:%s153]
    %155 = vrot.lane.b32.xlu0 %v154, 32
    %v156 = vpop.permute.xlu0 %155
    %vm157 = vcmask 457984
    %s158 = scalar_lea.vmem [#allocation0], 16
    %159 = vst.msk [vmem:[%s158] ss:$40 sm:$0x3] %vm157, %v156
    %s160 = scalar_lea.vmem %s0, 1
    %s161 = smov 3
    %v162 = vld [vmem:[%s160] ss:$24 sm:%s161]
    %s163 = scalar_lea.vmem %s0, 4294967265
    %s164 = smov 12
    %v165 = vld [vmem:[%s163] ss:$24 sm:%s164]
    %vm166 = vcmask 1043458
    %v167 = vsel %vm166, %v165, %v162
    %168 = vrot.lane.b32.xlu0 %v167, 24
    %v169 = vpop.permute.xlu0 %168
    %vm170 = vcmask 392384
    %171 = vst.msk [vmem:[#allocation0] ss:$40 sm:$0x3] %vm170, %v169
    %s172 = scalar_lea.vmem [#allocation0], 4294967240
    %173 = vst.msk [vmem:[%s172] ss:$40 sm:$0xc] %vm170, %v169
    %s174 = scalar_lea.vmem %s0, 22
    %s175 = smov 3
    %v176 = vld [vmem:[%s174] ss:$-16 sm:%s175]
    %s177 = scalar_lea.vmem %s0, 4294967294
    %s178 = smov 12
    %v179 = vld [vmem:[%s177] ss:$16 sm:%s178]
    %vm180 = vcmask 1043458
    %v181 = vsel %vm180, %v179, %v176
    %182 = vrot.lane.b32.xlu0 %v181, 16
    %v183 = vpop.permute.xlu0 %182
    %vm184 = vcmask 326784
    %s185 = scalar_lea.vmem [#allocation0], 32
    %186 = vst.msk [vmem:[%s185] ss:$-24 sm:$0x3] %vm184, %v183
    %187 = vst.msk [vmem:[#allocation0] ss:$24 sm:$0xc] %vm184, %v183
    %s188 = scalar_lea.vmem %s0, 11
    %s189 = smov 3
    %v190 = vld [vmem:[%s188] ss:$24 sm:%s189]
    %191 = vrot.lane.b32.xlu0 %v190, 8
    %v192 = vpop.permute.xlu0 %191
    %vm193 = vcmask 261184
    %s194 = scalar_lea.vmem [#allocation0], 16
    %195 = vst.msk [vmem:[%s194] ss:$40 sm:$0x3] %vm193, %v192
    %s197 = sshllo.u32 0, 1
    %v199 = vld [vmem:[#allocation0] sm:%s197]
    %s200 = sshllo.u32 0, 1
    %201 = vst [vmem:[%s1] sm:%s200] %v199
    %s202 = scalar_lea.vmem [#allocation0], 8
    %v203 = vld [vmem:[%s202] sm:%s197]
    %s204 = sshllo.u32 0, 1
    %s205 = scalar_lea.vmem %s1, 1
    %206 = vst [vmem:[%s205] sm:%s204] %v203
    %s207 = scalar_lea.vmem [#allocation0], 16
    %v208 = vld [vmem:[%s207] sm:%s197]
    %s209 = sshllo.u32 0, 1
    %s210 = smul.addr 1, 2
    %s211 = scalar_lea.vmem %s1, %s210
    %212 = vst [vmem:[%s211] sm:%s209] %v208
    %s213 = scalar_lea.vmem [#allocation0], 24
    %v214 = vld [vmem:[%s213] sm:%s197]
    %s215 = sshllo.u32 0, 1
    %s216 = smul.addr 1, 3
    %s217 = scalar_lea.vmem %s1, %s216
    %218 = vst [vmem:[%s217] sm:%s215] %v214
    %s219 = scalar_lea.vmem [#allocation0], 32
    %v220 = vld [vmem:[%s219] sm:%s197]
    %s221 = sshllo.u32 0, 1
    %s222 = smul.addr 1, 4
    %s223 = scalar_lea.vmem %s1, %s222
    %224 = vst [vmem:[%s223] sm:%s221] %v220
    %s225 = scalar_lea.vmem [#allocation0], 40
    %v226 = vld [vmem:[%s225] sm:%s197]
    %s227 = sshllo.u32 0, 1
    %s228 = smul.addr 1, 5
    %s229 = scalar_lea.vmem %s1, %s228
    %230 = vst [vmem:[%s229] sm:%s227] %v226
    %s231 = scalar_lea.vmem [#allocation0], 48
    %v232 = vld [vmem:[%s231] sm:%s197]
    %s233 = sshllo.u32 0, 1
    %s234 = smul.addr 1, 6
    %s235 = scalar_lea.vmem %s1, %s234
    %236 = vst [vmem:[%s235] sm:%s233] %v232
    %s237 = scalar_lea.vmem [#allocation0], 56
    %v238 = vld [vmem:[%s237] sm:%s197]
    %s239 = sshllo.u32 0, 1
    %s240 = smul.addr 1, 7
    %s241 = scalar_lea.vmem %s1, %s240
    %242 = vst [vmem:[%s241] sm:%s239] %v238
    %s243 = scalar_lea.vmem [#allocation0], 64
    %v244 = vld [vmem:[%s243] sm:%s197]
    %s245 = sshllo.u32 0, 1
    %s246 = smul.addr 1, 8
    %s247 = scalar_lea.vmem %s1, %s246
    %248 = vst [vmem:[%s247] sm:%s245] %v244
    %s249 = scalar_lea.vmem [#allocation0], 72
    %v250 = vld [vmem:[%s249] sm:%s197]
    %s251 = sshllo.u32 0, 1
    %s252 = smul.addr 1, 9
    %s253 = scalar_lea.vmem %s1, %s252
    %254 = vst [vmem:[%s253] sm:%s251] %v250

// kernel: cnn_forward.1
$region0: #{cnn_forward.1}
  #allocation0 [shape = 'u32[]', space=smem, size = 0x4, offset = 0x4, fixed_abs, tag = 'smem constant byte address 0x4 - core index']
  #allocation1 [shape = 'u32[144,128]{1,0:T(1,128)}', space=vmem, size = 0x12000, scoped, tag = 'internal scratch']
  #allocation2 [shape = 'bf16[8,768]{1,0:T(8,128)(2,1)}', space=vmem, size = 0x3000, scoped, tag = 'scratch operand']
  %s0 = inlined_call_operand.vmem [shape: f32[2,4,896], index: 0, kind: input, shape index: {}]
  %s1 = inlined_call_operand.vmem [shape: f32[8,32], index: 1, kind: input, shape index: {}]
  %s2 = inlined_call_operand.vmem [shape: f32[8,1], index: 2, kind: input, shape index: {}]
  %s3 = inlined_call_operand.vmem [shape: bf16[25,8,8], index: 3, kind: input, shape index: {}]
  %s4 = inlined_call_operand.vmem [shape: f32[8,1], index: 4, kind: input, shape index: {}]
  %s5 = inlined_call_operand.vmem [shape: bf16[448,128], index: 5, kind: input, shape index: {}]
  %s6 = inlined_call_operand.vmem [shape: bf16[8,128,128], index: 6, kind: input, shape index: {}]
  %s7 = inlined_call_operand.vmem [shape: f32[1,128], index: 7, kind: input, shape index: {}]
  %s8 = inlined_call_operand.hbm [shape: bf16[128,128], index: 8, kind: input, shape index: {}]
  %s9 = inlined_call_operand.vmem [shape: f32[1,128], index: 9, kind: input, shape index: {}]
  %s10 = inlined_call_operand.hbm [shape: f32[2,1,128], index: 10, kind: output, shape index: {}]
  %s11 = sld [smem:[#allocation0]]
  $region77: #{cnn_forward.1} parent=0
    _
  %s13 = ssub.s32 1, %s11
  %s14 = scalar_select 0, %s13, %s11
  $region1: #{cnn_forward.1} parent=0
    #allocation3 [shape = 'u8[32768]{0}', space=vmem, size = 0x8000, scoped, tag = 'input window, operand 8, single buffered']
    #allocation4 [shape = 's32[2]{0}', space=sflag, size = 0x8, scoped, tag = 'scoped memory for cnn_forward.1']
    #allocation5 [shape = 's32[2]{0}', space=sflag, size = 0x8, scoped, tag = 'scoped memory for cnn_forward.1']
    #allocation6 [shape = 'u8[1024]{0}', space=vmem, size = 0x400, scoped, tag = 'output window, operand 0']
    %15 = vsyncpa [#allocation4], 0
    %16 = vsyncpa [#allocation5], 0
    %s17 = scalar_lea.sflag [#allocation5], 1
    %18 = vsyncpa %s17, 0
    loop: start=0, step=1, limit=4
    $region2: #{cnn_forward.1} parent=1 // loop_pre_header
      _
    $region3: #{cnn_forward.1} parent=1 // loop_header
      %s20 = sphi 0, %s24
      %p21 = scmp.ge.s32.totalorder %s20, 4
      %s30 = sphi 0, %s32
      %s33 = sphi 0, %s30
      %s34 = sphi 0, %s33
      %s50 = sphi 0, %s34
      %s54 = sphi 0, %s54
      %s56 = sphi 0, %s54
      %s57 = sphi 0, %s56
      %s71 = sphi 0, %s57
      %s75 = sphi 0, %s75
      %s77 = sphi 0, %s75
      %s78 = sphi 0, %s77
      %s92 = sphi 0, %s78
      %s96 = sphi 0, %s96
      %s98 = sphi 0, %s96
      %s99 = sphi 0, %s98
      %s113 = sphi 0, %s99
      %s117 = sphi 0, %s117
      %s119 = sphi 0, %s117
      %s120 = sphi 0, %s119
      %s134 = sphi 0, %s120
      %s138 = sphi 0, %s138
      %s140 = sphi 0, %s138
      %s141 = sphi 0, %s140
      %s155 = sphi 0, %s141
      %s159 = sphi 0, %s159
      %s161 = sphi 0, %s159
      %s162 = sphi 0, %s161
      %s176 = sphi 0, %s162
      %s180 = sphi 0, %s180
      %s182 = sphi 0, %s180
      %s183 = sphi 0, %s182
      %s197 = sphi 0, %s183
      %s201 = sphi 0, %s201
      %s203 = sphi 0, %s201
      %s204 = sphi 0, %s203
      %s218 = sphi 0, %s204
      %s222 = sphi 0, %s222
      %s224 = sphi 0, %s222
      %s225 = sphi 0, %s224
      %s239 = sphi 0, %s225
      %s245 = sphi 0, %s247
      %s248 = sphi 0, %s245
      %s249 = sphi 0, %s248
      %s265 = sphi 0, %s249
    $region4: #{cnn_forward.1} parent=1 // loop_header_branch
      %23 = sbr.rel (%p21) target = $region8
    $region5: #{cnn_forward.1} parent=1 // loop_body
      %s25 = ssub.s32 %s20, 1
      %s26 = ssub.s32 %s20, 2
      %s27 = sadd.s32 %s20, 1
      %s28 = ssub.s32 %s20, %s27
      %p29 = scmp.eq.s32.totalorder %s28, 0
      %s31 = sadd.s32 %s30, 1
      %s32 = scalar_select %p29, %s30, %s31
      %p35 = pneg %p29
      %p36 = scmp.eq.s32.totalorder %s20, 1
      %p37 = por %p35, %p36
      %p38 = scmp.ne.s32.totalorder %s30, %s33
      %p39 = scmp.eq.s32.totalorder %s20, 0
      %p40 = por %p38, %p39
      %p41 = scmp.ne.s32.totalorder %s30, %s33
      %p42 = scmp.eq.s32.totalorder %s25, 1
      %p43 = por %p41, %p42
      %p44 = scmp.ne.s32.totalorder %s33, %s34
      %p45 = scmp.eq.s32.totalorder %s25, 0
      %p46 = por %p44, %p45
      %p47 = scmp.ne.s32.totalorder %s33, %s34
      %p48 = scmp.eq.s32.totalorder %s26, 1
      %p49 = por %p47, %p48
      %p51 = scmp.ne.s32.totalorder %s34, %s50
      %p52 = scmp.eq.s32.totalorder %s26, 0
      %p53 = por %p51, %p52
      %s55 = sadd.s32 %s54, 1
      %p58 = scmp.eq.s32.totalorder %s20, 1
      %p59 = scmp.ne.s32.totalorder %s54, %s56
      %p60 = scmp.eq.s32.totalorder %s20, 0
      %p61 = por %p59, %p60
      %p62 = scmp.ne.s32.totalorder %s54, %s56
      %p63 = scmp.eq.s32.totalorder %s25, 1
      %p64 = por %p62, %p63
      %p65 = scmp.ne.s32.totalorder %s56, %s57
      %p66 = scmp.eq.s32.totalorder %s25, 0
      %p67 = por %p65, %p66
      %p68 = scmp.ne.s32.totalorder %s56, %s57
      %p69 = scmp.eq.s32.totalorder %s26, 1
      %p70 = por %p68, %p69
      %p72 = scmp.ne.s32.totalorder %s57, %s71
      %p73 = scmp.eq.s32.totalorder %s26, 0
      %p74 = por %p72, %p73
      %s76 = sadd.s32 %s75, 1
      %p79 = scmp.eq.s32.totalorder %s20, 1
      %p80 = scmp.ne.s32.totalorder %s75, %s77
      %p81 = scmp.eq.s32.totalorder %s20, 0
      %p82 = por %p80, %p81
      %p83 = scmp.ne.s32.totalorder %s75, %s77
      %p84 = scmp.eq.s32.totalorder %s25, 1
      %p85 = por %p83, %p84
      %p86 = scmp.ne.s32.totalorder %s77, %s78
      %p87 = scmp.eq.s32.totalorder %s25, 0
      %p88 = por %p86, %p87
      %p89 = scmp.ne.s32.totalorder %s77, %s78
      %p90 = scmp.eq.s32.totalorder %s26, 1
      %p91 = por %p89, %p90
      %p93 = scmp.ne.s32.totalorder %s78, %s92
      %p94 = scmp.eq.s32.totalorder %s26, 0
      %p95 = por %p93, %p94
      %s97 = sadd.s32 %s96, 1
      %p100 = scmp.eq.s32.totalorder %s20, 1
      %p101 = scmp.ne.s32.totalorder %s96, %s98
      %p102 = scmp.eq.s32.totalorder %s20, 0
      %p103 = por %p101, %p102
      %p104 = scmp.ne.s32.totalorder %s96, %s98
      %p105 = scmp.eq.s32.totalorder %s25, 1
      %p106 = por %p104, %p105
      %p107 = scmp.ne.s32.totalorder %s98, %s99
      %p108 = scmp.eq.s32.totalorder %s25, 0
      %p109 = por %p107, %p108
      %p110 = scmp.ne.s32.totalorder %s98, %s99
      %p111 = scmp.eq.s32.totalorder %s26, 1
      %p112 = por %p110, %p111
      %p114 = scmp.ne.s32.totalorder %s99, %s113
      %p115 = scmp.eq.s32.totalorder %s26, 0
      %p116 = por %p114, %p115
      %s118 = sadd.s32 %s117, 1
      %p121 = scmp.eq.s32.totalorder %s20, 1
      %p122 = scmp.ne.s32.totalorder %s117, %s119
      %p123 = scmp.eq.s32.totalorder %s20, 0
      %p124 = por %p122, %p123
      %p125 = scmp.ne.s32.totalorder %s117, %s119
      %p126 = scmp.eq.s32.totalorder %s25, 1
      %p127 = por %p125, %p126
      %p128 = scmp.ne.s32.totalorder %s119, %s120
      %p129 = scmp.eq.s32.totalorder %s25, 0
      %p130 = por %p128, %p129
      %p131 = scmp.ne.s32.totalorder %s119, %s120
      %p132 = scmp.eq.s32.totalorder %s26, 1
      %p133 = por %p131, %p132
      %p135 = scmp.ne.s32.totalorder %s120, %s134
      %p136 = scmp.eq.s32.totalorder %s26, 0
      %p137 = por %p135, %p136
      %s139 = sadd.s32 %s138, 1
      %p142 = scmp.eq.s32.totalorder %s20, 1
      %p143 = scmp.ne.s32.totalorder %s138, %s140
      %p144 = scmp.eq.s32.totalorder %s20, 0
      %p145 = por %p143, %p144
      %p146 = scmp.ne.s32.totalorder %s138, %s140
      %p147 = scmp.eq.s32.totalorder %s25, 1
      %p148 = por %p146, %p147
      %p149 = scmp.ne.s32.totalorder %s140, %s141
      %p150 = scmp.eq.s32.totalorder %s25, 0
      %p151 = por %p149, %p150
      %p152 = scmp.ne.s32.totalorder %s140, %s141
      %p153 = scmp.eq.s32.totalorder %s26, 1
      %p154 = por %p152, %p153
      %p156 = scmp.ne.s32.totalorder %s141, %s155
      %p157 = scmp.eq.s32.totalorder %s26, 0
      %p158 = por %p156, %p157
      %s160 = sadd.s32 %s159, 1
      %p163 = scmp.eq.s32.totalorder %s20, 1
      %p164 = scmp.ne.s32.totalorder %s159, %s161
      %p165 = scmp.eq.s32.totalorder %s20, 0
      %p166 = por %p164, %p165
      %p167 = scmp.ne.s32.totalorder %s159, %s161
      %p168 = scmp.eq.s32.totalorder %s25, 1
      %p169 = por %p167, %p168
      %p170 = scmp.ne.s32.totalorder %s161, %s162
      %p171 = scmp.eq.s32.totalorder %s25, 0
      %p172 = por %p170, %p171
      %p173 = scmp.ne.s32.totalorder %s161, %s162
      %p174 = scmp.eq.s32.totalorder %s26, 1
      %p175 = por %p173, %p174
      %p177 = scmp.ne.s32.totalorder %s162, %s176
      %p178 = scmp.eq.s32.totalorder %s26, 0
      %p179 = por %p177, %p178
      %s181 = sadd.s32 %s180, 1
      %p184 = scmp.eq.s32.totalorder %s20, 1
      %p185 = scmp.ne.s32.totalorder %s180, %s182
      %p186 = scmp.eq.s32.totalorder %s20, 0
      %p187 = por %p185, %p186
      %p188 = scmp.ne.s32.totalorder %s180, %s182
      %p189 = scmp.eq.s32.totalorder %s25, 1
      %p190 = por %p188, %p189
      %p191 = scmp.ne.s32.totalorder %s182, %s183
      %p192 = scmp.eq.s32.totalorder %s25, 0
      %p193 = por %p191, %p192
      %p194 = scmp.ne.s32.totalorder %s182, %s183
      %p195 = scmp.eq.s32.totalorder %s26, 1
      %p196 = por %p194, %p195
      %p198 = scmp.ne.s32.totalorder %s183, %s197
      %p199 = scmp.eq.s32.totalorder %s26, 0
      %p200 = por %p198, %p199
      %s202 = sadd.s32 %s201, 1
      %p205 = scmp.eq.s32.totalorder %s20, 1
      %p206 = scmp.ne.s32.totalorder %s201, %s203
      %p207 = scmp.eq.s32.totalorder %s20, 0
      %p208 = por %p206, %p207
      %p209 = scmp.ne.s32.totalorder %s201, %s203
      %p210 = scmp.eq.s32.totalorder %s25, 1
      %p211 = por %p209, %p210
      %p212 = scmp.ne.s32.totalorder %s203, %s204
      %p213 = scmp.eq.s32.totalorder %s25, 0
      %p214 = por %p212, %p213
      %p215 = scmp.ne.s32.totalorder %s203, %s204
      %p216 = scmp.eq.s32.totalorder %s26, 1
      %p217 = por %p215, %p216
      %p219 = scmp.ne.s32.totalorder %s204, %s218
      %p220 = scmp.eq.s32.totalorder %s26, 0
      %p221 = por %p219, %p220
      %s223 = sadd.s32 %s222, 1
      %p226 = scmp.eq.s32.totalorder %s20, 1
      %p227 = scmp.ne.s32.totalorder %s222, %s224
      %p228 = scmp.eq.s32.totalorder %s20, 0
      %p229 = por %p227, %p228
      %p230 = scmp.ne.s32.totalorder %s222, %s224
      %p231 = scmp.eq.s32.totalorder %s25, 1
      %p232 = por %p230, %p231
      %p233 = scmp.ne.s32.totalorder %s224, %s225
      %p234 = scmp.eq.s32.totalorder %s25, 0
      %p235 = por %p233, %p234
      %p236 = scmp.ne.s32.totalorder %s224, %s225
      %p237 = scmp.eq.s32.totalorder %s26, 1
      %p238 = por %p236, %p237
      %p240 = scmp.ne.s32.totalorder %s225, %s239
      %p241 = scmp.eq.s32.totalorder %s26, 0
      %p242 = por %p240, %p241
      %s243 = ssub.s32 %s20, %s27
      %p244 = scmp.eq.s32.totalorder %s243, 0
      %s246 = sadd.s32 %s245, 1
      %s247 = scalar_select %p244, %s245, %s246
      %p250 = pneg %p244
      %p251 = scmp.eq.s32.totalorder %s20, 1
      %p252 = por %p250, %p251
      %p253 = scmp.ne.s32.totalorder %s245, %s248
      %p254 = scmp.eq.s32.totalorder %s20, 0
      %p255 = por %p253, %p254
      %p256 = scmp.ne.s32.totalorder %s245, %s248
      %p257 = scmp.eq.s32.totalorder %s25, 1
      %p258 = por %p256, %p257
      %p259 = scmp.ne.s32.totalorder %s248, %s249
      %p260 = scmp.eq.s32.totalorder %s25, 0
      %p261 = por %p259, %p260
      %p262 = scmp.ne.s32.totalorder %s248, %s249
      %p263 = scmp.eq.s32.totalorder %s26, 1
      %p264 = por %p262, %p263
      %p266 = scmp.ne.s32.totalorder %s249, %s265
      %p267 = scmp.eq.s32.totalorder %s26, 0
      %p268 = por %p266, %p267
      %p269 = scmp.le.s32.totalorder 1, %s20
      %p270 = scmp.lt.s32.totalorder %s20, 3
      %p271 = pnand %p269, %p270
      %p272 = pneg %p271
      // Predicated region
      $region9: #{cnn_forward.1} parent=5 // pred_check
        _
      $region10: #{cnn_forward.1} parent=5 // pred_check_branch
        %274 = sbr.rel (%p271) target = $region12
      $region11: #{cnn_forward.1} parent=5 // pred_region
        %s275 = ssub.s32 %s20, 1
        // Predicated region
        $region13: #{cnn_forward.1} parent=11 // pred_check
          %p276 = pneg %p67
        $region14: #{cnn_forward.1} parent=11 // pred_check_branch
          %278 = sbr.rel (%p276) target = $region16
        $region15: #{cnn_forward.1} parent=11 // pred_region
          _
        $region16: #{cnn_forward.1} parent=11 // pred_fallthru
          _
        // Predicated region
        $region17: #{cnn_forward.1} parent=11 // pred_check
          %p279 = pneg %p88
        $region18: #{cnn_forward.1} parent=11 // pred_check_branch
          %281 = sbr.rel (%p279) target = $region20
        $region19: #{cnn_forward.1} parent=11 // pred_region
          _
        $region20: #{cnn_forward.1} parent=11 // pred_fallthru
          _
        // Predicated region
        $region21: #{cnn_forward.1} parent=11 // pred_check
          %p282 = pneg %p109
        $region22: #{cnn_forward.1} parent=11 // pred_check_branch
          %284 = sbr.rel (%p282) target = $region24
        $region23: #{cnn_forward.1} parent=11 // pred_region
          _
        $region24: #{cnn_forward.1} parent=11 // pred_fallthru
          _
        // Predicated region
        $region25: #{cnn_forward.1} parent=11 // pred_check
          %p285 = pneg %p130
        $region26: #{cnn_forward.1} parent=11 // pred_check_branch
          %287 = sbr.rel (%p285) target = $region28
        $region27: #{cnn_forward.1} parent=11 // pred_region
          _
        $region28: #{cnn_forward.1} parent=11 // pred_fallthru
          _
        // Predicated region
        $region29: #{cnn_forward.1} parent=11 // pred_check
          %p288 = pneg %p151
        $region30: #{cnn_forward.1} parent=11 // pred_check_branch
          %290 = sbr.rel (%p288) target = $region32
        $region31: #{cnn_forward.1} parent=11 // pred_region
          _
        $region32: #{cnn_forward.1} parent=11 // pred_fallthru
          _
        // Predicated region
        $region33: #{cnn_forward.1} parent=11 // pred_check
          %p291 = pneg %p172
        $region34: #{cnn_forward.1} parent=11 // pred_check_branch
          %293 = sbr.rel (%p291) target = $region36
        $region35: #{cnn_forward.1} parent=11 // pred_region
          _
        $region36: #{cnn_forward.1} parent=11 // pred_fallthru
          _
        // Predicated region
        $region37: #{cnn_forward.1} parent=11 // pred_check
          %p294 = pneg %p193
        $region38: #{cnn_forward.1} parent=11 // pred_check_branch
          %296 = sbr.rel (%p294) target = $region40
        $region39: #{cnn_forward.1} parent=11 // pred_region
          _
        $region40: #{cnn_forward.1} parent=11 // pred_fallthru
          _
        // Predicated region
        $region41: #{cnn_forward.1} parent=11 // pred_check
          %p297 = pneg %p214
        $region42: #{cnn_forward.1} parent=11 // pred_check_branch
          %299 = sbr.rel (%p297) target = $region44
        $region43: #{cnn_forward.1} parent=11 // pred_region
          %s301 = ssub.s32 1024, 1024
          %302 = vsyncadd [#allocation4], %s301
          %s303 = sshll.u32 [#allocation3], 4
          %s304 = int_to_ptr.vmem [resolvable:$true] %s303
          %309 = dma.hbm_to_vmem [thread:$0]  %s8, 1024, %s304, [#allocation4], 64, 64, 4
        $region44: #{cnn_forward.1} parent=11 // pred_fallthru
          _
        // Predicated region
        $region45: #{cnn_forward.1} parent=11 // pred_check
          %p310 = pneg %p235
        $region46: #{cnn_forward.1} parent=11 // pred_check_branch
          %312 = sbr.rel (%p310) target = $region48
        $region47: #{cnn_forward.1} parent=11 // pred_region
          _
        $region48: #{cnn_forward.1} parent=11 // pred_fallthru
          _
      $region12: #{cnn_forward.1} parent=5 // pred_fallthru
        _
      %p313 = scmp.lt.s32.totalorder %s20, 2
      // Predicated region
      $region49: #{cnn_forward.1} parent=5 // pred_check
        %p314 = pneg %p313
      $region50: #{cnn_forward.1} parent=5 // pred_check_branch
        %316 = sbr.rel (%p314) target = $region52
      $region51: #{cnn_forward.1} parent=5 // pred_region
        // Predicated region
        $region53: #{cnn_forward.1} parent=51 // pred_check
          %p317 = pneg %p40
        $region54: #{cnn_forward.1} parent=51 // pred_check_branch
          %319 = sbr.rel (%p317) target = $region56
        $region55: #{cnn_forward.1} parent=51 // pred_region
          %p320 = scmp.lt.s32.totalorder %s20, 1
          %s321 = scalar_select %p320, %s20, 1
          %s322 = smul.addr %s321, 7
          %s323 = smul.addr %s322, 4
          %s324 = scalar_lea.vmem %s0, %s323
        $region56: #{cnn_forward.1} parent=51 // pred_fallthru
          _
      $region52: #{cnn_forward.1} parent=5 // pred_fallthru
        _
      %p325 = scmp.le.s32.totalorder 1, %s20
      %p326 = scmp.lt.s32.totalorder %s20, 3
      %p327 = pnand %p325, %p326
      %p328 = pneg %p327
      // Predicated region
      $region57: #{cnn_forward.1} parent=5 // pred_check
        _
      $region58: #{cnn_forward.1} parent=5 // pred_check_branch
        %330 = sbr.rel (%p327) target = $region60
      $region59: #{cnn_forward.1} parent=5 // pred_region
        %s331 = ssub.s32 %s20, 1
        // Predicated region
        $region61: #{cnn_forward.1} parent=59 // pred_check
          %p332 = pneg %p214
        $region62: #{cnn_forward.1} parent=59 // pred_check_branch
          %334 = sbr.rel (%p332) target = $region64
        $region63: #{cnn_forward.1} parent=59 // pred_region
          %335 = dma.done [#allocation4], 1024
        $region64: #{cnn_forward.1} parent=59 // pred_fallthru
          _
        %p336 = scmp.lt.s32.totalorder %s25, 1
        %s337 = scalar_select %p336, %s25, 1
        %s338 = smul.addr %s337, 7
        %s339 = smul.addr %s338, 4
        %s340 = scalar_lea.vmem %s0, %s339
        %p341 = pneg %p46
        %p342 = pneg %p43
        %p343 = pneg %p67
        %p344 = pneg %p64
        %p345 = pneg %p88
        %p346 = pneg %p85
        %p347 = pneg %p109
        %p348 = pneg %p106
        %p349 = pneg %p130
        %p350 = pneg %p127
        %p351 = pneg %p151
        %p352 = pneg %p148
        %p353 = pneg %p172
        %p354 = pneg %p169
        %p355 = pneg %p193
        %p356 = pneg %p190
        %p357 = pneg %p214
        %p358 = pneg %p211
        %p359 = pneg %p235
        %p360 = pneg %p232
        %p361 = pneg %p261
        %p362 = pneg %p258
        %s363 = sand.u32 %s248, 1
        %s364 = scalar_lea.sflag [#allocation5], %s363
        %s365 = sand.u32 %s248, 1
        %s366 = scalar_lea.vmem [#allocation6], %s365
        %p367 = scmp.lt.s32.totalorder %s25, 1
        %s368 = scalar_select %p367, %s25, 1
        %s369 = smul.addr %s368, 7
        %s370 = smul.addr %s369, 4
        %s371 = scalar_lea.vmem %s0, %s370
        %v373 = vld [vmem:[%s1] sm:$0xff]
        %v374 = vld [vmem:[%s371] ss:$4 sm:$0x3f]
        %376 = vset.pattern.permute.xlu0 0
        %377 = vperm.xlu0 %376, %v373
        %v378 = vpop.permute.xlu0 %377
        %v381 = vlaneseq
        %v382 = vshrl.u32 %v381, 7
        %v383 = vsub.s32 0, %v382
        %v384 = vrot.slane %v374, %v383
        %v385 = vlaneseq
        %v386 = vshrl.u32 %v385, 7
        %v387 = vsub.s32 1, %v386
        %v388 = vrot.slane %v374, %v387
        %v389 = vlaneseq
        %v390 = vshrl.u32 %v389, 7
        %v391 = vsub.s32 2, %v390
        %v392 = vrot.slane %v374, %v391
        %v393 = vlaneseq
        %v394 = vshrl.u32 %v393, 7
        %v395 = vsub.s32 3, %v394
        %v396 = vrot.slane %v374, %v395
        %v397 = vlaneseq
        %v398 = vshrl.u32 %v397, 7
        %v399 = vsub.s32 4, %v398
        %v400 = vrot.slane %v374, %v399
        %v401 = vlaneseq
        %v402 = vshrl.u32 %v401, 7
        %v403 = vsub.s32 5, %v402
        %v404 = vrot.slane %v374, %v403
        %v411 = vmul.f32 %v378, %v384
        %v412 = vmul.f32 %v378, %v388
        %v413 = vmul.f32 %v378, %v392
        %v414 = vmul.f32 %v378, %v396
        %v415 = vmul.f32 %v378, %v400
        %v416 = vmul.f32 %v378, %v404
        %s417 = scalar_lea.vmem %s371, 1
        %v418 = vld [vmem:[%s417] ss:$4 sm:$0x3f]
        %419 = vset.pattern.permute.xlu0 1
        %420 = vperm.xlu0 %419, %v373
        %v421 = vpop.permute.xlu0 %420
        %v424 = vlaneseq
        %v425 = vshrl.u32 %v424, 7
        %v426 = vsub.s32 0, %v425
        %v427 = vrot.slane %v418, %v426
        %v428 = vlaneseq
        %v429 = vshrl.u32 %v428, 7
        %v430 = vsub.s32 1, %v429
        %v431 = vrot.slane %v418, %v430
        %v432 = vlaneseq
        %v433 = vshrl.u32 %v432, 7
        %v434 = vsub.s32 2, %v433
        %v435 = vrot.slane %v418, %v434
        %v436 = vlaneseq
        %v437 = vshrl.u32 %v436, 7
        %v438 = vsub.s32 3, %v437
        %v439 = vrot.slane %v418, %v438
        %v440 = vlaneseq
        %v441 = vshrl.u32 %v440, 7
        %v442 = vsub.s32 4, %v441
        %v443 = vrot.slane %v418, %v442
        %v444 = vlaneseq
        %v445 = vshrl.u32 %v444, 7
        %v446 = vsub.s32 5, %v445
        %v447 = vrot.slane %v418, %v446
        %v454 = vmul.f32 %v421, %v427
        %v455 = vmul.f32 %v421, %v431
        %v456 = vmul.f32 %v421, %v435
        %v457 = vmul.f32 %v421, %v439
        %v458 = vmul.f32 %v421, %v443
        %v459 = vmul.f32 %v421, %v447
        %v460 = vadd.f32 %v411, %v454
        %v461 = vadd.f32 %v412, %v455
        %v462 = vadd.f32 %v413, %v456
        %v463 = vadd.f32 %v414, %v457
        %v464 = vadd.f32 %v415, %v458
        %v465 = vadd.f32 %v416, %v459
        %v466 = vld [vmem:[%s371] ss:$4 sm:$0x7f]
        %467 = vset.pattern.permute.xlu0 2
        %468 = vperm.xlu0 %467, %v373
        %v469 = vpop.permute.xlu0 %468
        %v472 = vlaneseq
        %v473 = vshrl.u32 %v472, 7
        %v474 = vsub.s32 0, %v473
        %v475 = vrot.slane %v466, %v474
        %v476 = vlaneseq
        %v477 = vshrl.u32 %v476, 7
        %v478 = vsub.s32 1, %v477
        %v479 = vrot.slane %v466, %v478
        %v480 = vlaneseq
        %v481 = vshrl.u32 %v480, 7
        %v482 = vsub.s32 2, %v481
        %v483 = vrot.slane %v466, %v482
        %v484 = vlaneseq
        %v485 = vshrl.u32 %v484, 7
        %v486 = vsub.s32 3, %v485
        %v487 = vrot.slane %v466, %v486
        %v488 = vlaneseq
        %v489 = vshrl.u32 %v488, 7
        %v490 = vsub.s32 4, %v489
        %v491 = vrot.slane %v466, %v490
        %v492 = vlaneseq
        %v493 = vshrl.u32 %v492, 7
        %v494 = vsub.s32 5, %v493
        %v495 = vrot.slane %v466, %v494
        %v496 = vlaneseq
        %v497 = vshrl.u32 %v496, 7
        %v498 = vsub.s32 6, %v497
        %v499 = vrot.slane %v466, %v498
        %v507 = vmul.f32 %v469, %v475
        %v508 = vmul.f32 %v469, %v479
        %v509 = vmul.f32 %v469, %v483
        %v510 = vmul.f32 %v469, %v487
        %v511 = vmul.f32 %v469, %v491
        %v512 = vmul.f32 %v469, %v495
        %v513 = vmul.f32 %v469, %v499
        %521 = vrot.lane.b32.xlu0 %v507, 127
        %v522 = vpop.permute.xlu0 %521
        %523 = vrot.lane.b32.xlu0 %v508, 127
        %v524 = vpop.permute.xlu0 %523
        %525 = vrot.lane.b32.xlu0 %v509, 127
        %v526 = vpop.permute.xlu0 %525
        %527 = vrot.lane.b32.xlu0 %v510, 127
        %v528 = vpop.permute.xlu0 %527
        %529 = vrot.lane.b32.xlu0 %v511, 127
        %v530 = vpop.permute.xlu0 %529
        %531 = vrot.lane.b32.xlu0 %v512, 127
        %v532 = vpop.permute.xlu0 %531
        %533 = vrot.lane.b32.xlu0 %v513, 127
        %v534 = vpop.permute.xlu0 %533
        %vm535 = vcmask 1039360
        %v536 = vsel %vm535, %v522, %v524
        %v537 = vsel %vm535, %v524, %v526
        %v538 = vsel %vm535, %v526, %v528
        %v539 = vsel %vm535, %v528, %v530
        %v540 = vsel %vm535, %v530, %v532
        %v541 = vsel %vm535, %v532, %v534
        %v548 = vadd.f32 %v460, %v536
        %v549 = vadd.f32 %v461, %v537
        %v550 = vadd.f32 %v462, %v538
        %v551 = vadd.f32 %v463, %v539
        %v552 = vadd.f32 %v464, %v540
        %v553 = vadd.f32 %v465, %v541
        %s554 = scalar_lea.vmem %s371, 1
        %v555 = vld [vmem:[%s554] ss:$4 sm:$0x7f]
        %556 = vset.pattern.permute.xlu0 3
        %557 = vperm.xlu0 %556, %v373
        %v558 = vpop.permute.xlu0 %557
        %v561 = vlaneseq
        %v562 = vshrl.u32 %v561, 7
        %v563 = vsub.s32 0, %v562
        %v564 = vrot.slane %v555, %v563
        %v565 = vlaneseq
        %v566 = vshrl.u32 %v565, 7
        %v567 = vsub.s32 1, %v566
        %v568 = vrot.slane %v555, %v567
        %v569 = vlaneseq
        %v570 = vshrl.u32 %v569, 7
        %v571 = vsub.s32 2, %v570
        %v572 = vrot.slane %v555, %v571
        %v573 = vlaneseq
        %v574 = vshrl.u32 %v573, 7
        %v575 = vsub.s32 3, %v574
        %v576 = vrot.slane %v555, %v575
        %v577 = vlaneseq
        %v578 = vshrl.u32 %v577, 7
        %v579 = vsub.s32 4, %v578
        %v580 = vrot.slane %v555, %v579
        %v581 = vlaneseq
        %v582 = vshrl.u32 %v581, 7
        %v583 = vsub.s32 5, %v582
        %v584 = vrot.slane %v555, %v583
        %v585 = vlaneseq
        %v586 = vshrl.u32 %v585, 7
        %v587 = vsub.s32 6, %v586
        %v588 = vrot.slane %v555, %v587
        %v596 = vmul.f32 %v558, %v564
        %v597 = vmul.f32 %v558, %v568
        %v598 = vmul.f32 %v558, %v572
        %v599 = vmul.f32 %v558, %v576
        %v600 = vmul.f32 %v558, %v580
        %v601 = vmul.f32 %v558, %v584
        %v602 = vmul.f32 %v558, %v588
        %610 = vrot.lane.b32.xlu0 %v596, 127
        %v611 = vpop.permute.xlu0 %610
        %612 = vrot.lane.b32.xlu0 %v597, 127
        %v613 = vpop.permute.xlu0 %612
        %614 = vrot.lane.b32.xlu0 %v598, 127
        %v615 = vpop.permute.xlu0 %614
        %616 = vrot.lane.b32.xlu0 %v599, 127
        %v617 = vpop.permute.xlu0 %616
        %618 = vrot.lane.b32.xlu0 %v600, 127
        %v619 = vpop.permute.xlu0 %618
        %620 = vrot.lane.b32.xlu0 %v601, 127
        %v621 = vpop.permute.xlu0 %620
        %622 = vrot.lane.b32.xlu0 %v602, 127
        %v623 = vpop.permute.xlu0 %622
        %v624 = vsel %vm535, %v611, %v613
        %v625 = vsel %vm535, %v613, %v615
        %v626 = vsel %vm535, %v615, %v617
        %v627 = vsel %vm535, %v617, %v619
        %v628 = vsel %vm535, %v619, %v621
        %v629 = vsel %vm535, %v621, %v623
        %v636 = vadd.f32 %v548, %v624
        %v637 = vadd.f32 %v549, %v625
        %v638 = vadd.f32 %v550, %v626
        %v639 = vadd.f32 %v551, %v627
        %v640 = vadd.f32 %v552, %v628
        %v641 = vadd.f32 %v553, %v629
        %642 = vset.pattern.permute.xlu0 4
        %643 = vperm.xlu0 %642, %v373
        %v644 = vpop.permute.xlu0 %643
        %v646 = vmul.f32 %v644, %v475
        %v647 = vmul.f32 %v644, %v479
        %v648 = vmul.f32 %v644, %v483
        %v649 = vmul.f32 %v644, %v487
        %v650 = vmul.f32 %v644, %v491
        %v651 = vmul.f32 %v644, %v495
        %v652 = vmul.f32 %v644, %v499
        %660 = vrot.lane.b32.xlu0 %v646, 126
        %v661 = vpop.permute.xlu0 %660
        %662 = vrot.lane.b32.xlu0 %v647, 126
        %v663 = vpop.permute.xlu0 %662
        %664 = vrot.lane.b32.xlu0 %v648, 126
        %v665 = vpop.permute.xlu0 %664
        %666 = vrot.lane.b32.xlu0 %v649, 126
        %v667 = vpop.permute.xlu0 %666
        %668 = vrot.lane.b32.xlu0 %v650, 126
        %v669 = vpop.permute.xlu0 %668
        %670 = vrot.lane.b32.xlu0 %v651, 126
        %v671 = vpop.permute.xlu0 %670
        %672 = vrot.lane.b32.xlu0 %v652, 126
        %v673 = vpop.permute.xlu0 %672
        %vm674 = vcmask 1031168
        %v675 = vsel %vm674, %v661, %v663
        %v676 = vsel %vm674, %v663, %v665
        %v677 = vsel %vm674, %v665, %v667
        %v678 = vsel %vm674, %v667, %v669
        %v679 = vsel %vm674, %v669, %v671
        %v680 = vsel %vm674, %v671, %v673
        %v687 = vadd.f32 %v636, %v675
        %v688 = vadd.f32 %v637, %v676
        %v689 = vadd.f32 %v638, %v677
        %v690 = vadd.f32 %v639, %v678
        %v691 = vadd.f32 %v640, %v679
        %v692 = vadd.f32 %v641, %v680
        %s693 = scalar_lea.vmem %s371, 2
        %v694 = vld [vmem:[%s693] ss:$4 sm:$0x3f]
        %695 = vset.pattern.permute.xlu0 5
        %696 = vperm.xlu0 %695, %v373
        %v697 = vpop.permute.xlu0 %696
        %v700 = vlaneseq
        %v701 = vshrl.u32 %v700, 7
        %v702 = vsub.s32 0, %v701
        %v703 = vrot.slane %v694, %v702
        %v704 = vlaneseq
        %v705 = vshrl.u32 %v704, 7
        %v706 = vsub.s32 1, %v705
        %v707 = vrot.slane %v694, %v706
        %v708 = vlaneseq
        %v709 = vshrl.u32 %v708, 7
        %v710 = vsub.s32 2, %v709
        %v711 = vrot.slane %v694, %v710
        %v712 = vlaneseq
        %v713 = vshrl.u32 %v712, 7
        %v714 = vsub.s32 3, %v713
        %v715 = vrot.slane %v694, %v714
        %v716 = vlaneseq
        %v717 = vshrl.u32 %v716, 7
        %v718 = vsub.s32 4, %v717
        %v719 = vrot.slane %v694, %v718
        %v720 = vlaneseq
        %v721 = vshrl.u32 %v720, 7
        %v722 = vsub.s32 5, %v721
        %v723 = vrot.slane %v694, %v722
        %v730 = vmul.f32 %v697, %v703
        %v731 = vmul.f32 %v697, %v707
        %v732 = vmul.f32 %v697, %v711
        %v733 = vmul.f32 %v697, %v715
        %v734 = vmul.f32 %v697, %v719
        %v735 = vmul.f32 %v697, %v723
        %v736 = vadd.f32 %v687, %v730
        %v737 = vadd.f32 %v688, %v731
        %v738 = vadd.f32 %v689, %v732
        %v739 = vadd.f32 %v690, %v733
        %v740 = vadd.f32 %v691, %v734
        %v741 = vadd.f32 %v692, %v735
        %s742 = scalar_lea.vmem %s371, 3
        %v743 = vld [vmem:[%s742] ss:$4 sm:$0x3f]
        %744 = vset.pattern.permute.xlu0 6
        %745 = vperm.xlu0 %744, %v373
        %v746 = vpop.permute.xlu0 %745
        %v749 = vlaneseq
        %v750 = vshrl.u32 %v749, 7
        %v751 = vsub.s32 0, %v750
        %v752 = vrot.slane %v743, %v751
        %v753 = vlaneseq
        %v754 = vshrl.u32 %v753, 7
        %v755 = vsub.s32 1, %v754
        %v756 = vrot.slane %v743, %v755
        %v757 = vlaneseq
        %v758 = vshrl.u32 %v757, 7
        %v759 = vsub.s32 2, %v758
        %v760 = vrot.slane %v743, %v759
        %v761 = vlaneseq
        %v762 = vshrl.u32 %v761, 7
        %v763 = vsub.s32 3, %v762
        %v764 = vrot.slane %v743, %v763
        %v765 = vlaneseq
        %v766 = vshrl.u32 %v765, 7
        %v767 = vsub.s32 4, %v766
        %v768 = vrot.slane %v743, %v767
        %v769 = vlaneseq
        %v770 = vshrl.u32 %v769, 7
        %v771 = vsub.s32 5, %v770
        %v772 = vrot.slane %v743, %v771
        %v779 = vmul.f32 %v746, %v752
        %v780 = vmul.f32 %v746, %v756
        %v781 = vmul.f32 %v746, %v760
        %v782 = vmul.f32 %v746, %v764
        %v783 = vmul.f32 %v746, %v768
        %v784 = vmul.f32 %v746, %v772
        %v785 = vadd.f32 %v736, %v779
        %v786 = vadd.f32 %v737, %v780
        %v787 = vadd.f32 %v738, %v781
        %v788 = vadd.f32 %v739, %v782
        %v789 = vadd.f32 %v740, %v783
        %v790 = vadd.f32 %v741, %v784
        %s791 = scalar_lea.vmem %s371, 2
        %v792 = vld [vmem:[%s791] ss:$4 sm:$0x7f]
        %793 = vset.pattern.permute.xlu0 7
        %794 = vperm.xlu0 %793, %v373
        %v795 = vpop.permute.xlu0 %794
        %v798 = vlaneseq
        %v799 = vshrl.u32 %v798, 7
        %v800 = vsub.s32 0, %v799
        %v801 = vrot.slane %v792, %v800
        %v802 = vlaneseq
        %v803 = vshrl.u32 %v802, 7
        %v804 = vsub.s32 1, %v803
        %v805 = vrot.slane %v792, %v804
        %v806 = vlaneseq
        %v807 = vshrl.u32 %v806, 7
        %v808 = vsub.s32 2, %v807
        %v809 = vrot.slane %v792, %v808
        %v810 = vlaneseq
        %v811 = vshrl.u32 %v810, 7
        %v812 = vsub.s32 3, %v811
        %v813 = vrot.slane %v792, %v812
        %v814 = vlaneseq
        %v815 = vshrl.u32 %v814, 7
        %v816 = vsub.s32 4, %v815
        %v817 = vrot.slane %v792, %v816
        %v818 = vlaneseq
        %v819 = vshrl.u32 %v818, 7
        %v820 = vsub.s32 5, %v819
        %v821 = vrot.slane %v792, %v820
        %v822 = vlaneseq
        %v823 = vshrl.u32 %v822, 7
        %v824 = vsub.s32 6, %v823
        %v825 = vrot.slane %v792, %v824
        %v833 = vmul.f32 %v795, %v801
        %v834 = vmul.f32 %v795, %v805
        %v835 = vmul.f32 %v795, %v809
        %v836 = vmul.f32 %v795, %v813
        %v837 = vmul.f32 %v795, %v817
        %v838 = vmul.f32 %v795, %v821
        %v839 = vmul.f32 %v795, %v825
        %847 = vrot.lane.b32.xlu0 %v833, 127
        %v848 = vpop.permute.xlu0 %847
        %849 = vrot.lane.b32.xlu0 %v834, 127
        %v850 = vpop.permute.xlu0 %849
        %851 = vrot.lane.b32.xlu0 %v835, 127
        %v852 = vpop.permute.xlu0 %851
        %853 = vrot.lane.b32.xlu0 %v836, 127
        %v854 = vpop.permute.xlu0 %853
        %855 = vrot.lane.b32.xlu0 %v837, 127
        %v856 = vpop.permute.xlu0 %855
        %857 = vrot.lane.b32.xlu0 %v838, 127
        %v858 = vpop.permute.xlu0 %857
        %859 = vrot.lane.b32.xlu0 %v839, 127
        %v860 = vpop.permute.xlu0 %859
        %v861 = vsel %vm535, %v848, %v850
        %v862 = vsel %vm535, %v850, %v852
        %v863 = vsel %vm535, %v852, %v854
        %v864 = vsel %vm535, %v854, %v856
        %v865 = vsel %vm535, %v856, %v858
        %v866 = vsel %vm535, %v858, %v860
        %v873 = vadd.f32 %v785, %v861
        %v874 = vadd.f32 %v786, %v862
        %v875 = vadd.f32 %v787, %v863
        %v876 = vadd.f32 %v788, %v864
        %v877 = vadd.f32 %v789, %v865
        %v878 = vadd.f32 %v790, %v866
        %s879 = scalar_lea.vmem %s371, 3
        %v880 = vld [vmem:[%s879] ss:$4 sm:$0x7f]
        %881 = vset.pattern.permute.xlu0 8
        %882 = vperm.xlu0 %881, %v373
        %v883 = vpop.permute.xlu0 %882
        %v886 = vlaneseq
        %v887 = vshrl.u32 %v886, 7
        %v888 = vsub.s32 0, %v887
        %v889 = vrot.slane %v880, %v888
        %v890 = vlaneseq
        %v891 = vshrl.u32 %v890, 7
        %v892 = vsub.s32 1, %v891
        %v893 = vrot.slane %v880, %v892
        %v894 = vlaneseq
        %v895 = vshrl.u32 %v894, 7
        %v896 = vsub.s32 2, %v895
        %v897 = vrot.slane %v880, %v896
        %v898 = vlaneseq
        %v899 = vshrl.u32 %v898, 7
        %v900 = vsub.s32 3, %v899
        %v901 = vrot.slane %v880, %v900
        %v902 = vlaneseq
        %v903 = vshrl.u32 %v902, 7
        %v904 = vsub.s32 4, %v903
        %v905 = vrot.slane %v880, %v904
        %v906 = vlaneseq
        %v907 = vshrl.u32 %v906, 7
        %v908 = vsub.s32 5, %v907
        %v909 = vrot.slane %v880, %v908
        %v910 = vlaneseq
        %v911 = vshrl.u32 %v910, 7
        %v912 = vsub.s32 6, %v911
        %v913 = vrot.slane %v880, %v912
        %v921 = vmul.f32 %v883, %v889
        %v922 = vmul.f32 %v883, %v893
        %v923 = vmul.f32 %v883, %v897
        %v924 = vmul.f32 %v883, %v901
        %v925 = vmul.f32 %v883, %v905
        %v926 = vmul.f32 %v883, %v909
        %v927 = vmul.f32 %v883, %v913
        %935 = vrot.lane.b32.xlu0 %v921, 127
        %v936 = vpop.permute.xlu0 %935
        %937 = vrot.lane.b32.xlu0 %v922, 127
        %v938 = vpop.permute.xlu0 %937
        %939 = vrot.lane.b32.xlu0 %v923, 127
        %v940 = vpop.permute.xlu0 %939
        %941 = vrot.lane.b32.xlu0 %v924, 127
        %v942 = vpop.permute.xlu0 %941
        %943 = vrot.lane.b32.xlu0 %v925, 127
        %v944 = vpop.permute.xlu0 %943
        %945 = vrot.lane.b32.xlu0 %v926, 127
        %v946 = vpop.permute.xlu0 %945
        %947 = vrot.lane.b32.xlu0 %v927, 127
        %v948 = vpop.permute.xlu0 %947
        %v949 = vsel %vm535, %v936, %v938
        %v950 = vsel %vm535, %v938, %v940
        %v951 = vsel %vm535, %v940, %v942
        %v952 = vsel %vm535, %v942, %v944
        %v953 = vsel %vm535, %v944, %v946
        %v954 = vsel %vm535, %v946, %v948
        %v961 = vadd.f32 %v873, %v949
        %v962 = vadd.f32 %v874, %v950
        %v963 = vadd.f32 %v875, %v951
        %v964 = vadd.f32 %v876, %v952
        %v965 = vadd.f32 %v877, %v953
        %v966 = vadd.f32 %v878, %v954
        %967 = vset.pattern.permute.xlu0 9
        %968 = vperm.xlu0 %967, %v373
        %v969 = vpop.permute.xlu0 %968
        %v971 = vmul.f32 %v969, %v801
        %v972 = vmul.f32 %v969, %v805
        %v973 = vmul.f32 %v969, %v809
        %v974 = vmul.f32 %v969, %v813
        %v975 = vmul.f32 %v969, %v817
        %v976 = vmul.f32 %v969, %v821
        %v977 = vmul.f32 %v969, %v825
        %985 = vrot.lane.b32.xlu0 %v971, 126
        %v986 = vpop.permute.xlu0 %985
        %987 = vrot.lane.b32.xlu0 %v972, 126
        %v988 = vpop.permute.xlu0 %987
        %989 = vrot.lane.b32.xlu0 %v973, 126
        %v990 = vpop.permute.xlu0 %989
        %991 = vrot.lane.b32.xlu0 %v974, 126
        %v992 = vpop.permute.xlu0 %991
        %993 = vrot.lane.b32.xlu0 %v975, 126
        %v994 = vpop.permute.xlu0 %993
        %995 = vrot.lane.b32.xlu0 %v976, 126
        %v996 = vpop.permute.xlu0 %995
        %997 = vrot.lane.b32.xlu0 %v977, 126
        %v998 = vpop.permute.xlu0 %997
        %v999 = vsel %vm674, %v986, %v988
        %v1000 = vsel %vm674, %v988, %v990
        %v1001 = vsel %vm674, %v990, %v992
        %v1002 = vsel %vm674, %v992, %v994
        %v1003 = vsel %vm674, %v994, %v996
        %v1004 = vsel %vm674, %v996, %v998
        %v1011 = vadd.f32 %v961, %v999
        %v1012 = vadd.f32 %v962, %v1000
        %v1013 = vadd.f32 %v963, %v1001
        %v1014 = vadd.f32 %v964, %v1002
        %v1015 = vadd.f32 %v965, %v1003
        %v1016 = vadd.f32 %v966, %v1004
        %1017 = vset.pattern.permute.xlu0 10
        %1018 = vperm.xlu0 %1017, %v373
        %v1019 = vpop.permute.xlu0 %1018
        %v1021 = vmul.f32 %v1019, %v475
        %v1022 = vmul.f32 %v1019, %v479
        %v1023 = vmul.f32 %v1019, %v483
        %v1024 = vmul.f32 %v1019, %v487
        %v1025 = vmul.f32 %v1019, %v491
        %v1026 = vmul.f32 %v1019, %v495
        %v1027 = vmul.f32 %v1019, %v499
        %1035 = vrot.lane.b32.xlu0 %v1021, 104
        %v1036 = vpop.permute.xlu0 %1035
        %1037 = vrot.lane.b32.xlu0 %v1022, 104
        %v1038 = vpop.permute.xlu0 %1037
        %1039 = vrot.lane.b32.xlu0 %v1023, 104
        %v1040 = vpop.permute.xlu0 %1039
        %1041 = vrot.lane.b32.xlu0 %v1024, 104
        %v1042 = vpop.permute.xlu0 %1041
        %1043 = vrot.lane.b32.xlu0 %v1025, 104
        %v1044 = vpop.permute.xlu0 %1043
        %1045 = vrot.lane.b32.xlu0 %v1026, 104
        %v1046 = vpop.permute.xlu0 %1045
        %1047 = vrot.lane.b32.xlu0 %v1027, 104
        %v1048 = vpop.permute.xlu0 %1047
        %vm1049 = vcmask 850944
        %v1050 = vsel %vm1049, %v1036, %v1038
        %v1051 = vsel %vm1049, %v1038, %v1040
        %v1052 = vsel %vm1049, %v1040, %v1042
        %v1053 = vsel %vm1049, %v1042, %v1044
        %v1054 = vsel %vm1049, %v1044, %v1046
        %v1055 = vsel %vm1049, %v1046, %v1048
        %v1062 = vadd.f32 %v1011, %v1050
        %v1063 = vadd.f32 %v1012, %v1051
        %v1064 = vadd.f32 %v1013, %v1052
        %v1065 = vadd.f32 %v1014, %v1053
        %v1066 = vadd.f32 %v1015, %v1054
        %v1067 = vadd.f32 %v1016, %v1055
        %1068 = vset.pattern.permute.xlu0 11
        %1069 = vperm.xlu0 %1068, %v373
        %v1070 = vpop.permute.xlu0 %1069
        %v1072 = vmul.f32 %v1070, %v564
        %v1073 = vmul.f32 %v1070, %v568
        %v1074 = vmul.f32 %v1070, %v572
        %v1075 = vmul.f32 %v1070, %v576
        %v1076 = vmul.f32 %v1070, %v580
        %v1077 = vmul.f32 %v1070, %v584
        %v1078 = vmul.f32 %v1070, %v588
        %1086 = vrot.lane.b32.xlu0 %v1072, 104
        %v1087 = vpop.permute.xlu0 %1086
        %1088 = vrot.lane.b32.xlu0 %v1073, 104
        %v1089 = vpop.permute.xlu0 %1088
        %1090 = vrot.lane.b32.xlu0 %v1074, 104
        %v1091 = vpop.permute.xlu0 %1090
        %1092 = vrot.lane.b32.xlu0 %v1075, 104
        %v1093 = vpop.permute.xlu0 %1092
        %1094 = vrot.lane.b32.xlu0 %v1076, 104
        %v1095 = vpop.permute.xlu0 %1094
        %1096 = vrot.lane.b32.xlu0 %v1077, 104
        %v1097 = vpop.permute.xlu0 %1096
        %1098 = vrot.lane.b32.xlu0 %v1078, 104
        %v1099 = vpop.permute.xlu0 %1098
        %v1100 = vsel %vm1049, %v1087, %v1089
        %v1101 = vsel %vm1049, %v1089, %v1091
        %v1102 = vsel %vm1049, %v1091, %v1093
        %v1103 = vsel %vm1049, %v1093, %v1095
        %v1104 = vsel %vm1049, %v1095, %v1097
        %v1105 = vsel %vm1049, %v1097, %v1099
        %v1112 = vadd.f32 %v1062, %v1100
        %v1113 = vadd.f32 %v1063, %v1101
        %v1114 = vadd.f32 %v1064, %v1102
        %v1115 = vadd.f32 %v1065, %v1103
        %v1116 = vadd.f32 %v1066, %v1104
        %v1117 = vadd.f32 %v1067, %v1105
        %1118 = vset.pattern.permute.xlu0 12
        %1119 = vperm.xlu0 %1118, %v373
        %v1120 = vpop.permute.xlu0 %1119
        %v1122 = vmul.f32 %v1120, %v475
        %v1123 = vmul.f32 %v1120, %v479
        %v1124 = vmul.f32 %v1120, %v483
        %v1125 = vmul.f32 %v1120, %v487
        %v1126 = vmul.f32 %v1120, %v491
        %v1127 = vmul.f32 %v1120, %v495
        %v1128 = vmul.f32 %v1120, %v499
        %1136 = vrot.lane.b32.xlu0 %v1122, 103
        %v1137 = vpop.permute.xlu0 %1136
        %1138 = vrot.lane.b32.xlu0 %v1123, 103
        %v1139 = vpop.permute.xlu0 %1138
        %1140 = vrot.lane.b32.xlu0 %v1124, 103
        %v1141 = vpop.permute.xlu0 %1140
        %1142 = vrot.lane.b32.xlu0 %v1125, 103
        %v1143 = vpop.permute.xlu0 %1142
        %1144 = vrot.lane.b32.xlu0 %v1126, 103
        %v1145 = vpop.permute.xlu0 %1144
        %1146 = vrot.lane.b32.xlu0 %v1127, 103
        %v1147 = vpop.permute.xlu0 %1146
        %1148 = vrot.lane.b32.xlu0 %v1128, 103
        %v1149 = vpop.permute.xlu0 %1148
        %vm1150 = vcmask 842752
        %v1151 = vsel %vm1150, %v1137, %v1139
        %v1152 = vsel %vm1150, %v1139, %v1141
        %v1153 = vsel %vm1150, %v1141, %v1143
        %v1154 = vsel %vm1150, %v1143, %v1145
        %v1155 = vsel %vm1150, %v1145, %v1147
        %v1156 = vsel %vm1150, %v1147, %v1149
        %v1163 = vadd.f32 %v1112, %v1151
        %v1164 = vadd.f32 %v1113, %v1152
        %v1165 = vadd.f32 %v1114, %v1153
        %v1166 = vadd.f32 %v1115, %v1154
        %v1167 = vadd.f32 %v1116, %v1155
        %v1168 = vadd.f32 %v1117, %v1156
        %1169 = vset.pattern.permute.xlu0 13
        %1170 = vperm.xlu0 %1169, %v373
        %v1171 = vpop.permute.xlu0 %1170
        %v1173 = vmul.f32 %v1171, %v564
        %v1174 = vmul.f32 %v1171, %v568
        %v1175 = vmul.f32 %v1171, %v572
        %v1176 = vmul.f32 %v1171, %v576
        %v1177 = vmul.f32 %v1171, %v580
        %v1178 = vmul.f32 %v1171, %v584
        %v1179 = vmul.f32 %v1171, %v588
        %1187 = vrot.lane.b32.xlu0 %v1173, 103
        %v1188 = vpop.permute.xlu0 %1187
        %1189 = vrot.lane.b32.xlu0 %v1174, 103
        %v1190 = vpop.permute.xlu0 %1189
        %1191 = vrot.lane.b32.xlu0 %v1175, 103
        %v1192 = vpop.permute.xlu0 %1191
        %1193 = vrot.lane.b32.xlu0 %v1176, 103
        %v1194 = vpop.permute.xlu0 %1193
        %1195 = vrot.lane.b32.xlu0 %v1177, 103
        %v1196 = vpop.permute.xlu0 %1195
        %1197 = vrot.lane.b32.xlu0 %v1178, 103
        %v1198 = vpop.permute.xlu0 %1197
        %1199 = vrot.lane.b32.xlu0 %v1179, 103
        %v1200 = vpop.permute.xlu0 %1199
        %v1201 = vsel %vm1150, %v1188, %v1190
        %v1202 = vsel %vm1150, %v1190, %v1192
        %v1203 = vsel %vm1150, %v1192, %v1194
        %v1204 = vsel %vm1150, %v1194, %v1196
        %v1205 = vsel %vm1150, %v1196, %v1198
        %v1206 = vsel %vm1150, %v1198, %v1200
        %v1213 = vadd.f32 %v1163, %v1201
        %v1214 = vadd.f32 %v1164, %v1202
        %v1215 = vadd.f32 %v1165, %v1203
        %v1216 = vadd.f32 %v1166, %v1204
        %v1217 = vadd.f32 %v1167, %v1205
        %v1218 = vadd.f32 %v1168, %v1206
        %1219 = vset.pattern.permute.xlu0 14
        %1220 = vperm.xlu0 %1219, %v373
        %v1221 = vpop.permute.xlu0 %1220
        %v1223 = vmul.f32 %v1221, %v475
        %v1224 = vmul.f32 %v1221, %v479
        %v1225 = vmul.f32 %v1221, %v483
        %v1226 = vmul.f32 %v1221, %v487
        %v1227 = vmul.f32 %v1221, %v491
        %v1228 = vmul.f32 %v1221, %v495
        %v1229 = vmul.f32 %v1221, %v499
        %1237 = vrot.lane.b32.xlu0 %v1223, 102
        %v1238 = vpop.permute.xlu0 %1237
        %1239 = vrot.lane.b32.xlu0 %v1224, 102
        %v1240 = vpop.permute.xlu0 %1239
        %1241 = vrot.lane.b32.xlu0 %v1225, 102
        %v1242 = vpop.permute.xlu0 %1241
        %1243 = vrot.lane.b32.xlu0 %v1226, 102
        %v1244 = vpop.permute.xlu0 %1243
        %1245 = vrot.lane.b32.xlu0 %v1227, 102
        %v1246 = vpop.permute.xlu0 %1245
        %1247 = vrot.lane.b32.xlu0 %v1228, 102
        %v1248 = vpop.permute.xlu0 %1247
        %1249 = vrot.lane.b32.xlu0 %v1229, 102
        %v1250 = vpop.permute.xlu0 %1249
        %vm1251 = vcmask 834560
        %v1252 = vsel %vm1251, %v1238, %v1240
        %v1253 = vsel %vm1251, %v1240, %v1242
        %v1254 = vsel %vm1251, %v1242, %v1244
        %v1255 = vsel %vm1251, %v1244, %v1246
        %v1256 = vsel %vm1251, %v1246, %v1248
        %v1257 = vsel %vm1251, %v1248, %v1250
        %v1264 = vadd.f32 %v1213, %v1252
        %v1265 = vadd.f32 %v1214, %v1253
        %v1266 = vadd.f32 %v1215, %v1254
        %v1267 = vadd.f32 %v1216, %v1255
        %v1268 = vadd.f32 %v1217, %v1256
        %v1269 = vadd.f32 %v1218, %v1257
        %1270 = vset.pattern.permute.xlu0 15
        %1271 = vperm.xlu0 %1270, %v373
        %v1272 = vpop.permute.xlu0 %1271
        %v1274 = vmul.f32 %v1272, %v801
        %v1275 = vmul.f32 %v1272, %v805
        %v1276 = vmul.f32 %v1272, %v809
        %v1277 = vmul.f32 %v1272, %v813
        %v1278 = vmul.f32 %v1272, %v817
        %v1279 = vmul.f32 %v1272, %v821
        %v1280 = vmul.f32 %v1272, %v825
        %1288 = vrot.lane.b32.xlu0 %v1274, 104
        %v1289 = vpop.permute.xlu0 %1288
        %1290 = vrot.lane.b32.xlu0 %v1275, 104
        %v1291 = vpop.permute.xlu0 %1290
        %1292 = vrot.lane.b32.xlu0 %v1276, 104
        %v1293 = vpop.permute.xlu0 %1292
        %1294 = vrot.lane.b32.xlu0 %v1277, 104
        %v1295 = vpop.permute.xlu0 %1294
        %1296 = vrot.lane.b32.xlu0 %v1278, 104
        %v1297 = vpop.permute.xlu0 %1296
        %1298 = vrot.lane.b32.xlu0 %v1279, 104
        %v1299 = vpop.permute.xlu0 %1298
        %1300 = vrot.lane.b32.xlu0 %v1280, 104
        %v1301 = vpop.permute.xlu0 %1300
        %v1302 = vsel %vm1049, %v1289, %v1291
        %v1303 = vsel %vm1049, %v1291, %v1293
        %v1304 = vsel %vm1049, %v1293, %v1295
        %v1305 = vsel %vm1049, %v1295, %v1297
        %v1306 = vsel %vm1049, %v1297, %v1299
        %v1307 = vsel %vm1049, %v1299, %v1301
        %v1314 = vadd.f32 %v1264, %v1302
        %v1315 = vadd.f32 %v1265, %v1303
        %v1316 = vadd.f32 %v1266, %v1304
        %v1317 = vadd.f32 %v1267, %v1305
        %v1318 = vadd.f32 %v1268, %v1306
        %v1319 = vadd.f32 %v1269, %v1307
        %1320 = vset.pattern.permute.xlu0 16
        %1321 = vperm.xlu0 %1320, %v373
        %v1322 = vpop.permute.xlu0 %1321
        %v1324 = vmul.f32 %v1322, %v889
        %v1325 = vmul.f32 %v1322, %v893
        %v1326 = vmul.f32 %v1322, %v897
        %v1327 = vmul.f32 %v1322, %v901
        %v1328 = vmul.f32 %v1322, %v905
        %v1329 = vmul.f32 %v1322, %v909
        %v1330 = vmul.f32 %v1322, %v913
        %1338 = vrot.lane.b32.xlu0 %v1324, 104
        %v1339 = vpop.permute.xlu0 %1338
        %1340 = vrot.lane.b32.xlu0 %v1325, 104
        %v1341 = vpop.permute.xlu0 %1340
        %1342 = vrot.lane.b32.xlu0 %v1326, 104
        %v1343 = vpop.permute.xlu0 %1342
        %1344 = vrot.lane.b32.xlu0 %v1327, 104
        %v1345 = vpop.permute.xlu0 %1344
        %1346 = vrot.lane.b32.xlu0 %v1328, 104
        %v1347 = vpop.permute.xlu0 %1346
        %1348 = vrot.lane.b32.xlu0 %v1329, 104
        %v1349 = vpop.permute.xlu0 %1348
        %1350 = vrot.lane.b32.xlu0 %v1330, 104
        %v1351 = vpop.permute.xlu0 %1350
        %v1352 = vsel %vm1049, %v1339, %v1341
        %v1353 = vsel %vm1049, %v1341, %v1343
        %v1354 = vsel %vm1049, %v1343, %v1345
        %v1355 = vsel %vm1049, %v1345, %v1347
        %v1356 = vsel %vm1049, %v1347, %v1349
        %v1357 = vsel %vm1049, %v1349, %v1351
        %v1364 = vadd.f32 %v1314, %v1352
        %v1365 = vadd.f32 %v1315, %v1353
        %v1366 = vadd.f32 %v1316, %v1354
        %v1367 = vadd.f32 %v1317, %v1355
        %v1368 = vadd.f32 %v1318, %v1356
        %v1369 = vadd.f32 %v1319, %v1357
        %1370 = vset.pattern.permute.xlu0 17
        %1371 = vperm.xlu0 %1370, %v373
        %v1372 = vpop.permute.xlu0 %1371
        %v1374 = vmul.f32 %v1372, %v801
        %v1375 = vmul.f32 %v1372, %v805
        %v1376 = vmul.f32 %v1372, %v809
        %v1377 = vmul.f32 %v1372, %v813
        %v1378 = vmul.f32 %v1372, %v817
        %v1379 = vmul.f32 %v1372, %v821
        %v1380 = vmul.f32 %v1372, %v825
        %1388 = vrot.lane.b32.xlu0 %v1374, 103
        %v1389 = vpop.permute.xlu0 %1388
        %1390 = vrot.lane.b32.xlu0 %v1375, 103
        %v1391 = vpop.permute.xlu0 %1390
        %1392 = vrot.lane.b32.xlu0 %v1376, 103
        %v1393 = vpop.permute.xlu0 %1392
        %1394 = vrot.lane.b32.xlu0 %v1377, 103
        %v1395 = vpop.permute.xlu0 %1394
        %1396 = vrot.lane.b32.xlu0 %v1378, 103
        %v1397 = vpop.permute.xlu0 %1396
        %1398 = vrot.lane.b32.xlu0 %v1379, 103
        %v1399 = vpop.permute.xlu0 %1398
        %1400 = vrot.lane.b32.xlu0 %v1380, 103
        %v1401 = vpop.permute.xlu0 %1400
        %v1402 = vsel %vm1150, %v1389, %v1391
        %v1403 = vsel %vm1150, %v1391, %v1393
        %v1404 = vsel %vm1150, %v1393, %v1395
        %v1405 = vsel %vm1150, %v1395, %v1397
        %v1406 = vsel %vm1150, %v1397, %v1399
        %v1407 = vsel %vm1150, %v1399, %v1401
        %v1414 = vadd.f32 %v1364, %v1402
        %v1415 = vadd.f32 %v1365, %v1403
        %v1416 = vadd.f32 %v1366, %v1404
        %v1417 = vadd.f32 %v1367, %v1405
        %v1418 = vadd.f32 %v1368, %v1406
        %v1419 = vadd.f32 %v1369, %v1407
        %1420 = vset.pattern.permute.xlu0 18
        %1421 = vperm.xlu0 %1420, %v373
        %v1422 = vpop.permute.xlu0 %1421
        %v1424 = vmul.f32 %v1422, %v889
        %v1425 = vmul.f32 %v1422, %v893
        %v1426 = vmul.f32 %v1422, %v897
        %v1427 = vmul.f32 %v1422, %v901
        %v1428 = vmul.f32 %v1422, %v905
        %v1429 = vmul.f32 %v1422, %v909
        %v1430 = vmul.f32 %v1422, %v913
        %1438 = vrot.lane.b32.xlu0 %v1424, 103
        %v1439 = vpop.permute.xlu0 %1438
        %1440 = vrot.lane.b32.xlu0 %v1425, 103
        %v1441 = vpop.permute.xlu0 %1440
        %1442 = vrot.lane.b32.xlu0 %v1426, 103
        %v1443 = vpop.permute.xlu0 %1442
        %1444 = vrot.lane.b32.xlu0 %v1427, 103
        %v1445 = vpop.permute.xlu0 %1444
        %1446 = vrot.lane.b32.xlu0 %v1428, 103
        %v1447 = vpop.permute.xlu0 %1446
        %1448 = vrot.lane.b32.xlu0 %v1429, 103
        %v1449 = vpop.permute.xlu0 %1448
        %1450 = vrot.lane.b32.xlu0 %v1430, 103
        %v1451 = vpop.permute.xlu0 %1450
        %v1452 = vsel %vm1150, %v1439, %v1441
        %v1453 = vsel %vm1150, %v1441, %v1443
        %v1454 = vsel %vm1150, %v1443, %v1445
        %v1455 = vsel %vm1150, %v1445, %v1447
        %v1456 = vsel %vm1150, %v1447, %v1449
        %v1457 = vsel %vm1150, %v1449, %v1451
        %v1464 = vadd.f32 %v1414, %v1452
        %v1465 = vadd.f32 %v1415, %v1453
        %v1466 = vadd.f32 %v1416, %v1454
        %v1467 = vadd.f32 %v1417, %v1455
        %v1468 = vadd.f32 %v1418, %v1456
        %v1469 = vadd.f32 %v1419, %v1457
        %1470 = vset.pattern.permute.xlu0 19
        %1471 = vperm.xlu0 %1470, %v373
        %v1472 = vpop.permute.xlu0 %1471
        %v1474 = vmul.f32 %v1472, %v801
        %v1475 = vmul.f32 %v1472, %v805
        %v1476 = vmul.f32 %v1472, %v809
        %v1477 = vmul.f32 %v1472, %v813
        %v1478 = vmul.f32 %v1472, %v817
        %v1479 = vmul.f32 %v1472, %v821
        %v1480 = vmul.f32 %v1472, %v825
        %1488 = vrot.lane.b32.xlu0 %v1474, 102
        %v1489 = vpop.permute.xlu0 %1488
        %1490 = vrot.lane.b32.xlu0 %v1475, 102
        %v1491 = vpop.permute.xlu0 %1490
        %1492 = vrot.lane.b32.xlu0 %v1476, 102
        %v1493 = vpop.permute.xlu0 %1492
        %1494 = vrot.lane.b32.xlu0 %v1477, 102
        %v1495 = vpop.permute.xlu0 %1494
        %1496 = vrot.lane.b32.xlu0 %v1478, 102
        %v1497 = vpop.permute.xlu0 %1496
        %1498 = vrot.lane.b32.xlu0 %v1479, 102
        %v1499 = vpop.permute.xlu0 %1498
        %1500 = vrot.lane.b32.xlu0 %v1480, 102
        %v1501 = vpop.permute.xlu0 %1500
        %v1502 = vsel %vm1251, %v1489, %v1491
        %v1503 = vsel %vm1251, %v1491, %v1493
        %v1504 = vsel %vm1251, %v1493, %v1495
        %v1505 = vsel %vm1251, %v1495, %v1497
        %v1506 = vsel %vm1251, %v1497, %v1499
        %v1507 = vsel %vm1251, %v1499, %v1501
        %v1514 = vadd.f32 %v1464, %v1502
        %v1515 = vadd.f32 %v1465, %v1503
        %v1516 = vadd.f32 %v1466, %v1504
        %v1517 = vadd.f32 %v1467, %v1505
        %v1518 = vadd.f32 %v1468, %v1506
        %v1519 = vadd.f32 %v1469, %v1507
        %1520 = vset.pattern.permute.xlu0 20
        %1521 = vperm.xlu0 %1520, %v373
        %v1522 = vpop.permute.xlu0 %1521
        %v1524 = vmul.f32 %v1522, %v475
        %v1525 = vmul.f32 %v1522, %v479
        %v1526 = vmul.f32 %v1522, %v483
        %v1527 = vmul.f32 %v1522, %v487
        %v1528 = vmul.f32 %v1522, %v491
        %v1529 = vmul.f32 %v1522, %v495
        %v1530 = vmul.f32 %v1522, %v499
        %1538 = vrot.lane.b32.xlu0 %v1524, 80
        %v1539 = vpop.permute.xlu0 %1538
        %1540 = vrot.lane.b32.xlu0 %v1525, 80
        %v1541 = vpop.permute.xlu0 %1540
        %1542 = vrot.lane.b32.xlu0 %v1526, 80
        %v1543 = vpop.permute.xlu0 %1542
        %1544 = vrot.lane.b32.xlu0 %v1527, 80
        %v1545 = vpop.permute.xlu0 %1544
        %1546 = vrot.lane.b32.xlu0 %v1528, 80
        %v1547 = vpop.permute.xlu0 %1546
        %1548 = vrot.lane.b32.xlu0 %v1529, 80
        %v1549 = vpop.permute.xlu0 %1548
        %1550 = vrot.lane.b32.xlu0 %v1530, 80
        %v1551 = vpop.permute.xlu0 %1550
        %vm1552 = vcmask 654336
        %v1553 = vsel %vm1552, %v1539, %v1541
        %v1554 = vsel %vm1552, %v1541, %v1543
        %v1555 = vsel %vm1552, %v1543, %v1545
        %v1556 = vsel %vm1552, %v1545, %v1547
        %v1557 = vsel %vm1552, %v1547, %v1549
        %v1558 = vsel %vm1552, %v1549, %v1551
        %v1565 = vadd.f32 %v1514, %v1553
        %v1566 = vadd.f32 %v1515, %v1554
        %v1567 = vadd.f32 %v1516, %v1555
        %v1568 = vadd.f32 %v1517, %v1556
        %v1569 = vadd.f32 %v1518, %v1557
        %v1570 = vadd.f32 %v1519, %v1558
        %1571 = vset.pattern.permute.xlu0 21
        %1572 = vperm.xlu0 %1571, %v373
        %v1573 = vpop.permute.xlu0 %1572
        %v1575 = vmul.f32 %v1573, %v564
        %v1576 = vmul.f32 %v1573, %v568
        %v1577 = vmul.f32 %v1573, %v572
        %v1578 = vmul.f32 %v1573, %v576
        %v1579 = vmul.f32 %v1573, %v580
        %v1580 = vmul.f32 %v1573, %v584
        %v1581 = vmul.f32 %v1573, %v588
        %1589 = vrot.lane.b32.xlu0 %v1575, 80
        %v1590 = vpop.permute.xlu0 %1589
        %1591 = vrot.lane.b32.xlu0 %v1576, 80
        %v1592 = vpop.permute.xlu0 %1591
        %1593 = vrot.lane.b32.xlu0 %v1577, 80
        %v1594 = vpop.permute.xlu0 %1593
        %1595 = vrot.lane.b32.xlu0 %v1578, 80
        %v1596 = vpop.permute.xlu0 %1595
        %1597 = vrot.lane.b32.xlu0 %v1579, 80
        %v1598 = vpop.permute.xlu0 %1597
        %1599 = vrot.lane.b32.xlu0 %v1580, 80
        %v1600 = vpop.permute.xlu0 %1599
        %1601 = vrot.lane.b32.xlu0 %v1581, 80
        %v1602 = vpop.permute.xlu0 %1601
        %v1603 = vsel %vm1552, %v1590, %v1592
        %v1604 = vsel %vm1552, %v1592, %v1594
        %v1605 = vsel %vm1552, %v1594, %v1596
        %v1606 = vsel %vm1552, %v1596, %v1598
        %v1607 = vsel %vm1552, %v1598, %v1600
        %v1608 = vsel %vm1552, %v1600, %v1602
        %v1615 = vadd.f32 %v1565, %v1603
        %v1616 = vadd.f32 %v1566, %v1604
        %v1617 = vadd.f32 %v1567, %v1605
        %v1618 = vadd.f32 %v1568, %v1606
        %v1619 = vadd.f32 %v1569, %v1607
        %v1620 = vadd.f32 %v1570, %v1608
        %1621 = vset.pattern.permute.xlu0 22
        %1622 = vperm.xlu0 %1621, %v373
        %v1623 = vpop.permute.xlu0 %1622
        %v1625 = vmul.f32 %v1623, %v475
        %v1626 = vmul.f32 %v1623, %v479
        %v1627 = vmul.f32 %v1623, %v483
        %v1628 = vmul.f32 %v1623, %v487
        %v1629 = vmul.f32 %v1623, %v491
        %v1630 = vmul.f32 %v1623, %v495
        %v1631 = vmul.f32 %v1623, %v499
        %1639 = vrot.lane.b32.xlu0 %v1625, 79
        %v1640 = vpop.permute.xlu0 %1639
        %1641 = vrot.lane.b32.xlu0 %v1626, 79
        %v1642 = vpop.permute.xlu0 %1641
        %1643 = vrot.lane.b32.xlu0 %v1627, 79
        %v1644 = vpop.permute.xlu0 %1643
        %1645 = vrot.lane.b32.xlu0 %v1628, 79
        %v1646 = vpop.permute.xlu0 %1645
        %1647 = vrot.lane.b32.xlu0 %v1629, 79
        %v1648 = vpop.permute.xlu0 %1647
        %1649 = vrot.lane.b32.xlu0 %v1630, 79
        %v1650 = vpop.permute.xlu0 %1649
        %1651 = vrot.lane.b32.xlu0 %v1631, 79
        %v1652 = vpop.permute.xlu0 %1651
        %vm1653 = vcmask 646144
        %v1654 = vsel %vm1653, %v1640, %v1642
        %v1655 = vsel %vm1653, %v1642, %v1644
        %v1656 = vsel %vm1653, %v1644, %v1646
        %v1657 = vsel %vm1653, %v1646, %v1648
        %v1658 = vsel %vm1653, %v1648, %v1650
        %v1659 = vsel %vm1653, %v1650, %v1652
        %v1666 = vadd.f32 %v1615, %v1654
        %v1667 = vadd.f32 %v1616, %v1655
        %v1668 = vadd.f32 %v1617, %v1656
        %v1669 = vadd.f32 %v1618, %v1657
        %v1670 = vadd.f32 %v1619, %v1658
        %v1671 = vadd.f32 %v1620, %v1659
        %1672 = vset.pattern.permute.xlu0 23
        %1673 = vperm.xlu0 %1672, %v373
        %v1674 = vpop.permute.xlu0 %1673
        %v1676 = vmul.f32 %v1674, %v564
        %v1677 = vmul.f32 %v1674, %v568
        %v1678 = vmul.f32 %v1674, %v572
        %v1679 = vmul.f32 %v1674, %v576
        %v1680 = vmul.f32 %v1674, %v580
        %v1681 = vmul.f32 %v1674, %v584
        %v1682 = vmul.f32 %v1674, %v588
        %1690 = vrot.lane.b32.xlu0 %v1676, 79
        %v1691 = vpop.permute.xlu0 %1690
        %1692 = vrot.lane.b32.xlu0 %v1677, 79
        %v1693 = vpop.permute.xlu0 %1692
        %1694 = vrot.lane.b32.xlu0 %v1678, 79
        %v1695 = vpop.permute.xlu0 %1694
        %1696 = vrot.lane.b32.xlu0 %v1679, 79
        %v1697 = vpop.permute.xlu0 %1696
        %1698 = vrot.lane.b32.xlu0 %v1680, 79
        %v1699 = vpop.permute.xlu0 %1698
        %1700 = vrot.lane.b32.xlu0 %v1681, 79
        %v1701 = vpop.permute.xlu0 %1700
        %1702 = vrot.lane.b32.xlu0 %v1682, 79
        %v1703 = vpop.permute.xlu0 %1702
        %v1704 = vsel %vm1653, %v1691, %v1693
        %v1705 = vsel %vm1653, %v1693, %v1695
        %v1706 = vsel %vm1653, %v1695, %v1697
        %v1707 = vsel %vm1653, %v1697, %v1699
        %v1708 = vsel %vm1653, %v1699, %v1701
        %v1709 = vsel %vm1653, %v1701, %v1703
        %v1716 = vadd.f32 %v1666, %v1704
        %v1717 = vadd.f32 %v1667, %v1705
        %v1718 = vadd.f32 %v1668, %v1706
        %v1719 = vadd.f32 %v1669, %v1707
        %v1720 = vadd.f32 %v1670, %v1708
        %v1721 = vadd.f32 %v1671, %v1709
        %1722 = vset.pattern.permute.xlu0 24
        %1723 = vperm.xlu0 %1722, %v373
        %v1724 = vpop.permute.xlu0 %1723
        %v1726 = vmul.f32 %v1724, %v475
        %v1727 = vmul.f32 %v1724, %v479
        %v1728 = vmul.f32 %v1724, %v483
        %v1729 = vmul.f32 %v1724, %v487
        %v1730 = vmul.f32 %v1724, %v491
        %v1731 = vmul.f32 %v1724, %v495
        %v1732 = vmul.f32 %v1724, %v499
        %1740 = vrot.lane.b32.xlu0 %v1726, 78
        %v1741 = vpop.permute.xlu0 %1740
        %1742 = vrot.lane.b32.xlu0 %v1727, 78
        %v1743 = vpop.permute.xlu0 %1742
        %1744 = vrot.lane.b32.xlu0 %v1728, 78
        %v1745 = vpop.permute.xlu0 %1744
        %1746 = vrot.lane.b32.xlu0 %v1729, 78
        %v1747 = vpop.permute.xlu0 %1746
        %1748 = vrot.lane.b32.xlu0 %v1730, 78
        %v1749 = vpop.permute.xlu0 %1748
        %1750 = vrot.lane.b32.xlu0 %v1731, 78
        %v1751 = vpop.permute.xlu0 %1750
        %1752 = vrot.lane.b32.xlu0 %v1732, 78
        %v1753 = vpop.permute.xlu0 %1752
        %vm1754 = vcmask 637952
        %v1755 = vsel %vm1754, %v1741, %v1743
        %v1756 = vsel %vm1754, %v1743, %v1745
        %v1757 = vsel %vm1754, %v1745, %v1747
        %v1758 = vsel %vm1754, %v1747, %v1749
        %v1759 = vsel %vm1754, %v1749, %v1751
        %v1760 = vsel %vm1754, %v1751, %v1753
        %v1767 = vadd.f32 %v1716, %v1755
        %v1768 = vadd.f32 %v1717, %v1756
        %v1769 = vadd.f32 %v1718, %v1757
        %v1770 = vadd.f32 %v1719, %v1758
        %v1771 = vadd.f32 %v1720, %v1759
        %v1772 = vadd.f32 %v1721, %v1760
        %v1773 = vmul.f32 %v378, %v427
        %v1774 = vmul.f32 %v378, %v431
        %v1775 = vmul.f32 %v378, %v435
        %v1776 = vmul.f32 %v378, %v439
        %v1777 = vmul.f32 %v378, %v443
        %v1778 = vmul.f32 %v378, %v447
        %v1779 = vmul.f32 %v421, %v475
        %v1780 = vmul.f32 %v421, %v479
        %v1781 = vmul.f32 %v421, %v483
        %v1782 = vmul.f32 %v421, %v487
        %v1783 = vmul.f32 %v421, %v491
        %v1784 = vmul.f32 %v421, %v495
        %v1785 = vmul.f32 %v421, %v499
        %1793 = vrot.lane.b32.xlu0 %v1779, 127
        %v1794 = vpop.permute.xlu0 %1793
        %1795 = vrot.lane.b32.xlu0 %v1780, 127
        %v1796 = vpop.permute.xlu0 %1795
        %1797 = vrot.lane.b32.xlu0 %v1781, 127
        %v1798 = vpop.permute.xlu0 %1797
        %1799 = vrot.lane.b32.xlu0 %v1782, 127
        %v1800 = vpop.permute.xlu0 %1799
        %1801 = vrot.lane.b32.xlu0 %v1783, 127
        %v1802 = vpop.permute.xlu0 %1801
        %1803 = vrot.lane.b32.xlu0 %v1784, 127
        %v1804 = vpop.permute.xlu0 %1803
        %1805 = vrot.lane.b32.xlu0 %v1785, 127
        %v1806 = vpop.permute.xlu0 %1805
        %v1807 = vsel %vm535, %v1794, %v1796
        %v1808 = vsel %vm535, %v1796, %v1798
        %v1809 = vsel %vm535, %v1798, %v1800
        %v1810 = vsel %vm535, %v1800, %v1802
        %v1811 = vsel %vm535, %v1802, %v1804
        %v1812 = vsel %vm535, %v1804, %v1806
        %v1819 = vadd.f32 %v1773, %v1807
        %v1820 = vadd.f32 %v1774, %v1808
        %v1821 = vadd.f32 %v1775, %v1809
        %v1822 = vadd.f32 %v1776, %v1810
        %v1823 = vadd.f32 %v1777, %v1811
        %v1824 = vadd.f32 %v1778, %v1812
        %v1825 = vmul.f32 %v469, %v564
        %v1826 = vmul.f32 %v469, %v568
        %v1827 = vmul.f32 %v469, %v572
        %v1828 = vmul.f32 %v469, %v576
        %v1829 = vmul.f32 %v469, %v580
        %v1830 = vmul.f32 %v469, %v584
        %v1831 = vmul.f32 %v469, %v588
        %1839 = vrot.lane.b32.xlu0 %v1825, 127
        %v1840 = vpop.permute.xlu0 %1839
        %1841 = vrot.lane.b32.xlu0 %v1826, 127
        %v1842 = vpop.permute.xlu0 %1841
        %1843 = vrot.lane.b32.xlu0 %v1827, 127
        %v1844 = vpop.permute.xlu0 %1843
        %1845 = vrot.lane.b32.xlu0 %v1828, 127
        %v1846 = vpop.permute.xlu0 %1845
        %1847 = vrot.lane.b32.xlu0 %v1829, 127
        %v1848 = vpop.permute.xlu0 %1847
        %1849 = vrot.lane.b32.xlu0 %v1830, 127
        %v1850 = vpop.permute.xlu0 %1849
        %1851 = vrot.lane.b32.xlu0 %v1831, 127
        %v1852 = vpop.permute.xlu0 %1851
        %v1853 = vsel %vm535, %v1840, %v1842
        %v1854 = vsel %vm535, %v1842, %v1844
        %v1855 = vsel %vm535, %v1844, %v1846
        %v1856 = vsel %vm535, %v1846, %v1848
        %v1857 = vsel %vm535, %v1848, %v1850
        %v1858 = vsel %vm535, %v1850, %v1852
        %v1865 = vadd.f32 %v1819, %v1853
        %v1866 = vadd.f32 %v1820, %v1854
        %v1867 = vadd.f32 %v1821, %v1855
        %v1868 = vadd.f32 %v1822, %v1856
        %v1869 = vadd.f32 %v1823, %v1857
        %v1870 = vadd.f32 %v1824, %v1858
        %v1871 = vmul.f32 %v558, %v475
        %v1872 = vmul.f32 %v558, %v479
        %v1873 = vmul.f32 %v558, %v483
        %v1874 = vmul.f32 %v558, %v487
        %v1875 = vmul.f32 %v558, %v491
        %v1876 = vmul.f32 %v558, %v495
        %v1877 = vmul.f32 %v558, %v499
        %1885 = vrot.lane.b32.xlu0 %v1871, 126
        %v1886 = vpop.permute.xlu0 %1885
        %1887 = vrot.lane.b32.xlu0 %v1872, 126
        %v1888 = vpop.permute.xlu0 %1887
        %1889 = vrot.lane.b32.xlu0 %v1873, 126
        %v1890 = vpop.permute.xlu0 %1889
        %1891 = vrot.lane.b32.xlu0 %v1874, 126
        %v1892 = vpop.permute.xlu0 %1891
        %1893 = vrot.lane.b32.xlu0 %v1875, 126
        %v1894 = vpop.permute.xlu0 %1893
        %1895 = vrot.lane.b32.xlu0 %v1876, 126
        %v1896 = vpop.permute.xlu0 %1895
        %1897 = vrot.lane.b32.xlu0 %v1877, 126
        %v1898 = vpop.permute.xlu0 %1897
        %v1899 = vsel %vm674, %v1886, %v1888
        %v1900 = vsel %vm674, %v1888, %v1890
        %v1901 = vsel %vm674, %v1890, %v1892
        %v1902 = vsel %vm674, %v1892, %v1894
        %v1903 = vsel %vm674, %v1894, %v1896
        %v1904 = vsel %vm674, %v1896, %v1898
        %v1911 = vadd.f32 %v1865, %v1899
        %v1912 = vadd.f32 %v1866, %v1900
        %v1913 = vadd.f32 %v1867, %v1901
        %v1914 = vadd.f32 %v1868, %v1902
        %v1915 = vadd.f32 %v1869, %v1903
        %v1916 = vadd.f32 %v1870, %v1904
        %v1917 = vmul.f32 %v644, %v564
        %v1918 = vmul.f32 %v644, %v568
        %v1919 = vmul.f32 %v644, %v572
        %v1920 = vmul.f32 %v644, %v576
        %v1921 = vmul.f32 %v644, %v580
        %v1922 = vmul.f32 %v644, %v584
        %v1923 = vmul.f32 %v644, %v588
        %1931 = vrot.lane.b32.xlu0 %v1917, 126
        %v1932 = vpop.permute.xlu0 %1931
        %1933 = vrot.lane.b32.xlu0 %v1918, 126
        %v1934 = vpop.permute.xlu0 %1933
        %1935 = vrot.lane.b32.xlu0 %v1919, 126
        %v1936 = vpop.permute.xlu0 %1935
        %1937 = vrot.lane.b32.xlu0 %v1920, 126
        %v1938 = vpop.permute.xlu0 %1937
        %1939 = vrot.lane.b32.xlu0 %v1921, 126
        %v1940 = vpop.permute.xlu0 %1939
        %1941 = vrot.lane.b32.xlu0 %v1922, 126
        %v1942 = vpop.permute.xlu0 %1941
        %1943 = vrot.lane.b32.xlu0 %v1923, 126
        %v1944 = vpop.permute.xlu0 %1943
        %v1945 = vsel %vm674, %v1932, %v1934
        %v1946 = vsel %vm674, %v1934, %v1936
        %v1947 = vsel %vm674, %v1936, %v1938
        %v1948 = vsel %vm674, %v1938, %v1940
        %v1949 = vsel %vm674, %v1940, %v1942
        %v1950 = vsel %vm674, %v1942, %v1944
        %v1957 = vadd.f32 %v1911, %v1945
        %v1958 = vadd.f32 %v1912, %v1946
        %v1959 = vadd.f32 %v1913, %v1947
        %v1960 = vadd.f32 %v1914, %v1948
        %v1961 = vadd.f32 %v1915, %v1949
        %v1962 = vadd.f32 %v1916, %v1950
        %v1963 = vmul.f32 %v697, %v752
        %v1964 = vmul.f32 %v697, %v756
        %v1965 = vmul.f32 %v697, %v760
        %v1966 = vmul.f32 %v697, %v764
        %v1967 = vmul.f32 %v697, %v768
        %v1968 = vmul.f32 %v697, %v772
        %v1969 = vadd.f32 %v1957, %v1963
        %v1970 = vadd.f32 %v1958, %v1964
        %v1971 = vadd.f32 %v1959, %v1965
        %v1972 = vadd.f32 %v1960, %v1966
        %v1973 = vadd.f32 %v1961, %v1967
        %v1974 = vadd.f32 %v1962, %v1968
        %v1975 = vmul.f32 %v746, %v801
        %v1976 = vmul.f32 %v746, %v805
        %v1977 = vmul.f32 %v746, %v809
        %v1978 = vmul.f32 %v746, %v813
        %v1979 = vmul.f32 %v746, %v817
        %v1980 = vmul.f32 %v746, %v821
        %v1981 = vmul.f32 %v746, %v825
        %1989 = vrot.lane.b32.xlu0 %v1975, 127
        %v1990 = vpop.permute.xlu0 %1989
        %1991 = vrot.lane.b32.xlu0 %v1976, 127
        %v1992 = vpop.permute.xlu0 %1991
        %1993 = vrot.lane.b32.xlu0 %v1977, 127
        %v1994 = vpop.permute.xlu0 %1993
        %1995 = vrot.lane.b32.xlu0 %v1978, 127
        %v1996 = vpop.permute.xlu0 %1995
        %1997 = vrot.lane.b32.xlu0 %v1979, 127
        %v1998 = vpop.permute.xlu0 %1997
        %1999 = vrot.lane.b32.xlu0 %v1980, 127
        %v2000 = vpop.permute.xlu0 %1999
        %2001 = vrot.lane.b32.xlu0 %v1981, 127
        %v2002 = vpop.permute.xlu0 %2001
        %v2003 = vsel %vm535, %v1990, %v1992
        %v2004 = vsel %vm535, %v1992, %v1994
        %v2005 = vsel %vm535, %v1994, %v1996
        %v2006 = vsel %vm535, %v1996, %v1998
        %v2007 = vsel %vm535, %v1998, %v2000
        %v2008 = vsel %vm535, %v2000, %v2002
        %v2015 = vadd.f32 %v1969, %v2003
        %v2016 = vadd.f32 %v1970, %v2004
        %v2017 = vadd.f32 %v1971, %v2005
        %v2018 = vadd.f32 %v1972, %v2006
        %v2019 = vadd.f32 %v1973, %v2007
        %v2020 = vadd.f32 %v1974, %v2008
        %v2021 = vmul.f32 %v795, %v889
        %v2022 = vmul.f32 %v795, %v893
        %v2023 = vmul.f32 %v795, %v897
        %v2024 = vmul.f32 %v795, %v901
        %v2025 = vmul.f32 %v795, %v905
        %v2026 = vmul.f32 %v795, %v909
        %v2027 = vmul.f32 %v795, %v913
        %2035 = vrot.lane.b32.xlu0 %v2021, 127
        %v2036 = vpop.permute.xlu0 %2035
        %2037 = vrot.lane.b32.xlu0 %v2022, 127
        %v2038 = vpop.permute.xlu0 %2037
        %2039 = vrot.lane.b32.xlu0 %v2023, 127
        %v2040 = vpop.permute.xlu0 %2039
        %2041 = vrot.lane.b32.xlu0 %v2024, 127
        %v2042 = vpop.permute.xlu0 %2041
        %2043 = vrot.lane.b32.xlu0 %v2025, 127
        %v2044 = vpop.permute.xlu0 %2043
        %2045 = vrot.lane.b32.xlu0 %v2026, 127
        %v2046 = vpop.permute.xlu0 %2045
        %2047 = vrot.lane.b32.xlu0 %v2027, 127
        %v2048 = vpop.permute.xlu0 %2047
        %v2049 = vsel %vm535, %v2036, %v2038
        %v2050 = vsel %vm535, %v2038, %v2040
        %v2051 = vsel %vm535, %v2040, %v2042
        %v2052 = vsel %vm535, %v2042, %v2044
        %v2053 = vsel %vm535, %v2044, %v2046
        %v2054 = vsel %vm535, %v2046, %v2048
        %v2061 = vadd.f32 %v2015, %v2049
        %v2062 = vadd.f32 %v2016, %v2050
        %v2063 = vadd.f32 %v2017, %v2051
        %v2064 = vadd.f32 %v2018, %v2052
        %v2065 = vadd.f32 %v2019, %v2053
        %v2066 = vadd.f32 %v2020, %v2054
        %v2067 = vmul.f32 %v883, %v801
        %v2068 = vmul.f32 %v883, %v805
        %v2069 = vmul.f32 %v883, %v809
        %v2070 = vmul.f32 %v883, %v813
        %v2071 = vmul.f32 %v883, %v817
        %v2072 = vmul.f32 %v883, %v821
        %v2073 = vmul.f32 %v883, %v825
        %2081 = vrot.lane.b32.xlu0 %v2067, 126
        %v2082 = vpop.permute.xlu0 %2081
        %2083 = vrot.lane.b32.xlu0 %v2068, 126
        %v2084 = vpop.permute.xlu0 %2083
        %2085 = vrot.lane.b32.xlu0 %v2069, 126
        %v2086 = vpop.permute.xlu0 %2085
        %2087 = vrot.lane.b32.xlu0 %v2070, 126
        %v2088 = vpop.permute.xlu0 %2087
        %2089 = vrot.lane.b32.xlu0 %v2071, 126
        %v2090 = vpop.permute.xlu0 %2089
        %2091 = vrot.lane.b32.xlu0 %v2072, 126
        %v2092 = vpop.permute.xlu0 %2091
        %2093 = vrot.lane.b32.xlu0 %v2073, 126
        %v2094 = vpop.permute.xlu0 %2093
        %v2095 = vsel %vm674, %v2082, %v2084
        %v2096 = vsel %vm674, %v2084, %v2086
        %v2097 = vsel %vm674, %v2086, %v2088
        %v2098 = vsel %vm674, %v2088, %v2090
        %v2099 = vsel %vm674, %v2090, %v2092
        %v2100 = vsel %vm674, %v2092, %v2094
        %v2107 = vadd.f32 %v2061, %v2095
        %v2108 = vadd.f32 %v2062, %v2096
        %v2109 = vadd.f32 %v2063, %v2097
        %v2110 = vadd.f32 %v2064, %v2098
        %v2111 = vadd.f32 %v2065, %v2099
        %v2112 = vadd.f32 %v2066, %v2100
        %v2113 = vmul.f32 %v969, %v889
        %v2114 = vmul.f32 %v969, %v893
        %v2115 = vmul.f32 %v969, %v897
        %v2116 = vmul.f32 %v969, %v901
        %v2117 = vmul.f32 %v969, %v905
        %v2118 = vmul.f32 %v969, %v909
        %v2119 = vmul.f32 %v969, %v913
        %2127 = vrot.lane.b32.xlu0 %v2113, 126
        %v2128 = vpop.permute.xlu0 %2127
        %2129 = vrot.lane.b32.xlu0 %v2114, 126
        %v2130 = vpop.permute.xlu0 %2129
        %2131 = vrot.lane.b32.xlu0 %v2115, 126
        %v2132 = vpop.permute.xlu0 %2131
        %2133 = vrot.lane.b32.xlu0 %v2116, 126
        %v2134 = vpop.permute.xlu0 %2133
        %2135 = vrot.lane.b32.xlu0 %v2117, 126
        %v2136 = vpop.permute.xlu0 %2135
        %2137 = vrot.lane.b32.xlu0 %v2118, 126
        %v2138 = vpop.permute.xlu0 %2137
        %2139 = vrot.lane.b32.xlu0 %v2119, 126
        %v2140 = vpop.permute.xlu0 %2139
        %v2141 = vsel %vm674, %v2128, %v2130
        %v2142 = vsel %vm674, %v2130, %v2132
        %v2143 = vsel %vm674, %v2132, %v2134
        %v2144 = vsel %vm674, %v2134, %v2136
        %v2145 = vsel %vm674, %v2136, %v2138
        %v2146 = vsel %vm674, %v2138, %v2140
        %v2153 = vadd.f32 %v2107, %v2141
        %v2154 = vadd.f32 %v2108, %v2142
        %v2155 = vadd.f32 %v2109, %v2143
        %v2156 = vadd.f32 %v2110, %v2144
        %v2157 = vadd.f32 %v2111, %v2145
        %v2158 = vadd.f32 %v2112, %v2146
        %v2159 = vmul.f32 %v1019, %v564
        %v2160 = vmul.f32 %v1019, %v568
        %v2161 = vmul.f32 %v1019, %v572
        %v2162 = vmul.f32 %v1019, %v576
        %v2163 = vmul.f32 %v1019, %v580
        %v2164 = vmul.f32 %v1019, %v584
        %v2165 = vmul.f32 %v1019, %v588
        %2173 = vrot.lane.b32.xlu0 %v2159, 104
        %v2174 = vpop.permute.xlu0 %2173
        %2175 = vrot.lane.b32.xlu0 %v2160, 104
        %v2176 = vpop.permute.xlu0 %2175
        %2177 = vrot.lane.b32.xlu0 %v2161, 104
        %v2178 = vpop.permute.xlu0 %2177
        %2179 = vrot.lane.b32.xlu0 %v2162, 104
        %v2180 = vpop.permute.xlu0 %2179
        %2181 = vrot.lane.b32.xlu0 %v2163, 104
        %v2182 = vpop.permute.xlu0 %2181
        %2183 = vrot.lane.b32.xlu0 %v2164, 104
        %v2184 = vpop.permute.xlu0 %2183
        %2185 = vrot.lane.b32.xlu0 %v2165, 104
        %v2186 = vpop.permute.xlu0 %2185
        %v2187 = vsel %vm1049, %v2174, %v2176
        %v2188 = vsel %vm1049, %v2176, %v2178
        %v2189 = vsel %vm1049, %v2178, %v2180
        %v2190 = vsel %vm1049, %v2180, %v2182
        %v2191 = vsel %vm1049, %v2182, %v2184
        %v2192 = vsel %vm1049, %v2184, %v2186
        %v2199 = vadd.f32 %v2153, %v2187
        %v2200 = vadd.f32 %v2154, %v2188
        %v2201 = vadd.f32 %v2155, %v2189
        %v2202 = vadd.f32 %v2156, %v2190
        %v2203 = vadd.f32 %v2157, %v2191
        %v2204 = vadd.f32 %v2158, %v2192
        %v2205 = vmul.f32 %v1070, %v475
        %v2206 = vmul.f32 %v1070, %v479
        %v2207 = vmul.f32 %v1070, %v483
        %v2208 = vmul.f32 %v1070, %v487
        %v2209 = vmul.f32 %v1070, %v491
        %v2210 = vmul.f32 %v1070, %v495
        %v2211 = vmul.f32 %v1070, %v499
        %2219 = vrot.lane.b32.xlu0 %v2205, 103
        %v2220 = vpop.permute.xlu0 %2219
        %2221 = vrot.lane.b32.xlu0 %v2206, 103
        %v2222 = vpop.permute.xlu0 %2221
        %2223 = vrot.lane.b32.xlu0 %v2207, 103
        %v2224 = vpop.permute.xlu0 %2223
        %2225 = vrot.lane.b32.xlu0 %v2208, 103
        %v2226 = vpop.permute.xlu0 %2225
        %2227 = vrot.lane.b32.xlu0 %v2209, 103
        %v2228 = vpop.permute.xlu0 %2227
        %2229 = vrot.lane.b32.xlu0 %v2210, 103
        %v2230 = vpop.permute.xlu0 %2229
        %2231 = vrot.lane.b32.xlu0 %v2211, 103
        %v2232 = vpop.permute.xlu0 %2231
        %v2233 = vsel %vm1150, %v2220, %v2222
        %v2234 = vsel %vm1150, %v2222, %v2224
        %v2235 = vsel %vm1150, %v2224, %v2226
        %v2236 = vsel %vm1150, %v2226, %v2228
        %v2237 = vsel %vm1150, %v2228, %v2230
        %v2238 = vsel %vm1150, %v2230, %v2232
        %v2245 = vadd.f32 %v2199, %v2233
        %v2246 = vadd.f32 %v2200, %v2234
        %v2247 = vadd.f32 %v2201, %v2235
        %v2248 = vadd.f32 %v2202, %v2236
        %v2249 = vadd.f32 %v2203, %v2237
        %v2250 = vadd.f32 %v2204, %v2238
        %v2251 = vmul.f32 %v1120, %v564
        %v2252 = vmul.f32 %v1120, %v568
        %v2253 = vmul.f32 %v1120, %v572
        %v2254 = vmul.f32 %v1120, %v576
        %v2255 = vmul.f32 %v1120, %v580
        %v2256 = vmul.f32 %v1120, %v584
        %v2257 = vmul.f32 %v1120, %v588
        %2265 = vrot.lane.b32.xlu0 %v2251, 103
        %v2266 = vpop.permute.xlu0 %2265
        %2267 = vrot.lane.b32.xlu0 %v2252, 103
        %v2268 = vpop.permute.xlu0 %2267
        %2269 = vrot.lane.b32.xlu0 %v2253, 103
        %v2270 = vpop.permute.xlu0 %2269
        %2271 = vrot.lane.b32.xlu0 %v2254, 103
        %v2272 = vpop.permute.xlu0 %2271
        %2273 = vrot.lane.b32.xlu0 %v2255, 103
        %v2274 = vpop.permute.xlu0 %2273
        %2275 = vrot.lane.b32.xlu0 %v2256, 103
        %v2276 = vpop.permute.xlu0 %2275
        %2277 = vrot.lane.b32.xlu0 %v2257, 103
        %v2278 = vpop.permute.xlu0 %2277
        %v2279 = vsel %vm1150, %v2266, %v2268
        %v2280 = vsel %vm1150, %v2268, %v2270
        %v2281 = vsel %vm1150, %v2270, %v2272
        %v2282 = vsel %vm1150, %v2272, %v2274
        %v2283 = vsel %vm1150, %v2274, %v2276
        %v2284 = vsel %vm1150, %v2276, %v2278
        %v2291 = vadd.f32 %v2245, %v2279
        %v2292 = vadd.f32 %v2246, %v2280
        %v2293 = vadd.f32 %v2247, %v2281
        %v2294 = vadd.f32 %v2248, %v2282
        %v2295 = vadd.f32 %v2249, %v2283
        %v2296 = vadd.f32 %v2250, %v2284
        %v2297 = vmul.f32 %v1171, %v475
        %v2298 = vmul.f32 %v1171, %v479
        %v2299 = vmul.f32 %v1171, %v483
        %v2300 = vmul.f32 %v1171, %v487
        %v2301 = vmul.f32 %v1171, %v491
        %v2302 = vmul.f32 %v1171, %v495
        %v2303 = vmul.f32 %v1171, %v499
        %2311 = vrot.lane.b32.xlu0 %v2297, 102
        %v2312 = vpop.permute.xlu0 %2311
        %2313 = vrot.lane.b32.xlu0 %v2298, 102
        %v2314 = vpop.permute.xlu0 %2313
        %2315 = vrot.lane.b32.xlu0 %v2299, 102
        %v2316 = vpop.permute.xlu0 %2315
        %2317 = vrot.lane.b32.xlu0 %v2300, 102
        %v2318 = vpop.permute.xlu0 %2317
        %2319 = vrot.lane.b32.xlu0 %v2301, 102
        %v2320 = vpop.permute.xlu0 %2319
        %2321 = vrot.lane.b32.xlu0 %v2302, 102
        %v2322 = vpop.permute.xlu0 %2321
        %2323 = vrot.lane.b32.xlu0 %v2303, 102
        %v2324 = vpop.permute.xlu0 %2323
        %v2325 = vsel %vm1251, %v2312, %v2314
        %v2326 = vsel %vm1251, %v2314, %v2316
        %v2327 = vsel %vm1251, %v2316, %v2318
        %v2328 = vsel %vm1251, %v2318, %v2320
        %v2329 = vsel %vm1251, %v2320, %v2322
        %v2330 = vsel %vm1251, %v2322, %v2324
        %v2337 = vadd.f32 %v2291, %v2325
        %v2338 = vadd.f32 %v2292, %v2326
        %v2339 = vadd.f32 %v2293, %v2327
        %v2340 = vadd.f32 %v2294, %v2328
        %v2341 = vadd.f32 %v2295, %v2329
        %v2342 = vadd.f32 %v2296, %v2330
        %v2343 = vmul.f32 %v1221, %v564
        %v2344 = vmul.f32 %v1221, %v568
        %v2345 = vmul.f32 %v1221, %v572
        %v2346 = vmul.f32 %v1221, %v576
        %v2347 = vmul.f32 %v1221, %v580
        %v2348 = vmul.f32 %v1221, %v584
        %v2349 = vmul.f32 %v1221, %v588
        %2357 = vrot.lane.b32.xlu0 %v2343, 102
        %v2358 = vpop.permute.xlu0 %2357
        %2359 = vrot.lane.b32.xlu0 %v2344, 102
        %v2360 = vpop.permute.xlu0 %2359
        %2361 = vrot.lane.b32.xlu0 %v2345, 102
        %v2362 = vpop.permute.xlu0 %2361
        %2363 = vrot.lane.b32.xlu0 %v2346, 102
        %v2364 = vpop.permute.xlu0 %2363
        %2365 = vrot.lane.b32.xlu0 %v2347, 102
        %v2366 = vpop.permute.xlu0 %2365
        %2367 = vrot.lane.b32.xlu0 %v2348, 102
        %v2368 = vpop.permute.xlu0 %2367
        %2369 = vrot.lane.b32.xlu0 %v2349, 102
        %v2370 = vpop.permute.xlu0 %2369
        %v2371 = vsel %vm1251, %v2358, %v2360
        %v2372 = vsel %vm1251, %v2360, %v2362
        %v2373 = vsel %vm1251, %v2362, %v2364
        %v2374 = vsel %vm1251, %v2364, %v2366
        %v2375 = vsel %vm1251, %v2366, %v2368
        %v2376 = vsel %vm1251, %v2368, %v2370
        %v2383 = vadd.f32 %v2337, %v2371
        %v2384 = vadd.f32 %v2338, %v2372
        %v2385 = vadd.f32 %v2339, %v2373
        %v2386 = vadd.f32 %v2340, %v2374
        %v2387 = vadd.f32 %v2341, %v2375
        %v2388 = vadd.f32 %v2342, %v2376
        %v2389 = vmul.f32 %v1272, %v889
        %v2390 = vmul.f32 %v1272, %v893
        %v2391 = vmul.f32 %v1272, %v897
        %v2392 = vmul.f32 %v1272, %v901
        %v2393 = vmul.f32 %v1272, %v905
        %v2394 = vmul.f32 %v1272, %v909
        %v2395 = vmul.f32 %v1272, %v913
        %2403 = vrot.lane.b32.xlu0 %v2389, 104
        %v2404 = vpop.permute.xlu0 %2403
        %2405 = vrot.lane.b32.xlu0 %v2390, 104
        %v2406 = vpop.permute.xlu0 %2405
        %2407 = vrot.lane.b32.xlu0 %v2391, 104
        %v2408 = vpop.permute.xlu0 %2407
        %2409 = vrot.lane.b32.xlu0 %v2392, 104
        %v2410 = vpop.permute.xlu0 %2409
        %2411 = vrot.lane.b32.xlu0 %v2393, 104
        %v2412 = vpop.permute.xlu0 %2411
        %2413 = vrot.lane.b32.xlu0 %v2394, 104
        %v2414 = vpop.permute.xlu0 %2413
        %2415 = vrot.lane.b32.xlu0 %v2395, 104
        %v2416 = vpop.permute.xlu0 %2415
        %v2417 = vsel %vm1049, %v2404, %v2406
        %v2418 = vsel %vm1049, %v2406, %v2408
        %v2419 = vsel %vm1049, %v2408, %v2410
        %v2420 = vsel %vm1049, %v2410, %v2412
        %v2421 = vsel %vm1049, %v2412, %v2414
        %v2422 = vsel %vm1049, %v2414, %v2416
        %v2429 = vadd.f32 %v2383, %v2417
        %v2430 = vadd.f32 %v2384, %v2418
        %v2431 = vadd.f32 %v2385, %v2419
        %v2432 = vadd.f32 %v2386, %v2420
        %v2433 = vadd.f32 %v2387, %v2421
        %v2434 = vadd.f32 %v2388, %v2422
        %v2435 = vmul.f32 %v1322, %v801
        %v2436 = vmul.f32 %v1322, %v805
        %v2437 = vmul.f32 %v1322, %v809
        %v2438 = vmul.f32 %v1322, %v813
        %v2439 = vmul.f32 %v1322, %v817
        %v2440 = vmul.f32 %v1322, %v821
        %v2441 = vmul.f32 %v1322, %v825
        %2449 = vrot.lane.b32.xlu0 %v2435, 103
        %v2450 = vpop.permute.xlu0 %2449
        %2451 = vrot.lane.b32.xlu0 %v2436, 103
        %v2452 = vpop.permute.xlu0 %2451
        %2453 = vrot.lane.b32.xlu0 %v2437, 103
        %v2454 = vpop.permute.xlu0 %2453
        %2455 = vrot.lane.b32.xlu0 %v2438, 103
        %v2456 = vpop.permute.xlu0 %2455
        %2457 = vrot.lane.b32.xlu0 %v2439, 103
        %v2458 = vpop.permute.xlu0 %2457
        %2459 = vrot.lane.b32.xlu0 %v2440, 103
        %v2460 = vpop.permute.xlu0 %2459
        %2461 = vrot.lane.b32.xlu0 %v2441, 103
        %v2462 = vpop.permute.xlu0 %2461
        %v2463 = vsel %vm1150, %v2450, %v2452
        %v2464 = vsel %vm1150, %v2452, %v2454
        %v2465 = vsel %vm1150, %v2454, %v2456
        %v2466 = vsel %vm1150, %v2456, %v2458
        %v2467 = vsel %vm1150, %v2458, %v2460
        %v2468 = vsel %vm1150, %v2460, %v2462
        %v2475 = vadd.f32 %v2429, %v2463
        %v2476 = vadd.f32 %v2430, %v2464
        %v2477 = vadd.f32 %v2431, %v2465
        %v2478 = vadd.f32 %v2432, %v2466
        %v2479 = vadd.f32 %v2433, %v2467
        %v2480 = vadd.f32 %v2434, %v2468
        %v2481 = vmul.f32 %v1372, %v889
        %v2482 = vmul.f32 %v1372, %v893
        %v2483 = vmul.f32 %v1372, %v897
        %v2484 = vmul.f32 %v1372, %v901
        %v2485 = vmul.f32 %v1372, %v905
        %v2486 = vmul.f32 %v1372, %v909
        %v2487 = vmul.f32 %v1372, %v913
        %2495 = vrot.lane.b32.xlu0 %v2481, 103
        %v2496 = vpop.permute.xlu0 %2495
        %2497 = vrot.lane.b32.xlu0 %v2482, 103
        %v2498 = vpop.permute.xlu0 %2497
        %2499 = vrot.lane.b32.xlu0 %v2483, 103
        %v2500 = vpop.permute.xlu0 %2499
        %2501 = vrot.lane.b32.xlu0 %v2484, 103
        %v2502 = vpop.permute.xlu0 %2501
        %2503 = vrot.lane.b32.xlu0 %v2485, 103
        %v2504 = vpop.permute.xlu0 %2503
        %2505 = vrot.lane.b32.xlu0 %v2486, 103
        %v2506 = vpop.permute.xlu0 %2505
        %2507 = vrot.lane.b32.xlu0 %v2487, 103
        %v2508 = vpop.permute.xlu0 %2507
        %v2509 = vsel %vm1150, %v2496, %v2498
        %v2510 = vsel %vm1150, %v2498, %v2500
        %v2511 = vsel %vm1150, %v2500, %v2502
        %v2512 = vsel %vm1150, %v2502, %v2504
        %v2513 = vsel %vm1150, %v2504, %v2506
        %v2514 = vsel %vm1150, %v2506, %v2508
        %v2521 = vadd.f32 %v2475, %v2509
        %v2522 = vadd.f32 %v2476, %v2510
        %v2523 = vadd.f32 %v2477, %v2511
        %v2524 = vadd.f32 %v2478, %v2512
        %v2525 = vadd.f32 %v2479, %v2513
        %v2526 = vadd.f32 %v2480, %v2514
        %v2527 = vmul.f32 %v1422, %v801
        %v2528 = vmul.f32 %v1422, %v805
        %v2529 = vmul.f32 %v1422, %v809
        %v2530 = vmul.f32 %v1422, %v813
        %v2531 = vmul.f32 %v1422, %v817
        %v2532 = vmul.f32 %v1422, %v821
        %v2533 = vmul.f32 %v1422, %v825
        %2541 = vrot.lane.b32.xlu0 %v2527, 102
        %v2542 = vpop.permute.xlu0 %2541
        %2543 = vrot.lane.b32.xlu0 %v2528, 102
        %v2544 = vpop.permute.xlu0 %2543
        %2545 = vrot.lane.b32.xlu0 %v2529, 102
        %v2546 = vpop.permute.xlu0 %2545
        %2547 = vrot.lane.b32.xlu0 %v2530, 102
        %v2548 = vpop.permute.xlu0 %2547
        %2549 = vrot.lane.b32.xlu0 %v2531, 102
        %v2550 = vpop.permute.xlu0 %2549
        %2551 = vrot.lane.b32.xlu0 %v2532, 102
        %v2552 = vpop.permute.xlu0 %2551
        %2553 = vrot.lane.b32.xlu0 %v2533, 102
        %v2554 = vpop.permute.xlu0 %2553
        %v2555 = vsel %vm1251, %v2542, %v2544
        %v2556 = vsel %vm1251, %v2544, %v2546
        %v2557 = vsel %vm1251, %v2546, %v2548
        %v2558 = vsel %vm1251, %v2548, %v2550
        %v2559 = vsel %vm1251, %v2550, %v2552
        %v2560 = vsel %vm1251, %v2552, %v2554
        %v2567 = vadd.f32 %v2521, %v2555
        %v2568 = vadd.f32 %v2522, %v2556
        %v2569 = vadd.f32 %v2523, %v2557
        %v2570 = vadd.f32 %v2524, %v2558
        %v2571 = vadd.f32 %v2525, %v2559
        %v2572 = vadd.f32 %v2526, %v2560
        %v2573 = vmul.f32 %v1472, %v889
        %v2574 = vmul.f32 %v1472, %v893
        %v2575 = vmul.f32 %v1472, %v897
        %v2576 = vmul.f32 %v1472, %v901
        %v2577 = vmul.f32 %v1472, %v905
        %v2578 = vmul.f32 %v1472, %v909
        %v2579 = vmul.f32 %v1472, %v913
        %2587 = vrot.lane.b32.xlu0 %v2573, 102
        %v2588 = vpop.permute.xlu0 %2587
        %2589 = vrot.lane.b32.xlu0 %v2574, 102
        %v2590 = vpop.permute.xlu0 %2589
        %2591 = vrot.lane.b32.xlu0 %v2575, 102
        %v2592 = vpop.permute.xlu0 %2591
        %2593 = vrot.lane.b32.xlu0 %v2576, 102
        %v2594 = vpop.permute.xlu0 %2593
        %2595 = vrot.lane.b32.xlu0 %v2577, 102
        %v2596 = vpop.permute.xlu0 %2595
        %2597 = vrot.lane.b32.xlu0 %v2578, 102
        %v2598 = vpop.permute.xlu0 %2597
        %2599 = vrot.lane.b32.xlu0 %v2579, 102
        %v2600 = vpop.permute.xlu0 %2599
        %v2601 = vsel %vm1251, %v2588, %v2590
        %v2602 = vsel %vm1251, %v2590, %v2592
        %v2603 = vsel %vm1251, %v2592, %v2594
        %v2604 = vsel %vm1251, %v2594, %v2596
        %v2605 = vsel %vm1251, %v2596, %v2598
        %v2606 = vsel %vm1251, %v2598, %v2600
        %v2613 = vadd.f32 %v2567, %v2601
        %v2614 = vadd.f32 %v2568, %v2602
        %v2615 = vadd.f32 %v2569, %v2603
        %v2616 = vadd.f32 %v2570, %v2604
        %v2617 = vadd.f32 %v2571, %v2605
        %v2618 = vadd.f32 %v2572, %v2606
        %v2619 = vmul.f32 %v1522, %v564
        %v2620 = vmul.f32 %v1522, %v568
        %v2621 = vmul.f32 %v1522, %v572
        %v2622 = vmul.f32 %v1522, %v576
        %v2623 = vmul.f32 %v1522, %v580
        %v2624 = vmul.f32 %v1522, %v584
        %v2625 = vmul.f32 %v1522, %v588
        %2633 = vrot.lane.b32.xlu0 %v2619, 80
        %v2634 = vpop.permute.xlu0 %2633
        %2635 = vrot.lane.b32.xlu0 %v2620, 80
        %v2636 = vpop.permute.xlu0 %2635
        %2637 = vrot.lane.b32.xlu0 %v2621, 80
        %v2638 = vpop.permute.xlu0 %2637
        %2639 = vrot.lane.b32.xlu0 %v2622, 80
        %v2640 = vpop.permute.xlu0 %2639
        %2641 = vrot.lane.b32.xlu0 %v2623, 80
        %v2642 = vpop.permute.xlu0 %2641
        %2643 = vrot.lane.b32.xlu0 %v2624, 80
        %v2644 = vpop.permute.xlu0 %2643
        %2645 = vrot.lane.b32.xlu0 %v2625, 80
        %v2646 = vpop.permute.xlu0 %2645
        %v2647 = vsel %vm1552, %v2634, %v2636
        %v2648 = vsel %vm1552, %v2636, %v2638
        %v2649 = vsel %vm1552, %v2638, %v2640
        %v2650 = vsel %vm1552, %v2640, %v2642
        %v2651 = vsel %vm1552, %v2642, %v2644
        %v2652 = vsel %vm1552, %v2644, %v2646
        %v2659 = vadd.f32 %v2613, %v2647
        %v2660 = vadd.f32 %v2614, %v2648
        %v2661 = vadd.f32 %v2615, %v2649
        %v2662 = vadd.f32 %v2616, %v2650
        %v2663 = vadd.f32 %v2617, %v2651
        %v2664 = vadd.f32 %v2618, %v2652
        %v2665 = vmul.f32 %v1573, %v475
        %v2666 = vmul.f32 %v1573, %v479
        %v2667 = vmul.f32 %v1573, %v483
        %v2668 = vmul.f32 %v1573, %v487
        %v2669 = vmul.f32 %v1573, %v491
        %v2670 = vmul.f32 %v1573, %v495
        %v2671 = vmul.f32 %v1573, %v499
        %2679 = vrot.lane.b32.xlu0 %v2665, 79
        %v2680 = vpop.permute.xlu0 %2679
        %2681 = vrot.lane.b32.xlu0 %v2666, 79
        %v2682 = vpop.permute.xlu0 %2681
        %2683 = vrot.lane.b32.xlu0 %v2667, 79
        %v2684 = vpop.permute.xlu0 %2683
        %2685 = vrot.lane.b32.xlu0 %v2668, 79
        %v2686 = vpop.permute.xlu0 %2685
        %2687 = vrot.lane.b32.xlu0 %v2669, 79
        %v2688 = vpop.permute.xlu0 %2687
        %2689 = vrot.lane.b32.xlu0 %v2670, 79
        %v2690 = vpop.permute.xlu0 %2689
        %2691 = vrot.lane.b32.xlu0 %v2671, 79
        %v2692 = vpop.permute.xlu0 %2691
        %v2693 = vsel %vm1653, %v2680, %v2682
        %v2694 = vsel %vm1653, %v2682, %v2684
        %v2695 = vsel %vm1653, %v2684, %v2686
        %v2696 = vsel %vm1653, %v2686, %v2688
        %v2697 = vsel %vm1653, %v2688, %v2690
        %v2698 = vsel %vm1653, %v2690, %v2692
        %v2705 = vadd.f32 %v2659, %v2693
        %v2706 = vadd.f32 %v2660, %v2694
        %v2707 = vadd.f32 %v2661, %v2695
        %v2708 = vadd.f32 %v2662, %v2696
        %v2709 = vadd.f32 %v2663, %v2697
        %v2710 = vadd.f32 %v2664, %v2698
        %v2711 = vmul.f32 %v1623, %v564
        %v2712 = vmul.f32 %v1623, %v568
        %v2713 = vmul.f32 %v1623, %v572
        %v2714 = vmul.f32 %v1623, %v576
        %v2715 = vmul.f32 %v1623, %v580
        %v2716 = vmul.f32 %v1623, %v584
        %v2717 = vmul.f32 %v1623, %v588
        %2725 = vrot.lane.b32.xlu0 %v2711, 79
        %v2726 = vpop.permute.xlu0 %2725
        %2727 = vrot.lane.b32.xlu0 %v2712, 79
        %v2728 = vpop.permute.xlu0 %2727
        %2729 = vrot.lane.b32.xlu0 %v2713, 79
        %v2730 = vpop.permute.xlu0 %2729
        %2731 = vrot.lane.b32.xlu0 %v2714, 79
        %v2732 = vpop.permute.xlu0 %2731
        %2733 = vrot.lane.b32.xlu0 %v2715, 79
        %v2734 = vpop.permute.xlu0 %2733
        %2735 = vrot.lane.b32.xlu0 %v2716, 79
        %v2736 = vpop.permute.xlu0 %2735
        %2737 = vrot.lane.b32.xlu0 %v2717, 79
        %v2738 = vpop.permute.xlu0 %2737
        %v2739 = vsel %vm1653, %v2726, %v2728
        %v2740 = vsel %vm1653, %v2728, %v2730
        %v2741 = vsel %vm1653, %v2730, %v2732
        %v2742 = vsel %vm1653, %v2732, %v2734
        %v2743 = vsel %vm1653, %v2734, %v2736
        %v2744 = vsel %vm1653, %v2736, %v2738
        %v2751 = vadd.f32 %v2705, %v2739
        %v2752 = vadd.f32 %v2706, %v2740
        %v2753 = vadd.f32 %v2707, %v2741
        %v2754 = vadd.f32 %v2708, %v2742
        %v2755 = vadd.f32 %v2709, %v2743
        %v2756 = vadd.f32 %v2710, %v2744
        %v2757 = vmul.f32 %v1674, %v475
        %v2758 = vmul.f32 %v1674, %v479
        %v2759 = vmul.f32 %v1674, %v483
        %v2760 = vmul.f32 %v1674, %v487
        %v2761 = vmul.f32 %v1674, %v491
        %v2762 = vmul.f32 %v1674, %v495
        %v2763 = vmul.f32 %v1674, %v499
        %2771 = vrot.lane.b32.xlu0 %v2757, 78
        %v2772 = vpop.permute.xlu0 %2771
        %2773 = vrot.lane.b32.xlu0 %v2758, 78
        %v2774 = vpop.permute.xlu0 %2773
        %2775 = vrot.lane.b32.xlu0 %v2759, 78
        %v2776 = vpop.permute.xlu0 %2775
        %2777 = vrot.lane.b32.xlu0 %v2760, 78
        %v2778 = vpop.permute.xlu0 %2777
        %2779 = vrot.lane.b32.xlu0 %v2761, 78
        %v2780 = vpop.permute.xlu0 %2779
        %2781 = vrot.lane.b32.xlu0 %v2762, 78
        %v2782 = vpop.permute.xlu0 %2781
        %2783 = vrot.lane.b32.xlu0 %v2763, 78
        %v2784 = vpop.permute.xlu0 %2783
        %v2785 = vsel %vm1754, %v2772, %v2774
        %v2786 = vsel %vm1754, %v2774, %v2776
        %v2787 = vsel %vm1754, %v2776, %v2778
        %v2788 = vsel %vm1754, %v2778, %v2780
        %v2789 = vsel %vm1754, %v2780, %v2782
        %v2790 = vsel %vm1754, %v2782, %v2784
        %v2797 = vadd.f32 %v2751, %v2785
        %v2798 = vadd.f32 %v2752, %v2786
        %v2799 = vadd.f32 %v2753, %v2787
        %v2800 = vadd.f32 %v2754, %v2788
        %v2801 = vadd.f32 %v2755, %v2789
        %v2802 = vadd.f32 %v2756, %v2790
        %v2803 = vmul.f32 %v1724, %v564
        %v2804 = vmul.f32 %v1724, %v568
        %v2805 = vmul.f32 %v1724, %v572
        %v2806 = vmul.f32 %v1724, %v576
        %v2807 = vmul.f32 %v1724, %v580
        %v2808 = vmul.f32 %v1724, %v584
        %v2809 = vmul.f32 %v1724, %v588
        %2817 = vrot.lane.b32.xlu0 %v2803, 78
        %v2818 = vpop.permute.xlu0 %2817
        %2819 = vrot.lane.b32.xlu0 %v2804, 78
        %v2820 = vpop.permute.xlu0 %2819
        %2821 = vrot.lane.b32.xlu0 %v2805, 78
        %v2822 = vpop.permute.xlu0 %2821
        %2823 = vrot.lane.b32.xlu0 %v2806, 78
        %v2824 = vpop.permute.xlu0 %2823
        %2825 = vrot.lane.b32.xlu0 %v2807, 78
        %v2826 = vpop.permute.xlu0 %2825
        %2827 = vrot.lane.b32.xlu0 %v2808, 78
        %v2828 = vpop.permute.xlu0 %2827
        %2829 = vrot.lane.b32.xlu0 %v2809, 78
        %v2830 = vpop.permute.xlu0 %2829
        %v2831 = vsel %vm1754, %v2818, %v2820
        %v2832 = vsel %vm1754, %v2820, %v2822
        %v2833 = vsel %vm1754, %v2822, %v2824
        %v2834 = vsel %vm1754, %v2824, %v2826
        %v2835 = vsel %vm1754, %v2826, %v2828
        %v2836 = vsel %vm1754, %v2828, %v2830
        %v2843 = vadd.f32 %v2797, %v2831
        %v2844 = vadd.f32 %v2798, %v2832
        %v2845 = vadd.f32 %v2799, %v2833
        %v2846 = vadd.f32 %v2800, %v2834
        %v2847 = vadd.f32 %v2801, %v2835
        %v2848 = vadd.f32 %v2802, %v2836
        %v2849 = vmax.f32 %v1767, %v2843
        %v2850 = vmax.f32 %v1768, %v2844
        %v2851 = vmax.f32 %v1769, %v2845
        %v2852 = vmax.f32 %v1770, %v2846
        %v2853 = vmax.f32 %v1771, %v2847
        %v2854 = vmax.f32 %v1772, %v2848
        %v2855 = vmul.f32 %v378, %v703
        %v2856 = vmul.f32 %v378, %v707
        %v2857 = vmul.f32 %v378, %v711
        %v2858 = vmul.f32 %v378, %v715
        %v2859 = vmul.f32 %v378, %v719
        %v2860 = vmul.f32 %v378, %v723
        %v2861 = vmul.f32 %v421, %v752
        %v2862 = vmul.f32 %v421, %v756
        %v2863 = vmul.f32 %v421, %v760
        %v2864 = vmul.f32 %v421, %v764
        %v2865 = vmul.f32 %v421, %v768
        %v2866 = vmul.f32 %v421, %v772
        %v2867 = vadd.f32 %v2855, %v2861
        %v2868 = vadd.f32 %v2856, %v2862
        %v2869 = vadd.f32 %v2857, %v2863
        %v2870 = vadd.f32 %v2858, %v2864
        %v2871 = vadd.f32 %v2859, %v2865
        %v2872 = vadd.f32 %v2860, %v2866
        %v2873 = vmul.f32 %v469, %v801
        %v2874 = vmul.f32 %v469, %v805
        %v2875 = vmul.f32 %v469, %v809
        %v2876 = vmul.f32 %v469, %v813
        %v2877 = vmul.f32 %v469, %v817
        %v2878 = vmul.f32 %v469, %v821
        %v2879 = vmul.f32 %v469, %v825
        %2887 = vrot.lane.b32.xlu0 %v2873, 127
        %v2888 = vpop.permute.xlu0 %2887
        %2889 = vrot.lane.b32.xlu0 %v2874, 127
        %v2890 = vpop.permute.xlu0 %2889
        %2891 = vrot.lane.b32.xlu0 %v2875, 127
        %v2892 = vpop.permute.xlu0 %2891
        %2893 = vrot.lane.b32.xlu0 %v2876, 127
        %v2894 = vpop.permute.xlu0 %2893
        %2895 = vrot.lane.b32.xlu0 %v2877, 127
        %v2896 = vpop.permute.xlu0 %2895
        %2897 = vrot.lane.b32.xlu0 %v2878, 127
        %v2898 = vpop.permute.xlu0 %2897
        %2899 = vrot.lane.b32.xlu0 %v2879, 127
        %v2900 = vpop.permute.xlu0 %2899
        %v2901 = vsel %vm535, %v2888, %v2890
        %v2902 = vsel %vm535, %v2890, %v2892
        %v2903 = vsel %vm535, %v2892, %v2894
        %v2904 = vsel %vm535, %v2894, %v2896
        %v2905 = vsel %vm535, %v2896, %v2898
        %v2906 = vsel %vm535, %v2898, %v2900
        %v2913 = vadd.f32 %v2867, %v2901
        %v2914 = vadd.f32 %v2868, %v2902
        %v2915 = vadd.f32 %v2869, %v2903
        %v2916 = vadd.f32 %v2870, %v2904
        %v2917 = vadd.f32 %v2871, %v2905
        %v2918 = vadd.f32 %v2872, %v2906
        %v2919 = vmul.f32 %v558, %v889
        %v2920 = vmul.f32 %v558, %v893
        %v2921 = vmul.f32 %v558, %v897
        %v2922 = vmul.f32 %v558, %v901
        %v2923 = vmul.f32 %v558, %v905
        %v2924 = vmul.f32 %v558, %v909
        %v2925 = vmul.f32 %v558, %v913
        %2933 = vrot.lane.b32.xlu0 %v2919, 127
        %v2934 = vpop.permute.xlu0 %2933
        %2935 = vrot.lane.b32.xlu0 %v2920, 127
        %v2936 = vpop.permute.xlu0 %2935
        %2937 = vrot.lane.b32.xlu0 %v2921, 127
        %v2938 = vpop.permute.xlu0 %2937
        %2939 = vrot.lane.b32.xlu0 %v2922, 127
        %v2940 = vpop.permute.xlu0 %2939
        %2941 = vrot.lane.b32.xlu0 %v2923, 127
        %v2942 = vpop.permute.xlu0 %2941
        %2943 = vrot.lane.b32.xlu0 %v2924, 127
        %v2944 = vpop.permute.xlu0 %2943
        %2945 = vrot.lane.b32.xlu0 %v2925, 127
        %v2946 = vpop.permute.xlu0 %2945
        %v2947 = vsel %vm535, %v2934, %v2936
        %v2948 = vsel %vm535, %v2936, %v2938
        %v2949 = vsel %vm535, %v2938, %v2940
        %v2950 = vsel %vm535, %v2940, %v2942
        %v2951 = vsel %vm535, %v2942, %v2944
        %v2952 = vsel %vm535, %v2944, %v2946
        %v2959 = vadd.f32 %v2913, %v2947
        %v2960 = vadd.f32 %v2914, %v2948
        %v2961 = vadd.f32 %v2915, %v2949
        %v2962 = vadd.f32 %v2916, %v2950
        %v2963 = vadd.f32 %v2917, %v2951
        %v2964 = vadd.f32 %v2918, %v2952
        %v2965 = vmul.f32 %v644, %v801
        %v2966 = vmul.f32 %v644, %v805
        %v2967 = vmul.f32 %v644, %v809
        %v2968 = vmul.f32 %v644, %v813
        %v2969 = vmul.f32 %v644, %v817
        %v2970 = vmul.f32 %v644, %v821
        %v2971 = vmul.f32 %v644, %v825
        %2979 = vrot.lane.b32.xlu0 %v2965, 126
        %v2980 = vpop.permute.xlu0 %2979
        %2981 = vrot.lane.b32.xlu0 %v2966, 126
        %v2982 = vpop.permute.xlu0 %2981
        %2983 = vrot.lane.b32.xlu0 %v2967, 126
        %v2984 = vpop.permute.xlu0 %2983
        %2985 = vrot.lane.b32.xlu0 %v2968, 126
        %v2986 = vpop.permute.xlu0 %2985
        %2987 = vrot.lane.b32.xlu0 %v2969, 126
        %v2988 = vpop.permute.xlu0 %2987
        %2989 = vrot.lane.b32.xlu0 %v2970, 126
        %v2990 = vpop.permute.xlu0 %2989
        %2991 = vrot.lane.b32.xlu0 %v2971, 126
        %v2992 = vpop.permute.xlu0 %2991
        %v2993 = vsel %vm674, %v2980, %v2982
        %v2994 = vsel %vm674, %v2982, %v2984
        %v2995 = vsel %vm674, %v2984, %v2986
        %v2996 = vsel %vm674, %v2986, %v2988
        %v2997 = vsel %vm674, %v2988, %v2990
        %v2998 = vsel %vm674, %v2990, %v2992
        %v3005 = vadd.f32 %v2959, %v2993
        %v3006 = vadd.f32 %v2960, %v2994
        %v3007 = vadd.f32 %v2961, %v2995
        %v3008 = vadd.f32 %v2962, %v2996
        %v3009 = vadd.f32 %v2963, %v2997
        %v3010 = vadd.f32 %v2964, %v2998
        %v3011 = vmul.f32 %v697, %v475
        %v3012 = vmul.f32 %v697, %v479
        %v3013 = vmul.f32 %v697, %v483
        %v3014 = vmul.f32 %v697, %v487
        %v3015 = vmul.f32 %v697, %v491
        %v3016 = vmul.f32 %v697, %v495
        %v3017 = vmul.f32 %v697, %v499
        %3025 = vrot.lane.b32.xlu0 %v3011, 104
        %v3026 = vpop.permute.xlu0 %3025
        %3027 = vrot.lane.b32.xlu0 %v3012, 104
        %v3028 = vpop.permute.xlu0 %3027
        %3029 = vrot.lane.b32.xlu0 %v3013, 104
        %v3030 = vpop.permute.xlu0 %3029
        %3031 = vrot.lane.b32.xlu0 %v3014, 104
        %v3032 = vpop.permute.xlu0 %3031
        %3033 = vrot.lane.b32.xlu0 %v3015, 104
        %v3034 = vpop.permute.xlu0 %3033
        %3035 = vrot.lane.b32.xlu0 %v3016, 104
        %v3036 = vpop.permute.xlu0 %3035
        %3037 = vrot.lane.b32.xlu0 %v3017, 104
        %v3038 = vpop.permute.xlu0 %3037
        %v3039 = vsel %vm1049, %v3026, %v3028
        %v3040 = vsel %vm1049, %v3028, %v3030
        %v3041 = vsel %vm1049, %v3030, %v3032
        %v3042 = vsel %vm1049, %v3032, %v3034
        %v3043 = vsel %vm1049, %v3034, %v3036
        %v3044 = vsel %vm1049, %v3036, %v3038
        %v3051 = vadd.f32 %v3005, %v3039
        %v3052 = vadd.f32 %v3006, %v3040
        %v3053 = vadd.f32 %v3007, %v3041
        %v3054 = vadd.f32 %v3008, %v3042
        %v3055 = vadd.f32 %v3009, %v3043
        %v3056 = vadd.f32 %v3010, %v3044
        %v3057 = vmul.f32 %v746, %v564
        %v3058 = vmul.f32 %v746, %v568
        %v3059 = vmul.f32 %v746, %v572
        %v3060 = vmul.f32 %v746, %v576
        %v3061 = vmul.f32 %v746, %v580
        %v3062 = vmul.f32 %v746, %v584
        %v3063 = vmul.f32 %v746, %v588
        %3071 = vrot.lane.b32.xlu0 %v3057, 104
        %v3072 = vpop.permute.xlu0 %3071
        %3073 = vrot.lane.b32.xlu0 %v3058, 104
        %v3074 = vpop.permute.xlu0 %3073
        %3075 = vrot.lane.b32.xlu0 %v3059, 104
        %v3076 = vpop.permute.xlu0 %3075
        %3077 = vrot.lane.b32.xlu0 %v3060, 104
        %v3078 = vpop.permute.xlu0 %3077
        %3079 = vrot.lane.b32.xlu0 %v3061, 104
        %v3080 = vpop.permute.xlu0 %3079
        %3081 = vrot.lane.b32.xlu0 %v3062, 104
        %v3082 = vpop.permute.xlu0 %3081
        %3083 = vrot.lane.b32.xlu0 %v3063, 104
        %v3084 = vpop.permute.xlu0 %3083
        %v3085 = vsel %vm1049, %v3072, %v3074
        %v3086 = vsel %vm1049, %v3074, %v3076
        %v3087 = vsel %vm1049, %v3076, %v3078
        %v3088 = vsel %vm1049, %v3078, %v3080
        %v3089 = vsel %vm1049, %v3080, %v3082
        %v3090 = vsel %vm1049, %v3082, %v3084
        %v3097 = vadd.f32 %v3051, %v3085
        %v3098 = vadd.f32 %v3052, %v3086
        %v3099 = vadd.f32 %v3053, %v3087
        %v3100 = vadd.f32 %v3054, %v3088
        %v3101 = vadd.f32 %v3055, %v3089
        %v3102 = vadd.f32 %v3056, %v3090
        %v3103 = vmul.f32 %v795, %v475
        %v3104 = vmul.f32 %v795, %v479
        %v3105 = vmul.f32 %v795, %v483
        %v3106 = vmul.f32 %v795, %v487
        %v3107 = vmul.f32 %v795, %v491
        %v3108 = vmul.f32 %v795, %v495
        %v3109 = vmul.f32 %v795, %v499
        %3117 = vrot.lane.b32.xlu0 %v3103, 103
        %v3118 = vpop.permute.xlu0 %3117
        %3119 = vrot.lane.b32.xlu0 %v3104, 103
        %v3120 = vpop.permute.xlu0 %3119
        %3121 = vrot.lane.b32.xlu0 %v3105, 103
        %v3122 = vpop.permute.xlu0 %3121
        %3123 = vrot.lane.b32.xlu0 %v3106, 103
        %v3124 = vpop.permute.xlu0 %3123
        %3125 = vrot.lane.b32.xlu0 %v3107, 103
        %v3126 = vpop.permute.xlu0 %3125
        %3127 = vrot.lane.b32.xlu0 %v3108, 103
        %v3128 = vpop.permute.xlu0 %3127
        %3129 = vrot.lane.b32.xlu0 %v3109, 103
        %v3130 = vpop.permute.xlu0 %3129
        %v3131 = vsel %vm1150, %v3118, %v3120
        %v3132 = vsel %vm1150, %v3120, %v3122
        %v3133 = vsel %vm1150, %v3122, %v3124
        %v3134 = vsel %vm1150, %v3124, %v3126
        %v3135 = vsel %vm1150, %v3126, %v3128
        %v3136 = vsel %vm1150, %v3128, %v3130
        %v3143 = vadd.f32 %v3097, %v3131
        %v3144 = vadd.f32 %v3098, %v3132
        %v3145 = vadd.f32 %v3099, %v3133
        %v3146 = vadd.f32 %v3100, %v3134
        %v3147 = vadd.f32 %v3101, %v3135
        %v3148 = vadd.f32 %v3102, %v3136
        %v3149 = vmul.f32 %v883, %v564
        %v3150 = vmul.f32 %v883, %v568
        %v3151 = vmul.f32 %v883, %v572
        %v3152 = vmul.f32 %v883, %v576
        %v3153 = vmul.f32 %v883, %v580
        %v3154 = vmul.f32 %v883, %v584
        %v3155 = vmul.f32 %v883, %v588
        %3163 = vrot.lane.b32.xlu0 %v3149, 103
        %v3164 = vpop.permute.xlu0 %3163
        %3165 = vrot.lane.b32.xlu0 %v3150, 103
        %v3166 = vpop.permute.xlu0 %3165
        %3167 = vrot.lane.b32.xlu0 %v3151, 103
        %v3168 = vpop.permute.xlu0 %3167
        %3169 = vrot.lane.b32.xlu0 %v3152, 103
        %v3170 = vpop.permute.xlu0 %3169
        %3171 = vrot.lane.b32.xlu0 %v3153, 103
        %v3172 = vpop.permute.xlu0 %3171
        %3173 = vrot.lane.b32.xlu0 %v3154, 103
        %v3174 = vpop.permute.xlu0 %3173
        %3175 = vrot.lane.b32.xlu0 %v3155, 103
        %v3176 = vpop.permute.xlu0 %3175
        %v3177 = vsel %vm1150, %v3164, %v3166
        %v3178 = vsel %vm1150, %v3166, %v3168
        %v3179 = vsel %vm1150, %v3168, %v3170
        %v3180 = vsel %vm1150, %v3170, %v3172
        %v3181 = vsel %vm1150, %v3172, %v3174
        %v3182 = vsel %vm1150, %v3174, %v3176
        %v3189 = vadd.f32 %v3143, %v3177
        %v3190 = vadd.f32 %v3144, %v3178
        %v3191 = vadd.f32 %v3145, %v3179
        %v3192 = vadd.f32 %v3146, %v3180
        %v3193 = vadd.f32 %v3147, %v3181
        %v3194 = vadd.f32 %v3148, %v3182
        %v3195 = vmul.f32 %v969, %v475
        %v3196 = vmul.f32 %v969, %v479
        %v3197 = vmul.f32 %v969, %v483
        %v3198 = vmul.f32 %v969, %v487
        %v3199 = vmul.f32 %v969, %v491
        %v3200 = vmul.f32 %v969, %v495
        %v3201 = vmul.f32 %v969, %v499
        %3209 = vrot.lane.b32.xlu0 %v3195, 102
        %v3210 = vpop.permute.xlu0 %3209
        %3211 = vrot.lane.b32.xlu0 %v3196, 102
        %v3212 = vpop.permute.xlu0 %3211
        %3213 = vrot.lane.b32.xlu0 %v3197, 102
        %v3214 = vpop.permute.xlu0 %3213
        %3215 = vrot.lane.b32.xlu0 %v3198, 102
        %v3216 = vpop.permute.xlu0 %3215
        %3217 = vrot.lane.b32.xlu0 %v3199, 102
        %v3218 = vpop.permute.xlu0 %3217
        %3219 = vrot.lane.b32.xlu0 %v3200, 102
        %v3220 = vpop.permute.xlu0 %3219
        %3221 = vrot.lane.b32.xlu0 %v3201, 102
        %v3222 = vpop.permute.xlu0 %3221
        %v3223 = vsel %vm1251, %v3210, %v3212
        %v3224 = vsel %vm1251, %v3212, %v3214
        %v3225 = vsel %vm1251, %v3214, %v3216
        %v3226 = vsel %vm1251, %v3216, %v3218
        %v3227 = vsel %vm1251, %v3218, %v3220
        %v3228 = vsel %vm1251, %v3220, %v3222
        %v3235 = vadd.f32 %v3189, %v3223
        %v3236 = vadd.f32 %v3190, %v3224
        %v3237 = vadd.f32 %v3191, %v3225
        %v3238 = vadd.f32 %v3192, %v3226
        %v3239 = vadd.f32 %v3193, %v3227
        %v3240 = vadd.f32 %v3194, %v3228
        %v3241 = vmul.f32 %v1019, %v801
        %v3242 = vmul.f32 %v1019, %v805
        %v3243 = vmul.f32 %v1019, %v809
        %v3244 = vmul.f32 %v1019, %v813
        %v3245 = vmul.f32 %v1019, %v817
        %v3246 = vmul.f32 %v1019, %v821
        %v3247 = vmul.f32 %v1019, %v825
        %3255 = vrot.lane.b32.xlu0 %v3241, 104
        %v3256 = vpop.permute.xlu0 %3255
        %3257 = vrot.lane.b32.xlu0 %v3242, 104
        %v3258 = vpop.permute.xlu0 %3257
        %3259 = vrot.lane.b32.xlu0 %v3243, 104
        %v3260 = vpop.permute.xlu0 %3259
        %3261 = vrot.lane.b32.xlu0 %v3244, 104
        %v3262 = vpop.permute.xlu0 %3261
        %3263 = vrot.lane.b32.xlu0 %v3245, 104
        %v3264 = vpop.permute.xlu0 %3263
        %3265 = vrot.lane.b32.xlu0 %v3246, 104
        %v3266 = vpop.permute.xlu0 %3265
        %3267 = vrot.lane.b32.xlu0 %v3247, 104
        %v3268 = vpop.permute.xlu0 %3267
        %v3269 = vsel %vm1049, %v3256, %v3258
        %v3270 = vsel %vm1049, %v3258, %v3260
        %v3271 = vsel %vm1049, %v3260, %v3262
        %v3272 = vsel %vm1049, %v3262, %v3264
        %v3273 = vsel %vm1049, %v3264, %v3266
        %v3274 = vsel %vm1049, %v3266, %v3268
        %v3281 = vadd.f32 %v3235, %v3269
        %v3282 = vadd.f32 %v3236, %v3270
        %v3283 = vadd.f32 %v3237, %v3271
        %v3284 = vadd.f32 %v3238, %v3272
        %v3285 = vadd.f32 %v3239, %v3273
        %v3286 = vadd.f32 %v3240, %v3274
        %v3287 = vmul.f32 %v1070, %v889
        %v3288 = vmul.f32 %v1070, %v893
        %v3289 = vmul.f32 %v1070, %v897
        %v3290 = vmul.f32 %v1070, %v901
        %v3291 = vmul.f32 %v1070, %v905
        %v3292 = vmul.f32 %v1070, %v909
        %v3293 = vmul.f32 %v1070, %v913
        %3301 = vrot.lane.b32.xlu0 %v3287, 104
        %v3302 = vpop.permute.xlu0 %3301
        %3303 = vrot.lane.b32.xlu0 %v3288, 104
        %v3304 = vpop.permute.xlu0 %3303
        %3305 = vrot.lane.b32.xlu0 %v3289, 104
        %v3306 = vpop.permute.xlu0 %3305
        %3307 = vrot.lane.b32.xlu0 %v3290, 104
        %v3308 = vpop.permute.xlu0 %3307
        %3309 = vrot.lane.b32.xlu0 %v3291, 104
        %v3310 = vpop.permute.xlu0 %3309
        %3311 = vrot.lane.b32.xlu0 %v3292, 104
        %v3312 = vpop.permute.xlu0 %3311
        %3313 = vrot.lane.b32.xlu0 %v3293, 104
        %v3314 = vpop.permute.xlu0 %3313
        %v3315 = vsel %vm1049, %v3302, %v3304
        %v3316 = vsel %vm1049, %v3304, %v3306
        %v3317 = vsel %vm1049, %v3306, %v3308
        %v3318 = vsel %vm1049, %v3308, %v3310
        %v3319 = vsel %vm1049, %v3310, %v3312
        %v3320 = vsel %vm1049, %v3312, %v3314
        %v3327 = vadd.f32 %v3281, %v3315
        %v3328 = vadd.f32 %v3282, %v3316
        %v3329 = vadd.f32 %v3283, %v3317
        %v3330 = vadd.f32 %v3284, %v3318
        %v3331 = vadd.f32 %v3285, %v3319
        %v3332 = vadd.f32 %v3286, %v3320
        %v3333 = vmul.f32 %v1120, %v801
        %v3334 = vmul.f32 %v1120, %v805
        %v3335 = vmul.f32 %v1120, %v809
        %v3336 = vmul.f32 %v1120, %v813
        %v3337 = vmul.f32 %v1120, %v817
        %v3338 = vmul.f32 %v1120, %v821
        %v3339 = vmul.f32 %v1120, %v825
        %3347 = vrot.lane.b32.xlu0 %v3333, 103
        %v3348 = vpop.permute.xlu0 %3347
        %3349 = vrot.lane.b32.xlu0 %v3334, 103
        %v3350 = vpop.permute.xlu0 %3349
        %3351 = vrot.lane.b32.xlu0 %v3335, 103
        %v3352 = vpop.permute.xlu0 %3351
        %3353 = vrot.lane.b32.xlu0 %v3336, 103
        %v3354 = vpop.permute.xlu0 %3353
        %3355 = vrot.lane.b32.xlu0 %v3337, 103
        %v3356 = vpop.permute.xlu0 %3355
        %3357 = vrot.lane.b32.xlu0 %v3338, 103
        %v3358 = vpop.permute.xlu0 %3357
        %3359 = vrot.lane.b32.xlu0 %v3339, 103
        %v3360 = vpop.permute.xlu0 %3359
        %v3361 = vsel %vm1150, %v3348, %v3350
        %v3362 = vsel %vm1150, %v3350, %v3352
        %v3363 = vsel %vm1150, %v3352, %v3354
        %v3364 = vsel %vm1150, %v3354, %v3356
        %v3365 = vsel %vm1150, %v3356, %v3358
        %v3366 = vsel %vm1150, %v3358, %v3360
        %v3373 = vadd.f32 %v3327, %v3361
        %v3374 = vadd.f32 %v3328, %v3362
        %v3375 = vadd.f32 %v3329, %v3363
        %v3376 = vadd.f32 %v3330, %v3364
        %v3377 = vadd.f32 %v3331, %v3365
        %v3378 = vadd.f32 %v3332, %v3366
        %v3379 = vmul.f32 %v1171, %v889
        %v3380 = vmul.f32 %v1171, %v893
        %v3381 = vmul.f32 %v1171, %v897
        %v3382 = vmul.f32 %v1171, %v901
        %v3383 = vmul.f32 %v1171, %v905
        %v3384 = vmul.f32 %v1171, %v909
        %v3385 = vmul.f32 %v1171, %v913
        %3393 = vrot.lane.b32.xlu0 %v3379, 103
        %v3394 = vpop.permute.xlu0 %3393
        %3395 = vrot.lane.b32.xlu0 %v3380, 103
        %v3396 = vpop.permute.xlu0 %3395
        %3397 = vrot.lane.b32.xlu0 %v3381, 103
        %v3398 = vpop.permute.xlu0 %3397
        %3399 = vrot.lane.b32.xlu0 %v3382, 103
        %v3400 = vpop.permute.xlu0 %3399
        %3401 = vrot.lane.b32.xlu0 %v3383, 103
        %v3402 = vpop.permute.xlu0 %3401
        %3403 = vrot.lane.b32.xlu0 %v3384, 103
        %v3404 = vpop.permute.xlu0 %3403
        %3405 = vrot.lane.b32.xlu0 %v3385, 103
        %v3406 = vpop.permute.xlu0 %3405
        %v3407 = vsel %vm1150, %v3394, %v3396
        %v3408 = vsel %vm1150, %v3396, %v3398
        %v3409 = vsel %vm1150, %v3398, %v3400
        %v3410 = vsel %vm1150, %v3400, %v3402
        %v3411 = vsel %vm1150, %v3402, %v3404
        %v3412 = vsel %vm1150, %v3404, %v3406
        %v3419 = vadd.f32 %v3373, %v3407
        %v3420 = vadd.f32 %v3374, %v3408
        %v3421 = vadd.f32 %v3375, %v3409
        %v3422 = vadd.f32 %v3376, %v3410
        %v3423 = vadd.f32 %v3377, %v3411
        %v3424 = vadd.f32 %v3378, %v3412
        %v3425 = vmul.f32 %v1221, %v801
        %v3426 = vmul.f32 %v1221, %v805
        %v3427 = vmul.f32 %v1221, %v809
        %v3428 = vmul.f32 %v1221, %v813
        %v3429 = vmul.f32 %v1221, %v817
        %v3430 = vmul.f32 %v1221, %v821
        %v3431 = vmul.f32 %v1221, %v825
        %3439 = vrot.lane.b32.xlu0 %v3425, 102
        %v3440 = vpop.permute.xlu0 %3439
        %3441 = vrot.lane.b32.xlu0 %v3426, 102
        %v3442 = vpop.permute.xlu0 %3441
        %3443 = vrot.lane.b32.xlu0 %v3427, 102
        %v3444 = vpop.permute.xlu0 %3443
        %3445 = vrot.lane.b32.xlu0 %v3428, 102
        %v3446 = vpop.permute.xlu0 %3445
        %3447 = vrot.lane.b32.xlu0 %v3429, 102
        %v3448 = vpop.permute.xlu0 %3447
        %3449 = vrot.lane.b32.xlu0 %v3430, 102
        %v3450 = vpop.permute.xlu0 %3449
        %3451 = vrot.lane.b32.xlu0 %v3431, 102
        %v3452 = vpop.permute.xlu0 %3451
        %v3453 = vsel %vm1251, %v3440, %v3442
        %v3454 = vsel %vm1251, %v3442, %v3444
        %v3455 = vsel %vm1251, %v3444, %v3446
        %v3456 = vsel %vm1251, %v3446, %v3448
        %v3457 = vsel %vm1251, %v3448, %v3450
        %v3458 = vsel %vm1251, %v3450, %v3452
        %v3465 = vadd.f32 %v3419, %v3453
        %v3466 = vadd.f32 %v3420, %v3454
        %v3467 = vadd.f32 %v3421, %v3455
        %v3468 = vadd.f32 %v3422, %v3456
        %v3469 = vadd.f32 %v3423, %v3457
        %v3470 = vadd.f32 %v3424, %v3458
        %v3471 = vmul.f32 %v1272, %v475
        %v3472 = vmul.f32 %v1272, %v479
        %v3473 = vmul.f32 %v1272, %v483
        %v3474 = vmul.f32 %v1272, %v487
        %v3475 = vmul.f32 %v1272, %v491
        %v3476 = vmul.f32 %v1272, %v495
        %v3477 = vmul.f32 %v1272, %v499
        %3485 = vrot.lane.b32.xlu0 %v3471, 80
        %v3486 = vpop.permute.xlu0 %3485
        %3487 = vrot.lane.b32.xlu0 %v3472, 80
        %v3488 = vpop.permute.xlu0 %3487
        %3489 = vrot.lane.b32.xlu0 %v3473, 80
        %v3490 = vpop.permute.xlu0 %3489
        %3491 = vrot.lane.b32.xlu0 %v3474, 80
        %v3492 = vpop.permute.xlu0 %3491
        %3493 = vrot.lane.b32.xlu0 %v3475, 80
        %v3494 = vpop.permute.xlu0 %3493
        %3495 = vrot.lane.b32.xlu0 %v3476, 80
        %v3496 = vpop.permute.xlu0 %3495
        %3497 = vrot.lane.b32.xlu0 %v3477, 80
        %v3498 = vpop.permute.xlu0 %3497
        %v3499 = vsel %vm1552, %v3486, %v3488
        %v3500 = vsel %vm1552, %v3488, %v3490
        %v3501 = vsel %vm1552, %v3490, %v3492
        %v3502 = vsel %vm1552, %v3492, %v3494
        %v3503 = vsel %vm1552, %v3494, %v3496
        %v3504 = vsel %vm1552, %v3496, %v3498
        %v3511 = vadd.f32 %v3465, %v3499
        %v3512 = vadd.f32 %v3466, %v3500
        %v3513 = vadd.f32 %v3467, %v3501
        %v3514 = vadd.f32 %v3468, %v3502
        %v3515 = vadd.f32 %v3469, %v3503
        %v3516 = vadd.f32 %v3470, %v3504
        %v3517 = vmul.f32 %v1322, %v564
        %v3518 = vmul.f32 %v1322, %v568
        %v3519 = vmul.f32 %v1322, %v572
        %v3520 = vmul.f32 %v1322, %v576
        %v3521 = vmul.f32 %v1322, %v580
        %v3522 = vmul.f32 %v1322, %v584
        %v3523 = vmul.f32 %v1322, %v588
        %3531 = vrot.lane.b32.xlu0 %v3517, 80
        %v3532 = vpop.permute.xlu0 %3531
        %3533 = vrot.lane.b32.xlu0 %v3518, 80
        %v3534 = vpop.permute.xlu0 %3533
        %3535 = vrot.lane.b32.xlu0 %v3519, 80
        %v3536 = vpop.permute.xlu0 %3535
        %3537 = vrot.lane.b32.xlu0 %v3520, 80
        %v3538 = vpop.permute.xlu0 %3537
        %3539 = vrot.lane.b32.xlu0 %v3521, 80
        %v3540 = vpop.permute.xlu0 %3539
        %3541 = vrot.lane.b32.xlu0 %v3522, 80
        %v3542 = vpop.permute.xlu0 %3541
        %3543 = vrot.lane.b32.xlu0 %v3523, 80
        %v3544 = vpop.permute.xlu0 %3543
        %v3545 = vsel %vm1552, %v3532, %v3534
        %v3546 = vsel %vm1552, %v3534, %v3536
        %v3547 = vsel %vm1552, %v3536, %v3538
        %v3548 = vsel %vm1552, %v3538, %v3540
        %v3549 = vsel %vm1552, %v3540, %v3542
        %v3550 = vsel %vm1552, %v3542, %v3544
        %v3557 = vadd.f32 %v3511, %v3545
        %v3558 = vadd.f32 %v3512, %v3546
        %v3559 = vadd.f32 %v3513, %v3547
        %v3560 = vadd.f32 %v3514, %v3548
        %v3561 = vadd.f32 %v3515, %v3549
        %v3562 = vadd.f32 %v3516, %v3550
        %v3563 = vmul.f32 %v1372, %v475
        %v3564 = vmul.f32 %v1372, %v479
        %v3565 = vmul.f32 %v1372, %v483
        %v3566 = vmul.f32 %v1372, %v487
        %v3567 = vmul.f32 %v1372, %v491
        %v3568 = vmul.f32 %v1372, %v495
        %v3569 = vmul.f32 %v1372, %v499
        %3577 = vrot.lane.b32.xlu0 %v3563, 79
        %v3578 = vpop.permute.xlu0 %3577
        %3579 = vrot.lane.b32.xlu0 %v3564, 79
        %v3580 = vpop.permute.xlu0 %3579
        %3581 = vrot.lane.b32.xlu0 %v3565, 79
        %v3582 = vpop.permute.xlu0 %3581
        %3583 = vrot.lane.b32.xlu0 %v3566, 79
        %v3584 = vpop.permute.xlu0 %3583
        %3585 = vrot.lane.b32.xlu0 %v3567, 79
        %v3586 = vpop.permute.xlu0 %3585
        %3587 = vrot.lane.b32.xlu0 %v3568, 79
        %v3588 = vpop.permute.xlu0 %3587
        %3589 = vrot.lane.b32.xlu0 %v3569, 79
        %v3590 = vpop.permute.xlu0 %3589
        %v3591 = vsel %vm1653, %v3578, %v3580
        %v3592 = vsel %vm1653, %v3580, %v3582
        %v3593 = vsel %vm1653, %v3582, %v3584
        %v3594 = vsel %vm1653, %v3584, %v3586
        %v3595 = vsel %vm1653, %v3586, %v3588
        %v3596 = vsel %vm1653, %v3588, %v3590
        %v3603 = vadd.f32 %v3557, %v3591
        %v3604 = vadd.f32 %v3558, %v3592
        %v3605 = vadd.f32 %v3559, %v3593
        %v3606 = vadd.f32 %v3560, %v3594
        %v3607 = vadd.f32 %v3561, %v3595
        %v3608 = vadd.f32 %v3562, %v3596
        %v3609 = vmul.f32 %v1422, %v564
        %v3610 = vmul.f32 %v1422, %v568
        %v3611 = vmul.f32 %v1422, %v572
        %v3612 = vmul.f32 %v1422, %v576
        %v3613 = vmul.f32 %v1422, %v580
        %v3614 = vmul.f32 %v1422, %v584
        %v3615 = vmul.f32 %v1422, %v588
        %3623 = vrot.lane.b32.xlu0 %v3609, 79
        %v3624 = vpop.permute.xlu0 %3623
        %3625 = vrot.lane.b32.xlu0 %v3610, 79
        %v3626 = vpop.permute.xlu0 %3625
        %3627 = vrot.lane.b32.xlu0 %v3611, 79
        %v3628 = vpop.permute.xlu0 %3627
        %3629 = vrot.lane.b32.xlu0 %v3612, 79
        %v3630 = vpop.permute.xlu0 %3629
        %3631 = vrot.lane.b32.xlu0 %v3613, 79
        %v3632 = vpop.permute.xlu0 %3631
        %3633 = vrot.lane.b32.xlu0 %v3614, 79
        %v3634 = vpop.permute.xlu0 %3633
        %3635 = vrot.lane.b32.xlu0 %v3615, 79
        %v3636 = vpop.permute.xlu0 %3635
        %v3637 = vsel %vm1653, %v3624, %v3626
        %v3638 = vsel %vm1653, %v3626, %v3628
        %v3639 = vsel %vm1653, %v3628, %v3630
        %v3640 = vsel %vm1653, %v3630, %v3632
        %v3641 = vsel %vm1653, %v3632, %v3634
        %v3642 = vsel %vm1653, %v3634, %v3636
        %v3649 = vadd.f32 %v3603, %v3637
        %v3650 = vadd.f32 %v3604, %v3638
        %v3651 = vadd.f32 %v3605, %v3639
        %v3652 = vadd.f32 %v3606, %v3640
        %v3653 = vadd.f32 %v3607, %v3641
        %v3654 = vadd.f32 %v3608, %v3642
        %v3655 = vmul.f32 %v1472, %v475
        %v3656 = vmul.f32 %v1472, %v479
        %v3657 = vmul.f32 %v1472, %v483
        %v3658 = vmul.f32 %v1472, %v487
        %v3659 = vmul.f32 %v1472, %v491
        %v3660 = vmul.f32 %v1472, %v495
        %v3661 = vmul.f32 %v1472, %v499
        %3669 = vrot.lane.b32.xlu0 %v3655, 78
        %v3670 = vpop.permute.xlu0 %3669
        %3671 = vrot.lane.b32.xlu0 %v3656, 78
        %v3672 = vpop.permute.xlu0 %3671
        %3673 = vrot.lane.b32.xlu0 %v3657, 78
        %v3674 = vpop.permute.xlu0 %3673
        %3675 = vrot.lane.b32.xlu0 %v3658, 78
        %v3676 = vpop.permute.xlu0 %3675
        %3677 = vrot.lane.b32.xlu0 %v3659, 78
        %v3678 = vpop.permute.xlu0 %3677
        %3679 = vrot.lane.b32.xlu0 %v3660, 78
        %v3680 = vpop.permute.xlu0 %3679
        %3681 = vrot.lane.b32.xlu0 %v3661, 78
        %v3682 = vpop.permute.xlu0 %3681
        %v3683 = vsel %vm1754, %v3670, %v3672
        %v3684 = vsel %vm1754, %v3672, %v3674
        %v3685 = vsel %vm1754, %v3674, %v3676
        %v3686 = vsel %vm1754, %v3676, %v3678
        %v3687 = vsel %vm1754, %v3678, %v3680
        %v3688 = vsel %vm1754, %v3680, %v3682
        %v3695 = vadd.f32 %v3649, %v3683
        %v3696 = vadd.f32 %v3650, %v3684
        %v3697 = vadd.f32 %v3651, %v3685
        %v3698 = vadd.f32 %v3652, %v3686
        %v3699 = vadd.f32 %v3653, %v3687
        %v3700 = vadd.f32 %v3654, %v3688
        %v3701 = vmul.f32 %v1522, %v801
        %v3702 = vmul.f32 %v1522, %v805
        %v3703 = vmul.f32 %v1522, %v809
        %v3704 = vmul.f32 %v1522, %v813
        %v3705 = vmul.f32 %v1522, %v817
        %v3706 = vmul.f32 %v1522, %v821
        %v3707 = vmul.f32 %v1522, %v825
        %3715 = vrot.lane.b32.xlu0 %v3701, 80
        %v3716 = vpop.permute.xlu0 %3715
        %3717 = vrot.lane.b32.xlu0 %v3702, 80
        %v3718 = vpop.permute.xlu0 %3717
        %3719 = vrot.lane.b32.xlu0 %v3703, 80
        %v3720 = vpop.permute.xlu0 %3719
        %3721 = vrot.lane.b32.xlu0 %v3704, 80
        %v3722 = vpop.permute.xlu0 %3721
        %3723 = vrot.lane.b32.xlu0 %v3705, 80
        %v3724 = vpop.permute.xlu0 %3723
        %3725 = vrot.lane.b32.xlu0 %v3706, 80
        %v3726 = vpop.permute.xlu0 %3725
        %3727 = vrot.lane.b32.xlu0 %v3707, 80
        %v3728 = vpop.permute.xlu0 %3727
        %v3729 = vsel %vm1552, %v3716, %v3718
        %v3730 = vsel %vm1552, %v3718, %v3720
        %v3731 = vsel %vm1552, %v3720, %v3722
        %v3732 = vsel %vm1552, %v3722, %v3724
        %v3733 = vsel %vm1552, %v3724, %v3726
        %v3734 = vsel %vm1552, %v3726, %v3728
        %v3741 = vadd.f32 %v3695, %v3729
        %v3742 = vadd.f32 %v3696, %v3730
        %v3743 = vadd.f32 %v3697, %v3731
        %v3744 = vadd.f32 %v3698, %v3732
        %v3745 = vadd.f32 %v3699, %v3733
        %v3746 = vadd.f32 %v3700, %v3734
        %v3747 = vmul.f32 %v1573, %v889
        %v3748 = vmul.f32 %v1573, %v893
        %v3749 = vmul.f32 %v1573, %v897
        %v3750 = vmul.f32 %v1573, %v901
        %v3751 = vmul.f32 %v1573, %v905
        %v3752 = vmul.f32 %v1573, %v909
        %v3753 = vmul.f32 %v1573, %v913
        %3761 = vrot.lane.b32.xlu0 %v3747, 80
        %v3762 = vpop.permute.xlu0 %3761
        %3763 = vrot.lane.b32.xlu0 %v3748, 80
        %v3764 = vpop.permute.xlu0 %3763
        %3765 = vrot.lane.b32.xlu0 %v3749, 80
        %v3766 = vpop.permute.xlu0 %3765
        %3767 = vrot.lane.b32.xlu0 %v3750, 80
        %v3768 = vpop.permute.xlu0 %3767
        %3769 = vrot.lane.b32.xlu0 %v3751, 80
        %v3770 = vpop.permute.xlu0 %3769
        %3771 = vrot.lane.b32.xlu0 %v3752, 80
        %v3772 = vpop.permute.xlu0 %3771
        %3773 = vrot.lane.b32.xlu0 %v3753, 80
        %v3774 = vpop.permute.xlu0 %3773
        %v3775 = vsel %vm1552, %v3762, %v3764
        %v3776 = vsel %vm1552, %v3764, %v3766
        %v3777 = vsel %vm1552, %v3766, %v3768
        %v3778 = vsel %vm1552, %v3768, %v3770
        %v3779 = vsel %vm1552, %v3770, %v3772
        %v3780 = vsel %vm1552, %v3772, %v3774
        %v3787 = vadd.f32 %v3741, %v3775
        %v3788 = vadd.f32 %v3742, %v3776
        %v3789 = vadd.f32 %v3743, %v3777
        %v3790 = vadd.f32 %v3744, %v3778
        %v3791 = vadd.f32 %v3745, %v3779
        %v3792 = vadd.f32 %v3746, %v3780
        %v3793 = vmul.f32 %v1623, %v801
        %v3794 = vmul.f32 %v1623, %v805
        %v3795 = vmul.f32 %v1623, %v809
        %v3796 = vmul.f32 %v1623, %v813
        %v3797 = vmul.f32 %v1623, %v817
        %v3798 = vmul.f32 %v1623, %v821
        %v3799 = vmul.f32 %v1623, %v825
        %3807 = vrot.lane.b32.xlu0 %v3793, 79
        %v3808 = vpop.permute.xlu0 %3807
        %3809 = vrot.lane.b32.xlu0 %v3794, 79
        %v3810 = vpop.permute.xlu0 %3809
        %3811 = vrot.lane.b32.xlu0 %v3795, 79
        %v3812 = vpop.permute.xlu0 %3811
        %3813 = vrot.lane.b32.xlu0 %v3796, 79
        %v3814 = vpop.permute.xlu0 %3813
        %3815 = vrot.lane.b32.xlu0 %v3797, 79
        %v3816 = vpop.permute.xlu0 %3815
        %3817 = vrot.lane.b32.xlu0 %v3798, 79
        %v3818 = vpop.permute.xlu0 %3817
        %3819 = vrot.lane.b32.xlu0 %v3799, 79
        %v3820 = vpop.permute.xlu0 %3819
        %v3821 = vsel %vm1653, %v3808, %v3810
        %v3822 = vsel %vm1653, %v3810, %v3812
        %v3823 = vsel %vm1653, %v3812, %v3814
        %v3824 = vsel %vm1653, %v3814, %v3816
        %v3825 = vsel %vm1653, %v3816, %v3818
        %v3826 = vsel %vm1653, %v3818, %v3820
        %v3833 = vadd.f32 %v3787, %v3821
        %v3834 = vadd.f32 %v3788, %v3822
        %v3835 = vadd.f32 %v3789, %v3823
        %v3836 = vadd.f32 %v3790, %v3824
        %v3837 = vadd.f32 %v3791, %v3825
        %v3838 = vadd.f32 %v3792, %v3826
        %v3839 = vmul.f32 %v1674, %v889
        %v3840 = vmul.f32 %v1674, %v893
        %v3841 = vmul.f32 %v1674, %v897
        %v3842 = vmul.f32 %v1674, %v901
        %v3843 = vmul.f32 %v1674, %v905
        %v3844 = vmul.f32 %v1674, %v909
        %v3845 = vmul.f32 %v1674, %v913
        %3853 = vrot.lane.b32.xlu0 %v3839, 79
        %v3854 = vpop.permute.xlu0 %3853
        %3855 = vrot.lane.b32.xlu0 %v3840, 79
        %v3856 = vpop.permute.xlu0 %3855
        %3857 = vrot.lane.b32.xlu0 %v3841, 79
        %v3858 = vpop.permute.xlu0 %3857
        %3859 = vrot.lane.b32.xlu0 %v3842, 79
        %v3860 = vpop.permute.xlu0 %3859
        %3861 = vrot.lane.b32.xlu0 %v3843, 79
        %v3862 = vpop.permute.xlu0 %3861
        %3863 = vrot.lane.b32.xlu0 %v3844, 79
        %v3864 = vpop.permute.xlu0 %3863
        %3865 = vrot.lane.b32.xlu0 %v3845, 79
        %v3866 = vpop.permute.xlu0 %3865
        %v3867 = vsel %vm1653, %v3854, %v3856
        %v3868 = vsel %vm1653, %v3856, %v3858
        %v3869 = vsel %vm1653, %v3858, %v3860
        %v3870 = vsel %vm1653, %v3860, %v3862
        %v3871 = vsel %vm1653, %v3862, %v3864
        %v3872 = vsel %vm1653, %v3864, %v3866
        %v3879 = vadd.f32 %v3833, %v3867
        %v3880 = vadd.f32 %v3834, %v3868
        %v3881 = vadd.f32 %v3835, %v3869
        %v3882 = vadd.f32 %v3836, %v3870
        %v3883 = vadd.f32 %v3837, %v3871
        %v3884 = vadd.f32 %v3838, %v3872
        %v3885 = vmul.f32 %v1724, %v801
        %v3886 = vmul.f32 %v1724, %v805
        %v3887 = vmul.f32 %v1724, %v809
        %v3888 = vmul.f32 %v1724, %v813
        %v3889 = vmul.f32 %v1724, %v817
        %v3890 = vmul.f32 %v1724, %v821
        %v3891 = vmul.f32 %v1724, %v825
        %3899 = vrot.lane.b32.xlu0 %v3885, 78
        %v3900 = vpop.permute.xlu0 %3899
        %3901 = vrot.lane.b32.xlu0 %v3886, 78
        %v3902 = vpop.permute.xlu0 %3901
        %3903 = vrot.lane.b32.xlu0 %v3887, 78
        %v3904 = vpop.permute.xlu0 %3903
        %3905 = vrot.lane.b32.xlu0 %v3888, 78
        %v3906 = vpop.permute.xlu0 %3905
        %3907 = vrot.lane.b32.xlu0 %v3889, 78
        %v3908 = vpop.permute.xlu0 %3907
        %3909 = vrot.lane.b32.xlu0 %v3890, 78
        %v3910 = vpop.permute.xlu0 %3909
        %3911 = vrot.lane.b32.xlu0 %v3891, 78
        %v3912 = vpop.permute.xlu0 %3911
        %v3913 = vsel %vm1754, %v3900, %v3902
        %v3914 = vsel %vm1754, %v3902, %v3904
        %v3915 = vsel %vm1754, %v3904, %v3906
        %v3916 = vsel %vm1754, %v3906, %v3908
        %v3917 = vsel %vm1754, %v3908, %v3910
        %v3918 = vsel %vm1754, %v3910, %v3912
        %v3925 = vadd.f32 %v3879, %v3913
        %v3926 = vadd.f32 %v3880, %v3914
        %v3927 = vadd.f32 %v3881, %v3915
        %v3928 = vadd.f32 %v3882, %v3916
        %v3929 = vadd.f32 %v3883, %v3917
        %v3930 = vadd.f32 %v3884, %v3918
        %v3931 = vmax.f32 %v2849, %v3925
        %v3932 = vmax.f32 %v2850, %v3926
        %v3933 = vmax.f32 %v2851, %v3927
        %v3934 = vmax.f32 %v2852, %v3928
        %v3935 = vmax.f32 %v2853, %v3929
        %v3936 = vmax.f32 %v2854, %v3930
        %v3937 = vmul.f32 %v378, %v752
        %v3938 = vmul.f32 %v378, %v756
        %v3939 = vmul.f32 %v378, %v760
        %v3940 = vmul.f32 %v378, %v764
        %v3941 = vmul.f32 %v378, %v768
        %v3942 = vmul.f32 %v378, %v772
        %v3943 = vmul.f32 %v421, %v801
        %v3944 = vmul.f32 %v421, %v805
        %v3945 = vmul.f32 %v421, %v809
        %v3946 = vmul.f32 %v421, %v813
        %v3947 = vmul.f32 %v421, %v817
        %v3948 = vmul.f32 %v421, %v821
        %v3949 = vmul.f32 %v421, %v825
        %3957 = vrot.lane.b32.xlu0 %v3943, 127
        %v3958 = vpop.permute.xlu0 %3957
        %3959 = vrot.lane.b32.xlu0 %v3944, 127
        %v3960 = vpop.permute.xlu0 %3959
        %3961 = vrot.lane.b32.xlu0 %v3945, 127
        %v3962 = vpop.permute.xlu0 %3961
        %3963 = vrot.lane.b32.xlu0 %v3946, 127
        %v3964 = vpop.permute.xlu0 %3963
        %3965 = vrot.lane.b32.xlu0 %v3947, 127
        %v3966 = vpop.permute.xlu0 %3965
        %3967 = vrot.lane.b32.xlu0 %v3948, 127
        %v3968 = vpop.permute.xlu0 %3967
        %3969 = vrot.lane.b32.xlu0 %v3949, 127
        %v3970 = vpop.permute.xlu0 %3969
        %v3971 = vsel %vm535, %v3958, %v3960
        %v3972 = vsel %vm535, %v3960, %v3962
        %v3973 = vsel %vm535, %v3962, %v3964
        %v3974 = vsel %vm535, %v3964, %v3966
        %v3975 = vsel %vm535, %v3966, %v3968
        %v3976 = vsel %vm535, %v3968, %v3970
        %v3983 = vadd.f32 %v3937, %v3971
        %v3984 = vadd.f32 %v3938, %v3972
        %v3985 = vadd.f32 %v3939, %v3973
        %v3986 = vadd.f32 %v3940, %v3974
        %v3987 = vadd.f32 %v3941, %v3975
        %v3988 = vadd.f32 %v3942, %v3976
        %v3989 = vmul.f32 %v469, %v889
        %v3990 = vmul.f32 %v469, %v893
        %v3991 = vmul.f32 %v469, %v897
        %v3992 = vmul.f32 %v469, %v901
        %v3993 = vmul.f32 %v469, %v905
        %v3994 = vmul.f32 %v469, %v909
        %v3995 = vmul.f32 %v469, %v913
        %4003 = vrot.lane.b32.xlu0 %v3989, 127
        %v4004 = vpop.permute.xlu0 %4003
        %4005 = vrot.lane.b32.xlu0 %v3990, 127
        %v4006 = vpop.permute.xlu0 %4005
        %4007 = vrot.lane.b32.xlu0 %v3991, 127
        %v4008 = vpop.permute.xlu0 %4007
        %4009 = vrot.lane.b32.xlu0 %v3992, 127
        %v4010 = vpop.permute.xlu0 %4009
        %4011 = vrot.lane.b32.xlu0 %v3993, 127
        %v4012 = vpop.permute.xlu0 %4011
        %4013 = vrot.lane.b32.xlu0 %v3994, 127
        %v4014 = vpop.permute.xlu0 %4013
        %4015 = vrot.lane.b32.xlu0 %v3995, 127
        %v4016 = vpop.permute.xlu0 %4015
        %v4017 = vsel %vm535, %v4004, %v4006
        %v4018 = vsel %vm535, %v4006, %v4008
        %v4019 = vsel %vm535, %v4008, %v4010
        %v4020 = vsel %vm535, %v4010, %v4012
        %v4021 = vsel %vm535, %v4012, %v4014
        %v4022 = vsel %vm535, %v4014, %v4016
        %v4029 = vadd.f32 %v3983, %v4017
        %v4030 = vadd.f32 %v3984, %v4018
        %v4031 = vadd.f32 %v3985, %v4019
        %v4032 = vadd.f32 %v3986, %v4020
        %v4033 = vadd.f32 %v3987, %v4021
        %v4034 = vadd.f32 %v3988, %v4022
        %v4035 = vmul.f32 %v558, %v801
        %v4036 = vmul.f32 %v558, %v805
        %v4037 = vmul.f32 %v558, %v809
        %v4038 = vmul.f32 %v558, %v813
        %v4039 = vmul.f32 %v558, %v817
        %v4040 = vmul.f32 %v558, %v821
        %v4041 = vmul.f32 %v558, %v825
        %4049 = vrot.lane.b32.xlu0 %v4035, 126
        %v4050 = vpop.permute.xlu0 %4049
        %4051 = vrot.lane.b32.xlu0 %v4036, 126
        %v4052 = vpop.permute.xlu0 %4051
        %4053 = vrot.lane.b32.xlu0 %v4037, 126
        %v4054 = vpop.permute.xlu0 %4053
        %4055 = vrot.lane.b32.xlu0 %v4038, 126
        %v4056 = vpop.permute.xlu0 %4055
        %4057 = vrot.lane.b32.xlu0 %v4039, 126
        %v4058 = vpop.permute.xlu0 %4057
        %4059 = vrot.lane.b32.xlu0 %v4040, 126
        %v4060 = vpop.permute.xlu0 %4059
        %4061 = vrot.lane.b32.xlu0 %v4041, 126
        %v4062 = vpop.permute.xlu0 %4061
        %v4063 = vsel %vm674, %v4050, %v4052
        %v4064 = vsel %vm674, %v4052, %v4054
        %v4065 = vsel %vm674, %v4054, %v4056
        %v4066 = vsel %vm674, %v4056, %v4058
        %v4067 = vsel %vm674, %v4058, %v4060
        %v4068 = vsel %vm674, %v4060, %v4062
        %v4075 = vadd.f32 %v4029, %v4063
        %v4076 = vadd.f32 %v4030, %v4064
        %v4077 = vadd.f32 %v4031, %v4065
        %v4078 = vadd.f32 %v4032, %v4066
        %v4079 = vadd.f32 %v4033, %v4067
        %v4080 = vadd.f32 %v4034, %v4068
        %v4081 = vmul.f32 %v644, %v889
        %v4082 = vmul.f32 %v644, %v893
        %v4083 = vmul.f32 %v644, %v897
        %v4084 = vmul.f32 %v644, %v901
        %v4085 = vmul.f32 %v644, %v905
        %v4086 = vmul.f32 %v644, %v909
        %v4087 = vmul.f32 %v644, %v913
        %4095 = vrot.lane.b32.xlu0 %v4081, 126
        %v4096 = vpop.permute.xlu0 %4095
        %4097 = vrot.lane.b32.xlu0 %v4082, 126
        %v4098 = vpop.permute.xlu0 %4097
        %4099 = vrot.lane.b32.xlu0 %v4083, 126
        %v4100 = vpop.permute.xlu0 %4099
        %4101 = vrot.lane.b32.xlu0 %v4084, 126
        %v4102 = vpop.permute.xlu0 %4101
        %4103 = vrot.lane.b32.xlu0 %v4085, 126
        %v4104 = vpop.permute.xlu0 %4103
        %4105 = vrot.lane.b32.xlu0 %v4086, 126
        %v4106 = vpop.permute.xlu0 %4105
        %4107 = vrot.lane.b32.xlu0 %v4087, 126
        %v4108 = vpop.permute.xlu0 %4107
        %v4109 = vsel %vm674, %v4096, %v4098
        %v4110 = vsel %vm674, %v4098, %v4100
        %v4111 = vsel %vm674, %v4100, %v4102
        %v4112 = vsel %vm674, %v4102, %v4104
        %v4113 = vsel %vm674, %v4104, %v4106
        %v4114 = vsel %vm674, %v4106, %v4108
        %v4121 = vadd.f32 %v4075, %v4109
        %v4122 = vadd.f32 %v4076, %v4110
        %v4123 = vadd.f32 %v4077, %v4111
        %v4124 = vadd.f32 %v4078, %v4112
        %v4125 = vadd.f32 %v4079, %v4113
        %v4126 = vadd.f32 %v4080, %v4114
        %v4127 = vmul.f32 %v697, %v564
        %v4128 = vmul.f32 %v697, %v568
        %v4129 = vmul.f32 %v697, %v572
        %v4130 = vmul.f32 %v697, %v576
        %v4131 = vmul.f32 %v697, %v580
        %v4132 = vmul.f32 %v697, %v584
        %v4133 = vmul.f32 %v697, %v588
        %4141 = vrot.lane.b32.xlu0 %v4127, 104
        %v4142 = vpop.permute.xlu0 %4141
        %4143 = vrot.lane.b32.xlu0 %v4128, 104
        %v4144 = vpop.permute.xlu0 %4143
        %4145 = vrot.lane.b32.xlu0 %v4129, 104
        %v4146 = vpop.permute.xlu0 %4145
        %4147 = vrot.lane.b32.xlu0 %v4130, 104
        %v4148 = vpop.permute.xlu0 %4147
        %4149 = vrot.lane.b32.xlu0 %v4131, 104
        %v4150 = vpop.permute.xlu0 %4149
        %4151 = vrot.lane.b32.xlu0 %v4132, 104
        %v4152 = vpop.permute.xlu0 %4151
        %4153 = vrot.lane.b32.xlu0 %v4133, 104
        %v4154 = vpop.permute.xlu0 %4153
        %v4155 = vsel %vm1049, %v4142, %v4144
        %v4156 = vsel %vm1049, %v4144, %v4146
        %v4157 = vsel %vm1049, %v4146, %v4148
        %v4158 = vsel %vm1049, %v4148, %v4150
        %v4159 = vsel %vm1049, %v4150, %v4152
        %v4160 = vsel %vm1049, %v4152, %v4154
        %v4167 = vadd.f32 %v4121, %v4155
        %v4168 = vadd.f32 %v4122, %v4156
        %v4169 = vadd.f32 %v4123, %v4157
        %v4170 = vadd.f32 %v4124, %v4158
        %v4171 = vadd.f32 %v4125, %v4159
        %v4172 = vadd.f32 %v4126, %v4160
        %v4173 = vmul.f32 %v746, %v475
        %v4174 = vmul.f32 %v746, %v479
        %v4175 = vmul.f32 %v746, %v483
        %v4176 = vmul.f32 %v746, %v487
        %v4177 = vmul.f32 %v746, %v491
        %v4178 = vmul.f32 %v746, %v495
        %v4179 = vmul.f32 %v746, %v499
        %4187 = vrot.lane.b32.xlu0 %v4173, 103
        %v4188 = vpop.permute.xlu0 %4187
        %4189 = vrot.lane.b32.xlu0 %v4174, 103
        %v4190 = vpop.permute.xlu0 %4189
        %4191 = vrot.lane.b32.xlu0 %v4175, 103
        %v4192 = vpop.permute.xlu0 %4191
        %4193 = vrot.lane.b32.xlu0 %v4176, 103
        %v4194 = vpop.permute.xlu0 %4193
        %4195 = vrot.lane.b32.xlu0 %v4177, 103
        %v4196 = vpop.permute.xlu0 %4195
        %4197 = vrot.lane.b32.xlu0 %v4178, 103
        %v4198 = vpop.permute.xlu0 %4197
        %4199 = vrot.lane.b32.xlu0 %v4179, 103
        %v4200 = vpop.permute.xlu0 %4199
        %v4201 = vsel %vm1150, %v4188, %v4190
        %v4202 = vsel %vm1150, %v4190, %v4192
        %v4203 = vsel %vm1150, %v4192, %v4194
        %v4204 = vsel %vm1150, %v4194, %v4196
        %v4205 = vsel %vm1150, %v4196, %v4198
        %v4206 = vsel %vm1150, %v4198, %v4200
        %v4213 = vadd.f32 %v4167, %v4201
        %v4214 = vadd.f32 %v4168, %v4202
        %v4215 = vadd.f32 %v4169, %v4203
        %v4216 = vadd.f32 %v4170, %v4204
        %v4217 = vadd.f32 %v4171, %v4205
        %v4218 = vadd.f32 %v4172, %v4206
        %v4219 = vmul.f32 %v795, %v564
        %v4220 = vmul.f32 %v795, %v568
        %v4221 = vmul.f32 %v795, %v572
        %v4222 = vmul.f32 %v795, %v576
        %v4223 = vmul.f32 %v795, %v580
        %v4224 = vmul.f32 %v795, %v584
        %v4225 = vmul.f32 %v795, %v588
        %4233 = vrot.lane.b32.xlu0 %v4219, 103
        %v4234 = vpop.permute.xlu0 %4233
        %4235 = vrot.lane.b32.xlu0 %v4220, 103
        %v4236 = vpop.permute.xlu0 %4235
        %4237 = vrot.lane.b32.xlu0 %v4221, 103
        %v4238 = vpop.permute.xlu0 %4237
        %4239 = vrot.lane.b32.xlu0 %v4222, 103
        %v4240 = vpop.permute.xlu0 %4239
        %4241 = vrot.lane.b32.xlu0 %v4223, 103
        %v4242 = vpop.permute.xlu0 %4241
        %4243 = vrot.lane.b32.xlu0 %v4224, 103
        %v4244 = vpop.permute.xlu0 %4243
        %4245 = vrot.lane.b32.xlu0 %v4225, 103
        %v4246 = vpop.permute.xlu0 %4245
        %v4247 = vsel %vm1150, %v4234, %v4236
        %v4248 = vsel %vm1150, %v4236, %v4238
        %v4249 = vsel %vm1150, %v4238, %v4240
        %v4250 = vsel %vm1150, %v4240, %v4242
        %v4251 = vsel %vm1150, %v4242, %v4244
        %v4252 = vsel %vm1150, %v4244, %v4246
        %v4259 = vadd.f32 %v4213, %v4247
        %v4260 = vadd.f32 %v4214, %v4248
        %v4261 = vadd.f32 %v4215, %v4249
        %v4262 = vadd.f32 %v4216, %v4250
        %v4263 = vadd.f32 %v4217, %v4251
        %v4264 = vadd.f32 %v4218, %v4252
        %v4265 = vmul.f32 %v883, %v475
        %v4266 = vmul.f32 %v883, %v479
        %v4267 = vmul.f32 %v883, %v483
        %v4268 = vmul.f32 %v883, %v487
        %v4269 = vmul.f32 %v883, %v491
        %v4270 = vmul.f32 %v883, %v495
        %v4271 = vmul.f32 %v883, %v499
        %4279 = vrot.lane.b32.xlu0 %v4265, 102
        %v4280 = vpop.permute.xlu0 %4279
        %4281 = vrot.lane.b32.xlu0 %v4266, 102
        %v4282 = vpop.permute.xlu0 %4281
        %4283 = vrot.lane.b32.xlu0 %v4267, 102
        %v4284 = vpop.permute.xlu0 %4283
        %4285 = vrot.lane.b32.xlu0 %v4268, 102
        %v4286 = vpop.permute.xlu0 %4285
        %4287 = vrot.lane.b32.xlu0 %v4269, 102
        %v4288 = vpop.permute.xlu0 %4287
        %4289 = vrot.lane.b32.xlu0 %v4270, 102
        %v4290 = vpop.permute.xlu0 %4289
        %4291 = vrot.lane.b32.xlu0 %v4271, 102
        %v4292 = vpop.permute.xlu0 %4291
        %v4293 = vsel %vm1251, %v4280, %v4282
        %v4294 = vsel %vm1251, %v4282, %v4284
        %v4295 = vsel %vm1251, %v4284, %v4286
        %v4296 = vsel %vm1251, %v4286, %v4288
        %v4297 = vsel %vm1251, %v4288, %v4290
        %v4298 = vsel %vm1251, %v4290, %v4292
        %v4305 = vadd.f32 %v4259, %v4293
        %v4306 = vadd.f32 %v4260, %v4294
        %v4307 = vadd.f32 %v4261, %v4295
        %v4308 = vadd.f32 %v4262, %v4296
        %v4309 = vadd.f32 %v4263, %v4297
        %v4310 = vadd.f32 %v4264, %v4298
        %v4311 = vmul.f32 %v969, %v564
        %v4312 = vmul.f32 %v969, %v568
        %v4313 = vmul.f32 %v969, %v572
        %v4314 = vmul.f32 %v969, %v576
        %v4315 = vmul.f32 %v969, %v580
        %v4316 = vmul.f32 %v969, %v584
        %v4317 = vmul.f32 %v969, %v588
        %4325 = vrot.lane.b32.xlu0 %v4311, 102
        %v4326 = vpop.permute.xlu0 %4325
        %4327 = vrot.lane.b32.xlu0 %v4312, 102
        %v4328 = vpop.permute.xlu0 %4327
        %4329 = vrot.lane.b32.xlu0 %v4313, 102
        %v4330 = vpop.permute.xlu0 %4329
        %4331 = vrot.lane.b32.xlu0 %v4314, 102
        %v4332 = vpop.permute.xlu0 %4331
        %4333 = vrot.lane.b32.xlu0 %v4315, 102
        %v4334 = vpop.permute.xlu0 %4333
        %4335 = vrot.lane.b32.xlu0 %v4316, 102
        %v4336 = vpop.permute.xlu0 %4335
        %4337 = vrot.lane.b32.xlu0 %v4317, 102
        %v4338 = vpop.permute.xlu0 %4337
        %v4339 = vsel %vm1251, %v4326, %v4328
        %v4340 = vsel %vm1251, %v4328, %v4330
        %v4341 = vsel %vm1251, %v4330, %v4332
        %v4342 = vsel %vm1251, %v4332, %v4334
        %v4343 = vsel %vm1251, %v4334, %v4336
        %v4344 = vsel %vm1251, %v4336, %v4338
        %v4351 = vadd.f32 %v4305, %v4339
        %v4352 = vadd.f32 %v4306, %v4340
        %v4353 = vadd.f32 %v4307, %v4341
        %v4354 = vadd.f32 %v4308, %v4342
        %v4355 = vadd.f32 %v4309, %v4343
        %v4356 = vadd.f32 %v4310, %v4344
        %v4357 = vmul.f32 %v1019, %v889
        %v4358 = vmul.f32 %v1019, %v893
        %v4359 = vmul.f32 %v1019, %v897
        %v4360 = vmul.f32 %v1019, %v901
        %v4361 = vmul.f32 %v1019, %v905
        %v4362 = vmul.f32 %v1019, %v909
        %v4363 = vmul.f32 %v1019, %v913
        %4371 = vrot.lane.b32.xlu0 %v4357, 104
        %v4372 = vpop.permute.xlu0 %4371
        %4373 = vrot.lane.b32.xlu0 %v4358, 104
        %v4374 = vpop.permute.xlu0 %4373
        %4375 = vrot.lane.b32.xlu0 %v4359, 104
        %v4376 = vpop.permute.xlu0 %4375
        %4377 = vrot.lane.b32.xlu0 %v4360, 104
        %v4378 = vpop.permute.xlu0 %4377
        %4379 = vrot.lane.b32.xlu0 %v4361, 104
        %v4380 = vpop.permute.xlu0 %4379
        %4381 = vrot.lane.b32.xlu0 %v4362, 104
        %v4382 = vpop.permute.xlu0 %4381
        %4383 = vrot.lane.b32.xlu0 %v4363, 104
        %v4384 = vpop.permute.xlu0 %4383
        %v4385 = vsel %vm1049, %v4372, %v4374
        %v4386 = vsel %vm1049, %v4374, %v4376
        %v4387 = vsel %vm1049, %v4376, %v4378
        %v4388 = vsel %vm1049, %v4378, %v4380
        %v4389 = vsel %vm1049, %v4380, %v4382
        %v4390 = vsel %vm1049, %v4382, %v4384
        %v4397 = vadd.f32 %v4351, %v4385
        %v4398 = vadd.f32 %v4352, %v4386
        %v4399 = vadd.f32 %v4353, %v4387
        %v4400 = vadd.f32 %v4354, %v4388
        %v4401 = vadd.f32 %v4355, %v4389
        %v4402 = vadd.f32 %v4356, %v4390
        %v4403 = vmul.f32 %v1070, %v801
        %v4404 = vmul.f32 %v1070, %v805
        %v4405 = vmul.f32 %v1070, %v809
        %v4406 = vmul.f32 %v1070, %v813
        %v4407 = vmul.f32 %v1070, %v817
        %v4408 = vmul.f32 %v1070, %v821
        %v4409 = vmul.f32 %v1070, %v825
        %4417 = vrot.lane.b32.xlu0 %v4403, 103
        %v4418 = vpop.permute.xlu0 %4417
        %4419 = vrot.lane.b32.xlu0 %v4404, 103
        %v4420 = vpop.permute.xlu0 %4419
        %4421 = vrot.lane.b32.xlu0 %v4405, 103
        %v4422 = vpop.permute.xlu0 %4421
        %4423 = vrot.lane.b32.xlu0 %v4406, 103
        %v4424 = vpop.permute.xlu0 %4423
        %4425 = vrot.lane.b32.xlu0 %v4407, 103
        %v4426 = vpop.permute.xlu0 %4425
        %4427 = vrot.lane.b32.xlu0 %v4408, 103
        %v4428 = vpop.permute.xlu0 %4427
        %4429 = vrot.lane.b32.xlu0 %v4409, 103
        %v4430 = vpop.permute.xlu0 %4429
        %v4431 = vsel %vm1150, %v4418, %v4420
        %v4432 = vsel %vm1150, %v4420, %v4422
        %v4433 = vsel %vm1150, %v4422, %v4424
        %v4434 = vsel %vm1150, %v4424, %v4426
        %v4435 = vsel %vm1150, %v4426, %v4428
        %v4436 = vsel %vm1150, %v4428, %v4430
        %v4443 = vadd.f32 %v4397, %v4431
        %v4444 = vadd.f32 %v4398, %v4432
        %v4445 = vadd.f32 %v4399, %v4433
        %v4446 = vadd.f32 %v4400, %v4434
        %v4447 = vadd.f32 %v4401, %v4435
        %v4448 = vadd.f32 %v4402, %v4436
        %v4449 = vmul.f32 %v1120, %v889
        %v4450 = vmul.f32 %v1120, %v893
        %v4451 = vmul.f32 %v1120, %v897
        %v4452 = vmul.f32 %v1120, %v901
        %v4453 = vmul.f32 %v1120, %v905
        %v4454 = vmul.f32 %v1120, %v909
        %v4455 = vmul.f32 %v1120, %v913
        %4463 = vrot.lane.b32.xlu0 %v4449, 103
        %v4464 = vpop.permute.xlu0 %4463
        %4465 = vrot.lane.b32.xlu0 %v4450, 103
        %v4466 = vpop.permute.xlu0 %4465
        %4467 = vrot.lane.b32.xlu0 %v4451, 103
        %v4468 = vpop.permute.xlu0 %4467
        %4469 = vrot.lane.b32.xlu0 %v4452, 103
        %v4470 = vpop.permute.xlu0 %4469
        %4471 = vrot.lane.b32.xlu0 %v4453, 103
        %v4472 = vpop.permute.xlu0 %4471
        %4473 = vrot.lane.b32.xlu0 %v4454, 103
        %v4474 = vpop.permute.xlu0 %4473
        %4475 = vrot.lane.b32.xlu0 %v4455, 103
        %v4476 = vpop.permute.xlu0 %4475
        %v4477 = vsel %vm1150, %v4464, %v4466
        %v4478 = vsel %vm1150, %v4466, %v4468
        %v4479 = vsel %vm1150, %v4468, %v4470
        %v4480 = vsel %vm1150, %v4470, %v4472
        %v4481 = vsel %vm1150, %v4472, %v4474
        %v4482 = vsel %vm1150, %v4474, %v4476
        %v4489 = vadd.f32 %v4443, %v4477
        %v4490 = vadd.f32 %v4444, %v4478
        %v4491 = vadd.f32 %v4445, %v4479
        %v4492 = vadd.f32 %v4446, %v4480
        %v4493 = vadd.f32 %v4447, %v4481
        %v4494 = vadd.f32 %v4448, %v4482
        %v4495 = vmul.f32 %v1171, %v801
        %v4496 = vmul.f32 %v1171, %v805
        %v4497 = vmul.f32 %v1171, %v809
        %v4498 = vmul.f32 %v1171, %v813
        %v4499 = vmul.f32 %v1171, %v817
        %v4500 = vmul.f32 %v1171, %v821
        %v4501 = vmul.f32 %v1171, %v825
        %4509 = vrot.lane.b32.xlu0 %v4495, 102
        %v4510 = vpop.permute.xlu0 %4509
        %4511 = vrot.lane.b32.xlu0 %v4496, 102
        %v4512 = vpop.permute.xlu0 %4511
        %4513 = vrot.lane.b32.xlu0 %v4497, 102
        %v4514 = vpop.permute.xlu0 %4513
        %4515 = vrot.lane.b32.xlu0 %v4498, 102
        %v4516 = vpop.permute.xlu0 %4515
        %4517 = vrot.lane.b32.xlu0 %v4499, 102
        %v4518 = vpop.permute.xlu0 %4517
        %4519 = vrot.lane.b32.xlu0 %v4500, 102
        %v4520 = vpop.permute.xlu0 %4519
        %4521 = vrot.lane.b32.xlu0 %v4501, 102
        %v4522 = vpop.permute.xlu0 %4521
        %v4523 = vsel %vm1251, %v4510, %v4512
        %v4524 = vsel %vm1251, %v4512, %v4514
        %v4525 = vsel %vm1251, %v4514, %v4516
        %v4526 = vsel %vm1251, %v4516, %v4518
        %v4527 = vsel %vm1251, %v4518, %v4520
        %v4528 = vsel %vm1251, %v4520, %v4522
        %v4535 = vadd.f32 %v4489, %v4523
        %v4536 = vadd.f32 %v4490, %v4524
        %v4537 = vadd.f32 %v4491, %v4525
        %v4538 = vadd.f32 %v4492, %v4526
        %v4539 = vadd.f32 %v4493, %v4527
        %v4540 = vadd.f32 %v4494, %v4528
        %v4541 = vmul.f32 %v1221, %v889
        %v4542 = vmul.f32 %v1221, %v893
        %v4543 = vmul.f32 %v1221, %v897
        %v4544 = vmul.f32 %v1221, %v901
        %v4545 = vmul.f32 %v1221, %v905
        %v4546 = vmul.f32 %v1221, %v909
        %v4547 = vmul.f32 %v1221, %v913
        %4555 = vrot.lane.b32.xlu0 %v4541, 102
        %v4556 = vpop.permute.xlu0 %4555
        %4557 = vrot.lane.b32.xlu0 %v4542, 102
        %v4558 = vpop.permute.xlu0 %4557
        %4559 = vrot.lane.b32.xlu0 %v4543, 102
        %v4560 = vpop.permute.xlu0 %4559
        %4561 = vrot.lane.b32.xlu0 %v4544, 102
        %v4562 = vpop.permute.xlu0 %4561
        %4563 = vrot.lane.b32.xlu0 %v4545, 102
        %v4564 = vpop.permute.xlu0 %4563
        %4565 = vrot.lane.b32.xlu0 %v4546, 102
        %v4566 = vpop.permute.xlu0 %4565
        %4567 = vrot.lane.b32.xlu0 %v4547, 102
        %v4568 = vpop.permute.xlu0 %4567
        %v4569 = vsel %vm1251, %v4556, %v4558
        %v4570 = vsel %vm1251, %v4558, %v4560
        %v4571 = vsel %vm1251, %v4560, %v4562
        %v4572 = vsel %vm1251, %v4562, %v4564
        %v4573 = vsel %vm1251, %v4564, %v4566
        %v4574 = vsel %vm1251, %v4566, %v4568
        %v4581 = vadd.f32 %v4535, %v4569
        %v4582 = vadd.f32 %v4536, %v4570
        %v4583 = vadd.f32 %v4537, %v4571
        %v4584 = vadd.f32 %v4538, %v4572
        %v4585 = vadd.f32 %v4539, %v4573
        %v4586 = vadd.f32 %v4540, %v4574
        %v4587 = vmul.f32 %v1272, %v564
        %v4588 = vmul.f32 %v1272, %v568
        %v4589 = vmul.f32 %v1272, %v572
        %v4590 = vmul.f32 %v1272, %v576
        %v4591 = vmul.f32 %v1272, %v580
        %v4592 = vmul.f32 %v1272, %v584
        %v4593 = vmul.f32 %v1272, %v588
        %4601 = vrot.lane.b32.xlu0 %v4587, 80
        %v4602 = vpop.permute.xlu0 %4601
        %4603 = vrot.lane.b32.xlu0 %v4588, 80
        %v4604 = vpop.permute.xlu0 %4603
        %4605 = vrot.lane.b32.xlu0 %v4589, 80
        %v4606 = vpop.permute.xlu0 %4605
        %4607 = vrot.lane.b32.xlu0 %v4590, 80
        %v4608 = vpop.permute.xlu0 %4607
        %4609 = vrot.lane.b32.xlu0 %v4591, 80
        %v4610 = vpop.permute.xlu0 %4609
        %4611 = vrot.lane.b32.xlu0 %v4592, 80
        %v4612 = vpop.permute.xlu0 %4611
        %4613 = vrot.lane.b32.xlu0 %v4593, 80
        %v4614 = vpop.permute.xlu0 %4613
        %v4615 = vsel %vm1552, %v4602, %v4604
        %v4616 = vsel %vm1552, %v4604, %v4606
        %v4617 = vsel %vm1552, %v4606, %v4608
        %v4618 = vsel %vm1552, %v4608, %v4610
        %v4619 = vsel %vm1552, %v4610, %v4612
        %v4620 = vsel %vm1552, %v4612, %v4614
        %v4627 = vadd.f32 %v4581, %v4615
        %v4628 = vadd.f32 %v4582, %v4616
        %v4629 = vadd.f32 %v4583, %v4617
        %v4630 = vadd.f32 %v4584, %v4618
        %v4631 = vadd.f32 %v4585, %v4619
        %v4632 = vadd.f32 %v4586, %v4620
        %v4633 = vmul.f32 %v1322, %v475
        %v4634 = vmul.f32 %v1322, %v479
        %v4635 = vmul.f32 %v1322, %v483
        %v4636 = vmul.f32 %v1322, %v487
        %v4637 = vmul.f32 %v1322, %v491
        %v4638 = vmul.f32 %v1322, %v495
        %v4639 = vmul.f32 %v1322, %v499
        %4647 = vrot.lane.b32.xlu0 %v4633, 79
        %v4648 = vpop.permute.xlu0 %4647
        %4649 = vrot.lane.b32.xlu0 %v4634, 79
        %v4650 = vpop.permute.xlu0 %4649
        %4651 = vrot.lane.b32.xlu0 %v4635, 79
        %v4652 = vpop.permute.xlu0 %4651
        %4653 = vrot.lane.b32.xlu0 %v4636, 79
        %v4654 = vpop.permute.xlu0 %4653
        %4655 = vrot.lane.b32.xlu0 %v4637, 79
        %v4656 = vpop.permute.xlu0 %4655
        %4657 = vrot.lane.b32.xlu0 %v4638, 79
        %v4658 = vpop.permute.xlu0 %4657
        %4659 = vrot.lane.b32.xlu0 %v4639, 79
        %v4660 = vpop.permute.xlu0 %4659
        %v4661 = vsel %vm1653, %v4648, %v4650
        %v4662 = vsel %vm1653, %v4650, %v4652
        %v4663 = vsel %vm1653, %v4652, %v4654
        %v4664 = vsel %vm1653, %v4654, %v4656
        %v4665 = vsel %vm1653, %v4656, %v4658
        %v4666 = vsel %vm1653, %v4658, %v4660
        %v4673 = vadd.f32 %v4627, %v4661
        %v4674 = vadd.f32 %v4628, %v4662
        %v4675 = vadd.f32 %v4629, %v4663
        %v4676 = vadd.f32 %v4630, %v4664
        %v4677 = vadd.f32 %v4631, %v4665
        %v4678 = vadd.f32 %v4632, %v4666
        %v4679 = vmul.f32 %v1372, %v564
        %v4680 = vmul.f32 %v1372, %v568
        %v4681 = vmul.f32 %v1372, %v572
        %v4682 = vmul.f32 %v1372, %v576
        %v4683 = vmul.f32 %v1372, %v580
        %v4684 = vmul.f32 %v1372, %v584
        %v4685 = vmul.f32 %v1372, %v588
        %4693 = vrot.lane.b32.xlu0 %v4679, 79
        %v4694 = vpop.permute.xlu0 %4693
        %4695 = vrot.lane.b32.xlu0 %v4680, 79
        %v4696 = vpop.permute.xlu0 %4695
        %4697 = vrot.lane.b32.xlu0 %v4681, 79
        %v4698 = vpop.permute.xlu0 %4697
        %4699 = vrot.lane.b32.xlu0 %v4682, 79
        %v4700 = vpop.permute.xlu0 %4699
        %4701 = vrot.lane.b32.xlu0 %v4683, 79
        %v4702 = vpop.permute.xlu0 %4701
        %4703 = vrot.lane.b32.xlu0 %v4684, 79
        %v4704 = vpop.permute.xlu0 %4703
        %4705 = vrot.lane.b32.xlu0 %v4685, 79
        %v4706 = vpop.permute.xlu0 %4705
        %v4707 = vsel %vm1653, %v4694, %v4696
        %v4708 = vsel %vm1653, %v4696, %v4698
        %v4709 = vsel %vm1653, %v4698, %v4700
        %v4710 = vsel %vm1653, %v4700, %v4702
        %v4711 = vsel %vm1653, %v4702, %v4704
        %v4712 = vsel %vm1653, %v4704, %v4706
        %v4719 = vadd.f32 %v4673, %v4707
        %v4720 = vadd.f32 %v4674, %v4708
        %v4721 = vadd.f32 %v4675, %v4709
        %v4722 = vadd.f32 %v4676, %v4710
        %v4723 = vadd.f32 %v4677, %v4711
        %v4724 = vadd.f32 %v4678, %v4712
        %v4725 = vmul.f32 %v1422, %v475
        %v4726 = vmul.f32 %v1422, %v479
        %v4727 = vmul.f32 %v1422, %v483
        %v4728 = vmul.f32 %v1422, %v487
        %v4729 = vmul.f32 %v1422, %v491
        %v4730 = vmul.f32 %v1422, %v495
        %v4731 = vmul.f32 %v1422, %v499
        %4739 = vrot.lane.b32.xlu0 %v4725, 78
        %v4740 = vpop.permute.xlu0 %4739
        %4741 = vrot.lane.b32.xlu0 %v4726, 78
        %v4742 = vpop.permute.xlu0 %4741
        %4743 = vrot.lane.b32.xlu0 %v4727, 78
        %v4744 = vpop.permute.xlu0 %4743
        %4745 = vrot.lane.b32.xlu0 %v4728, 78
        %v4746 = vpop.permute.xlu0 %4745
        %4747 = vrot.lane.b32.xlu0 %v4729, 78
        %v4748 = vpop.permute.xlu0 %4747
        %4749 = vrot.lane.b32.xlu0 %v4730, 78
        %v4750 = vpop.permute.xlu0 %4749
        %4751 = vrot.lane.b32.xlu0 %v4731, 78
        %v4752 = vpop.permute.xlu0 %4751
        %v4753 = vsel %vm1754, %v4740, %v4742
        %v4754 = vsel %vm1754, %v4742, %v4744
        %v4755 = vsel %vm1754, %v4744, %v4746
        %v4756 = vsel %vm1754, %v4746, %v4748
        %v4757 = vsel %vm1754, %v4748, %v4750
        %v4758 = vsel %vm1754, %v4750, %v4752
        %v4765 = vadd.f32 %v4719, %v4753
        %v4766 = vadd.f32 %v4720, %v4754
        %v4767 = vadd.f32 %v4721, %v4755
        %v4768 = vadd.f32 %v4722, %v4756
        %v4769 = vadd.f32 %v4723, %v4757
        %v4770 = vadd.f32 %v4724, %v4758
        %v4771 = vmul.f32 %v1472, %v564
        %v4772 = vmul.f32 %v1472, %v568
        %v4773 = vmul.f32 %v1472, %v572
        %v4774 = vmul.f32 %v1472, %v576
        %v4775 = vmul.f32 %v1472, %v580
        %v4776 = vmul.f32 %v1472, %v584
        %v4777 = vmul.f32 %v1472, %v588
        %4785 = vrot.lane.b32.xlu0 %v4771, 78
        %v4786 = vpop.permute.xlu0 %4785
        %4787 = vrot.lane.b32.xlu0 %v4772, 78
        %v4788 = vpop.permute.xlu0 %4787
        %4789 = vrot.lane.b32.xlu0 %v4773, 78
        %v4790 = vpop.permute.xlu0 %4789
        %4791 = vrot.lane.b32.xlu0 %v4774, 78
        %v4792 = vpop.permute.xlu0 %4791
        %4793 = vrot.lane.b32.xlu0 %v4775, 78
        %v4794 = vpop.permute.xlu0 %4793
        %4795 = vrot.lane.b32.xlu0 %v4776, 78
        %v4796 = vpop.permute.xlu0 %4795
        %4797 = vrot.lane.b32.xlu0 %v4777, 78
        %v4798 = vpop.permute.xlu0 %4797
        %v4799 = vsel %vm1754, %v4786, %v4788
        %v4800 = vsel %vm1754, %v4788, %v4790
        %v4801 = vsel %vm1754, %v4790, %v4792
        %v4802 = vsel %vm1754, %v4792, %v4794
        %v4803 = vsel %vm1754, %v4794, %v4796
        %v4804 = vsel %vm1754, %v4796, %v4798
        %v4811 = vadd.f32 %v4765, %v4799
        %v4812 = vadd.f32 %v4766, %v4800
        %v4813 = vadd.f32 %v4767, %v4801
        %v4814 = vadd.f32 %v4768, %v4802
        %v4815 = vadd.f32 %v4769, %v4803
        %v4816 = vadd.f32 %v4770, %v4804
        %v4817 = vmul.f32 %v1522, %v889
        %v4818 = vmul.f32 %v1522, %v893
        %v4819 = vmul.f32 %v1522, %v897
        %v4820 = vmul.f32 %v1522, %v901
        %v4821 = vmul.f32 %v1522, %v905
        %v4822 = vmul.f32 %v1522, %v909
        %v4823 = vmul.f32 %v1522, %v913
        %4831 = vrot.lane.b32.xlu0 %v4817, 80
        %v4832 = vpop.permute.xlu0 %4831
        %4833 = vrot.lane.b32.xlu0 %v4818, 80
        %v4834 = vpop.permute.xlu0 %4833
        %4835 = vrot.lane.b32.xlu0 %v4819, 80
        %v4836 = vpop.permute.xlu0 %4835
        %4837 = vrot.lane.b32.xlu0 %v4820, 80
        %v4838 = vpop.permute.xlu0 %4837
        %4839 = vrot.lane.b32.xlu0 %v4821, 80
        %v4840 = vpop.permute.xlu0 %4839
        %4841 = vrot.lane.b32.xlu0 %v4822, 80
        %v4842 = vpop.permute.xlu0 %4841
        %4843 = vrot.lane.b32.xlu0 %v4823, 80
        %v4844 = vpop.permute.xlu0 %4843
        %v4845 = vsel %vm1552, %v4832, %v4834
        %v4846 = vsel %vm1552, %v4834, %v4836
        %v4847 = vsel %vm1552, %v4836, %v4838
        %v4848 = vsel %vm1552, %v4838, %v4840
        %v4849 = vsel %vm1552, %v4840, %v4842
        %v4850 = vsel %vm1552, %v4842, %v4844
        %v4857 = vadd.f32 %v4811, %v4845
        %v4858 = vadd.f32 %v4812, %v4846
        %v4859 = vadd.f32 %v4813, %v4847
        %v4860 = vadd.f32 %v4814, %v4848
        %v4861 = vadd.f32 %v4815, %v4849
        %v4862 = vadd.f32 %v4816, %v4850
        %v4863 = vmul.f32 %v1573, %v801
        %v4864 = vmul.f32 %v1573, %v805
        %v4865 = vmul.f32 %v1573, %v809
        %v4866 = vmul.f32 %v1573, %v813
        %v4867 = vmul.f32 %v1573, %v817
        %v4868 = vmul.f32 %v1573, %v821
        %v4869 = vmul.f32 %v1573, %v825
        %4877 = vrot.lane.b32.xlu0 %v4863, 79
        %v4878 = vpop.permute.xlu0 %4877
        %4879 = vrot.lane.b32.xlu0 %v4864, 79
        %v4880 = vpop.permute.xlu0 %4879
        %4881 = vrot.lane.b32.xlu0 %v4865, 79
        %v4882 = vpop.permute.xlu0 %4881
        %4883 = vrot.lane.b32.xlu0 %v4866, 79
        %v4884 = vpop.permute.xlu0 %4883
        %4885 = vrot.lane.b32.xlu0 %v4867, 79
        %v4886 = vpop.permute.xlu0 %4885
        %4887 = vrot.lane.b32.xlu0 %v4868, 79
        %v4888 = vpop.permute.xlu0 %4887
        %4889 = vrot.lane.b32.xlu0 %v4869, 79
        %v4890 = vpop.permute.xlu0 %4889
        %v4891 = vsel %vm1653, %v4878, %v4880
        %v4892 = vsel %vm1653, %v4880, %v4882
        %v4893 = vsel %vm1653, %v4882, %v4884
        %v4894 = vsel %vm1653, %v4884, %v4886
        %v4895 = vsel %vm1653, %v4886, %v4888
        %v4896 = vsel %vm1653, %v4888, %v4890
        %v4903 = vadd.f32 %v4857, %v4891
        %v4904 = vadd.f32 %v4858, %v4892
        %v4905 = vadd.f32 %v4859, %v4893
        %v4906 = vadd.f32 %v4860, %v4894
        %v4907 = vadd.f32 %v4861, %v4895
        %v4908 = vadd.f32 %v4862, %v4896
        %v4909 = vmul.f32 %v1623, %v889
        %v4910 = vmul.f32 %v1623, %v893
        %v4911 = vmul.f32 %v1623, %v897
        %v4912 = vmul.f32 %v1623, %v901
        %v4913 = vmul.f32 %v1623, %v905
        %v4914 = vmul.f32 %v1623, %v909
        %v4915 = vmul.f32 %v1623, %v913
        %4923 = vrot.lane.b32.xlu0 %v4909, 79
        %v4924 = vpop.permute.xlu0 %4923
        %4925 = vrot.lane.b32.xlu0 %v4910, 79
        %v4926 = vpop.permute.xlu0 %4925
        %4927 = vrot.lane.b32.xlu0 %v4911, 79
        %v4928 = vpop.permute.xlu0 %4927
        %4929 = vrot.lane.b32.xlu0 %v4912, 79
        %v4930 = vpop.permute.xlu0 %4929
        %4931 = vrot.lane.b32.xlu0 %v4913, 79
        %v4932 = vpop.permute.xlu0 %4931
        %4933 = vrot.lane.b32.xlu0 %v4914, 79
        %v4934 = vpop.permute.xlu0 %4933
        %4935 = vrot.lane.b32.xlu0 %v4915, 79
        %v4936 = vpop.permute.xlu0 %4935
        %v4937 = vsel %vm1653, %v4924, %v4926
        %v4938 = vsel %vm1653, %v4926, %v4928
        %v4939 = vsel %vm1653, %v4928, %v4930
        %v4940 = vsel %vm1653, %v4930, %v4932
        %v4941 = vsel %vm1653, %v4932, %v4934
        %v4942 = vsel %vm1653, %v4934, %v4936
        %v4949 = vadd.f32 %v4903, %v4937
        %v4950 = vadd.f32 %v4904, %v4938
        %v4951 = vadd.f32 %v4905, %v4939
        %v4952 = vadd.f32 %v4906, %v4940
        %v4953 = vadd.f32 %v4907, %v4941
        %v4954 = vadd.f32 %v4908, %v4942
        %v4955 = vmul.f32 %v1674, %v801
        %v4956 = vmul.f32 %v1674, %v805
        %v4957 = vmul.f32 %v1674, %v809
        %v4958 = vmul.f32 %v1674, %v813
        %v4959 = vmul.f32 %v1674, %v817
        %v4960 = vmul.f32 %v1674, %v821
        %v4961 = vmul.f32 %v1674, %v825
        %4969 = vrot.lane.b32.xlu0 %v4955, 78
        %v4970 = vpop.permute.xlu0 %4969
        %4971 = vrot.lane.b32.xlu0 %v4956, 78
        %v4972 = vpop.permute.xlu0 %4971
        %4973 = vrot.lane.b32.xlu0 %v4957, 78
        %v4974 = vpop.permute.xlu0 %4973
        %4975 = vrot.lane.b32.xlu0 %v4958, 78
        %v4976 = vpop.permute.xlu0 %4975
        %4977 = vrot.lane.b32.xlu0 %v4959, 78
        %v4978 = vpop.permute.xlu0 %4977
        %4979 = vrot.lane.b32.xlu0 %v4960, 78
        %v4980 = vpop.permute.xlu0 %4979
        %4981 = vrot.lane.b32.xlu0 %v4961, 78
        %v4982 = vpop.permute.xlu0 %4981
        %v4983 = vsel %vm1754, %v4970, %v4972
        %v4984 = vsel %vm1754, %v4972, %v4974
        %v4985 = vsel %vm1754, %v4974, %v4976
        %v4986 = vsel %vm1754, %v4976, %v4978
        %v4987 = vsel %vm1754, %v4978, %v4980
        %v4988 = vsel %vm1754, %v4980, %v4982
        %v4995 = vadd.f32 %v4949, %v4983
        %v4996 = vadd.f32 %v4950, %v4984
        %v4997 = vadd.f32 %v4951, %v4985
        %v4998 = vadd.f32 %v4952, %v4986
        %v4999 = vadd.f32 %v4953, %v4987
        %v5000 = vadd.f32 %v4954, %v4988
        %v5001 = vmul.f32 %v1724, %v889
        %v5002 = vmul.f32 %v1724, %v893
        %v5003 = vmul.f32 %v1724, %v897
        %v5004 = vmul.f32 %v1724, %v901
        %v5005 = vmul.f32 %v1724, %v905
        %v5006 = vmul.f32 %v1724, %v909
        %v5007 = vmul.f32 %v1724, %v913
        %5015 = vrot.lane.b32.xlu0 %v5001, 78
        %v5016 = vpop.permute.xlu0 %5015
        %5017 = vrot.lane.b32.xlu0 %v5002, 78
        %v5018 = vpop.permute.xlu0 %5017
        %5019 = vrot.lane.b32.xlu0 %v5003, 78
        %v5020 = vpop.permute.xlu0 %5019
        %5021 = vrot.lane.b32.xlu0 %v5004, 78
        %v5022 = vpop.permute.xlu0 %5021
        %5023 = vrot.lane.b32.xlu0 %v5005, 78
        %v5024 = vpop.permute.xlu0 %5023
        %5025 = vrot.lane.b32.xlu0 %v5006, 78
        %v5026 = vpop.permute.xlu0 %5025
        %5027 = vrot.lane.b32.xlu0 %v5007, 78
        %v5028 = vpop.permute.xlu0 %5027
        %v5029 = vsel %vm1754, %v5016, %v5018
        %v5030 = vsel %vm1754, %v5018, %v5020
        %v5031 = vsel %vm1754, %v5020, %v5022
        %v5032 = vsel %vm1754, %v5022, %v5024
        %v5033 = vsel %vm1754, %v5024, %v5026
        %v5034 = vsel %vm1754, %v5026, %v5028
        %v5041 = vadd.f32 %v4995, %v5029
        %v5042 = vadd.f32 %v4996, %v5030
        %v5043 = vadd.f32 %v4997, %v5031
        %v5044 = vadd.f32 %v4998, %v5032
        %v5045 = vadd.f32 %v4999, %v5033
        %v5046 = vadd.f32 %v5000, %v5034
        %v5047 = vmax.f32 %v3931, %v5041
        %v5048 = vmax.f32 %v3932, %v5042
        %v5049 = vmax.f32 %v3933, %v5043
        %v5050 = vmax.f32 %v3934, %v5044
        %v5051 = vmax.f32 %v3935, %v5045
        %v5052 = vmax.f32 %v3936, %v5046
        %v5053 = vld [vmem:[%s2] sm:$0xff]
        %5055 = vset.pattern.permute.xlu0 0
        %5056 = vperm.xlu0 %5055, %v5053
        %v5057 = vpop.permute.xlu0 %5056
        %v5059 = vadd.f32 %v5047, %v5057
        %v5060 = vadd.f32 %v5048, %v5057
        %v5061 = vadd.f32 %v5049, %v5057
        %v5062 = vadd.f32 %v5050, %v5057
        %v5063 = vadd.f32 %v5051, %v5057
        %v5064 = vadd.f32 %v5052, %v5057
        %v5065 = vmax.f32 %v5059, 0.0
        %v5066 = vmax.f32 %v5060, 0.0
        %v5067 = vmax.f32 %v5061, 0.0
        %v5068 = vmax.f32 %v5062, 0.0
        %v5069 = vmax.f32 %v5063, 0.0
        %v5070 = vmax.f32 %v5064, 0.0
        %v5071 = vpack.c.bf16 %v5065, %v5065
        %v5072 = vpack.c.bf16 %v5066, %v5066
        %v5073 = vpack.c.bf16 %v5067, %v5067
        %v5074 = vpack.c.bf16 %v5068, %v5068
        %v5075 = vpack.c.bf16 %v5069, %v5069
        %v5076 = vpack.c.bf16 %v5070, %v5070
        %v5083 = vunpack.c.l.b16 %v5071
        %v5084 = vunpack.c.l.b16 %v5072
        %v5085 = vunpack.c.l.b16 %v5073
        %v5086 = vunpack.c.l.b16 %v5074
        %v5087 = vunpack.c.l.b16 %v5075
        %v5088 = vunpack.c.l.b16 %v5076
        %v5089 = vpack.c.b16 %v5084, %v5083
        %v5090 = vpack.c.b16 %v5086, %v5085
        %v5091 = vpack.c.b16 %v5088, %v5087
        %5095 = vst [vmem:[#allocation2] sm:$0xff] %v5089
        %5096 = vst [vmem:[#allocation2 + $0x8] sm:$0xff] %v5090
        %5097 = vst [vmem:[#allocation2 + $0x10] sm:$0xff] %v5091
        %v5098 = vld [vmem:[#allocation2] sm:$0xff]
        %v5099 = vld [vmem:[#allocation2 + $0x8] sm:$0xff]
        %v5100 = vld [vmem:[%s3] sm:$0xf]
        %v5101 = vld [vmem:[#allocation2 + $0x10] sm:$0xf]
        %s5102 = scalar_lea.vmem %s3, 4
        %v5103 = vld [vmem:[%s5102] sm:$0xf]
        %v5107 = vunpack.c.l.b16 %v5098
        %v5108 = vunpack.c.h.b16 %v5098
        %v5109 = vunpack.c.l.b16 %v5099
        %v5110 = vunpack.c.h.b16 %v5099
        %v5111 = vunpack.c.l.b16 %v5101
        %v5112 = vpack.c.b16 %v5107, %v5107
        %v5113 = vpack.c.b16 %v5108, %v5108
        %v5114 = vpack.c.b16 %v5109, %v5109
        %v5115 = vpack.c.b16 %v5110, %v5110
        %v5116 = vpack.c.b16 %v5111, %v5111
        %5117 = vrot.lane.b32.xlu0 %v5112, 127
        %v5118 = vpop.permute.xlu0 %5117
        %5119 = vrot.lane.b32.xlu0 %v5113, 127
        %v5120 = vpop.permute.xlu0 %5119
        %5121 = vrot.lane.b32.xlu0 %v5114, 127
        %v5122 = vpop.permute.xlu0 %5121
        %5123 = vrot.lane.b32.xlu0 %v5115, 127
        %v5124 = vpop.permute.xlu0 %5123
        %5125 = vrot.lane.b32.xlu0 %v5116, 127
        %v5126 = vpop.permute.xlu0 %5125
        %vm5127 = vcmask 1039360
        %v5128 = vsel %vm5127, %v5118, %v5120
        %v5129 = vsel %vm5127, %v5120, %v5122
        %v5130 = vsel %vm5127, %v5122, %v5124
        %v5131 = vsel %vm5127, %v5124, %v5126
        %vm5132 = vcmask 64512
        %v5134 = vsel %vm5132, %v5103, 0
        %vm5136 = vcmask 1043456
        %v5138 = vsel %vm5136, %v5128, 0
        %v5141 = vsel %vm5136, %v5129, 0
        %v5144 = vsel %vm5136, %v5130, 0
        %v5147 = vsel %vm5136, %v5131, 0
        %5149 = vmatprep.subr.bf16.mxu0 %v5141
        %5150 = vmatpush1.bf16.msra.mxu0 %v5138
        %5151 = vmatprep.subr.bf16.mxu0 0
        %5152 = vmatpush1.bf16.msra.mxu0 0
        %5153 = vmatprep.subr.bf16.mxu0 0
        %5154 = vmatpush1.bf16.msra.mxu0 0
        %5155 = vmatprep.subr.bf16.mxu0 0
        %5156 = vmatpush1.bf16.msra.mxu0 0
        %5157 = vmatprep.subr.bf16.mxu0 0
        %5158 = vmatpush1.bf16.msra.mxu0 0
        %5159 = vmatprep.subr.bf16.mxu0 0
        %5160 = vmatpush1.bf16.msra.mxu0 0
        %5161 = vmatprep.subr.bf16.mxu0 0
        %5162 = vmatpush1.bf16.msra.mxu0 0
        %5163 = vmatprep.subr.bf16.mxu0 0
        %5164 = vmatpush1.bf16.msra.mxu0 0
        %5165 = vmatprep.subr.bf16.mxu0 0
        %5166 = vmatpush1.bf16.msra.mxu0 0
        %5167 = vmatprep.subr.bf16.mxu0 0
        %5168 = vmatpush1.bf16.msra.mxu0 0
        %5169 = vmatprep.subr.bf16.mxu0 0
        %5170 = vmatpush1.bf16.msra.mxu0 0
        %5171 = vmatprep.subr.bf16.mxu0 0
        %5172 = vmatpush1.bf16.msra.mxu0 0
        %5173 = vmatprep.subr.bf16.mxu0 0
        %5174 = vmatpush1.bf16.msra.mxu0 0
        %5175 = vmatprep.subr.bf16.mxu0 0
        %5176 = vmatpush1.bf16.msra.mxu0 0
        %5177 = vmatprep.subr.bf16.mxu0 0
        %5178 = vmatpush1.bf16.msra.mxu0 0
        %5179 = vmatprep.subr.bf16.mxu0 0
        %5180 = vmatpush1.bf16.msra.mxu0 0
        %5181 = vmatprep.mubr.bf16.mxu0 0
        %5182 = vmatmul.mubr.bf16.gmra.mrb[0].mxu0 %v5134
        %v5183 = vpop.f32.mrb[0].mxu0
        %v5184 = vadd.f32 0.0, %v5183
        %v5185 = vpop.f32.mrb[0].mxu0
        %v5186 = vadd.f32 0.0, %v5185
        %v5187 = vpop.f32.mrb[0].mxu0
        %v5188 = vpop.f32.mrb[0].mxu0
        %5189 = vdwg.mxu0
        %5190 = vmatprep.subr.bf16.mxu0 %v5147
        %5191 = vmatpush1.bf16.msra.mxu0 %v5144
        %5192 = vmatprep.subr.bf16.mxu0 0
        %5193 = vmatpush1.bf16.msra.mxu0 0
        %5194 = vmatprep.subr.bf16.mxu0 0
        %5195 = vmatpush1.bf16.msra.mxu0 0
        %5196 = vmatprep.subr.bf16.mxu0 0
        %5197 = vmatpush1.bf16.msra.mxu0 0
        %5198 = vmatprep.subr.bf16.mxu0 0
        %5199 = vmatpush1.bf16.msra.mxu0 0
        %5200 = vmatprep.subr.bf16.mxu0 0
        %5201 = vmatpush1.bf16.msra.mxu0 0
        %5202 = vmatprep.subr.bf16.mxu0 0
        %5203 = vmatpush1.bf16.msra.mxu0 0
        %5204 = vmatprep.subr.bf16.mxu0 0
        %5205 = vmatpush1.bf16.msra.mxu0 0
        %5206 = vmatprep.subr.bf16.mxu0 0
        %5207 = vmatpush1.bf16.msra.mxu0 0
        %5208 = vmatprep.subr.bf16.mxu0 0
        %5209 = vmatpush1.bf16.msra.mxu0 0
        %5210 = vmatprep.subr.bf16.mxu0 0
        %5211 = vmatpush1.bf16.msra.mxu0 0
        %5212 = vmatprep.subr.bf16.mxu0 0
        %5213 = vmatpush1.bf16.msra.mxu0 0
        %5214 = vmatprep.subr.bf16.mxu0 0
        %5215 = vmatpush1.bf16.msra.mxu0 0
        %5216 = vmatprep.subr.bf16.mxu0 0
        %5217 = vmatpush1.bf16.msra.mxu0 0
        %5218 = vmatprep.subr.bf16.mxu0 0
        %5219 = vmatpush1.bf16.msra.mxu0 0
        %5220 = vmatprep.subr.bf16.mxu0 0
        %5221 = vmatpush1.bf16.msra.mxu0 0
        %5222 = vmatprep.mubr.bf16.mxu0 0
        %5223 = vmatmul.mubr.bf16.gmra.mrb[0].mxu0 %v5134
        %v5224 = vpop.f32.mrb[0].mxu0
        %v5225 = vadd.f32 0.0, %v5224
        %v5226 = vpop.f32.mrb[0].mxu0
        %v5227 = vadd.f32 0.0, %v5226
        %v5228 = vpop.f32.mrb[0].mxu0
        %v5229 = vpop.f32.mrb[0].mxu0
        %5230 = vdwg.mxu0
        %v5232 = vsel %vm5132, %v5100, 0
        %v5235 = vsel %vm5136, %v5112, 0
        %v5238 = vsel %vm5136, %v5113, 0
        %v5241 = vsel %vm5136, %v5114, 0
        %v5244 = vsel %vm5136, %v5115, 0
        %5246 = vmatprep.subr.bf16.mxu0 %v5238
        %5247 = vmatpush1.bf16.msra.mxu0 %v5235
        %5248 = vmatprep.subr.bf16.mxu0 0
        %5249 = vmatpush1.bf16.msra.mxu0 0
        %5250 = vmatprep.subr.bf16.mxu0 0
        %5251 = vmatpush1.bf16.msra.mxu0 0
        %5252 = vmatprep.subr.bf16.mxu0 0
        %5253 = vmatpush1.bf16.msra.mxu0 0
        %5254 = vmatprep.subr.bf16.mxu0 0
        %5255 = vmatpush1.bf16.msra.mxu0 0
        %5256 = vmatprep.subr.bf16.mxu0 0
        %5257 = vmatpush1.bf16.msra.mxu0 0
        %5258 = vmatprep.subr.bf16.mxu0 0
        %5259 = vmatpush1.bf16.msra.mxu0 0
        %5260 = vmatprep.subr.bf16.mxu0 0
        %5261 = vmatpush1.bf16.msra.mxu0 0
        %5262 = vmatprep.subr.bf16.mxu0 0
        %5263 = vmatpush1.bf16.msra.mxu0 0
        %5264 = vmatprep.subr.bf16.mxu0 0
        %5265 = vmatpush1.bf16.msra.mxu0 0
        %5266 = vmatprep.subr.bf16.mxu0 0
        %5267 = vmatpush1.bf16.msra.mxu0 0
        %5268 = vmatprep.subr.bf16.mxu0 0
        %5269 = vmatpush1.bf16.msra.mxu0 0
        %5270 = vmatprep.subr.bf16.mxu0 0
        %5271 = vmatpush1.bf16.msra.mxu0 0
        %5272 = vmatprep.subr.bf16.mxu0 0
        %5273 = vmatpush1.bf16.msra.mxu0 0
        %5274 = vmatprep.subr.bf16.mxu0 0
        %5275 = vmatpush1.bf16.msra.mxu0 0
        %5276 = vmatprep.subr.bf16.mxu0 0
        %5277 = vmatpush1.bf16.msra.mxu0 0
        %5278 = vmatprep.mubr.bf16.mxu0 0
        %5279 = vmatmul.mubr.bf16.gmra.mrb[0].mxu0 %v5232
        %v5280 = vpop.f32.mrb[0].mxu0
        %v5281 = vadd.f32 %v5184, %v5280
        %v5282 = vpop.f32.mrb[0].mxu0
        %v5283 = vadd.f32 %v5186, %v5282
        %v5284 = vpop.f32.mrb[0].mxu0
        %v5285 = vpop.f32.mrb[0].mxu0
        %5286 = vdwg.mxu0
        %5287 = vmatprep.subr.bf16.mxu0 %v5244
        %5288 = vmatpush1.bf16.msra.mxu0 %v5241
        %5289 = vmatprep.subr.bf16.mxu0 0
        %5290 = vmatpush1.bf16.msra.mxu0 0
        %5291 = vmatprep.subr.bf16.mxu0 0
        %5292 = vmatpush1.bf16.msra.mxu0 0
        %5293 = vmatprep.subr.bf16.mxu0 0
        %5294 = vmatpush1.bf16.msra.mxu0 0
        %5295 = vmatprep.subr.bf16.mxu0 0
        %5296 = vmatpush1.bf16.msra.mxu0 0
        %5297 = vmatprep.subr.bf16.mxu0 0
        %5298 = vmatpush1.bf16.msra.mxu0 0
        %5299 = vmatprep.subr.bf16.mxu0 0
        %5300 = vmatpush1.bf16.msra.mxu0 0
        %5301 = vmatprep.subr.bf16.mxu0 0
        %5302 = vmatpush1.bf16.msra.mxu0 0
        %5303 = vmatprep.subr.bf16.mxu0 0
        %5304 = vmatpush1.bf16.msra.mxu0 0
        %5305 = vmatprep.subr.bf16.mxu0 0
        %5306 = vmatpush1.bf16.msra.mxu0 0
        %5307 = vmatprep.subr.bf16.mxu0 0
        %5308 = vmatpush1.bf16.msra.mxu0 0
        %5309 = vmatprep.subr.bf16.mxu0 0
        %5310 = vmatpush1.bf16.msra.mxu0 0
        %5311 = vmatprep.subr.bf16.mxu0 0
        %5312 = vmatpush1.bf16.msra.mxu0 0
        %5313 = vmatprep.subr.bf16.mxu0 0
        %5314 = vmatpush1.bf16.msra.mxu0 0
        %5315 = vmatprep.subr.bf16.mxu0 0
        %5316 = vmatpush1.bf16.msra.mxu0 0
        %5317 = vmatprep.subr.bf16.mxu0 0
        %5318 = vmatpush1.bf16.msra.mxu0 0
        %5319 = vmatprep.mubr.bf16.mxu0 0
        %5320 = vmatmul.mubr.bf16.gmra.mrb[0].mxu0 %v5232
        %v5321 = vpop.f32.mrb[0].mxu0
        %v5322 = vadd.f32 %v5225, %v5321
        %v5323 = vpop.f32.mrb[0].mxu0
        %v5324 = vadd.f32 %v5227, %v5323
        %v5325 = vpop.f32.mrb[0].mxu0
        %v5326 = vpop.f32.mrb[0].mxu0
        %5327 = vdwg.mxu0
        %s5328 = scalar_lea.vmem %s3, 8
        %v5329 = vld [vmem:[%s5328] sm:$0xf]
        %5330 = vrot.lane.b32.xlu0 %v5112, 126
        %v5331 = vpop.permute.xlu0 %5330
        %5332 = vrot.lane.b32.xlu0 %v5113, 126
        %v5333 = vpop.permute.xlu0 %5332
        %5334 = vrot.lane.b32.xlu0 %v5114, 126
        %v5335 = vpop.permute.xlu0 %5334
        %5336 = vrot.lane.b32.xlu0 %v5115, 126
        %v5337 = vpop.permute.xlu0 %5336
        %5338 = vrot.lane.b32.xlu0 %v5116, 126
        %v5339 = vpop.permute.xlu0 %5338
        %vm5340 = vcmask 1031168
        %v5341 = vsel %vm5340, %v5331, %v5333
        %v5342 = vsel %vm5340, %v5333, %v5335
        %v5343 = vsel %vm5340, %v5335, %v5337
        %v5344 = vsel %vm5340, %v5337, %v5339
        %v5346 = vsel %vm5132, %v5329, 0
        %v5349 = vsel %vm5136, %v5341, 0
        %v5352 = vsel %vm5136, %v5342, 0
        %v5355 = vsel %vm5136, %v5343, 0
        %v5358 = vsel %vm5136, %v5344, 0
        %5360 = vmatprep.subr.bf16.mxu0 %v5352
        %5361 = vmatpush1.bf16.msra.mxu0 %v5349
        %5362 = vmatprep.subr.bf16.mxu0 0
        %5363 = vmatpush1.bf16.msra.mxu0 0
        %5364 = vmatprep.subr.bf16.mxu0 0
        %5365 = vmatpush1.bf16.msra.mxu0 0
        %5366 = vmatprep.subr.bf16.mxu0 0
        %5367 = vmatpush1.bf16.msra.mxu0 0
        %5368 = vmatprep.subr.bf16.mxu0 0
        %5369 = vmatpush1.bf16.msra.mxu0 0
        %5370 = vmatprep.subr.bf16.mxu0 0
        %5371 = vmatpush1.bf16.msra.mxu0 0
        %5372 = vmatprep.subr.bf16.mxu0 0
        %5373 = vmatpush1.bf16.msra.mxu0 0
        %5374 = vmatprep.subr.bf16.mxu0 0
        %5375 = vmatpush1.bf16.msra.mxu0 0
        %5376 = vmatprep.subr.bf16.mxu0 0
        %5377 = vmatpush1.bf16.msra.mxu0 0
        %5378 = vmatprep.subr.bf16.mxu0 0
        %5379 = vmatpush1.bf16.msra.mxu0 0
        %5380 = vmatprep.subr.bf16.mxu0 0
        %5381 = vmatpush1.bf16.msra.mxu0 0
        %5382 = vmatprep.subr.bf16.mxu0 0
        %5383 = vmatpush1.bf16.msra.mxu0 0
        %5384 = vmatprep.subr.bf16.mxu0 0
        %5385 = vmatpush1.bf16.msra.mxu0 0
        %5386 = vmatprep.subr.bf16.mxu0 0
        %5387 = vmatpush1.bf16.msra.mxu0 0
        %5388 = vmatprep.subr.bf16.mxu0 0
        %5389 = vmatpush1.bf16.msra.mxu0 0
        %5390 = vmatprep.subr.bf16.mxu0 0
        %5391 = vmatpush1.bf16.msra.mxu0 0
        %5392 = vmatprep.mubr.bf16.mxu0 0
        %5393 = vmatmul.mubr.bf16.gmra.mrb[0].mxu0 %v5346
        %v5394 = vpop.f32.mrb[0].mxu0
        %v5395 = vadd.f32 0.0, %v5394
        %v5396 = vpop.f32.mrb[0].mxu0
        %v5397 = vadd.f32 0.0, %v5396
        %v5398 = vpop.f32.mrb[0].mxu0
        %v5399 = vpop.f32.mrb[0].mxu0
        %5400 = vdwg.mxu0
        %5401 = vmatprep.subr.bf16.mxu0 %v5358
        %5402 = vmatpush1.bf16.msra.mxu0 %v5355
        %5403 = vmatprep.subr.bf16.mxu0 0
        %5404 = vmatpush1.bf16.msra.mxu0 0
        %5405 = vmatprep.subr.bf16.mxu0 0
        %5406 = vmatpush1.bf16.msra.mxu0 0
        %5407 = vmatprep.subr.bf16.mxu0 0
        %5408 = vmatpush1.bf16.msra.mxu0 0
        %5409 = vmatprep.subr.bf16.mxu0 0
        %5410 = vmatpush1.bf16.msra.mxu0 0
        %5411 = vmatprep.subr.bf16.mxu0 0
        %5412 = vmatpush1.bf16.msra.mxu0 0
        %5413 = vmatprep.subr.bf16.mxu0 0
        %5414 = vmatpush1.bf16.msra.mxu0 0
        %5415 = vmatprep.subr.bf16.mxu0 0
        %5416 = vmatpush1.bf16.msra.mxu0 0
        %5417 = vmatprep.subr.bf16.mxu0 0
        %5418 = vmatpush1.bf16.msra.mxu0 0
        %5419 = vmatprep.subr.bf16.mxu0 0
        %5420 = vmatpush1.bf16.msra.mxu0 0
        %5421 = vmatprep.subr.bf16.mxu0 0
        %5422 = vmatpush1.bf16.msra.mxu0 0
        %5423 = vmatprep.subr.bf16.mxu0 0
        %5424 = vmatpush1.bf16.msra.mxu0 0
        %5425 = vmatprep.subr.bf16.mxu0 0
        %5426 = vmatpush1.bf16.msra.mxu0 0
        %5427 = vmatprep.subr.bf16.mxu0 0
        %5428 = vmatpush1.bf16.msra.mxu0 0
        %5429 = vmatprep.subr.bf16.mxu0 0
        %5430 = vmatpush1.bf16.msra.mxu0 0
        %5431 = vmatprep.subr.bf16.mxu0 0
        %5432 = vmatpush1.bf16.msra.mxu0 0
        %5433 = vmatprep.mubr.bf16.mxu0 0
        %5434 = vmatmul.mubr.bf16.gmra.mrb[0].mxu0 %v5346
        %v5435 = vpop.f32.mrb[0].mxu0
        %v5436 = vadd.f32 0.0, %v5435
        %v5437 = vpop.f32.mrb[0].mxu0
        %v5438 = vadd.f32 0.0, %v5437
        %v5439 = vpop.f32.mrb[0].mxu0
        %v5440 = vpop.f32.mrb[0].mxu0
        %5441 = vdwg.mxu0
        %v5442 = vadd.f32 %v5281, %v5395
        %v5443 = vadd.f32 %v5283, %v5397
        %v5444 = vadd.f32 %v5322, %v5436
        %v5445 = vadd.f32 %v5324, %v5438
        %s5446 = scalar_lea.vmem %s3, 12
        %v5447 = vld [vmem:[%s5446] sm:$0xf]
        %5448 = vrot.lane.b32.xlu0 %v5112, 125
        %v5449 = vpop.permute.xlu0 %5448
        %5450 = vrot.lane.b32.xlu0 %v5113, 125
        %v5451 = vpop.permute.xlu0 %5450
        %5452 = vrot.lane.b32.xlu0 %v5114, 125
        %v5453 = vpop.permute.xlu0 %5452
        %5454 = vrot.lane.b32.xlu0 %v5115, 125
        %v5455 = vpop.permute.xlu0 %5454
        %5456 = vrot.lane.b32.xlu0 %v5116, 125
        %v5457 = vpop.permute.xlu0 %5456
        %vm5458 = vcmask 1022976
        %v5459 = vsel %vm5458, %v5449, %v5451
        %v5460 = vsel %vm5458, %v5451, %v5453
        %v5461 = vsel %vm5458, %v5453, %v5455
        %v5462 = vsel %vm5458, %v5455, %v5457
        %v5464 = vsel %vm5132, %v5447, 0
        %v5467 = vsel %vm5136, %v5459, 0
        %v5470 = vsel %vm5136, %v5460, 0
        %v5473 = vsel %vm5136, %v5461, 0
        %v5476 = vsel %vm5136, %v5462, 0
        %5478 = vmatprep.subr.bf16.mxu0 %v5470
        %5479 = vmatpush1.bf16.msra.mxu0 %v5467
        %5480 = vmatprep.subr.bf16.mxu0 0
        %5481 = vmatpush1.bf16.msra.mxu0 0
        %5482 = vmatprep.subr.bf16.mxu0 0
        %5483 = vmatpush1.bf16.msra.mxu0 0
        %5484 = vmatprep.subr.bf16.mxu0 0
        %5485 = vmatpush1.bf16.msra.mxu0 0
        %5486 = vmatprep.subr.bf16.mxu0 0
        %5487 = vmatpush1.bf16.msra.mxu0 0
        %5488 = vmatprep.subr.bf16.mxu0 0
        %5489 = vmatpush1.bf16.msra.mxu0 0
        %5490 = vmatprep.subr.bf16.mxu0 0
        %5491 = vmatpush1.bf16.msra.mxu0 0
        %5492 = vmatprep.subr.bf16.mxu0 0
        %5493 = vmatpush1.bf16.msra.mxu0 0
        %5494 = vmatprep.subr.bf16.mxu0 0
        %5495 = vmatpush1.bf16.msra.mxu0 0
        %5496 = vmatprep.subr.bf16.mxu0 0
        %5497 = vmatpush1.bf16.msra.mxu0 0
        %5498 = vmatprep.subr.bf16.mxu0 0
        %5499 = vmatpush1.bf16.msra.mxu0 0
        %5500 = vmatprep.subr.bf16.mxu0 0
        %5501 = vmatpush1.bf16.msra.mxu0 0
        %5502 = vmatprep.subr.bf16.mxu0 0
        %5503 = vmatpush1.bf16.msra.mxu0 0
        %5504 = vmatprep.subr.bf16.mxu0 0
        %5505 = vmatpush1.bf16.msra.mxu0 0
        %5506 = vmatprep.subr.bf16.mxu0 0
        %5507 = vmatpush1.bf16.msra.mxu0 0
        %5508 = vmatprep.subr.bf16.mxu0 0
        %5509 = vmatpush1.bf16.msra.mxu0 0
        %5510 = vmatprep.mubr.bf16.mxu0 0
        %5511 = vmatmul.mubr.bf16.gmra.mrb[0].mxu0 %v5464
        %v5512 = vpop.f32.mrb[0].mxu0
        %v5513 = vadd.f32 0.0, %v5512
        %v5514 = vpop.f32.mrb[0].mxu0
        %v5515 = vadd.f32 0.0, %v5514
        %v5516 = vpop.f32.mrb[0].mxu0
        %v5517 = vpop.f32.mrb[0].mxu0
        %5518 = vdwg.mxu0
        %5519 = vmatprep.subr.bf16.mxu0 %v5476
        %5520 = vmatpush1.bf16.msra.mxu0 %v5473
        %5521 = vmatprep.subr.bf16.mxu0 0
        %5522 = vmatpush1.bf16.msra.mxu0 0
        %5523 = vmatprep.subr.bf16.mxu0 0
        %5524 = vmatpush1.bf16.msra.mxu0 0
        %5525 = vmatprep.subr.bf16.mxu0 0
        %5526 = vmatpush1.bf16.msra.mxu0 0
        %5527 = vmatprep.subr.bf16.mxu0 0
        %5528 = vmatpush1.bf16.msra.mxu0 0
        %5529 = vmatprep.subr.bf16.mxu0 0
        %5530 = vmatpush1.bf16.msra.mxu0 0
        %5531 = vmatprep.subr.bf16.mxu0 0
        %5532 = vmatpush1.bf16.msra.mxu0 0
        %5533 = vmatprep.subr.bf16.mxu0 0
        %5534 = vmatpush1.bf16.msra.mxu0 0
        %5535 = vmatprep.subr.bf16.mxu0 0
        %5536 = vmatpush1.bf16.msra.mxu0 0
        %5537 = vmatprep.subr.bf16.mxu0 0
        %5538 = vmatpush1.bf16.msra.mxu0 0
        %5539 = vmatprep.subr.bf16.mxu0 0
        %5540 = vmatpush1.bf16.msra.mxu0 0
        %5541 = vmatprep.subr.bf16.mxu0 0
        %5542 = vmatpush1.bf16.msra.mxu0 0
        %5543 = vmatprep.subr.bf16.mxu0 0
        %5544 = vmatpush1.bf16.msra.mxu0 0
        %5545 = vmatprep.subr.bf16.mxu0 0
        %5546 = vmatpush1.bf16.msra.mxu0 0
        %5547 = vmatprep.subr.bf16.mxu0 0
        %5548 = vmatpush1.bf16.msra.mxu0 0
        %5549 = vmatprep.subr.bf16.mxu0 0
        %5550 = vmatpush1.bf16.msra.mxu0 0
        %5551 = vmatprep.mubr.bf16.mxu0 0
        %5552 = vmatmul.mubr.bf16.gmra.mrb[0].mxu0 %v5464
        %v5553 = vpop.f32.mrb[0].mxu0
        %v5554 = vadd.f32 0.0, %v5553
        %v5555 = vpop.f32.mrb[0].mxu0
        %v5556 = vadd.f32 0.0, %v5555
        %v5557 = vpop.f32.mrb[0].mxu0
        %v5558 = vpop.f32.mrb[0].mxu0
        %5559 = vdwg.mxu0
        %v5560 = vadd.f32 %v5442, %v5513
        %v5561 = vadd.f32 %v5443, %v5515
        %v5562 = vadd.f32 %v5444, %v5554
        %v5563 = vadd.f32 %v5445, %v5556
        %s5564 = scalar_lea.vmem %s3, 16
        %v5565 = vld [vmem:[%s5564] sm:$0xf]
        %5566 = vrot.lane.b32.xlu0 %v5112, 124
        %v5567 = vpop.permute.xlu0 %5566
        %5568 = vrot.lane.b32.xlu0 %v5113, 124
        %v5569 = vpop.permute.xlu0 %5568
        %5570 = vrot.lane.b32.xlu0 %v5114, 124
        %v5571 = vpop.permute.xlu0 %5570
        %5572 = vrot.lane.b32.xlu0 %v5115, 124
        %v5573 = vpop.permute.xlu0 %5572
        %5574 = vrot.lane.b32.xlu0 %v5116, 124
        %v5575 = vpop.permute.xlu0 %5574
        %vm5576 = vcmask 1014784
        %v5577 = vsel %vm5576, %v5567, %v5569
        %v5578 = vsel %vm5576, %v5569, %v5571
        %v5579 = vsel %vm5576, %v5571, %v5573
        %v5580 = vsel %vm5576, %v5573, %v5575
        %v5582 = vsel %vm5132, %v5565, 0
        %v5585 = vsel %vm5136, %v5577, 0
        %v5588 = vsel %vm5136, %v5578, 0
        %v5591 = vsel %vm5136, %v5579, 0
        %v5594 = vsel %vm5136, %v5580, 0
        %5596 = vmatprep.subr.bf16.mxu0 %v5588
        %5597 = vmatpush1.bf16.msra.mxu0 %v5585
        %5598 = vmatprep.subr.bf16.mxu0 0
        %5599 = vmatpush1.bf16.msra.mxu0 0
        %5600 = vmatprep.subr.bf16.mxu0 0
        %5601 = vmatpush1.bf16.msra.mxu0 0
        %5602 = vmatprep.subr.bf16.mxu0 0
        %5603 = vmatpush1.bf16.msra.mxu0 0
        %5604 = vmatprep.subr.bf16.mxu0 0
        %5605 = vmatpush1.bf16.msra.mxu0 0
        %5606 = vmatprep.subr.bf16.mxu0 0
        %5607 = vmatpush1.bf16.msra.mxu0 0
        %5608 = vmatprep.subr.bf16.mxu0 0
        %5609 = vmatpush1.bf16.msra.mxu0 0
        %5610 = vmatprep.subr.bf16.mxu0 0
        %5611 = vmatpush1.bf16.msra.mxu0 0
        %5612 = vmatprep.subr.bf16.mxu0 0
        %5613 = vmatpush1.bf16.msra.mxu0 0
        %5614 = vmatprep.subr.bf16.mxu0 0
        %5615 = vmatpush1.bf16.msra.mxu0 0
        %5616 = vmatprep.subr.bf16.mxu0 0
        %5617 = vmatpush1.bf16.msra.mxu0 0
        %5618 = vmatprep.subr.bf16.mxu0 0
        %5619 = vmatpush1.bf16.msra.mxu0 0
        %5620 = vmatprep.subr.bf16.mxu0 0
        %5621 = vmatpush1.bf16.msra.mxu0 0
        %5622 = vmatprep.subr.bf16.mxu0 0
        %5623 = vmatpush1.bf16.msra.mxu0 0
        %5624 = vmatprep.subr.bf16.mxu0 0
        %5625 = vmatpush1.bf16.msra.mxu0 0
        %5626 = vmatprep.subr.bf16.mxu0 0
        %5627 = vmatpush1.bf16.msra.mxu0 0
        %5628 = vmatprep.mubr.bf16.mxu0 0
        %5629 = vmatmul.mubr.bf16.gmra.mrb[0].mxu0 %v5582
        %v5630 = vpop.f32.mrb[0].mxu0
        %v5631 = vadd.f32 0.0, %v5630
        %v5632 = vpop.f32.mrb[0].mxu0
        %v5633 = vadd.f32 0.0, %v5632
        %v5634 = vpop.f32.mrb[0].mxu0
        %v5635 = vpop.f32.mrb[0].mxu0
        %5636 = vdwg.mxu0
        %5637 = vmatprep.subr.bf16.mxu0 %v5594
        %5638 = vmatpush1.bf16.msra.mxu0 %v5591
        %5639 = vmatprep.subr.bf16.mxu0 0
        %5640 = vmatpush1.bf16.msra.mxu0 0
        %5641 = vmatprep.subr.bf16.mxu0 0
        %5642 = vmatpush1.bf16.msra.mxu0 0
        %5643 = vmatprep.subr.bf16.mxu0 0
        %5644 = vmatpush1.bf16.msra.mxu0 0
        %5645 = vmatprep.subr.bf16.mxu0 0
        %5646 = vmatpush1.bf16.msra.mxu0 0
        %5647 = vmatprep.subr.bf16.mxu0 0
        %5648 = vmatpush1.bf16.msra.mxu0 0
        %5649 = vmatprep.subr.bf16.mxu0 0
        %5650 = vmatpush1.bf16.msra.mxu0 0
        %5651 = vmatprep.subr.bf16.mxu0 0
        %5652 = vmatpush1.bf16.msra.mxu0 0
        %5653 = vmatprep.subr.bf16.mxu0 0
        %5654 = vmatpush1.bf16.msra.mxu0 0
        %5655 = vmatprep.subr.bf16.mxu0 0
        %5656 = vmatpush1.bf16.msra.mxu0 0
        %5657 = vmatprep.subr.bf16.mxu0 0
        %5658 = vmatpush1.bf16.msra.mxu0 0
        %5659 = vmatprep.subr.bf16.mxu0 0
        %5660 = vmatpush1.bf16.msra.mxu0 0
        %5661 = vmatprep.subr.bf16.mxu0 0
        %5662 = vmatpush1.bf16.msra.mxu0 0
        %5663 = vmatprep.subr.bf16.mxu0 0
        %5664 = vmatpush1.bf16.msra.mxu0 0
        %5665 = vmatprep.subr.bf16.mxu0 0
        %5666 = vmatpush1.bf16.msra.mxu0 0
        %5667 = vmatprep.subr.bf16.mxu0 0
        %5668 = vmatpush1.bf16.msra.mxu0 0
        %5669 = vmatprep.mubr.bf16.mxu0 0
        %5670 = vmatmul.mubr.bf16.gmra.mrb[0].mxu0 %v5582
        %v5671 = vpop.f32.mrb[0].mxu0
        %v5672 = vadd.f32 0.0, %v5671
        %v5673 = vpop.f32.mrb[0].mxu0
        %v5674 = vadd.f32 0.0, %v5673
        %v5675 = vpop.f32.mrb[0].mxu0
        %v5676 = vpop.f32.mrb[0].mxu0
        %5677 = vdwg.mxu0
        %v5678 = vadd.f32 %v5560, %v5631
        %v5679 = vadd.f32 %v5561, %v5633
        %v5680 = vadd.f32 %v5562, %v5672
        %v5681 = vadd.f32 %v5563, %v5674
        %s5682 = scalar_lea.vmem %s3, 20
        %v5683 = vld [vmem:[%s5682] sm:$0xf]
        %5684 = vrot.lane.b32.xlu0 %v5112, 104
        %v5685 = vpop.permute.xlu0 %5684
        %5686 = vrot.lane.b32.xlu0 %v5113, 104
        %v5687 = vpop.permute.xlu0 %5686
        %5688 = vrot.lane.b32.xlu0 %v5114, 104
        %v5689 = vpop.permute.xlu0 %5688
        %5690 = vrot.lane.b32.xlu0 %v5115, 104
        %v5691 = vpop.permute.xlu0 %5690
        %5692 = vrot.lane.b32.xlu0 %v5116, 104
        %v5693 = vpop.permute.xlu0 %5692
        %vm5694 = vcmask 850944
        %v5695 = vsel %vm5694, %v5685, %v5687
        %v5696 = vsel %vm5694, %v5687, %v5689
        %v5697 = vsel %vm5694, %v5689, %v5691
        %v5698 = vsel %vm5694, %v5691, %v5693
        %v5700 = vsel %vm5132, %v5683, 0
        %v5703 = vsel %vm5136, %v5695, 0
        %v5706 = vsel %vm5136, %v5696, 0
        %v5709 = vsel %vm5136, %v5697, 0
        %v5712 = vsel %vm5136, %v5698, 0
        %5714 = vmatprep.subr.bf16.mxu0 %v5706
        %5715 = vmatpush1.bf16.msra.mxu0 %v5703
        %5716 = vmatprep.subr.bf16.mxu0 0
        %5717 = vmatpush1.bf16.msra.mxu0 0
        %5718 = vmatprep.subr.bf16.mxu0 0
        %5719 = vmatpush1.bf16.msra.mxu0 0
        %5720 = vmatprep.subr.bf16.mxu0 0
        %5721 = vmatpush1.bf16.msra.mxu0 0
        %5722 = vmatprep.subr.bf16.mxu0 0
        %5723 = vmatpush1.bf16.msra.mxu0 0
        %5724 = vmatprep.subr.bf16.mxu0 0
        %5725 = vmatpush1.bf16.msra.mxu0 0
        %5726 = vmatprep.subr.bf16.mxu0 0
        %5727 = vmatpush1.bf16.msra.mxu0 0
        %5728 = vmatprep.subr.bf16.mxu0 0
        %5729 = vmatpush1.bf16.msra.mxu0 0
        %5730 = vmatprep.subr.bf16.mxu0 0
        %5731 = vmatpush1.bf16.msra.mxu0 0
        %5732 = vmatprep.subr.bf16.mxu0 0
        %5733 = vmatpush1.bf16.msra.mxu0 0
        %5734 = vmatprep.subr.bf16.mxu0 0
        %5735 = vmatpush1.bf16.msra.mxu0 0
        %5736 = vmatprep.subr.bf16.mxu0 0
        %5737 = vmatpush1.bf16.msra.mxu0 0
        %5738 = vmatprep.subr.bf16.mxu0 0
        %5739 = vmatpush1.bf16.msra.mxu0 0
        %5740 = vmatprep.subr.bf16.mxu0 0
        %5741 = vmatpush1.bf16.msra.mxu0 0
        %5742 = vmatprep.subr.bf16.mxu0 0
        %5743 = vmatpush1.bf16.msra.mxu0 0
        %5744 = vmatprep.subr.bf16.mxu0 0
        %5745 = vmatpush1.bf16.msra.mxu0 0
        %5746 = vmatprep.mubr.bf16.mxu0 0
        %5747 = vmatmul.mubr.bf16.gmra.mrb[0].mxu0 %v5700
        %v5748 = vpop.f32.mrb[0].mxu0
        %v5749 = vadd.f32 0.0, %v5748
        %v5750 = vpop.f32.mrb[0].mxu0
        %v5751 = vadd.f32 0.0, %v5750
        %v5752 = vpop.f32.mrb[0].mxu0
        %v5753 = vpop.f32.mrb[0].mxu0
        %5754 = vdwg.mxu0
        %5755 = vmatprep.subr.bf16.mxu0 %v5712
        %5756 = vmatpush1.bf16.msra.mxu0 %v5709
        %5757 = vmatprep.subr.bf16.mxu0 0
        %5758 = vmatpush1.bf16.msra.mxu0 0
        %5759 = vmatprep.subr.bf16.mxu0 0
        %5760 = vmatpush1.bf16.msra.mxu0 0
        %5761 = vmatprep.subr.bf16.mxu0 0
        %5762 = vmatpush1.bf16.msra.mxu0 0
        %5763 = vmatprep.subr.bf16.mxu0 0
        %5764 = vmatpush1.bf16.msra.mxu0 0
        %5765 = vmatprep.subr.bf16.mxu0 0
        %5766 = vmatpush1.bf16.msra.mxu0 0
        %5767 = vmatprep.subr.bf16.mxu0 0
        %5768 = vmatpush1.bf16.msra.mxu0 0
        %5769 = vmatprep.subr.bf16.mxu0 0
        %5770 = vmatpush1.bf16.msra.mxu0 0
        %5771 = vmatprep.subr.bf16.mxu0 0
        %5772 = vmatpush1.bf16.msra.mxu0 0
        %5773 = vmatprep.subr.bf16.mxu0 0
        %5774 = vmatpush1.bf16.msra.mxu0 0
        %5775 = vmatprep.subr.bf16.mxu0 0
        %5776 = vmatpush1.bf16.msra.mxu0 0
        %5777 = vmatprep.subr.bf16.mxu0 0
        %5778 = vmatpush1.bf16.msra.mxu0 0
        %5779 = vmatprep.subr.bf16.mxu0 0
        %5780 = vmatpush1.bf16.msra.mxu0 0
        %5781 = vmatprep.subr.bf16.mxu0 0
        %5782 = vmatpush1.bf16.msra.mxu0 0
        %5783 = vmatprep.subr.bf16.mxu0 0
        %5784 = vmatpush1.bf16.msra.mxu0 0
        %5785 = vmatprep.subr.bf16.mxu0 0
        %5786 = vmatpush1.bf16.msra.mxu0 0
        %5787 = vmatprep.mubr.bf16.mxu0 0
        %5788 = vmatmul.mubr.bf16.gmra.mrb[0].mxu0 %v5700
        %v5789 = vpop.f32.mrb[0].mxu0
        %v5790 = vadd.f32 0.0, %v5789
        %v5791 = vpop.f32.mrb[0].mxu0
        %v5792 = vadd.f32 0.0, %v5791
        %v5793 = vpop.f32.mrb[0].mxu0
        %v5794 = vpop.f32.mrb[0].mxu0
        %5795 = vdwg.mxu0
        %v5796 = vadd.f32 %v5678, %v5749
        %v5797 = vadd.f32 %v5679, %v5751
        %v5798 = vadd.f32 %v5680, %v5790
        %v5799 = vadd.f32 %v5681, %v5792
        %s5800 = scalar_lea.vmem %s3, 24
        %v5801 = vld [vmem:[%s5800] sm:$0xf]
        %5802 = vrot.lane.b32.xlu0 %v5112, 103
        %v5803 = vpop.permute.xlu0 %5802
        %5804 = vrot.lane.b32.xlu0 %v5113, 103
        %v5805 = vpop.permute.xlu0 %5804
        %5806 = vrot.lane.b32.xlu0 %v5114, 103
        %v5807 = vpop.permute.xlu0 %5806
        %5808 = vrot.lane.b32.xlu0 %v5115, 103
        %v5809 = vpop.permute.xlu0 %5808
        %5810 = vrot.lane.b32.xlu0 %v5116, 103
        %v5811 = vpop.permute.xlu0 %5810
        %vm5812 = vcmask 842752
        %v5813 = vsel %vm5812, %v5803, %v5805
        %v5814 = vsel %vm5812, %v5805, %v5807
        %v5815 = vsel %vm5812, %v5807, %v5809
        %v5816 = vsel %vm5812, %v5809, %v5811
        %v5818 = vsel %vm5132, %v5801, 0
        %v5821 = vsel %vm5136, %v5813, 0
        %v5824 = vsel %vm5136, %v5814, 0
        %v5827 = vsel %vm5136, %v5815, 0
        %v5830 = vsel %vm5136, %v5816, 0
        %5832 = vmatprep.subr.bf16.mxu0 %v5824
        %5833 = vmatpush1.bf16.msra.mxu0 %v5821
        %5834 = vmatprep.subr.bf16.mxu0 0
        %5835 = vmatpush1.bf16.msra.mxu0 0
        %5836 = vmatprep.subr.bf16.mxu0 0
        %5837 = vmatpush1.bf16.msra.mxu0 0
        %5838 = vmatprep.subr.bf16.mxu0 0
        %5839 = vmatpush1.bf16.msra.mxu0 0
        %5840 = vmatprep.subr.bf16.mxu0 0
        %5841 = vmatpush1.bf16.msra.mxu0 0
        %5842 = vmatprep.subr.bf16.mxu0 0
        %5843 = vmatpush1.bf16.msra.mxu0 0
        %5844 = vmatprep.subr.bf16.mxu0 0
        %5845 = vmatpush1.bf16.msra.mxu0 0
        %5846 = vmatprep.subr.bf16.mxu0 0
        %5847 = vmatpush1.bf16.msra.mxu0 0
        %5848 = vmatprep.subr.bf16.mxu0 0
        %5849 = vmatpush1.bf16.msra.mxu0 0
        %5850 = vmatprep.subr.bf16.mxu0 0
        %5851 = vmatpush1.bf16.msra.mxu0 0
        %5852 = vmatprep.subr.bf16.mxu0 0
        %5853 = vmatpush1.bf16.msra.mxu0 0
        %5854 = vmatprep.subr.bf16.mxu0 0
        %5855 = vmatpush1.bf16.msra.mxu0 0
        %5856 = vmatprep.subr.bf16.mxu0 0
        %5857 = vmatpush1.bf16.msra.mxu0 0
        %5858 = vmatprep.subr.bf16.mxu0 0
        %5859 = vmatpush1.bf16.msra.mxu0 0
        %5860 = vmatprep.subr.bf16.mxu0 0
        %5861 = vmatpush1.bf16.msra.mxu0 0
        %5862 = vmatprep.subr.bf16.mxu0 0
        %5863 = vmatpush1.bf16.msra.mxu0 0
        %5864 = vmatprep.mubr.bf16.mxu0 0
        %5865 = vmatmul.mubr.bf16.gmra.mrb[0].mxu0 %v5818
        %v5866 = vpop.f32.mrb[0].mxu0
        %v5867 = vadd.f32 0.0, %v5866
        %v5868 = vpop.f32.mrb[0].mxu0
        %v5869 = vadd.f32 0.0, %v5868
        %v5870 = vpop.f32.mrb[0].mxu0
        %v5871 = vpop.f32.mrb[0].mxu0
        %5872 = vdwg.mxu0
        %5873 = vmatprep.subr.bf16.mxu0 %v5830
        %5874 = vmatpush1.bf16.msra.mxu0 %v5827
        %5875 = vmatprep.subr.bf16.mxu0 0
        %5876 = vmatpush1.bf16.msra.mxu0 0
        %5877 = vmatprep.subr.bf16.mxu0 0
        %5878 = vmatpush1.bf16.msra.mxu0 0
        %5879 = vmatprep.subr.bf16.mxu0 0
        %5880 = vmatpush1.bf16.msra.mxu0 0
        %5881 = vmatprep.subr.bf16.mxu0 0
        %5882 = vmatpush1.bf16.msra.mxu0 0
        %5883 = vmatprep.subr.bf16.mxu0 0
        %5884 = vmatpush1.bf16.msra.mxu0 0
        %5885 = vmatprep.subr.bf16.mxu0 0
        %5886 = vmatpush1.bf16.msra.mxu0 0
        %5887 = vmatprep.subr.bf16.mxu0 0
        %5888 = vmatpush1.bf16.msra.mxu0 0
        %5889 = vmatprep.subr.bf16.mxu0 0
        %5890 = vmatpush1.bf16.msra.mxu0 0
        %5891 = vmatprep.subr.bf16.mxu0 0
        %5892 = vmatpush1.bf16.msra.mxu0 0
        %5893 = vmatprep.subr.bf16.mxu0 0
        %5894 = vmatpush1.bf16.msra.mxu0 0
        %5895 = vmatprep.subr.bf16.mxu0 0
        %5896 = vmatpush1.bf16.msra.mxu0 0
        %5897 = vmatprep.subr.bf16.mxu0 0
        %5898 = vmatpush1.bf16.msra.mxu0 0
        %5899 = vmatprep.subr.bf16.mxu0 0
        %5900 = vmatpush1.bf16.msra.mxu0 0
        %5901 = vmatprep.subr.bf16.mxu0 0
        %5902 = vmatpush1.bf16.msra.mxu0 0
        %5903 = vmatprep.subr.bf16.mxu0 0
        %5904 = vmatpush1.bf16.msra.mxu0 0
        %5905 = vmatprep.mubr.bf16.mxu0 0
        %5906 = vmatmul.mubr.bf16.gmra.mrb[0].mxu0 %v5818
        %v5907 = vpop.f32.mrb[0].mxu0
        %v5908 = vadd.f32 0.0, %v5907
        %v5909 = vpop.f32.mrb[0].mxu0
        %v5910 = vadd.f32 0.0, %v5909
        %v5911 = vpop.f32.mrb[0].mxu0
        %v5912 = vpop.f32.mrb[0].mxu0
        %5913 = vdwg.mxu0
        %v5914 = vadd.f32 %v5796, %v5867
        %v5915 = vadd.f32 %v5797, %v5869
        %v5916 = vadd.f32 %v5798, %v5908
        %v5917 = vadd.f32 %v5799, %v5910
        %s5918 = scalar_lea.vmem %s3, 28
        %v5919 = vld [vmem:[%s5918] sm:$0xf]
        %5920 = vrot.lane.b32.xlu0 %v5112, 102
        %v5921 = vpop.permute.xlu0 %5920
        %5922 = vrot.lane.b32.xlu0 %v5113, 102
        %v5923 = vpop.permute.xlu0 %5922
        %5924 = vrot.lane.b32.xlu0 %v5114, 102
        %v5925 = vpop.permute.xlu0 %5924
        %5926 = vrot.lane.b32.xlu0 %v5115, 102
        %v5927 = vpop.permute.xlu0 %5926
        %5928 = vrot.lane.b32.xlu0 %v5116, 102
        %v5929 = vpop.permute.xlu0 %5928
        %vm5930 = vcmask 834560
        %v5931 = vsel %vm5930, %v5921, %v5923
        %v5932 = vsel %vm5930, %v5923, %v5925
        %v5933 = vsel %vm5930, %v5925, %v5927
        %v5934 = vsel %vm5930, %v5927, %v5929
        %v5936 = vsel %vm5132, %v5919, 0
        %v5939 = vsel %vm5136, %v5931, 0
        %v5942 = vsel %vm5136, %v5932, 0
        %v5945 = vsel %vm5136, %v5933, 0
        %v5948 = vsel %vm5136, %v5934, 0
        %5950 = vmatprep.subr.bf16.mxu0 %v5942
        %5951 = vmatpush1.bf16.msra.mxu0 %v5939
        %5952 = vmatprep.subr.bf16.mxu0 0
        %5953 = vmatpush1.bf16.msra.mxu0 0
        %5954 = vmatprep.subr.bf16.mxu0 0
        %5955 = vmatpush1.bf16.msra.mxu0 0
        %5956 = vmatprep.subr.bf16.mxu0 0
        %5957 = vmatpush1.bf16.msra.mxu0 0
        %5958 = vmatprep.subr.bf16.mxu0 0
        %5959 = vmatpush1.bf16.msra.mxu0 0
        %5960 = vmatprep.subr.bf16.mxu0 0
        %5961 = vmatpush1.bf16.msra.mxu0 0
        %5962 = vmatprep.subr.bf16.mxu0 0
        %5963 = vmatpush1.bf16.msra.mxu0 0
        %5964 = vmatprep.subr.bf16.mxu0 0
        %5965 = vmatpush1.bf16.msra.mxu0 0
        %5966 = vmatprep.subr.bf16.mxu0 0
        %5967 = vmatpush1.bf16.msra.mxu0 0
        %5968 = vmatprep.subr.bf16.mxu0 0
        %5969 = vmatpush1.bf16.msra.mxu0 0
        %5970 = vmatprep.subr.bf16.mxu0 0
        %5971 = vmatpush1.bf16.msra.mxu0 0
        %5972 = vmatprep.subr.bf16.mxu0 0
        %5973 = vmatpush1.bf16.msra.mxu0 0
        %5974 = vmatprep.subr.bf16.mxu0 0
        %5975 = vmatpush1.bf16.msra.mxu0 0
        %5976 = vmatprep.subr.bf16.mxu0 0
        %5977 = vmatpush1.bf16.msra.mxu0 0
        %5978 = vmatprep.subr.bf16.mxu0 0
        %5979 = vmatpush1.bf16.msra.mxu0 0
        %5980 = vmatprep.subr.bf16.mxu0 0
        %5981 = vmatpush1.bf16.msra.mxu0 0
        %5982 = vmatprep.mubr.bf16.mxu0 0
        %5983 = vmatmul.mubr.bf16.gmra.mrb[0].mxu0 %v5936
        %v5984 = vpop.f32.mrb[0].mxu0
        %v5985 = vadd.f32 0.0, %v5984
        %v5986 = vpop.f32.mrb[0].mxu0
        %v5987 = vadd.f32 0.0, %v5986
        %v5988 = vpop.f32.mrb[0].mxu0
        %v5989 = vpop.f32.mrb[0].mxu0
        %5990 = vdwg.mxu0
        %5991 = vmatprep.subr.bf16.mxu0 %v5948
        %5992 = vmatpush1.bf16.msra.mxu0 %v5945
        %5993 = vmatprep.subr.bf16.mxu0 0
        %5994 = vmatpush1.bf16.msra.mxu0 0
        %5995 = vmatprep.subr.bf16.mxu0 0
        %5996 = vmatpush1.bf16.msra.mxu0 0
        %5997 = vmatprep.subr.bf16.mxu0 0
        %5998 = vmatpush1.bf16.msra.mxu0 0
        %5999 = vmatprep.subr.bf16.mxu0 0
        %6000 = vmatpush1.bf16.msra.mxu0 0
        %6001 = vmatprep.subr.bf16.mxu0 0
        %6002 = vmatpush1.bf16.msra.mxu0 0
        %6003 = vmatprep.subr.bf16.mxu0 0
        %6004 = vmatpush1.bf16.msra.mxu0 0
        %6005 = vmatprep.subr.bf16.mxu0 0
        %6006 = vmatpush1.bf16.msra.mxu0 0
        %6007 = vmatprep.subr.bf16.mxu0 0
        %6008 = vmatpush1.bf16.msra.mxu0 0
        %6009 = vmatprep.subr.bf16.mxu0 0
        %6010 = vmatpush1.bf16.msra.mxu0 0
        %6011 = vmatprep.subr.bf16.mxu0 0
        %6012 = vmatpush1.bf16.msra.mxu0 0
        %6013 = vmatprep.subr.bf16.mxu0 0
        %6014 = vmatpush1.bf16.msra.mxu0 0
        %6015 = vmatprep.subr.bf16.mxu0 0
        %6016 = vmatpush1.bf16.msra.mxu0 0
        %6017 = vmatprep.subr.bf16.mxu0 0
        %6018 = vmatpush1.bf16.msra.mxu0 0
        %6019 = vmatprep.subr.bf16.mxu0 0
        %6020 = vmatpush1.bf16.msra.mxu0 0
        %6021 = vmatprep.subr.bf16.mxu0 0
        %6022 = vmatpush1.bf16.msra.mxu0 0
        %6023 = vmatprep.mubr.bf16.mxu0 0
        %6024 = vmatmul.mubr.bf16.gmra.mrb[0].mxu0 %v5936
        %v6025 = vpop.f32.mrb[0].mxu0
        %v6026 = vadd.f32 0.0, %v6025
        %v6027 = vpop.f32.mrb[0].mxu0
        %v6028 = vadd.f32 0.0, %v6027
        %v6029 = vpop.f32.mrb[0].mxu0
        %v6030 = vpop.f32.mrb[0].mxu0
        %6031 = vdwg.mxu0
        %v6032 = vadd.f32 %v5914, %v5985
        %v6033 = vadd.f32 %v5915, %v5987
        %v6034 = vadd.f32 %v5916, %v6026
        %v6035 = vadd.f32 %v5917, %v6028
        %s6036 = scalar_lea.vmem %s3, 32
        %v6037 = vld [vmem:[%s6036] sm:$0xf]
        %6038 = vrot.lane.b32.xlu0 %v5112, 101
        %v6039 = vpop.permute.xlu0 %6038
        %6040 = vrot.lane.b32.xlu0 %v5113, 101
        %v6041 = vpop.permute.xlu0 %6040
        %6042 = vrot.lane.b32.xlu0 %v5114, 101
        %v6043 = vpop.permute.xlu0 %6042
        %6044 = vrot.lane.b32.xlu0 %v5115, 101
        %v6045 = vpop.permute.xlu0 %6044
        %6046 = vrot.lane.b32.xlu0 %v5116, 101
        %v6047 = vpop.permute.xlu0 %6046
        %vm6048 = vcmask 826368
        %v6049 = vsel %vm6048, %v6039, %v6041
        %v6050 = vsel %vm6048, %v6041, %v6043
        %v6051 = vsel %vm6048, %v6043, %v6045
        %v6052 = vsel %vm6048, %v6045, %v6047
        %v6054 = vsel %vm5132, %v6037, 0
        %v6057 = vsel %vm5136, %v6049, 0
        %v6060 = vsel %vm5136, %v6050, 0
        %v6063 = vsel %vm5136, %v6051, 0
        %v6066 = vsel %vm5136, %v6052, 0
        %6068 = vmatprep.subr.bf16.mxu0 %v6060
        %6069 = vmatpush1.bf16.msra.mxu0 %v6057
        %6070 = vmatprep.subr.bf16.mxu0 0
        %6071 = vmatpush1.bf16.msra.mxu0 0
        %6072 = vmatprep.subr.bf16.mxu0 0
        %6073 = vmatpush1.bf16.msra.mxu0 0
        %6074 = vmatprep.subr.bf16.mxu0 0
        %6075 = vmatpush1.bf16.msra.mxu0 0
        %6076 = vmatprep.subr.bf16.mxu0 0
        %6077 = vmatpush1.bf16.msra.mxu0 0
        %6078 = vmatprep.subr.bf16.mxu0 0
        %6079 = vmatpush1.bf16.msra.mxu0 0
        %6080 = vmatprep.subr.bf16.mxu0 0
        %6081 = vmatpush1.bf16.msra.mxu0 0
        %6082 = vmatprep.subr.bf16.mxu0 0
        %6083 = vmatpush1.bf16.msra.mxu0 0
        %6084 = vmatprep.subr.bf16.mxu0 0
        %6085 = vmatpush1.bf16.msra.mxu0 0
        %6086 = vmatprep.subr.bf16.mxu0 0
        %6087 = vmatpush1.bf16.msra.mxu0 0
        %6088 = vmatprep.subr.bf16.mxu0 0
        %6089 = vmatpush1.bf16.msra.mxu0 0
        %6090 = vmatprep.subr.bf16.mxu0 0
        %6091 = vmatpush1.bf16.msra.mxu0 0
        %6092 = vmatprep.subr.bf16.mxu0 0
        %6093 = vmatpush1.bf16.msra.mxu0 0
        %6094 = vmatprep.subr.bf16.mxu0 0
        %6095 = vmatpush1.bf16.msra.mxu0 0
        %6096 = vmatprep.subr.bf16.mxu0 0
        %6097 = vmatpush1.bf16.msra.mxu0 0
        %6098 = vmatprep.subr.bf16.mxu0 0
        %6099 = vmatpush1.bf16.msra.mxu0 0
        %6100 = vmatprep.mubr.bf16.mxu0 0
        %6101 = vmatmul.mubr.bf16.gmra.mrb[0].mxu0 %v6054
        %v6102 = vpop.f32.mrb[0].mxu0
        %v6103 = vadd.f32 0.0, %v6102
        %v6104 = vpop.f32.mrb[0].mxu0
        %v6105 = vadd.f32 0.0, %v6104
        %v6106 = vpop.f32.mrb[0].mxu0
        %v6107 = vpop.f32.mrb[0].mxu0
        %6108 = vdwg.mxu0
        %6109 = vmatprep.subr.bf16.mxu0 %v6066
        %6110 = vmatpush1.bf16.msra.mxu0 %v6063
        %6111 = vmatprep.subr.bf16.mxu0 0
        %6112 = vmatpush1.bf16.msra.mxu0 0
        %6113 = vmatprep.subr.bf16.mxu0 0
        %6114 = vmatpush1.bf16.msra.mxu0 0
        %6115 = vmatprep.subr.bf16.mxu0 0
        %6116 = vmatpush1.bf16.msra.mxu0 0
        %6117 = vmatprep.subr.bf16.mxu0 0
        %6118 = vmatpush1.bf16.msra.mxu0 0
        %6119 = vmatprep.subr.bf16.mxu0 0
        %6120 = vmatpush1.bf16.msra.mxu0 0
        %6121 = vmatprep.subr.bf16.mxu0 0
        %6122 = vmatpush1.bf16.msra.mxu0 0
        %6123 = vmatprep.subr.bf16.mxu0 0
        %6124 = vmatpush1.bf16.msra.mxu0 0
        %6125 = vmatprep.subr.bf16.mxu0 0
        %6126 = vmatpush1.bf16.msra.mxu0 0
        %6127 = vmatprep.subr.bf16.mxu0 0
        %6128 = vmatpush1.bf16.msra.mxu0 0
        %6129 = vmatprep.subr.bf16.mxu0 0
        %6130 = vmatpush1.bf16.msra.mxu0 0
        %6131 = vmatprep.subr.bf16.mxu0 0
        %6132 = vmatpush1.bf16.msra.mxu0 0
        %6133 = vmatprep.subr.bf16.mxu0 0
        %6134 = vmatpush1.bf16.msra.mxu0 0
        %6135 = vmatprep.subr.bf16.mxu0 0
        %6136 = vmatpush1.bf16.msra.mxu0 0
        %6137 = vmatprep.subr.bf16.mxu0 0
        %6138 = vmatpush1.bf16.msra.mxu0 0
        %6139 = vmatprep.subr.bf16.mxu0 0
        %6140 = vmatpush1.bf16.msra.mxu0 0
        %6141 = vmatprep.mubr.bf16.mxu0 0
        %6142 = vmatmul.mubr.bf16.gmra.mrb[0].mxu0 %v6054
        %v6143 = vpop.f32.mrb[0].mxu0
        %v6144 = vadd.f32 0.0, %v6143
        %v6145 = vpop.f32.mrb[0].mxu0
        %v6146 = vadd.f32 0.0, %v6145
        %v6147 = vpop.f32.mrb[0].mxu0
        %v6148 = vpop.f32.mrb[0].mxu0
        %6149 = vdwg.mxu0
        %v6150 = vadd.f32 %v6032, %v6103
        %v6151 = vadd.f32 %v6033, %v6105
        %v6152 = vadd.f32 %v6034, %v6144
        %v6153 = vadd.f32 %v6035, %v6146
        %s6154 = scalar_lea.vmem %s3, 36
        %v6155 = vld [vmem:[%s6154] sm:$0xf]
        %6156 = vrot.lane.b32.xlu0 %v5112, 100
        %v6157 = vpop.permute.xlu0 %6156
        %6158 = vrot.lane.b32.xlu0 %v5113, 100
        %v6159 = vpop.permute.xlu0 %6158
        %6160 = vrot.lane.b32.xlu0 %v5114, 100
        %v6161 = vpop.permute.xlu0 %6160
        %6162 = vrot.lane.b32.xlu0 %v5115, 100
        %v6163 = vpop.permute.xlu0 %6162
        %6164 = vrot.lane.b32.xlu0 %v5116, 100
        %v6165 = vpop.permute.xlu0 %6164
        %vm6166 = vcmask 818176
        %v6167 = vsel %vm6166, %v6157, %v6159
        %v6168 = vsel %vm6166, %v6159, %v6161
        %v6169 = vsel %vm6166, %v6161, %v6163
        %v6170 = vsel %vm6166, %v6163, %v6165
        %v6172 = vsel %vm5132, %v6155, 0
        %v6175 = vsel %vm5136, %v6167, 0
        %v6178 = vsel %vm5136, %v6168, 0
        %v6181 = vsel %vm5136, %v6169, 0
        %v6184 = vsel %vm5136, %v6170, 0
        %6186 = vmatprep.subr.bf16.mxu0 %v6178
        %6187 = vmatpush1.bf16.msra.mxu0 %v6175
        %6188 = vmatprep.subr.bf16.mxu0 0
        %6189 = vmatpush1.bf16.msra.mxu0 0
        %6190 = vmatprep.subr.bf16.mxu0 0
        %6191 = vmatpush1.bf16.msra.mxu0 0
        %6192 = vmatprep.subr.bf16.mxu0 0
        %6193 = vmatpush1.bf16.msra.mxu0 0
        %6194 = vmatprep.subr.bf16.mxu0 0
        %6195 = vmatpush1.bf16.msra.mxu0 0
        %6196 = vmatprep.subr.bf16.mxu0 0
        %6197 = vmatpush1.bf16.msra.mxu0 0
        %6198 = vmatprep.subr.bf16.mxu0 0
        %6199 = vmatpush1.bf16.msra.mxu0 0
        %6200 = vmatprep.subr.bf16.mxu0 0
        %6201 = vmatpush1.bf16.msra.mxu0 0
        %6202 = vmatprep.subr.bf16.mxu0 0
        %6203 = vmatpush1.bf16.msra.mxu0 0
        %6204 = vmatprep.subr.bf16.mxu0 0
        %6205 = vmatpush1.bf16.msra.mxu0 0
        %6206 = vmatprep.subr.bf16.mxu0 0
        %6207 = vmatpush1.bf16.msra.mxu0 0
        %6208 = vmatprep.subr.bf16.mxu0 0
        %6209 = vmatpush1.bf16.msra.mxu0 0
        %6210 = vmatprep.subr.bf16.mxu0 0
        %6211 = vmatpush1.bf16.msra.mxu0 0
        %6212 = vmatprep.subr.bf16.mxu0 0
        %6213 = vmatpush1.bf16.msra.mxu0 0
        %6214 = vmatprep.subr.bf16.mxu0 0
        %6215 = vmatpush1.bf16.msra.mxu0 0
        %6216 = vmatprep.subr.bf16.mxu0 0
        %6217 = vmatpush1.bf16.msra.mxu0 0
        %6218 = vmatprep.mubr.bf16.mxu0 0
        %6219 = vmatmul.mubr.bf16.gmra.mrb[0].mxu0 %v6172
        %v6220 = vpop.f32.mrb[0].mxu0
        %v6221 = vadd.f32 0.0, %v6220
        %v6222 = vpop.f32.mrb[0].mxu0
        %v6223 = vadd.f32 0.0, %v6222
        %v6224 = vpop.f32.mrb[0].mxu0
        %v6225 = vpop.f32.mrb[0].mxu0
        %6226 = vdwg.mxu0
        %6227 = vmatprep.subr.bf16.mxu0 %v6184
        %6228 = vmatpush1.bf16.msra.mxu0 %v6181
        %6229 = vmatprep.subr.bf16.mxu0 0
        %6230 = vmatpush1.bf16.msra.mxu0 0
        %6231 = vmatprep.subr.bf16.mxu0 0
        %6232 = vmatpush1.bf16.msra.mxu0 0
        %6233 = vmatprep.subr.bf16.mxu0 0
        %6234 = vmatpush1.bf16.msra.mxu0 0
        %6235 = vmatprep.subr.bf16.mxu0 0
        %6236 = vmatpush1.bf16.msra.mxu0 0
        %6237 = vmatprep.subr.bf16.mxu0 0
        %6238 = vmatpush1.bf16.msra.mxu0 0
        %6239 = vmatprep.subr.bf16.mxu0 0
        %6240 = vmatpush1.bf16.msra.mxu0 0
        %6241 = vmatprep.subr.bf16.mxu0 0
        %6242 = vmatpush1.bf16.msra.mxu0 0
        %6243 = vmatprep.subr.bf16.mxu0 0
        %6244 = vmatpush1.bf16.msra.mxu0 0
        %6245 = vmatprep.subr.bf16.mxu0 0
        %6246 = vmatpush1.bf16.msra.mxu0 0
        %6247 = vmatprep.subr.bf16.mxu0 0
        %6248 = vmatpush1.bf16.msra.mxu0 0
        %6249 = vmatprep.subr.bf16.mxu0 0
        %6250 = vmatpush1.bf16.msra.mxu0 0
        %6251 = vmatprep.subr.bf16.mxu0 0
        %6252 = vmatpush1.bf16.msra.mxu0 0
        %6253 = vmatprep.subr.bf16.mxu0 0
        %6254 = vmatpush1.bf16.msra.mxu0 0
        %6255 = vmatprep.subr.bf16.mxu0 0
        %6256 = vmatpush1.bf16.msra.mxu0 0
        %6257 = vmatprep.subr.bf16.mxu0 0
        %6258 = vmatpush1.bf16.msra.mxu0 0
        %6259 = vmatprep.mubr.bf16.mxu0 0
        %6260 = vmatmul.mubr.bf16.gmra.mrb[0].mxu0 %v6172
        %v6261 = vpop.f32.mrb[0].mxu0
        %v6262 = vadd.f32 0.0, %v6261
        %v6263 = vpop.f32.mrb[0].mxu0
        %v6264 = vadd.f32 0.0, %v6263
        %v6265 = vpop.f32.mrb[0].mxu0
        %v6266 = vpop.f32.mrb[0].mxu0
        %6267 = vdwg.mxu0
        %v6268 = vadd.f32 %v6150, %v6221
        %v6269 = vadd.f32 %v6151, %v6223
        %v6270 = vadd.f32 %v6152, %v6262
        %v6271 = vadd.f32 %v6153, %v6264
        %s6272 = scalar_lea.vmem %s3, 40
        %v6273 = vld [vmem:[%s6272] sm:$0xf]
        %6274 = vrot.lane.b32.xlu0 %v5112, 80
        %v6275 = vpop.permute.xlu0 %6274
        %6276 = vrot.lane.b32.xlu0 %v5113, 80
        %v6277 = vpop.permute.xlu0 %6276
        %6278 = vrot.lane.b32.xlu0 %v5114, 80
        %v6279 = vpop.permute.xlu0 %6278
        %6280 = vrot.lane.b32.xlu0 %v5115, 80
        %v6281 = vpop.permute.xlu0 %6280
        %6282 = vrot.lane.b32.xlu0 %v5116, 80
        %v6283 = vpop.permute.xlu0 %6282
        %vm6284 = vcmask 654336
        %v6285 = vsel %vm6284, %v6275, %v6277
        %v6286 = vsel %vm6284, %v6277, %v6279
        %v6287 = vsel %vm6284, %v6279, %v6281
        %v6288 = vsel %vm6284, %v6281, %v6283
        %v6290 = vsel %vm5132, %v6273, 0
        %v6293 = vsel %vm5136, %v6285, 0
        %v6296 = vsel %vm5136, %v6286, 0
        %v6299 = vsel %vm5136, %v6287, 0
        %v6302 = vsel %vm5136, %v6288, 0
        %6304 = vmatprep.subr.bf16.mxu0 %v6296
        %6305 = vmatpush1.bf16.msra.mxu0 %v6293
        %6306 = vmatprep.subr.bf16.mxu0 0
        %6307 = vmatpush1.bf16.msra.mxu0 0
        %6308 = vmatprep.subr.bf16.mxu0 0
        %6309 = vmatpush1.bf16.msra.mxu0 0
        %6310 = vmatprep.subr.bf16.mxu0 0
        %6311 = vmatpush1.bf16.msra.mxu0 0
        %6312 = vmatprep.subr.bf16.mxu0 0
        %6313 = vmatpush1.bf16.msra.mxu0 0
        %6314 = vmatprep.subr.bf16.mxu0 0
        %6315 = vmatpush1.bf16.msra.mxu0 0
        %6316 = vmatprep.subr.bf16.mxu0 0
        %6317 = vmatpush1.bf16.msra.mxu0 0
        %6318 = vmatprep.subr.bf16.mxu0 0
        %6319 = vmatpush1.bf16.msra.mxu0 0
        %6320 = vmatprep.subr.bf16.mxu0 0
        %6321 = vmatpush1.bf16.msra.mxu0 0
        %6322 = vmatprep.subr.bf16.mxu0 0
        %6323 = vmatpush1.bf16.msra.mxu0 0
        %6324 = vmatprep.subr.bf16.mxu0 0
        %6325 = vmatpush1.bf16.msra.mxu0 0
        %6326 = vmatprep.subr.bf16.mxu0 0
        %6327 = vmatpush1.bf16.msra.mxu0 0
        %6328 = vmatprep.subr.bf16.mxu0 0
        %6329 = vmatpush1.bf16.msra.mxu0 0
        %6330 = vmatprep.subr.bf16.mxu0 0
        %6331 = vmatpush1.bf16.msra.mxu0 0
        %6332 = vmatprep.subr.bf16.mxu0 0
        %6333 = vmatpush1.bf16.msra.mxu0 0
        %6334 = vmatprep.subr.bf16.mxu0 0
        %6335 = vmatpush1.bf16.msra.mxu0 0
        %6336 = vmatprep.mubr.bf16.mxu0 0
        %6337 = vmatmul.mubr.bf16.gmra.mrb[0].mxu0 %v6290
        %v6338 = vpop.f32.mrb[0].mxu0
        %v6339 = vadd.f32 0.0, %v6338
        %v6340 = vpop.f32.mrb[0].mxu0
        %v6341 = vadd.f32 0.0, %v6340
        %v6342 = vpop.f32.mrb[0].mxu0
        %v6343 = vpop.f32.mrb[0].mxu0
        %6344 = vdwg.mxu0
        %6345 = vmatprep.subr.bf16.mxu0 %v6302
        %6346 = vmatpush1.bf16.msra.mxu0 %v6299
        %6347 = vmatprep.subr.bf16.mxu0 0
        %6348 = vmatpush1.bf16.msra.mxu0 0
        %6349 = vmatprep.subr.bf16.mxu0 0
        %6350 = vmatpush1.bf16.msra.mxu0 0
        %6351 = vmatprep.subr.bf16.mxu0 0
        %6352 = vmatpush1.bf16.msra.mxu0 0
        %6353 = vmatprep.subr.bf16.mxu0 0
        %6354 = vmatpush1.bf16.msra.mxu0 0
        %6355 = vmatprep.subr.bf16.mxu0 0
        %6356 = vmatpush1.bf16.msra.mxu0 0
        %6357 = vmatprep.subr.bf16.mxu0 0
        %6358 = vmatpush1.bf16.msra.mxu0 0
        %6359 = vmatprep.subr.bf16.mxu0 0
        %6360 = vmatpush1.bf16.msra.mxu0 0
        %6361 = vmatprep.subr.bf16.mxu0 0
        %6362 = vmatpush1.bf16.msra.mxu0 0
        %6363 = vmatprep.subr.bf16.mxu0 0
        %6364 = vmatpush1.bf16.msra.mxu0 0
        %6365 = vmatprep.subr.bf16.mxu0 0
        %6366 = vmatpush1.bf16.msra.mxu0 0
        %6367 = vmatprep.subr.bf16.mxu0 0
        %6368 = vmatpush1.bf16.msra.mxu0 0
        %6369 = vmatprep.subr.bf16.mxu0 0
        %6370 = vmatpush1.bf16.msra.mxu0 0
        %6371 = vmatprep.subr.bf16.mxu0 0
        %6372 = vmatpush1.bf16.msra.mxu0 0
        %6373 = vmatprep.subr.bf16.mxu0 0
        %6374 = vmatpush1.bf16.msra.mxu0 0
        %6375 = vmatprep.subr.bf16.mxu0 0
        %6376 = vmatpush1.bf16.msra.mxu0 0
        %6377 = vmatprep.mubr.bf16.mxu0 0
        %6378 = vmatmul.mubr.bf16.gmra.mrb[0].mxu0 %v6290
        %v6379 = vpop.f32.mrb[0].mxu0
        %v6380 = vadd.f32 0.0, %v6379
        %v6381 = vpop.f32.mrb[0].mxu0
        %v6382 = vadd.f32 0.0, %v6381
        %v6383 = vpop.f32.mrb[0].mxu0
        %v6384 = vpop.f32.mrb[0].mxu0
        %6385 = vdwg.mxu0
        %v6386 = vadd.f32 %v6268, %v6339
        %v6387 = vadd.f32 %v6269, %v6341
        %v6388 = vadd.f32 %v6270, %v6380
        %v6389 = vadd.f32 %v6271, %v6382
        %s6390 = scalar_lea.vmem %s3, 44
        %v6391 = vld [vmem:[%s6390] sm:$0xf]
        %6392 = vrot.lane.b32.xlu0 %v5112, 79
        %v6393 = vpop.permute.xlu0 %6392
        %6394 = vrot.lane.b32.xlu0 %v5113, 79
        %v6395 = vpop.permute.xlu0 %6394
        %6396 = vrot.lane.b32.xlu0 %v5114, 79
        %v6397 = vpop.permute.xlu0 %6396
        %6398 = vrot.lane.b32.xlu0 %v5115, 79
        %v6399 = vpop.permute.xlu0 %6398
        %6400 = vrot.lane.b32.xlu0 %v5116, 79
        %v6401 = vpop.permute.xlu0 %6400
        %vm6402 = vcmask 646144
        %v6403 = vsel %vm6402, %v6393, %v6395
        %v6404 = vsel %vm6402, %v6395, %v6397
        %v6405 = vsel %vm6402, %v6397, %v6399
        %v6406 = vsel %vm6402, %v6399, %v6401
        %v6408 = vsel %vm5132, %v6391, 0
        %v6411 = vsel %vm5136, %v6403, 0
        %v6414 = vsel %vm5136, %v6404, 0
        %v6417 = vsel %vm5136, %v6405, 0
        %v6420 = vsel %vm5136, %v6406, 0
        %6422 = vmatprep.subr.bf16.mxu0 %v6414
        %6423 = vmatpush1.bf16.msra.mxu0 %v6411
        %6424 = vmatprep.subr.bf16.mxu0 0
        %6425 = vmatpush1.bf16.msra.mxu0 0
        %6426 = vmatprep.subr.bf16.mxu0 0
        %6427 = vmatpush1.bf16.msra.mxu0 0
        %6428 = vmatprep.subr.bf16.mxu0 0
        %6429 = vmatpush1.bf16.msra.mxu0 0
        %6430 = vmatprep.subr.bf16.mxu0 0
        %6431 = vmatpush1.bf16.msra.mxu0 0
        %6432 = vmatprep.subr.bf16.mxu0 0
        %6433 = vmatpush1.bf16.msra.mxu0 0
        %6434 = vmatprep.subr.bf16.mxu0 0
        %6435 = vmatpush1.bf16.msra.mxu0 0
        %6436 = vmatprep.subr.bf16.mxu0 0
        %6437 = vmatpush1.bf16.msra.mxu0 0
        %6438 = vmatprep.subr.bf16.mxu0 0
        %6439 = vmatpush1.bf16.msra.mxu0 0
        %6440 = vmatprep.subr.bf16.mxu0 0
        %6441 = vmatpush1.bf16.msra.mxu0 0
        %6442 = vmatprep.subr.bf16.mxu0 0
        %6443 = vmatpush1.bf16.msra.mxu0 0
        %6444 = vmatprep.subr.bf16.mxu0 0
        %6445 = vmatpush1.bf16.msra.mxu0 0
        %6446 = vmatprep.subr.bf16.mxu0 0
        %6447 = vmatpush1.bf16.msra.mxu0 0
        %6448 = vmatprep.subr.bf16.mxu0 0
        %6449 = vmatpush1.bf16.msra.mxu0 0
        %6450 = vmatprep.subr.bf16.mxu0 0
        %6451 = vmatpush1.bf16.msra.mxu0 0
        %6452 = vmatprep.subr.bf16.mxu0 0
        %6453 = vmatpush1.bf16.msra.mxu0 0
        %6454 = vmatprep.mubr.bf16.mxu0 0
        %6455 = vmatmul.mubr.bf16.gmra.mrb[0].mxu0 %v6408
        %v6456 = vpop.f32.mrb[0].mxu0
        %v6457 = vadd.f32 0.0, %v6456
        %v6458 = vpop.f32.mrb[0].mxu0
        %v6459 = vadd.f32 0.0, %v6458
        %v6460 = vpop.f32.mrb[0].mxu0
        %v6461 = vpop.f32.mrb[0].mxu0
        %6462 = vdwg.mxu0
        %6463 = vmatprep.subr.bf16.mxu0 %v6420
        %6464 = vmatpush1.bf16.msra.mxu0 %v6417
        %6465 = vmatprep.subr.bf16.mxu0 0
        %6466 = vmatpush1.bf16.msra.mxu0 0
        %6467 = vmatprep.subr.bf16.mxu0 0
        %6468 = vmatpush1.bf16.msra.mxu0 0
        %6469 = vmatprep.subr.bf16.mxu0 0
        %6470 = vmatpush1.bf16.msra.mxu0 0
        %6471 = vmatprep.subr.bf16.mxu0 0
        %6472 = vmatpush1.bf16.msra.mxu0 0
        %6473 = vmatprep.subr.bf16.mxu0 0
        %6474 = vmatpush1.bf16.msra.mxu0 0
        %6475 = vmatprep.subr.bf16.mxu0 0
        %6476 = vmatpush1.bf16.msra.mxu0 0
        %6477 = vmatprep.subr.bf16.mxu0 0
        %6478 = vmatpush1.bf16.msra.mxu0 0
        %6479 = vmatprep.subr.bf16.mxu0 0
        %6480 = vmatpush1.bf16.msra.mxu0 0
        %6481 = vmatprep.subr.bf16.mxu0 0
        %6482 = vmatpush1.bf16.msra.mxu0 0
        %6483 = vmatprep.subr.bf16.mxu0 0
        %6484 = vmatpush1.bf16.msra.mxu0 0
        %6485 = vmatprep.subr.bf16.mxu0 0
        %6486 = vmatpush1.bf16.msra.mxu0 0
        %6487 = vmatprep.subr.bf16.mxu0 0
        %6488 = vmatpush1.bf16.msra.mxu0 0
        %6489 = vmatprep.subr.bf16.mxu0 0
        %6490 = vmatpush1.bf16.msra.mxu0 0
        %6491 = vmatprep.subr.bf16.mxu0 0
        %6492 = vmatpush1.bf16.msra.mxu0 0
        %6493 = vmatprep.subr.bf16.mxu0 0
        %6494 = vmatpush1.bf16.msra.mxu0 0
        %6495 = vmatprep.mubr.bf16.mxu0 0
        %6496 = vmatmul.mubr.bf16.gmra.mrb[0].mxu0 %v6408
        %v6497 = vpop.f32.mrb[0].mxu0
        %v6498 = vadd.f32 0.0, %v6497
        %v6499 = vpop.f32.mrb[0].mxu0
        %v6500 = vadd.f32 0.0, %v6499
        %v6501 = vpop.f32.mrb[0].mxu0
        %v6502 = vpop.f32.mrb[0].mxu0
        %6503 = vdwg.mxu0
        %v6504 = vadd.f32 %v6386, %v6457
        %v6505 = vadd.f32 %v6387, %v6459
        %v6506 = vadd.f32 %v6388, %v6498
        %v6507 = vadd.f32 %v6389, %v6500
        %s6508 = scalar_lea.vmem %s3, 48
        %v6509 = vld [vmem:[%s6508] sm:$0xf]
        %6510 = vrot.lane.b32.xlu0 %v5112, 78
        %v6511 = vpop.permute.xlu0 %6510
        %6512 = vrot.lane.b32.xlu0 %v5113, 78
        %v6513 = vpop.permute.xlu0 %6512
        %6514 = vrot.lane.b32.xlu0 %v5114, 78
        %v6515 = vpop.permute.xlu0 %6514
        %6516 = vrot.lane.b32.xlu0 %v5115, 78
        %v6517 = vpop.permute.xlu0 %6516
        %6518 = vrot.lane.b32.xlu0 %v5116, 78
        %v6519 = vpop.permute.xlu0 %6518
        %vm6520 = vcmask 637952
        %v6521 = vsel %vm6520, %v6511, %v6513
        %v6522 = vsel %vm6520, %v6513, %v6515
        %v6523 = vsel %vm6520, %v6515, %v6517
        %v6524 = vsel %vm6520, %v6517, %v6519
        %v6526 = vsel %vm5132, %v6509, 0
        %v6529 = vsel %vm5136, %v6521, 0
        %v6532 = vsel %vm5136, %v6522, 0
        %v6535 = vsel %vm5136, %v6523, 0
        %v6538 = vsel %vm5136, %v6524, 0
        %6540 = vmatprep.subr.bf16.mxu0 %v6532
        %6541 = vmatpush1.bf16.msra.mxu0 %v6529
        %6542 = vmatprep.subr.bf16.mxu0 0
        %6543 = vmatpush1.bf16.msra.mxu0 0
        %6544 = vmatprep.subr.bf16.mxu0 0
        %6545 = vmatpush1.bf16.msra.mxu0 0
        %6546 = vmatprep.subr.bf16.mxu0 0
        %6547 = vmatpush1.bf16.msra.mxu0 0
        %6548 = vmatprep.subr.bf16.mxu0 0
        %6549 = vmatpush1.bf16.msra.mxu0 0
        %6550 = vmatprep.subr.bf16.mxu0 0
        %6551 = vmatpush1.bf16.msra.mxu0 0
        %6552 = vmatprep.subr.bf16.mxu0 0
        %6553 = vmatpush1.bf16.msra.mxu0 0
        %6554 = vmatprep.subr.bf16.mxu0 0
        %6555 = vmatpush1.bf16.msra.mxu0 0
        %6556 = vmatprep.subr.bf16.mxu0 0
        %6557 = vmatpush1.bf16.msra.mxu0 0
        %6558 = vmatprep.subr.bf16.mxu0 0
        %6559 = vmatpush1.bf16.msra.mxu0 0
        %6560 = vmatprep.subr.bf16.mxu0 0
        %6561 = vmatpush1.bf16.msra.mxu0 0
        %6562 = vmatprep.subr.bf16.mxu0 0
        %6563 = vmatpush1.bf16.msra.mxu0 0
        %6564 = vmatprep.subr.bf16.mxu0 0
        %6565 = vmatpush1.bf16.msra.mxu0 0
        %6566 = vmatprep.subr.bf16.mxu0 0
        %6567 = vmatpush1.bf16.msra.mxu0 0
        %6568 = vmatprep.subr.bf16.mxu0 0
        %6569 = vmatpush1.bf16.msra.mxu0 0
        %6570 = vmatprep.subr.bf16.mxu0 0
        %6571 = vmatpush1.bf16.msra.mxu0 0
        %6572 = vmatprep.mubr.bf16.mxu0 0
        %6573 = vmatmul.mubr.bf16.gmra.mrb[0].mxu0 %v6526
        %v6574 = vpop.f32.mrb[0].mxu0
        %v6575 = vadd.f32 0.0, %v6574
        %v6576 = vpop.f32.mrb[0].mxu0
        %v6577 = vadd.f32 0.0, %v6576
        %v6578 = vpop.f32.mrb[0].mxu0
        %v6579 = vpop.f32.mrb[0].mxu0
        %6580 = vdwg.mxu0
        %6581 = vmatprep.subr.bf16.mxu0 %v6538
        %6582 = vmatpush1.bf16.msra.mxu0 %v6535
        %6583 = vmatprep.subr.bf16.mxu0 0
        %6584 = vmatpush1.bf16.msra.mxu0 0
        %6585 = vmatprep.subr.bf16.mxu0 0
        %6586 = vmatpush1.bf16.msra.mxu0 0
        %6587 = vmatprep.subr.bf16.mxu0 0
        %6588 = vmatpush1.bf16.msra.mxu0 0
        %6589 = vmatprep.subr.bf16.mxu0 0
        %6590 = vmatpush1.bf16.msra.mxu0 0
        %6591 = vmatprep.subr.bf16.mxu0 0
        %6592 = vmatpush1.bf16.msra.mxu0 0
        %6593 = vmatprep.subr.bf16.mxu0 0
        %6594 = vmatpush1.bf16.msra.mxu0 0
        %6595 = vmatprep.subr.bf16.mxu0 0
        %6596 = vmatpush1.bf16.msra.mxu0 0
        %6597 = vmatprep.subr.bf16.mxu0 0
        %6598 = vmatpush1.bf16.msra.mxu0 0
        %6599 = vmatprep.subr.bf16.mxu0 0
        %6600 = vmatpush1.bf16.msra.mxu0 0
        %6601 = vmatprep.subr.bf16.mxu0 0
        %6602 = vmatpush1.bf16.msra.mxu0 0
        %6603 = vmatprep.subr.bf16.mxu0 0
        %6604 = vmatpush1.bf16.msra.mxu0 0
        %6605 = vmatprep.subr.bf16.mxu0 0
        %6606 = vmatpush1.bf16.msra.mxu0 0
        %6607 = vmatprep.subr.bf16.mxu0 0
        %6608 = vmatpush1.bf16.msra.mxu0 0
        %6609 = vmatprep.subr.bf16.mxu0 0
        %6610 = vmatpush1.bf16.msra.mxu0 0
        %6611 = vmatprep.subr.bf16.mxu0 0
        %6612 = vmatpush1.bf16.msra.mxu0 0
        %6613 = vmatprep.mubr.bf16.mxu0 0
        %6614 = vmatmul.mubr.bf16.gmra.mrb[0].mxu0 %v6526
        %v6615 = vpop.f32.mrb[0].mxu0
        %v6616 = vadd.f32 0.0, %v6615
        %v6617 = vpop.f32.mrb[0].mxu0
        %v6618 = vadd.f32 0.0, %v6617
        %v6619 = vpop.f32.mrb[0].mxu0
        %v6620 = vpop.f32.mrb[0].mxu0
        %6621 = vdwg.mxu0
        %v6622 = vadd.f32 %v6504, %v6575
        %v6623 = vadd.f32 %v6505, %v6577
        %v6624 = vadd.f32 %v6506, %v6616
        %v6625 = vadd.f32 %v6507, %v6618
        %s6626 = scalar_lea.vmem %s3, 52
        %v6627 = vld [vmem:[%s6626] sm:$0xf]
        %6628 = vrot.lane.b32.xlu0 %v5112, 77
        %v6629 = vpop.permute.xlu0 %6628
        %6630 = vrot.lane.b32.xlu0 %v5113, 77
        %v6631 = vpop.permute.xlu0 %6630
        %6632 = vrot.lane.b32.xlu0 %v5114, 77
        %v6633 = vpop.permute.xlu0 %6632
        %6634 = vrot.lane.b32.xlu0 %v5115, 77
        %v6635 = vpop.permute.xlu0 %6634
        %6636 = vrot.lane.b32.xlu0 %v5116, 77
        %v6637 = vpop.permute.xlu0 %6636
        %vm6638 = vcmask 629760
        %v6639 = vsel %vm6638, %v6629, %v6631
        %v6640 = vsel %vm6638, %v6631, %v6633
        %v6641 = vsel %vm6638, %v6633, %v6635
        %v6642 = vsel %vm6638, %v6635, %v6637
        %v6644 = vsel %vm5132, %v6627, 0
        %v6647 = vsel %vm5136, %v6639, 0
        %v6650 = vsel %vm5136, %v6640, 0
        %v6653 = vsel %vm5136, %v6641, 0
        %v6656 = vsel %vm5136, %v6642, 0
        %6658 = vmatprep.subr.bf16.mxu0 %v6650
        %6659 = vmatpush1.bf16.msra.mxu0 %v6647
        %6660 = vmatprep.subr.bf16.mxu0 0
        %6661 = vmatpush1.bf16.msra.mxu0 0
        %6662 = vmatprep.subr.bf16.mxu0 0
        %6663 = vmatpush1.bf16.msra.mxu0 0
        %6664 = vmatprep.subr.bf16.mxu0 0
        %6665 = vmatpush1.bf16.msra.mxu0 0
        %6666 = vmatprep.subr.bf16.mxu0 0
        %6667 = vmatpush1.bf16.msra.mxu0 0
        %6668 = vmatprep.subr.bf16.mxu0 0
        %6669 = vmatpush1.bf16.msra.mxu0 0
        %6670 = vmatprep.subr.bf16.mxu0 0
        %6671 = vmatpush1.bf16.msra.mxu0 0
        %6672 = vmatprep.subr.bf16.mxu0 0
        %6673 = vmatpush1.bf16.msra.mxu0 0
        %6674 = vmatprep.subr.bf16.mxu0 0
        %6675 = vmatpush1.bf16.msra.mxu0 0
        %6676 = vmatprep.subr.bf16.mxu0 0
        %6677 = vmatpush1.bf16.msra.mxu0 0
        %6678 = vmatprep.subr.bf16.mxu0 0
        %6679 = vmatpush1.bf16.msra.mxu0 0
        %6680 = vmatprep.subr.bf16.mxu0 0
        %6681 = vmatpush1.bf16.msra.mxu0 0
        %6682 = vmatprep.subr.bf16.mxu0 0
        %6683 = vmatpush1.bf16.msra.mxu0 0
        %6684 = vmatprep.subr.bf16.mxu0 0
        %6685 = vmatpush1.bf16.msra.mxu0 0
        %6686 = vmatprep.subr.bf16.mxu0 0
        %6687 = vmatpush1.bf16.msra.mxu0 0
        %6688 = vmatprep.subr.bf16.mxu0 0
        %6689 = vmatpush1.bf16.msra.mxu0 0
        %6690 = vmatprep.mubr.bf16.mxu0 0
        %6691 = vmatmul.mubr.bf16.gmra.mrb[0].mxu0 %v6644
        %v6692 = vpop.f32.mrb[0].mxu0
        %v6693 = vadd.f32 0.0, %v6692
        %v6694 = vpop.f32.mrb[0].mxu0
        %v6695 = vadd.f32 0.0, %v6694
        %v6696 = vpop.f32.mrb[0].mxu0
        %v6697 = vpop.f32.mrb[0].mxu0
        %6698 = vdwg.mxu0
        %6699 = vmatprep.subr.bf16.mxu0 %v6656
        %6700 = vmatpush1.bf16.msra.mxu0 %v6653
        %6701 = vmatprep.subr.bf16.mxu0 0
        %6702 = vmatpush1.bf16.msra.mxu0 0
        %6703 = vmatprep.subr.bf16.mxu0 0
        %6704 = vmatpush1.bf16.msra.mxu0 0
        %6705 = vmatprep.subr.bf16.mxu0 0
        %6706 = vmatpush1.bf16.msra.mxu0 0
        %6707 = vmatprep.subr.bf16.mxu0 0
        %6708 = vmatpush1.bf16.msra.mxu0 0
        %6709 = vmatprep.subr.bf16.mxu0 0
        %6710 = vmatpush1.bf16.msra.mxu0 0
        %6711 = vmatprep.subr.bf16.mxu0 0
        %6712 = vmatpush1.bf16.msra.mxu0 0
        %6713 = vmatprep.subr.bf16.mxu0 0
        %6714 = vmatpush1.bf16.msra.mxu0 0
        %6715 = vmatprep.subr.bf16.mxu0 0
        %6716 = vmatpush1.bf16.msra.mxu0 0
        %6717 = vmatprep.subr.bf16.mxu0 0
        %6718 = vmatpush1.bf16.msra.mxu0 0
        %6719 = vmatprep.subr.bf16.mxu0 0
        %6720 = vmatpush1.bf16.msra.mxu0 0
        %6721 = vmatprep.subr.bf16.mxu0 0
        %6722 = vmatpush1.bf16.msra.mxu0 0
        %6723 = vmatprep.subr.bf16.mxu0 0
        %6724 = vmatpush1.bf16.msra.mxu0 0
        %6725 = vmatprep.subr.bf16.mxu0 0
        %6726 = vmatpush1.bf16.msra.mxu0 0
        %6727 = vmatprep.subr.bf16.mxu0 0
        %6728 = vmatpush1.bf16.msra.mxu0 0
        %6729 = vmatprep.subr.bf16.mxu0 0
        %6730 = vmatpush1.bf16.msra.mxu0 0
        %6731 = vmatprep.mubr.bf16.mxu0 0
        %6732 = vmatmul.mubr.bf16.gmra.mrb[0].mxu0 %v6644
        %v6733 = vpop.f32.mrb[0].mxu0
        %v6734 = vadd.f32 0.0, %v6733
        %v6735 = vpop.f32.mrb[0].mxu0
        %v6736 = vadd.f32 0.0, %v6735
        %v6737 = vpop.f32.mrb[0].mxu0
        %v6738 = vpop.f32.mrb[0].mxu0
        %6739 = vdwg.mxu0
        %v6740 = vadd.f32 %v6622, %v6693
        %v6741 = vadd.f32 %v6623, %v6695
        %v6742 = vadd.f32 %v6624, %v6734
        %v6743 = vadd.f32 %v6625, %v6736
        %s6744 = scalar_lea.vmem %s3, 56
        %v6745 = vld [vmem:[%s6744] sm:$0xf]
        %6746 = vrot.lane.b32.xlu0 %v5112, 76
        %v6747 = vpop.permute.xlu0 %6746
        %6748 = vrot.lane.b32.xlu0 %v5113, 76
        %v6749 = vpop.permute.xlu0 %6748
        %6750 = vrot.lane.b32.xlu0 %v5114, 76
        %v6751 = vpop.permute.xlu0 %6750
        %6752 = vrot.lane.b32.xlu0 %v5115, 76
        %v6753 = vpop.permute.xlu0 %6752
        %6754 = vrot.lane.b32.xlu0 %v5116, 76
        %v6755 = vpop.permute.xlu0 %6754
        %vm6756 = vcmask 621568
        %v6757 = vsel %vm6756, %v6747, %v6749
        %v6758 = vsel %vm6756, %v6749, %v6751
        %v6759 = vsel %vm6756, %v6751, %v6753
        %v6760 = vsel %vm6756, %v6753, %v6755
        %v6762 = vsel %vm5132, %v6745, 0
        %v6765 = vsel %vm5136, %v6757, 0
        %v6768 = vsel %vm5136, %v6758, 0
        %v6771 = vsel %vm5136, %v6759, 0
        %v6774 = vsel %vm5136, %v6760, 0
        %6776 = vmatprep.subr.bf16.mxu0 %v6768
        %6777 = vmatpush1.bf16.msra.mxu0 %v6765
        %6778 = vmatprep.subr.bf16.mxu0 0
        %6779 = vmatpush1.bf16.msra.mxu0 0
        %6780 = vmatprep.subr.bf16.mxu0 0
        %6781 = vmatpush1.bf16.msra.mxu0 0
        %6782 = vmatprep.subr.bf16.mxu0 0
        %6783 = vmatpush1.bf16.msra.mxu0 0
        %6784 = vmatprep.subr.bf16.mxu0 0
        %6785 = vmatpush1.bf16.msra.mxu0 0
        %6786 = vmatprep.subr.bf16.mxu0 0
        %6787 = vmatpush1.bf16.msra.mxu0 0
        %6788 = vmatprep.subr.bf16.mxu0 0
        %6789 = vmatpush1.bf16.msra.mxu0 0
        %6790 = vmatprep.subr.bf16.mxu0 0
        %6791 = vmatpush1.bf16.msra.mxu0 0
        %6792 = vmatprep.subr.bf16.mxu0 0
        %6793 = vmatpush1.bf16.msra.mxu0 0
        %6794 = vmatprep.subr.bf16.mxu0 0
        %6795 = vmatpush1.bf16.msra.mxu0 0
        %6796 = vmatprep.subr.bf16.mxu0 0
        %6797 = vmatpush1.bf16.msra.mxu0 0
        %6798 = vmatprep.subr.bf16.mxu0 0
        %6799 = vmatpush1.bf16.msra.mxu0 0
        %6800 = vmatprep.subr.bf16.mxu0 0
        %6801 = vmatpush1.bf16.msra.mxu0 0
        %6802 = vmatprep.subr.bf16.mxu0 0
        %6803 = vmatpush1.bf16.msra.mxu0 0
        %6804 = vmatprep.subr.bf16.mxu0 0
        %6805 = vmatpush1.bf16.msra.mxu0 0
        %6806 = vmatprep.subr.bf16.mxu0 0
        %6807 = vmatpush1.bf16.msra.mxu0 0
        %6808 = vmatprep.mubr.bf16.mxu0 0
        %6809 = vmatmul.mubr.bf16.gmra.mrb[0].mxu0 %v6762
        %v6810 = vpop.f32.mrb[0].mxu0
        %v6811 = vadd.f32 0.0, %v6810
        %v6812 = vpop.f32.mrb[0].mxu0
        %v6813 = vadd.f32 0.0, %v6812
        %v6814 = vpop.f32.mrb[0].mxu0
        %v6815 = vpop.f32.mrb[0].mxu0
        %6816 = vdwg.mxu0
        %6817 = vmatprep.subr.bf16.mxu0 %v6774
        %6818 = vmatpush1.bf16.msra.mxu0 %v6771
        %6819 = vmatprep.subr.bf16.mxu0 0
        %6820 = vmatpush1.bf16.msra.mxu0 0
        %6821 = vmatprep.subr.bf16.mxu0 0
        %6822 = vmatpush1.bf16.msra.mxu0 0
        %6823 = vmatprep.subr.bf16.mxu0 0
        %6824 = vmatpush1.bf16.msra.mxu0 0
        %6825 = vmatprep.subr.bf16.mxu0 0
        %6826 = vmatpush1.bf16.msra.mxu0 0
        %6827 = vmatprep.subr.bf16.mxu0 0
        %6828 = vmatpush1.bf16.msra.mxu0 0
        %6829 = vmatprep.subr.bf16.mxu0 0
        %6830 = vmatpush1.bf16.msra.mxu0 0
        %6831 = vmatprep.subr.bf16.mxu0 0
        %6832 = vmatpush1.bf16.msra.mxu0 0
        %6833 = vmatprep.subr.bf16.mxu0 0
        %6834 = vmatpush1.bf16.msra.mxu0 0
        %6835 = vmatprep.subr.bf16.mxu0 0
        %6836 = vmatpush1.bf16.msra.mxu0 0
        %6837 = vmatprep.subr.bf16.mxu0 0
        %6838 = vmatpush1.bf16.msra.mxu0 0
        %6839 = vmatprep.subr.bf16.mxu0 0
        %6840 = vmatpush1.bf16.msra.mxu0 0
        %6841 = vmatprep.subr.bf16.mxu0 0
        %6842 = vmatpush1.bf16.msra.mxu0 0
        %6843 = vmatprep.subr.bf16.mxu0 0
        %6844 = vmatpush1.bf16.msra.mxu0 0
        %6845 = vmatprep.subr.bf16.mxu0 0
        %6846 = vmatpush1.bf16.msra.mxu0 0
        %6847 = vmatprep.subr.bf16.mxu0 0
        %6848 = vmatpush1.bf16.msra.mxu0 0
        %6849 = vmatprep.mubr.bf16.mxu0 0
        %6850 = vmatmul.mubr.bf16.gmra.mrb[0].mxu0 %v6762
        %v6851 = vpop.f32.mrb[0].mxu0
        %v6852 = vadd.f32 0.0, %v6851
        %v6853 = vpop.f32.mrb[0].mxu0
        %v6854 = vadd.f32 0.0, %v6853
        %v6855 = vpop.f32.mrb[0].mxu0
        %v6856 = vpop.f32.mrb[0].mxu0
        %6857 = vdwg.mxu0
        %v6858 = vadd.f32 %v6740, %v6811
        %v6859 = vadd.f32 %v6741, %v6813
        %v6860 = vadd.f32 %v6742, %v6852
        %v6861 = vadd.f32 %v6743, %v6854
        %s6862 = scalar_lea.vmem %s3, 60
        %v6863 = vld [vmem:[%s6862] sm:$0xf]
        %6864 = vrot.lane.b32.xlu0 %v5112, 56
        %v6865 = vpop.permute.xlu0 %6864
        %6866 = vrot.lane.b32.xlu0 %v5113, 56
        %v6867 = vpop.permute.xlu0 %6866
        %6868 = vrot.lane.b32.xlu0 %v5114, 56
        %v6869 = vpop.permute.xlu0 %6868
        %6870 = vrot.lane.b32.xlu0 %v5115, 56
        %v6871 = vpop.permute.xlu0 %6870
        %6872 = vrot.lane.b32.xlu0 %v5116, 56
        %v6873 = vpop.permute.xlu0 %6872
        %vm6874 = vcmask 457728
        %v6875 = vsel %vm6874, %v6865, %v6867
        %v6876 = vsel %vm6874, %v6867, %v6869
        %v6877 = vsel %vm6874, %v6869, %v6871
        %v6878 = vsel %vm6874, %v6871, %v6873
        %v6880 = vsel %vm5132, %v6863, 0
        %v6883 = vsel %vm5136, %v6875, 0
        %v6886 = vsel %vm5136, %v6876, 0
        %v6889 = vsel %vm5136, %v6877, 0
        %v6892 = vsel %vm5136, %v6878, 0
        %6894 = vmatprep.subr.bf16.mxu0 %v6886
        %6895 = vmatpush1.bf16.msra.mxu0 %v6883
        %6896 = vmatprep.subr.bf16.mxu0 0
        %6897 = vmatpush1.bf16.msra.mxu0 0
        %6898 = vmatprep.subr.bf16.mxu0 0
        %6899 = vmatpush1.bf16.msra.mxu0 0
        %6900 = vmatprep.subr.bf16.mxu0 0
        %6901 = vmatpush1.bf16.msra.mxu0 0
        %6902 = vmatprep.subr.bf16.mxu0 0
        %6903 = vmatpush1.bf16.msra.mxu0 0
        %6904 = vmatprep.subr.bf16.mxu0 0
        %6905 = vmatpush1.bf16.msra.mxu0 0
        %6906 = vmatprep.subr.bf16.mxu0 0
        %6907 = vmatpush1.bf16.msra.mxu0 0
        %6908 = vmatprep.subr.bf16.mxu0 0
        %6909 = vmatpush1.bf16.msra.mxu0 0
        %6910 = vmatprep.subr.bf16.mxu0 0
        %6911 = vmatpush1.bf16.msra.mxu0 0
        %6912 = vmatprep.subr.bf16.mxu0 0
        %6913 = vmatpush1.bf16.msra.mxu0 0
        %6914 = vmatprep.subr.bf16.mxu0 0
        %6915 = vmatpush1.bf16.msra.mxu0 0
        %6916 = vmatprep.subr.bf16.mxu0 0
        %6917 = vmatpush1.bf16.msra.mxu0 0
        %6918 = vmatprep.subr.bf16.mxu0 0
        %6919 = vmatpush1.bf16.msra.mxu0 0
        %6920 = vmatprep.subr.bf16.mxu0 0
        %6921 = vmatpush1.bf16.msra.mxu0 0
        %6922 = vmatprep.subr.bf16.mxu0 0
        %6923 = vmatpush1.bf16.msra.mxu0 0
        %6924 = vmatprep.subr.bf16.mxu0 0
        %6925 = vmatpush1.bf16.msra.mxu0 0
        %6926 = vmatprep.mubr.bf16.mxu0 0
        %6927 = vmatmul.mubr.bf16.gmra.mrb[0].mxu0 %v6880
        %v6928 = vpop.f32.mrb[0].mxu0
        %v6929 = vadd.f32 0.0, %v6928
        %v6930 = vpop.f32.mrb[0].mxu0
        %v6931 = vadd.f32 0.0, %v6930
        %v6932 = vpop.f32.mrb[0].mxu0
        %v6933 = vpop.f32.mrb[0].mxu0
        %6934 = vdwg.mxu0
        %6935 = vmatprep.subr.bf16.mxu0 %v6892
        %6936 = vmatpush1.bf16.msra.mxu0 %v6889
        %6937 = vmatprep.subr.bf16.mxu0 0
        %6938 = vmatpush1.bf16.msra.mxu0 0
        %6939 = vmatprep.subr.bf16.mxu0 0
        %6940 = vmatpush1.bf16.msra.mxu0 0
        %6941 = vmatprep.subr.bf16.mxu0 0
        %6942 = vmatpush1.bf16.msra.mxu0 0
        %6943 = vmatprep.subr.bf16.mxu0 0
        %6944 = vmatpush1.bf16.msra.mxu0 0
        %6945 = vmatprep.subr.bf16.mxu0 0
        %6946 = vmatpush1.bf16.msra.mxu0 0
        %6947 = vmatprep.subr.bf16.mxu0 0
        %6948 = vmatpush1.bf16.msra.mxu0 0
        %6949 = vmatprep.subr.bf16.mxu0 0
        %6950 = vmatpush1.bf16.msra.mxu0 0
        %6951 = vmatprep.subr.bf16.mxu0 0
        %6952 = vmatpush1.bf16.msra.mxu0 0
        %6953 = vmatprep.subr.bf16.mxu0 0
        %6954 = vmatpush1.bf16.msra.mxu0 0
        %6955 = vmatprep.subr.bf16.mxu0 0
        %6956 = vmatpush1.bf16.msra.mxu0 0
        %6957 = vmatprep.subr.bf16.mxu0 0
        %6958 = vmatpush1.bf16.msra.mxu0 0
        %6959 = vmatprep.subr.bf16.mxu0 0
        %6960 = vmatpush1.bf16.msra.mxu0 0
        %6961 = vmatprep.subr.bf16.mxu0 0
        %6962 = vmatpush1.bf16.msra.mxu0 0
        %6963 = vmatprep.subr.bf16.mxu0 0
        %6964 = vmatpush1.bf16.msra.mxu0 0
        %6965 = vmatprep.subr.bf16.mxu0 0
        %6966 = vmatpush1.bf16.msra.mxu0 0
        %6967 = vmatprep.mubr.bf16.mxu0 0
        %6968 = vmatmul.mubr.bf16.gmra.mrb[0].mxu0 %v6880
        %v6969 = vpop.f32.mrb[0].mxu0
        %v6970 = vadd.f32 0.0, %v6969
        %v6971 = vpop.f32.mrb[0].mxu0
        %v6972 = vadd.f32 0.0, %v6971
        %v6973 = vpop.f32.mrb[0].mxu0
        %v6974 = vpop.f32.mrb[0].mxu0
        %6975 = vdwg.mxu0
        %v6976 = vadd.f32 %v6858, %v6929
        %v6977 = vadd.f32 %v6859, %v6931
        %v6978 = vadd.f32 %v6860, %v6970
        %v6979 = vadd.f32 %v6861, %v6972
        %s6980 = scalar_lea.vmem %s3, 64
        %v6981 = vld [vmem:[%s6980] sm:$0xf]
        %6982 = vrot.lane.b32.xlu0 %v5112, 55
        %v6983 = vpop.permute.xlu0 %6982
        %6984 = vrot.lane.b32.xlu0 %v5113, 55
        %v6985 = vpop.permute.xlu0 %6984
        %6986 = vrot.lane.b32.xlu0 %v5114, 55
        %v6987 = vpop.permute.xlu0 %6986
        %6988 = vrot.lane.b32.xlu0 %v5115, 55
        %v6989 = vpop.permute.xlu0 %6988
        %6990 = vrot.lane.b32.xlu0 %v5116, 55
        %v6991 = vpop.permute.xlu0 %6990
        %vm6992 = vcmask 449536
        %v6993 = vsel %vm6992, %v6983, %v6985
        %v6994 = vsel %vm6992, %v6985, %v6987
        %v6995 = vsel %vm6992, %v6987, %v6989
        %v6996 = vsel %vm6992, %v6989, %v6991
        %v6998 = vsel %vm5132, %v6981, 0
        %v7001 = vsel %vm5136, %v6993, 0
        %v7004 = vsel %vm5136, %v6994, 0
        %v7007 = vsel %vm5136, %v6995, 0
        %v7010 = vsel %vm5136, %v6996, 0
        %7012 = vmatprep.subr.bf16.mxu0 %v7004
        %7013 = vmatpush1.bf16.msra.mxu0 %v7001
        %7014 = vmatprep.subr.bf16.mxu0 0
        %7015 = vmatpush1.bf16.msra.mxu0 0
        %7016 = vmatprep.subr.bf16.mxu0 0
        %7017 = vmatpush1.bf16.msra.mxu0 0
        %7018 = vmatprep.subr.bf16.mxu0 0
        %7019 = vmatpush1.bf16.msra.mxu0 0
        %7020 = vmatprep.subr.bf16.mxu0 0
        %7021 = vmatpush1.bf16.msra.mxu0 0
        %7022 = vmatprep.subr.bf16.mxu0 0
        %7023 = vmatpush1.bf16.msra.mxu0 0
        %7024 = vmatprep.subr.bf16.mxu0 0
        %7025 = vmatpush1.bf16.msra.mxu0 0
        %7026 = vmatprep.subr.bf16.mxu0 0
        %7027 = vmatpush1.bf16.msra.mxu0 0
        %7028 = vmatprep.subr.bf16.mxu0 0
        %7029 = vmatpush1.bf16.msra.mxu0 0
        %7030 = vmatprep.subr.bf16.mxu0 0
        %7031 = vmatpush1.bf16.msra.mxu0 0
        %7032 = vmatprep.subr.bf16.mxu0 0
        %7033 = vmatpush1.bf16.msra.mxu0 0
        %7034 = vmatprep.subr.bf16.mxu0 0
        %7035 = vmatpush1.bf16.msra.mxu0 0
        %7036 = vmatprep.subr.bf16.mxu0 0
        %7037 = vmatpush1.bf16.msra.mxu0 0
        %7038 = vmatprep.subr.bf16.mxu0 0
        %7039 = vmatpush1.bf16.msra.mxu0 0
        %7040 = vmatprep.subr.bf16.mxu0 0
        %7041 = vmatpush1.bf16.msra.mxu0 0
        %7042 = vmatprep.subr.bf16.mxu0 0
        %7043 = vmatpush1.bf16.msra.mxu0 0
        %7044 = vmatprep.mubr.bf16.mxu0 0
        %7045 = vmatmul.mubr.bf16.gmra.mrb[0].mxu0 %v6998
        %v7046 = vpop.f32.mrb[0].mxu0
        %v7047 = vadd.f32 0.0, %v7046
        %v7048 = vpop.f32.mrb[0].mxu0
        %v7049 = vadd.f32 0.0, %v7048
        %v7050 = vpop.f32.mrb[0].mxu0
        %v7051 = vpop.f32.mrb[0].mxu0
        %7052 = vdwg.mxu0
        %7053 = vmatprep.subr.bf16.mxu0 %v7010
        %7054 = vmatpush1.bf16.msra.mxu0 %v7007
        %7055 = vmatprep.subr.bf16.mxu0 0
        %7056 = vmatpush1.bf16.msra.mxu0 0
        %7057 = vmatprep.subr.bf16.mxu0 0
        %7058 = vmatpush1.bf16.msra.mxu0 0
        %7059 = vmatprep.subr.bf16.mxu0 0
        %7060 = vmatpush1.bf16.msra.mxu0 0
        %7061 = vmatprep.subr.bf16.mxu0 0
        %7062 = vmatpush1.bf16.msra.mxu0 0
        %7063 = vmatprep.subr.bf16.mxu0 0
        %7064 = vmatpush1.bf16.msra.mxu0 0
        %7065 = vmatprep.subr.bf16.mxu0 0
        %7066 = vmatpush1.bf16.msra.mxu0 0
        %7067 = vmatprep.subr.bf16.mxu0 0
        %7068 = vmatpush1.bf16.msra.mxu0 0
        %7069 = vmatprep.subr.bf16.mxu0 0
        %7070 = vmatpush1.bf16.msra.mxu0 0
        %7071 = vmatprep.subr.bf16.mxu0 0
        %7072 = vmatpush1.bf16.msra.mxu0 0
        %7073 = vmatprep.subr.bf16.mxu0 0
        %7074 = vmatpush1.bf16.msra.mxu0 0
        %7075 = vmatprep.subr.bf16.mxu0 0
        %7076 = vmatpush1.bf16.msra.mxu0 0
        %7077 = vmatprep.subr.bf16.mxu0 0
        %7078 = vmatpush1.bf16.msra.mxu0 0
        %7079 = vmatprep.subr.bf16.mxu0 0
        %7080 = vmatpush1.bf16.msra.mxu0 0
        %7081 = vmatprep.subr.bf16.mxu0 0
        %7082 = vmatpush1.bf16.msra.mxu0 0
        %7083 = vmatprep.subr.bf16.mxu0 0
        %7084 = vmatpush1.bf16.msra.mxu0 0
        %7085 = vmatprep.mubr.bf16.mxu0 0
        %7086 = vmatmul.mubr.bf16.gmra.mrb[0].mxu0 %v6998
        %v7087 = vpop.f32.mrb[0].mxu0
        %v7088 = vadd.f32 0.0, %v7087
        %v7089 = vpop.f32.mrb[0].mxu0
        %v7090 = vadd.f32 0.0, %v7089
        %v7091 = vpop.f32.mrb[0].mxu0
        %v7092 = vpop.f32.mrb[0].mxu0
        %7093 = vdwg.mxu0
        %v7094 = vadd.f32 %v6976, %v7047
        %v7095 = vadd.f32 %v6977, %v7049
        %v7096 = vadd.f32 %v6978, %v7088
        %v7097 = vadd.f32 %v6979, %v7090
        %s7098 = scalar_lea.vmem %s3, 68
        %v7099 = vld [vmem:[%s7098] sm:$0xf]
        %7100 = vrot.lane.b32.xlu0 %v5112, 54
        %v7101 = vpop.permute.xlu0 %7100
        %7102 = vrot.lane.b32.xlu0 %v5113, 54
        %v7103 = vpop.permute.xlu0 %7102
        %7104 = vrot.lane.b32.xlu0 %v5114, 54
        %v7105 = vpop.permute.xlu0 %7104
        %7106 = vrot.lane.b32.xlu0 %v5115, 54
        %v7107 = vpop.permute.xlu0 %7106
        %7108 = vrot.lane.b32.xlu0 %v5116, 54
        %v7109 = vpop.permute.xlu0 %7108
        %vm7110 = vcmask 441344
        %v7111 = vsel %vm7110, %v7101, %v7103
        %v7112 = vsel %vm7110, %v7103, %v7105
        %v7113 = vsel %vm7110, %v7105, %v7107
        %v7114 = vsel %vm7110, %v7107, %v7109
        %v7116 = vsel %vm5132, %v7099, 0
        %v7119 = vsel %vm5136, %v7111, 0
        %v7122 = vsel %vm5136, %v7112, 0
        %v7125 = vsel %vm5136, %v7113, 0
        %v7128 = vsel %vm5136, %v7114, 0
        %7130 = vmatprep.subr.bf16.mxu0 %v7122
        %7131 = vmatpush1.bf16.msra.mxu0 %v7119
        %7132 = vmatprep.subr.bf16.mxu0 0
        %7133 = vmatpush1.bf16.msra.mxu0 0
        %7134 = vmatprep.subr.bf16.mxu0 0
        %7135 = vmatpush1.bf16.msra.mxu0 0
        %7136 = vmatprep.subr.bf16.mxu0 0
        %7137 = vmatpush1.bf16.msra.mxu0 0
        %7138 = vmatprep.subr.bf16.mxu0 0
        %7139 = vmatpush1.bf16.msra.mxu0 0
        %7140 = vmatprep.subr.bf16.mxu0 0
        %7141 = vmatpush1.bf16.msra.mxu0 0
        %7142 = vmatprep.subr.bf16.mxu0 0
        %7143 = vmatpush1.bf16.msra.mxu0 0
        %7144 = vmatprep.subr.bf16.mxu0 0
        %7145 = vmatpush1.bf16.msra.mxu0 0
        %7146 = vmatprep.subr.bf16.mxu0 0
        %7147 = vmatpush1.bf16.msra.mxu0 0
        %7148 = vmatprep.subr.bf16.mxu0 0
        %7149 = vmatpush1.bf16.msra.mxu0 0
        %7150 = vmatprep.subr.bf16.mxu0 0
        %7151 = vmatpush1.bf16.msra.mxu0 0
        %7152 = vmatprep.subr.bf16.mxu0 0
        %7153 = vmatpush1.bf16.msra.mxu0 0
        %7154 = vmatprep.subr.bf16.mxu0 0
        %7155 = vmatpush1.bf16.msra.mxu0 0
        %7156 = vmatprep.subr.bf16.mxu0 0
        %7157 = vmatpush1.bf16.msra.mxu0 0
        %7158 = vmatprep.subr.bf16.mxu0 0
        %7159 = vmatpush1.bf16.msra.mxu0 0
        %7160 = vmatprep.subr.bf16.mxu0 0
        %7161 = vmatpush1.bf16.msra.mxu0 0
        %7162 = vmatprep.mubr.bf16.mxu0 0
        %7163 = vmatmul.mubr.bf16.gmra.mrb[0].mxu0 %v7116
        %v7164 = vpop.f32.mrb[0].mxu0
        %v7165 = vadd.f32 0.0, %v7164
        %v7166 = vpop.f32.mrb[0].mxu0
        %v7167 = vadd.f32 0.0, %v7166
        %v7168 = vpop.f32.mrb[0].mxu0
        %v7169 = vpop.f32.mrb[0].mxu0
        %7170 = vdwg.mxu0
        %7171 = vmatprep.subr.bf16.mxu0 %v7128
        %7172 = vmatpush1.bf16.msra.mxu0 %v7125
        %7173 = vmatprep.subr.bf16.mxu0 0
        %7174 = vmatpush1.bf16.msra.mxu0 0
        %7175 = vmatprep.subr.bf16.mxu0 0
        %7176 = vmatpush1.bf16.msra.mxu0 0
        %7177 = vmatprep.subr.bf16.mxu0 0
        %7178 = vmatpush1.bf16.msra.mxu0 0
        %7179 = vmatprep.subr.bf16.mxu0 0
        %7180 = vmatpush1.bf16.msra.mxu0 0
        %7181 = vmatprep.subr.bf16.mxu0 0
        %7182 = vmatpush1.bf16.msra.mxu0 0
        %7183 = vmatprep.subr.bf16.mxu0 0
        %7184 = vmatpush1.bf16.msra.mxu0 0
        %7185 = vmatprep.subr.bf16.mxu0 0
        %7186 = vmatpush1.bf16.msra.mxu0 0
        %7187 = vmatprep.subr.bf16.mxu0 0
        %7188 = vmatpush1.bf16.msra.mxu0 0
        %7189 = vmatprep.subr.bf16.mxu0 0
        %7190 = vmatpush1.bf16.msra.mxu0 0
        %7191 = vmatprep.subr.bf16.mxu0 0
        %7192 = vmatpush1.bf16.msra.mxu0 0
        %7193 = vmatprep.subr.bf16.mxu0 0
        %7194 = vmatpush1.bf16.msra.mxu0 0
        %7195 = vmatprep.subr.bf16.mxu0 0
        %7196 = vmatpush1.bf16.msra.mxu0 0
        %7197 = vmatprep.subr.bf16.mxu0 0
        %7198 = vmatpush1.bf16.msra.mxu0 0
        %7199 = vmatprep.subr.bf16.mxu0 0
        %7200 = vmatpush1.bf16.msra.mxu0 0
        %7201 = vmatprep.subr.bf16.mxu0 0
        %7202 = vmatpush1.bf16.msra.mxu0 0
        %7203 = vmatprep.mubr.bf16.mxu0 0
        %7204 = vmatmul.mubr.bf16.gmra.mrb[0].mxu0 %v7116
        %v7205 = vpop.f32.mrb[0].mxu0
        %v7206 = vadd.f32 0.0, %v7205
        %v7207 = vpop.f32.mrb[0].mxu0
        %v7208 = vadd.f32 0.0, %v7207
        %v7209 = vpop.f32.mrb[0].mxu0
        %v7210 = vpop.f32.mrb[0].mxu0
        %7211 = vdwg.mxu0
        %v7212 = vadd.f32 %v7094, %v7165
        %v7213 = vadd.f32 %v7095, %v7167
        %v7214 = vadd.f32 %v7096, %v7206
        %v7215 = vadd.f32 %v7097, %v7208
        %s7216 = scalar_lea.vmem %s3, 72
        %v7217 = vld [vmem:[%s7216] sm:$0xf]
        %7218 = vrot.lane.b32.xlu0 %v5112, 53
        %v7219 = vpop.permute.xlu0 %7218
        %7220 = vrot.lane.b32.xlu0 %v5113, 53
        %v7221 = vpop.permute.xlu0 %7220
        %7222 = vrot.lane.b32.xlu0 %v5114, 53
        %v7223 = vpop.permute.xlu0 %7222
        %7224 = vrot.lane.b32.xlu0 %v5115, 53
        %v7225 = vpop.permute.xlu0 %7224
        %7226 = vrot.lane.b32.xlu0 %v5116, 53
        %v7227 = vpop.permute.xlu0 %7226
        %vm7228 = vcmask 433152
        %v7229 = vsel %vm7228, %v7219, %v7221
        %v7230 = vsel %vm7228, %v7221, %v7223
        %v7231 = vsel %vm7228, %v7223, %v7225
        %v7232 = vsel %vm7228, %v7225, %v7227
        %v7234 = vsel %vm5132, %v7217, 0
        %v7237 = vsel %vm5136, %v7229, 0
        %v7240 = vsel %vm5136, %v7230, 0
        %v7243 = vsel %vm5136, %v7231, 0
        %v7246 = vsel %vm5136, %v7232, 0
        %7248 = vmatprep.subr.bf16.mxu0 %v7240
        %7249 = vmatpush1.bf16.msra.mxu0 %v7237
        %7250 = vmatprep.subr.bf16.mxu0 0
        %7251 = vmatpush1.bf16.msra.mxu0 0
        %7252 = vmatprep.subr.bf16.mxu0 0
        %7253 = vmatpush1.bf16.msra.mxu0 0
        %7254 = vmatprep.subr.bf16.mxu0 0
        %7255 = vmatpush1.bf16.msra.mxu0 0
        %7256 = vmatprep.subr.bf16.mxu0 0
        %7257 = vmatpush1.bf16.msra.mxu0 0
        %7258 = vmatprep.subr.bf16.mxu0 0
        %7259 = vmatpush1.bf16.msra.mxu0 0
        %7260 = vmatprep.subr.bf16.mxu0 0
        %7261 = vmatpush1.bf16.msra.mxu0 0
        %7262 = vmatprep.subr.bf16.mxu0 0
        %7263 = vmatpush1.bf16.msra.mxu0 0
        %7264 = vmatprep.subr.bf16.mxu0 0
        %7265 = vmatpush1.bf16.msra.mxu0 0
        %7266 = vmatprep.subr.bf16.mxu0 0
        %7267 = vmatpush1.bf16.msra.mxu0 0
        %7268 = vmatprep.subr.bf16.mxu0 0
        %7269 = vmatpush1.bf16.msra.mxu0 0
        %7270 = vmatprep.subr.bf16.mxu0 0
        %7271 = vmatpush1.bf16.msra.mxu0 0
        %7272 = vmatprep.subr.bf16.mxu0 0
        %7273 = vmatpush1.bf16.msra.mxu0 0
        %7274 = vmatprep.subr.bf16.mxu0 0
        %7275 = vmatpush1.bf16.msra.mxu0 0
        %7276 = vmatprep.subr.bf16.mxu0 0
        %7277 = vmatpush1.bf16.msra.mxu0 0
        %7278 = vmatprep.subr.bf16.mxu0 0
        %7279 = vmatpush1.bf16.msra.mxu0 0
        %7280 = vmatprep.mubr.bf16.mxu0 0
        %7281 = vmatmul.mubr.bf16.gmra.mrb[0].mxu0 %v7234
        %v7282 = vpop.f32.mrb[0].mxu0
        %v7283 = vadd.f32 0.0, %v7282
        %v7284 = vpop.f32.mrb[0].mxu0
        %v7285 = vadd.f32 0.0, %v7284
        %v7286 = vpop.f32.mrb[0].mxu0
        %v7287 = vpop.f32.mrb[0].mxu0
        %7288 = vdwg.mxu0
        %7289 = vmatprep.subr.bf16.mxu0 %v7246
        %7290 = vmatpush1.bf16.msra.mxu0 %v7243
        %7291 = vmatprep.subr.bf16.mxu0 0
        %7292 = vmatpush1.bf16.msra.mxu0 0
        %7293 = vmatprep.subr.bf16.mxu0 0
        %7294 = vmatpush1.bf16.msra.mxu0 0
        %7295 = vmatprep.subr.bf16.mxu0 0
        %7296 = vmatpush1.bf16.msra.mxu0 0
        %7297 = vmatprep.subr.bf16.mxu0 0
        %7298 = vmatpush1.bf16.msra.mxu0 0
        %7299 = vmatprep.subr.bf16.mxu0 0
        %7300 = vmatpush1.bf16.msra.mxu0 0
        %7301 = vmatprep.subr.bf16.mxu0 0
        %7302 = vmatpush1.bf16.msra.mxu0 0
        %7303 = vmatprep.subr.bf16.mxu0 0
        %7304 = vmatpush1.bf16.msra.mxu0 0
        %7305 = vmatprep.subr.bf16.mxu0 0
        %7306 = vmatpush1.bf16.msra.mxu0 0
        %7307 = vmatprep.subr.bf16.mxu0 0
        %7308 = vmatpush1.bf16.msra.mxu0 0
        %7309 = vmatprep.subr.bf16.mxu0 0
        %7310 = vmatpush1.bf16.msra.mxu0 0
        %7311 = vmatprep.subr.bf16.mxu0 0
        %7312 = vmatpush1.bf16.msra.mxu0 0
        %7313 = vmatprep.subr.bf16.mxu0 0
        %7314 = vmatpush1.bf16.msra.mxu0 0
        %7315 = vmatprep.subr.bf16.mxu0 0
        %7316 = vmatpush1.bf16.msra.mxu0 0
        %7317 = vmatprep.subr.bf16.mxu0 0
        %7318 = vmatpush1.bf16.msra.mxu0 0
        %7319 = vmatprep.subr.bf16.mxu0 0
        %7320 = vmatpush1.bf16.msra.mxu0 0
        %7321 = vmatprep.mubr.bf16.mxu0 0
        %7322 = vmatmul.mubr.bf16.gmra.mrb[0].mxu0 %v7234
        %v7323 = vpop.f32.mrb[0].mxu0
        %v7324 = vadd.f32 0.0, %v7323
        %v7325 = vpop.f32.mrb[0].mxu0
        %v7326 = vadd.f32 0.0, %v7325
        %v7327 = vpop.f32.mrb[0].mxu0
        %v7328 = vpop.f32.mrb[0].mxu0
        %7329 = vdwg.mxu0
        %v7330 = vadd.f32 %v7212, %v7283
        %v7331 = vadd.f32 %v7213, %v7285
        %v7332 = vadd.f32 %v7214, %v7324
        %v7333 = vadd.f32 %v7215, %v7326
        %s7334 = scalar_lea.vmem %s3, 76
        %v7335 = vld [vmem:[%s7334] sm:$0xf]
        %7336 = vrot.lane.b32.xlu0 %v5112, 52
        %v7337 = vpop.permute.xlu0 %7336
        %7338 = vrot.lane.b32.xlu0 %v5113, 52
        %v7339 = vpop.permute.xlu0 %7338
        %7340 = vrot.lane.b32.xlu0 %v5114, 52
        %v7341 = vpop.permute.xlu0 %7340
        %7342 = vrot.lane.b32.xlu0 %v5115, 52
        %v7343 = vpop.permute.xlu0 %7342
        %7344 = vrot.lane.b32.xlu0 %v5116, 52
        %v7345 = vpop.permute.xlu0 %7344
        %vm7346 = vcmask 424960
        %v7347 = vsel %vm7346, %v7337, %v7339
        %v7348 = vsel %vm7346, %v7339, %v7341
        %v7349 = vsel %vm7346, %v7341, %v7343
        %v7350 = vsel %vm7346, %v7343, %v7345
        %v7352 = vsel %vm5132, %v7335, 0
        %v7355 = vsel %vm5136, %v7347, 0
        %v7358 = vsel %vm5136, %v7348, 0
        %v7361 = vsel %vm5136, %v7349, 0
        %v7364 = vsel %vm5136, %v7350, 0
        %7366 = vmatprep.subr.bf16.mxu0 %v7358
        %7367 = vmatpush1.bf16.msra.mxu0 %v7355
        %7368 = vmatprep.subr.bf16.mxu0 0
        %7369 = vmatpush1.bf16.msra.mxu0 0
        %7370 = vmatprep.subr.bf16.mxu0 0
        %7371 = vmatpush1.bf16.msra.mxu0 0
        %7372 = vmatprep.subr.bf16.mxu0 0
        %7373 = vmatpush1.bf16.msra.mxu0 0
        %7374 = vmatprep.subr.bf16.mxu0 0
        %7375 = vmatpush1.bf16.msra.mxu0 0
        %7376 = vmatprep.subr.bf16.mxu0 0
        %7377 = vmatpush1.bf16.msra.mxu0 0
        %7378 = vmatprep.subr.bf16.mxu0 0
        %7379 = vmatpush1.bf16.msra.mxu0 0
        %7380 = vmatprep.subr.bf16.mxu0 0
        %7381 = vmatpush1.bf16.msra.mxu0 0
        %7382 = vmatprep.subr.bf16.mxu0 0
        %7383 = vmatpush1.bf16.msra.mxu0 0
        %7384 = vmatprep.subr.bf16.mxu0 0
        %7385 = vmatpush1.bf16.msra.mxu0 0
        %7386 = vmatprep.subr.bf16.mxu0 0
        %7387 = vmatpush1.bf16.msra.mxu0 0
        %7388 = vmatprep.subr.bf16.mxu0 0
        %7389 = vmatpush1.bf16.msra.mxu0 0
        %7390 = vmatprep.subr.bf16.mxu0 0
        %7391 = vmatpush1.bf16.msra.mxu0 0
        %7392 = vmatprep.subr.bf16.mxu0 0
        %7393 = vmatpush1.bf16.msra.mxu0 0
        %7394 = vmatprep.subr.bf16.mxu0 0
        %7395 = vmatpush1.bf16.msra.mxu0 0
        %7396 = vmatprep.subr.bf16.mxu0 0
        %7397 = vmatpush1.bf16.msra.mxu0 0
        %7398 = vmatprep.mubr.bf16.mxu0 0
        %7399 = vmatmul.mubr.bf16.gmra.mrb[0].mxu0 %v7352
        %v7400 = vpop.f32.mrb[0].mxu0
        %v7401 = vadd.f32 0.0, %v7400
        %v7402 = vpop.f32.mrb[0].mxu0
        %v7403 = vadd.f32 0.0, %v7402
        %v7404 = vpop.f32.mrb[0].mxu0
        %v7405 = vpop.f32.mrb[0].mxu0
        %7406 = vdwg.mxu0
        %7407 = vmatprep.subr.bf16.mxu0 %v7364
        %7408 = vmatpush1.bf16.msra.mxu0 %v7361
        %7409 = vmatprep.subr.bf16.mxu0 0
        %7410 = vmatpush1.bf16.msra.mxu0 0
        %7411 = vmatprep.subr.bf16.mxu0 0
        %7412 = vmatpush1.bf16.msra.mxu0 0
        %7413 = vmatprep.subr.bf16.mxu0 0
        %7414 = vmatpush1.bf16.msra.mxu0 0
        %7415 = vmatprep.subr.bf16.mxu0 0
        %7416 = vmatpush1.bf16.msra.mxu0 0
        %7417 = vmatprep.subr.bf16.mxu0 0
        %7418 = vmatpush1.bf16.msra.mxu0 0
        %7419 = vmatprep.subr.bf16.mxu0 0
        %7420 = vmatpush1.bf16.msra.mxu0 0
        %7421 = vmatprep.subr.bf16.mxu0 0
        %7422 = vmatpush1.bf16.msra.mxu0 0
        %7423 = vmatprep.subr.bf16.mxu0 0
        %7424 = vmatpush1.bf16.msra.mxu0 0
        %7425 = vmatprep.subr.bf16.mxu0 0
        %7426 = vmatpush1.bf16.msra.mxu0 0
        %7427 = vmatprep.subr.bf16.mxu0 0
        %7428 = vmatpush1.bf16.msra.mxu0 0
        %7429 = vmatprep.subr.bf16.mxu0 0
        %7430 = vmatpush1.bf16.msra.mxu0 0
        %7431 = vmatprep.subr.bf16.mxu0 0
        %7432 = vmatpush1.bf16.msra.mxu0 0
        %7433 = vmatprep.subr.bf16.mxu0 0
        %7434 = vmatpush1.bf16.msra.mxu0 0
        %7435 = vmatprep.subr.bf16.mxu0 0
        %7436 = vmatpush1.bf16.msra.mxu0 0
        %7437 = vmatprep.subr.bf16.mxu0 0
        %7438 = vmatpush1.bf16.msra.mxu0 0
        %7439 = vmatprep.mubr.bf16.mxu0 0
        %7440 = vmatmul.mubr.bf16.gmra.mrb[0].mxu0 %v7352
        %v7441 = vpop.f32.mrb[0].mxu0
        %v7442 = vadd.f32 0.0, %v7441
        %v7443 = vpop.f32.mrb[0].mxu0
        %v7444 = vadd.f32 0.0, %v7443
        %v7445 = vpop.f32.mrb[0].mxu0
        %v7446 = vpop.f32.mrb[0].mxu0
        %7447 = vdwg.mxu0
        %v7448 = vadd.f32 %v7330, %v7401
        %v7449 = vadd.f32 %v7331, %v7403
        %v7450 = vadd.f32 %v7332, %v7442
        %v7451 = vadd.f32 %v7333, %v7444
        %s7452 = scalar_lea.vmem %s3, 80
        %v7453 = vld [vmem:[%s7452] sm:$0xf]
        %7454 = vrot.lane.b32.xlu0 %v5112, 32
        %v7455 = vpop.permute.xlu0 %7454
        %7456 = vrot.lane.b32.xlu0 %v5113, 32
        %v7457 = vpop.permute.xlu0 %7456
        %7458 = vrot.lane.b32.xlu0 %v5114, 32
        %v7459 = vpop.permute.xlu0 %7458
        %7460 = vrot.lane.b32.xlu0 %v5115, 32
        %v7461 = vpop.permute.xlu0 %7460
        %7462 = vrot.lane.b32.xlu0 %v5116, 32
        %v7463 = vpop.permute.xlu0 %7462
        %vm7464 = vcmask 261120
        %v7465 = vsel %vm7464, %v7455, %v7457
        %v7466 = vsel %vm7464, %v7457, %v7459
        %v7467 = vsel %vm7464, %v7459, %v7461
        %v7468 = vsel %vm7464, %v7461, %v7463
        %v7470 = vsel %vm5132, %v7453, 0
        %v7473 = vsel %vm5136, %v7465, 0
        %v7476 = vsel %vm5136, %v7466, 0
        %v7479 = vsel %vm5136, %v7467, 0
        %v7482 = vsel %vm5136, %v7468, 0
        %7484 = vmatprep.subr.bf16.mxu0 %v7476
        %7485 = vmatpush1.bf16.msra.mxu0 %v7473
        %7486 = vmatprep.subr.bf16.mxu0 0
        %7487 = vmatpush1.bf16.msra.mxu0 0
        %7488 = vmatprep.subr.bf16.mxu0 0
        %7489 = vmatpush1.bf16.msra.mxu0 0
        %7490 = vmatprep.subr.bf16.mxu0 0
        %7491 = vmatpush1.bf16.msra.mxu0 0
        %7492 = vmatprep.subr.bf16.mxu0 0
        %7493 = vmatpush1.bf16.msra.mxu0 0
        %7494 = vmatprep.subr.bf16.mxu0 0
        %7495 = vmatpush1.bf16.msra.mxu0 0
        %7496 = vmatprep.subr.bf16.mxu0 0
        %7497 = vmatpush1.bf16.msra.mxu0 0
        %7498 = vmatprep.subr.bf16.mxu0 0
        %7499 = vmatpush1.bf16.msra.mxu0 0
        %7500 = vmatprep.subr.bf16.mxu0 0
        %7501 = vmatpush1.bf16.msra.mxu0 0
        %7502 = vmatprep.subr.bf16.mxu0 0
        %7503 = vmatpush1.bf16.msra.mxu0 0
        %7504 = vmatprep.subr.bf16.mxu0 0
        %7505 = vmatpush1.bf16.msra.mxu0 0
        %7506 = vmatprep.subr.bf16.mxu0 0
        %7507 = vmatpush1.bf16.msra.mxu0 0
        %7508 = vmatprep.subr.bf16.mxu0 0
        %7509 = vmatpush1.bf16.msra.mxu0 0
        %7510 = vmatprep.subr.bf16.mxu0 0
        %7511 = vmatpush1.bf16.msra.mxu0 0
        %7512 = vmatprep.subr.bf16.mxu0 0
        %7513 = vmatpush1.bf16.msra.mxu0 0
        %7514 = vmatprep.subr.bf16.mxu0 0
        %7515 = vmatpush1.bf16.msra.mxu0 0
        %7516 = vmatprep.mubr.bf16.mxu0 0
        %7517 = vmatmul.mubr.bf16.gmra.mrb[0].mxu0 %v7470
        %v7518 = vpop.f32.mrb[0].mxu0
        %v7519 = vadd.f32 0.0, %v7518
        %v7520 = vpop.f32.mrb[0].mxu0
        %v7521 = vadd.f32 0.0, %v7520
        %v7522 = vpop.f32.mrb[0].mxu0
        %v7523 = vpop.f32.mrb[0].mxu0
        %7524 = vdwg.mxu0
        %7525 = vmatprep.subr.bf16.mxu0 %v7482
        %7526 = vmatpush1.bf16.msra.mxu0 %v7479
        %7527 = vmatprep.subr.bf16.mxu0 0
        %7528 = vmatpush1.bf16.msra.mxu0 0
        %7529 = vmatprep.subr.bf16.mxu0 0
        %7530 = vmatpush1.bf16.msra.mxu0 0
        %7531 = vmatprep.subr.bf16.mxu0 0
        %7532 = vmatpush1.bf16.msra.mxu0 0
        %7533 = vmatprep.subr.bf16.mxu0 0
        %7534 = vmatpush1.bf16.msra.mxu0 0
        %7535 = vmatprep.subr.bf16.mxu0 0
        %7536 = vmatpush1.bf16.msra.mxu0 0
        %7537 = vmatprep.subr.bf16.mxu0 0
        %7538 = vmatpush1.bf16.msra.mxu0 0
        %7539 = vmatprep.subr.bf16.mxu0 0
        %7540 = vmatpush1.bf16.msra.mxu0 0
        %7541 = vmatprep.subr.bf16.mxu0 0
        %7542 = vmatpush1.bf16.msra.mxu0 0
        %7543 = vmatprep.subr.bf16.mxu0 0
        %7544 = vmatpush1.bf16.msra.mxu0 0
        %7545 = vmatprep.subr.bf16.mxu0 0
        %7546 = vmatpush1.bf16.msra.mxu0 0
        %7547 = vmatprep.subr.bf16.mxu0 0
        %7548 = vmatpush1.bf16.msra.mxu0 0
        %7549 = vmatprep.subr.bf16.mxu0 0
        %7550 = vmatpush1.bf16.msra.mxu0 0
        %7551 = vmatprep.subr.bf16.mxu0 0
        %7552 = vmatpush1.bf16.msra.mxu0 0
        %7553 = vmatprep.subr.bf16.mxu0 0
        %7554 = vmatpush1.bf16.msra.mxu0 0
        %7555 = vmatprep.subr.bf16.mxu0 0
        %7556 = vmatpush1.bf16.msra.mxu0 0
        %7557 = vmatprep.mubr.bf16.mxu0 0
        %7558 = vmatmul.mubr.bf16.gmra.mrb[0].mxu0 %v7470
        %v7559 = vpop.f32.mrb[0].mxu0
        %v7560 = vadd.f32 0.0, %v7559
        %v7561 = vpop.f32.mrb[0].mxu0
        %v7562 = vadd.f32 0.0, %v7561
        %v7563 = vpop.f32.mrb[0].mxu0
        %v7564 = vpop.f32.mrb[0].mxu0
        %7565 = vdwg.mxu0
        %v7566 = vadd.f32 %v7448, %v7519
        %v7567 = vadd.f32 %v7449, %v7521
        %v7568 = vadd.f32 %v7450, %v7560
        %v7569 = vadd.f32 %v7451, %v7562
        %s7570 = scalar_lea.vmem %s3, 84
        %v7571 = vld [vmem:[%s7570] sm:$0xf]
        %7572 = vrot.lane.b32.xlu0 %v5112, 31
        %v7573 = vpop.permute.xlu0 %7572
        %7574 = vrot.lane.b32.xlu0 %v5113, 31
        %v7575 = vpop.permute.xlu0 %7574
        %7576 = vrot.lane.b32.xlu0 %v5114, 31
        %v7577 = vpop.permute.xlu0 %7576
        %7578 = vrot.lane.b32.xlu0 %v5115, 31
        %v7579 = vpop.permute.xlu0 %7578
        %7580 = vrot.lane.b32.xlu0 %v5116, 31
        %v7581 = vpop.permute.xlu0 %7580
        %vm7582 = vcmask 252928
        %v7583 = vsel %vm7582, %v7573, %v7575
        %v7584 = vsel %vm7582, %v7575, %v7577
        %v7585 = vsel %vm7582, %v7577, %v7579
        %v7586 = vsel %vm7582, %v7579, %v7581
        %v7588 = vsel %vm5132, %v7571, 0
        %v7591 = vsel %vm5136, %v7583, 0
        %v7594 = vsel %vm5136, %v7584, 0
        %v7597 = vsel %vm5136, %v7585, 0
        %v7600 = vsel %vm5136, %v7586, 0
        %7602 = vmatprep.subr.bf16.mxu0 %v7594
        %7603 = vmatpush1.bf16.msra.mxu0 %v7591
        %7604 = vmatprep.subr.bf16.mxu0 0
        %7605 = vmatpush1.bf16.msra.mxu0 0
        %7606 = vmatprep.subr.bf16.mxu0 0
        %7607 = vmatpush1.bf16.msra.mxu0 0
        %7608 = vmatprep.subr.bf16.mxu0 0
        %7609 = vmatpush1.bf16.msra.mxu0 0
        %7610 = vmatprep.subr.bf16.mxu0 0
        %7611 = vmatpush1.bf16.msra.mxu0 0
        %7612 = vmatprep.subr.bf16.mxu0 0
        %7613 = vmatpush1.bf16.msra.mxu0 0
        %7614 = vmatprep.subr.bf16.mxu0 0
        %7615 = vmatpush1.bf16.msra.mxu0 0
        %7616 = vmatprep.subr.bf16.mxu0 0
        %7617 = vmatpush1.bf16.msra.mxu0 0
        %7618 = vmatprep.subr.bf16.mxu0 0
        %7619 = vmatpush1.bf16.msra.mxu0 0
        %7620 = vmatprep.subr.bf16.mxu0 0
        %7621 = vmatpush1.bf16.msra.mxu0 0
        %7622 = vmatprep.subr.bf16.mxu0 0
        %7623 = vmatpush1.bf16.msra.mxu0 0
        %7624 = vmatprep.subr.bf16.mxu0 0
        %7625 = vmatpush1.bf16.msra.mxu0 0
        %7626 = vmatprep.subr.bf16.mxu0 0
        %7627 = vmatpush1.bf16.msra.mxu0 0
        %7628 = vmatprep.subr.bf16.mxu0 0
        %7629 = vmatpush1.bf16.msra.mxu0 0
        %7630 = vmatprep.subr.bf16.mxu0 0
        %7631 = vmatpush1.bf16.msra.mxu0 0
        %7632 = vmatprep.subr.bf16.mxu0 0
        %7633 = vmatpush1.bf16.msra.mxu0 0
        %7634 = vmatprep.mubr.bf16.mxu0 0
        %7635 = vmatmul.mubr.bf16.gmra.mrb[0].mxu0 %v7588
        %v7636 = vpop.f32.mrb[0].mxu0
        %v7637 = vadd.f32 0.0, %v7636
        %v7638 = vpop.f32.mrb[0].mxu0
        %v7639 = vadd.f32 0.0, %v7638
        %v7640 = vpop.f32.mrb[0].mxu0
        %v7641 = vpop.f32.mrb[0].mxu0
        %7642 = vdwg.mxu0
        %7643 = vmatprep.subr.bf16.mxu0 %v7600
        %7644 = vmatpush1.bf16.msra.mxu0 %v7597
        %7645 = vmatprep.subr.bf16.mxu0 0
        %7646 = vmatpush1.bf16.msra.mxu0 0
        %7647 = vmatprep.subr.bf16.mxu0 0
        %7648 = vmatpush1.bf16.msra.mxu0 0
        %7649 = vmatprep.subr.bf16.mxu0 0
        %7650 = vmatpush1.bf16.msra.mxu0 0
        %7651 = vmatprep.subr.bf16.mxu0 0
        %7652 = vmatpush1.bf16.msra.mxu0 0
        %7653 = vmatprep.subr.bf16.mxu0 0
        %7654 = vmatpush1.bf16.msra.mxu0 0
        %7655 = vmatprep.subr.bf16.mxu0 0
        %7656 = vmatpush1.bf16.msra.mxu0 0
        %7657 = vmatprep.subr.bf16.mxu0 0
        %7658 = vmatpush1.bf16.msra.mxu0 0
        %7659 = vmatprep.subr.bf16.mxu0 0
        %7660 = vmatpush1.bf16.msra.mxu0 0
        %7661 = vmatprep.subr.bf16.mxu0 0
        %7662 = vmatpush1.bf16.msra.mxu0 0
        %7663 = vmatprep.subr.bf16.mxu0 0
        %7664 = vmatpush1.bf16.msra.mxu0 0
        %7665 = vmatprep.subr.bf16.mxu0 0
        %7666 = vmatpush1.bf16.msra.mxu0 0
        %7667 = vmatprep.subr.bf16.mxu0 0
        %7668 = vmatpush1.bf16.msra.mxu0 0
        %7669 = vmatprep.subr.bf16.mxu0 0
        %7670 = vmatpush1.bf16.msra.mxu0 0
        %7671 = vmatprep.subr.bf16.mxu0 0
        %7672 = vmatpush1.bf16.msra.mxu0 0
        %7673 = vmatprep.subr.bf16.mxu0 0
        %7674 = vmatpush1.bf16.msra.mxu0 0
        %7675 = vmatprep.mubr.bf16.mxu0 0
        %7676 = vmatmul.mubr.bf16.gmra.mrb[0].mxu0 %v7588
        %v7677 = vpop.f32.mrb[0].mxu0
        %v7678 = vadd.f32 0.0, %v7677
        %v7679 = vpop.f32.mrb[0].mxu0
        %v7680 = vadd.f32 0.0, %v7679
        %v7681 = vpop.f32.mrb[0].mxu0
        %v7682 = vpop.f32.mrb[0].mxu0
        %7683 = vdwg.mxu0
        %v7684 = vadd.f32 %v7566, %v7637
        %v7685 = vadd.f32 %v7567, %v7639
        %v7686 = vadd.f32 %v7568, %v7678
        %v7687 = vadd.f32 %v7569, %v7680
        %s7688 = scalar_lea.vmem %s3, 88
        %v7689 = vld [vmem:[%s7688] sm:$0xf]
        %7690 = vrot.lane.b32.xlu0 %v5112, 30
        %v7691 = vpop.permute.xlu0 %7690
        %7692 = vrot.lane.b32.xlu0 %v5113, 30
        %v7693 = vpop.permute.xlu0 %7692
        %7694 = vrot.lane.b32.xlu0 %v5114, 30
        %v7695 = vpop.permute.xlu0 %7694
        %7696 = vrot.lane.b32.xlu0 %v5115, 30
        %v7697 = vpop.permute.xlu0 %7696
        %7698 = vrot.lane.b32.xlu0 %v5116, 30
        %v7699 = vpop.permute.xlu0 %7698
        %vm7700 = vcmask 244736
        %v7701 = vsel %vm7700, %v7691, %v7693
        %v7702 = vsel %vm7700, %v7693, %v7695
        %v7703 = vsel %vm7700, %v7695, %v7697
        %v7704 = vsel %vm7700, %v7697, %v7699
        %v7706 = vsel %vm5132, %v7689, 0
        %v7709 = vsel %vm5136, %v7701, 0
        %v7712 = vsel %vm5136, %v7702, 0
        %v7715 = vsel %vm5136, %v7703, 0
        %v7718 = vsel %vm5136, %v7704, 0
        %7720 = vmatprep.subr.bf16.mxu0 %v7712
        %7721 = vmatpush1.bf16.msra.mxu0 %v7709
        %7722 = vmatprep.subr.bf16.mxu0 0
        %7723 = vmatpush1.bf16.msra.mxu0 0
        %7724 = vmatprep.subr.bf16.mxu0 0
        %7725 = vmatpush1.bf16.msra.mxu0 0
        %7726 = vmatprep.subr.bf16.mxu0 0
        %7727 = vmatpush1.bf16.msra.mxu0 0
        %7728 = vmatprep.subr.bf16.mxu0 0
        %7729 = vmatpush1.bf16.msra.mxu0 0
        %7730 = vmatprep.subr.bf16.mxu0 0
        %7731 = vmatpush1.bf16.msra.mxu0 0
        %7732 = vmatprep.subr.bf16.mxu0 0
        %7733 = vmatpush1.bf16.msra.mxu0 0
        %7734 = vmatprep.subr.bf16.mxu0 0
        %7735 = vmatpush1.bf16.msra.mxu0 0
        %7736 = vmatprep.subr.bf16.mxu0 0
        %7737 = vmatpush1.bf16.msra.mxu0 0
        %7738 = vmatprep.subr.bf16.mxu0 0
        %7739 = vmatpush1.bf16.msra.mxu0 0
        %7740 = vmatprep.subr.bf16.mxu0 0
        %7741 = vmatpush1.bf16.msra.mxu0 0
        %7742 = vmatprep.subr.bf16.mxu0 0
        %7743 = vmatpush1.bf16.msra.mxu0 0
        %7744 = vmatprep.subr.bf16.mxu0 0
        %7745 = vmatpush1.bf16.msra.mxu0 0
        %7746 = vmatprep.subr.bf16.mxu0 0
        %7747 = vmatpush1.bf16.msra.mxu0 0
        %7748 = vmatprep.subr.bf16.mxu0 0
        %7749 = vmatpush1.bf16.msra.mxu0 0
        %7750 = vmatprep.subr.bf16.mxu0 0
        %7751 = vmatpush1.bf16.msra.mxu0 0
        %7752 = vmatprep.mubr.bf16.mxu0 0
        %7753 = vmatmul.mubr.bf16.gmra.mrb[0].mxu0 %v7706
        %v7754 = vpop.f32.mrb[0].mxu0
        %v7755 = vadd.f32 0.0, %v7754
        %v7756 = vpop.f32.mrb[0].mxu0
        %v7757 = vadd.f32 0.0, %v7756
        %v7758 = vpop.f32.mrb[0].mxu0
        %v7759 = vpop.f32.mrb[0].mxu0
        %7760 = vdwg.mxu0
        %7761 = vmatprep.subr.bf16.mxu0 %v7718
        %7762 = vmatpush1.bf16.msra.mxu0 %v7715
        %7763 = vmatprep.subr.bf16.mxu0 0
        %7764 = vmatpush1.bf16.msra.mxu0 0
        %7765 = vmatprep.subr.bf16.mxu0 0
        %7766 = vmatpush1.bf16.msra.mxu0 0
        %7767 = vmatprep.subr.bf16.mxu0 0
        %7768 = vmatpush1.bf16.msra.mxu0 0
        %7769 = vmatprep.subr.bf16.mxu0 0
        %7770 = vmatpush1.bf16.msra.mxu0 0
        %7771 = vmatprep.subr.bf16.mxu0 0
        %7772 = vmatpush1.bf16.msra.mxu0 0
        %7773 = vmatprep.subr.bf16.mxu0 0
        %7774 = vmatpush1.bf16.msra.mxu0 0
        %7775 = vmatprep.subr.bf16.mxu0 0
        %7776 = vmatpush1.bf16.msra.mxu0 0
        %7777 = vmatprep.subr.bf16.mxu0 0
        %7778 = vmatpush1.bf16.msra.mxu0 0
        %7779 = vmatprep.subr.bf16.mxu0 0
        %7780 = vmatpush1.bf16.msra.mxu0 0
        %7781 = vmatprep.subr.bf16.mxu0 0
        %7782 = vmatpush1.bf16.msra.mxu0 0
        %7783 = vmatprep.subr.bf16.mxu0 0
        %7784 = vmatpush1.bf16.msra.mxu0 0
        %7785 = vmatprep.subr.bf16.mxu0 0
        %7786 = vmatpush1.bf16.msra.mxu0 0
        %7787 = vmatprep.subr.bf16.mxu0 0
        %7788 = vmatpush1.bf16.msra.mxu0 0
        %7789 = vmatprep.subr.bf16.mxu0 0
        %7790 = vmatpush1.bf16.msra.mxu0 0
        %7791 = vmatprep.subr.bf16.mxu0 0
        %7792 = vmatpush1.bf16.msra.mxu0 0
        %7793 = vmatprep.mubr.bf16.mxu0 0
        %7794 = vmatmul.mubr.bf16.gmra.mrb[0].mxu0 %v7706
        %v7795 = vpop.f32.mrb[0].mxu0
        %v7796 = vadd.f32 0.0, %v7795
        %v7797 = vpop.f32.mrb[0].mxu0
        %v7798 = vadd.f32 0.0, %v7797
        %v7799 = vpop.f32.mrb[0].mxu0
        %v7800 = vpop.f32.mrb[0].mxu0
        %7801 = vdwg.mxu0
        %v7802 = vadd.f32 %v7684, %v7755
        %v7803 = vadd.f32 %v7685, %v7757
        %v7804 = vadd.f32 %v7686, %v7796
        %v7805 = vadd.f32 %v7687, %v7798
        %s7806 = scalar_lea.vmem %s3, 92
        %v7807 = vld [vmem:[%s7806] sm:$0xf]
        %7808 = vrot.lane.b32.xlu0 %v5112, 29
        %v7809 = vpop.permute.xlu0 %7808
        %7810 = vrot.lane.b32.xlu0 %v5113, 29
        %v7811 = vpop.permute.xlu0 %7810
        %7812 = vrot.lane.b32.xlu0 %v5114, 29
        %v7813 = vpop.permute.xlu0 %7812
        %7814 = vrot.lane.b32.xlu0 %v5115, 29
        %v7815 = vpop.permute.xlu0 %7814
        %7816 = vrot.lane.b32.xlu0 %v5116, 29
        %v7817 = vpop.permute.xlu0 %7816
        %vm7818 = vcmask 236544
        %v7819 = vsel %vm7818, %v7809, %v7811
        %v7820 = vsel %vm7818, %v7811, %v7813
        %v7821 = vsel %vm7818, %v7813, %v7815
        %v7822 = vsel %vm7818, %v7815, %v7817
        %v7824 = vsel %vm5132, %v7807, 0
        %v7827 = vsel %vm5136, %v7819, 0
        %v7830 = vsel %vm5136, %v7820, 0
        %v7833 = vsel %vm5136, %v7821, 0
        %v7836 = vsel %vm5136, %v7822, 0
        %7838 = vmatprep.subr.bf16.mxu0 %v7830
        %7839 = vmatpush1.bf16.msra.mxu0 %v7827
        %7840 = vmatprep.subr.bf16.mxu0 0
        %7841 = vmatpush1.bf16.msra.mxu0 0
        %7842 = vmatprep.subr.bf16.mxu0 0
        %7843 = vmatpush1.bf16.msra.mxu0 0
        %7844 = vmatprep.subr.bf16.mxu0 0
        %7845 = vmatpush1.bf16.msra.mxu0 0
        %7846 = vmatprep.subr.bf16.mxu0 0
        %7847 = vmatpush1.bf16.msra.mxu0 0
        %7848 = vmatprep.subr.bf16.mxu0 0
        %7849 = vmatpush1.bf16.msra.mxu0 0
        %7850 = vmatprep.subr.bf16.mxu0 0
        %7851 = vmatpush1.bf16.msra.mxu0 0
        %7852 = vmatprep.subr.bf16.mxu0 0
        %7853 = vmatpush1.bf16.msra.mxu0 0
        %7854 = vmatprep.subr.bf16.mxu0 0
        %7855 = vmatpush1.bf16.msra.mxu0 0
        %7856 = vmatprep.subr.bf16.mxu0 0
        %7857 = vmatpush1.bf16.msra.mxu0 0
        %7858 = vmatprep.subr.bf16.mxu0 0
        %7859 = vmatpush1.bf16.msra.mxu0 0
        %7860 = vmatprep.subr.bf16.mxu0 0
        %7861 = vmatpush1.bf16.msra.mxu0 0
        %7862 = vmatprep.subr.bf16.mxu0 0
        %7863 = vmatpush1.bf16.msra.mxu0 0
        %7864 = vmatprep.subr.bf16.mxu0 0
        %7865 = vmatpush1.bf16.msra.mxu0 0
        %7866 = vmatprep.subr.bf16.mxu0 0
        %7867 = vmatpush1.bf16.msra.mxu0 0
        %7868 = vmatprep.subr.bf16.mxu0 0
        %7869 = vmatpush1.bf16.msra.mxu0 0
        %7870 = vmatprep.mubr.bf16.mxu0 0
        %7871 = vmatmul.mubr.bf16.gmra.mrb[0].mxu0 %v7824
        %v7872 = vpop.f32.mrb[0].mxu0
        %v7873 = vadd.f32 0.0, %v7872
        %v7874 = vpop.f32.mrb[0].mxu0
        %v7875 = vadd.f32 0.0, %v7874
        %v7876 = vpop.f32.mrb[0].mxu0
        %v7877 = vpop.f32.mrb[0].mxu0
        %7878 = vdwg.mxu0
        %7879 = vmatprep.subr.bf16.mxu0 %v7836
        %7880 = vmatpush1.bf16.msra.mxu0 %v7833
        %7881 = vmatprep.subr.bf16.mxu0 0
        %7882 = vmatpush1.bf16.msra.mxu0 0
        %7883 = vmatprep.subr.bf16.mxu0 0
        %7884 = vmatpush1.bf16.msra.mxu0 0
        %7885 = vmatprep.subr.bf16.mxu0 0
        %7886 = vmatpush1.bf16.msra.mxu0 0
        %7887 = vmatprep.subr.bf16.mxu0 0
        %7888 = vmatpush1.bf16.msra.mxu0 0
        %7889 = vmatprep.subr.bf16.mxu0 0
        %7890 = vmatpush1.bf16.msra.mxu0 0
        %7891 = vmatprep.subr.bf16.mxu0 0
        %7892 = vmatpush1.bf16.msra.mxu0 0
        %7893 = vmatprep.subr.bf16.mxu0 0
        %7894 = vmatpush1.bf16.msra.mxu0 0
        %7895 = vmatprep.subr.bf16.mxu0 0
        %7896 = vmatpush1.bf16.msra.mxu0 0
        %7897 = vmatprep.subr.bf16.mxu0 0
        %7898 = vmatpush1.bf16.msra.mxu0 0
        %7899 = vmatprep.subr.bf16.mxu0 0
        %7900 = vmatpush1.bf16.msra.mxu0 0
        %7901 = vmatprep.subr.bf16.mxu0 0
        %7902 = vmatpush1.bf16.msra.mxu0 0
        %7903 = vmatprep.subr.bf16.mxu0 0
        %7904 = vmatpush1.bf16.msra.mxu0 0
        %7905 = vmatprep.subr.bf16.mxu0 0
        %7906 = vmatpush1.bf16.msra.mxu0 0
        %7907 = vmatprep.subr.bf16.mxu0 0
        %7908 = vmatpush1.bf16.msra.mxu0 0
        %7909 = vmatprep.subr.bf16.mxu0 0
        %7910 = vmatpush1.bf16.msra.mxu0 0
        %7911 = vmatprep.mubr.bf16.mxu0 0
        %7912 = vmatmul.mubr.bf16.gmra.mrb[0].mxu0 %v7824
        %v7913 = vpop.f32.mrb[0].mxu0
        %v7914 = vadd.f32 0.0, %v7913
        %v7915 = vpop.f32.mrb[0].mxu0
        %v7916 = vadd.f32 0.0, %v7915
        %v7917 = vpop.f32.mrb[0].mxu0
        %v7918 = vpop.f32.mrb[0].mxu0
        %7919 = vdwg.mxu0
        %v7920 = vadd.f32 %v7802, %v7873
        %v7921 = vadd.f32 %v7803, %v7875
        %v7922 = vadd.f32 %v7804, %v7914
        %v7923 = vadd.f32 %v7805, %v7916
        %s7924 = scalar_lea.vmem %s3, 96
        %v7925 = vld [vmem:[%s7924] sm:$0xf]
        %7926 = vrot.lane.b32.xlu0 %v5112, 28
        %v7927 = vpop.permute.xlu0 %7926
        %7928 = vrot.lane.b32.xlu0 %v5113, 28
        %v7929 = vpop.permute.xlu0 %7928
        %7930 = vrot.lane.b32.xlu0 %v5114, 28
        %v7931 = vpop.permute.xlu0 %7930
        %7932 = vrot.lane.b32.xlu0 %v5115, 28
        %v7933 = vpop.permute.xlu0 %7932
        %7934 = vrot.lane.b32.xlu0 %v5116, 28
        %v7935 = vpop.permute.xlu0 %7934
        %vm7936 = vcmask 228352
        %v7937 = vsel %vm7936, %v7927, %v7929
        %v7938 = vsel %vm7936, %v7929, %v7931
        %v7939 = vsel %vm7936, %v7931, %v7933
        %v7940 = vsel %vm7936, %v7933, %v7935
        %v7942 = vsel %vm5132, %v7925, 0
        %v7945 = vsel %vm5136, %v7937, 0
        %v7948 = vsel %vm5136, %v7938, 0
        %v7951 = vsel %vm5136, %v7939, 0
        %v7954 = vsel %vm5136, %v7940, 0
        %7956 = vmatprep.subr.bf16.mxu0 %v7948
        %7957 = vmatpush1.bf16.msra.mxu0 %v7945
        %7958 = vmatprep.subr.bf16.mxu0 0
        %7959 = vmatpush1.bf16.msra.mxu0 0
        %7960 = vmatprep.subr.bf16.mxu0 0
        %7961 = vmatpush1.bf16.msra.mxu0 0
        %7962 = vmatprep.subr.bf16.mxu0 0
        %7963 = vmatpush1.bf16.msra.mxu0 0
        %7964 = vmatprep.subr.bf16.mxu0 0
        %7965 = vmatpush1.bf16.msra.mxu0 0
        %7966 = vmatprep.subr.bf16.mxu0 0
        %7967 = vmatpush1.bf16.msra.mxu0 0
        %7968 = vmatprep.subr.bf16.mxu0 0
        %7969 = vmatpush1.bf16.msra.mxu0 0
        %7970 = vmatprep.subr.bf16.mxu0 0
        %7971 = vmatpush1.bf16.msra.mxu0 0
        %7972 = vmatprep.subr.bf16.mxu0 0
        %7973 = vmatpush1.bf16.msra.mxu0 0
        %7974 = vmatprep.subr.bf16.mxu0 0
        %7975 = vmatpush1.bf16.msra.mxu0 0
        %7976 = vmatprep.subr.bf16.mxu0 0
        %7977 = vmatpush1.bf16.msra.mxu0 0
        %7978 = vmatprep.subr.bf16.mxu0 0
        %7979 = vmatpush1.bf16.msra.mxu0 0
        %7980 = vmatprep.subr.bf16.mxu0 0
        %7981 = vmatpush1.bf16.msra.mxu0 0
        %7982 = vmatprep.subr.bf16.mxu0 0
        %7983 = vmatpush1.bf16.msra.mxu0 0
        %7984 = vmatprep.subr.bf16.mxu0 0
        %7985 = vmatpush1.bf16.msra.mxu0 0
        %7986 = vmatprep.subr.bf16.mxu0 0
        %7987 = vmatpush1.bf16.msra.mxu0 0
        %7988 = vmatprep.mubr.bf16.mxu0 0
        %7989 = vmatmul.mubr.bf16.gmra.mrb[0].mxu0 %v7942
        %v7990 = vpop.f32.mrb[0].mxu0
        %v7991 = vadd.f32 0.0, %v7990
        %v7992 = vpop.f32.mrb[0].mxu0
        %v7993 = vadd.f32 0.0, %v7992
        %v7994 = vpop.f32.mrb[0].mxu0
        %v7995 = vpop.f32.mrb[0].mxu0
        %7996 = vdwg.mxu0
        %7997 = vmatprep.subr.bf16.mxu0 %v7954
        %7998 = vmatpush1.bf16.msra.mxu0 %v7951
        %7999 = vmatprep.subr.bf16.mxu0 0
        %8000 = vmatpush1.bf16.msra.mxu0 0
        %8001 = vmatprep.subr.bf16.mxu0 0
        %8002 = vmatpush1.bf16.msra.mxu0 0
        %8003 = vmatprep.subr.bf16.mxu0 0
        %8004 = vmatpush1.bf16.msra.mxu0 0
        %8005 = vmatprep.subr.bf16.mxu0 0
        %8006 = vmatpush1.bf16.msra.mxu0 0
        %8007 = vmatprep.subr.bf16.mxu0 0
        %8008 = vmatpush1.bf16.msra.mxu0 0
        %8009 = vmatprep.subr.bf16.mxu0 0
        %8010 = vmatpush1.bf16.msra.mxu0 0
        %8011 = vmatprep.subr.bf16.mxu0 0
        %8012 = vmatpush1.bf16.msra.mxu0 0
        %8013 = vmatprep.subr.bf16.mxu0 0
        %8014 = vmatpush1.bf16.msra.mxu0 0
        %8015 = vmatprep.subr.bf16.mxu0 0
        %8016 = vmatpush1.bf16.msra.mxu0 0
        %8017 = vmatprep.subr.bf16.mxu0 0
        %8018 = vmatpush1.bf16.msra.mxu0 0
        %8019 = vmatprep.subr.bf16.mxu0 0
        %8020 = vmatpush1.bf16.msra.mxu0 0
        %8021 = vmatprep.subr.bf16.mxu0 0
        %8022 = vmatpush1.bf16.msra.mxu0 0
        %8023 = vmatprep.subr.bf16.mxu0 0
        %8024 = vmatpush1.bf16.msra.mxu0 0
        %8025 = vmatprep.subr.bf16.mxu0 0
        %8026 = vmatpush1.bf16.msra.mxu0 0
        %8027 = vmatprep.subr.bf16.mxu0 0
        %8028 = vmatpush1.bf16.msra.mxu0 0
        %8029 = vmatprep.mubr.bf16.mxu0 0
        %8030 = vmatmul.mubr.bf16.gmra.mrb[0].mxu0 %v7942
        %v8031 = vpop.f32.mrb[0].mxu0
        %v8032 = vadd.f32 0.0, %v8031
        %v8033 = vpop.f32.mrb[0].mxu0
        %v8034 = vadd.f32 0.0, %v8033
        %v8035 = vpop.f32.mrb[0].mxu0
        %v8036 = vpop.f32.mrb[0].mxu0
        %8037 = vdwg.mxu0
        %v8038 = vadd.f32 %v7920, %v7991
        %v8039 = vadd.f32 %v7921, %v7993
        %v8040 = vadd.f32 %v7922, %v8032
        %v8041 = vadd.f32 %v7923, %v8034
        %8046 = vrot.lane.b32.xlu0 %v8038, 127
        %v8047 = vpop.permute.xlu0 %8046
        %8048 = vrot.lane.b32.xlu0 %v8039, 127
        %v8049 = vpop.permute.xlu0 %8048
        %8050 = vrot.lane.b32.xlu0 %v8040, 127
        %v8051 = vpop.permute.xlu0 %8050
        %8052 = vrot.lane.b32.xlu0 %v8041, 127
        %v8053 = vpop.permute.xlu0 %8052
        %v8054 = vsel %vm535, %v8047, %v8049
        %v8055 = vsel %vm535, %v8049, %v8051
        %v8056 = vsel %vm535, %v8051, %v8053
        %v8061 = vmax.f32 %v8038, %v8054
        %v8062 = vmax.f32 %v8039, %v8055
        %v8063 = vmax.f32 %v8040, %v8056
        %v8064 = vmax.f32 %v8041, %v8053
        %8069 = vrot.lane.b32.xlu0 %v8061, 104
        %v8070 = vpop.permute.xlu0 %8069
        %8071 = vrot.lane.b32.xlu0 %v8062, 104
        %v8072 = vpop.permute.xlu0 %8071
        %8073 = vrot.lane.b32.xlu0 %v8063, 104
        %v8074 = vpop.permute.xlu0 %8073
        %8075 = vrot.lane.b32.xlu0 %v8064, 104
        %v8076 = vpop.permute.xlu0 %8075
        %v8077 = vsel %vm1049, %v8070, %v8072
        %v8078 = vsel %vm1049, %v8072, %v8074
        %v8079 = vsel %vm1049, %v8074, %v8076
        %v8084 = vmax.f32 %v8061, %v8077
        %v8085 = vmax.f32 %v8062, %v8078
        %v8086 = vmax.f32 %v8063, %v8079
        %v8087 = vmax.f32 %v8064, %v8076
        %v8088 = vld [vmem:[%s4] sm:$0xff]
        %8090 = vset.pattern.permute.xlu0 0
        %8091 = vperm.xlu0 %8090, %v8088
        %v8092 = vpop.permute.xlu0 %8091
        %v8094 = vadd.f32 %v8084, %v8092
        %v8095 = vadd.f32 %v8085, %v8092
        %v8096 = vadd.f32 %v8086, %v8092
        %v8097 = vadd.f32 %v8087, %v8092
        %v8098 = vmax.f32 %v8094, 0.0
        %v8099 = vmax.f32 %v8095, 0.0
        %v8100 = vmax.f32 %v8096, 0.0
        %v8101 = vmax.f32 %v8097, 0.0
        %v8102 = vpack.c.bf16 %v8098, %v8098
        %v8103 = vpack.c.bf16 %v8099, %v8099
        %v8104 = vpack.c.bf16 %v8100, %v8100
        %v8105 = vpack.c.bf16 %v8101, %v8101
        %v8106 = vld [vmem:[%s5] sm:$0xf]
        %v8107 = vld [vmem:[%s5 + $0x4] sm:$0xf]
        %v8108 = vld [vmem:[%s5 + $0x8] sm:$0xf]
        %v8109 = vld [vmem:[%s5 + $0xc] sm:$0xf]
        %v8110 = vld [vmem:[%s5 + $0x10] sm:$0xf]
        %v8111 = vld [vmem:[%s5 + $0x14] sm:$0xf]
        %v8112 = vld [vmem:[%s5 + $0x18] sm:$0xf]
        %v8113 = vld [vmem:[%s5 + $0x1c] sm:$0xf]
        %v8114 = vld [vmem:[%s5 + $0x20] sm:$0xf]
        %v8115 = vld [vmem:[%s5 + $0x24] sm:$0xf]
        %v8116 = vld [vmem:[%s5 + $0x28] sm:$0xf]
        %v8117 = vld [vmem:[%s5 + $0x2c] sm:$0xf]
        %v8118 = vld [vmem:[%s5 + $0x30] sm:$0xf]
        %v8119 = vld [vmem:[%s5 + $0x34] sm:$0xf]
        %v8120 = vld [vmem:[%s5 + $0x38] sm:$0xf]
        %v8121 = vld [vmem:[%s5 + $0x3c] sm:$0xf]
        %v8122 = vld [vmem:[%s5 + $0x40] sm:$0xf]
        %v8123 = vld [vmem:[%s5 + $0x44] sm:$0xf]
        %v8124 = vld [vmem:[%s5 + $0x48] sm:$0xf]
        %v8125 = vld [vmem:[%s5 + $0x4c] sm:$0xf]
        %v8126 = vld [vmem:[%s5 + $0x50] sm:$0xf]
        %v8127 = vld [vmem:[%s5 + $0x54] sm:$0xf]
        %v8128 = vld [vmem:[%s5 + $0x58] sm:$0xf]
        %v8129 = vld [vmem:[%s5 + $0x5c] sm:$0xf]
        %v8130 = vld [vmem:[%s5 + $0x60] sm:$0xf]
        %v8131 = vld [vmem:[%s5 + $0x64] sm:$0xf]
        %v8132 = vld [vmem:[%s5 + $0x68] sm:$0xf]
        %v8133 = vld [vmem:[%s5 + $0x6c] sm:$0xf]
        %v8134 = vld [vmem:[%s5 + $0x70] sm:$0xf]
        %v8135 = vld [vmem:[%s5 + $0x74] sm:$0xf]
        %v8136 = vld [vmem:[%s5 + $0x78] sm:$0xf]
        %v8137 = vld [vmem:[%s5 + $0x7c] sm:$0xf]
        %v8138 = vld [vmem:[%s5 + $0x80] sm:$0xf]
        %v8139 = vld [vmem:[%s5 + $0x84] sm:$0xf]
        %v8140 = vld [vmem:[%s5 + $0x88] sm:$0xf]
        %v8141 = vld [vmem:[%s5 + $0x8c] sm:$0xf]
        %v8142 = vld [vmem:[%s5 + $0x90] sm:$0xf]
        %v8143 = vld [vmem:[%s5 + $0x94] sm:$0xf]
        %v8144 = vld [vmem:[%s5 + $0x98] sm:$0xf]
        %v8145 = vld [vmem:[%s5 + $0x9c] sm:$0xf]
        %v8146 = vld [vmem:[%s5 + $0xa0] sm:$0xf]
        %v8147 = vld [vmem:[%s5 + $0xa4] sm:$0xf]
        %v8148 = vld [vmem:[%s5 + $0xa8] sm:$0xf]
        %v8149 = vld [vmem:[%s5 + $0xac] sm:$0xf]
        %v8150 = vld [vmem:[%s5 + $0xb0] sm:$0xf]
        %v8151 = vld [vmem:[%s5 + $0xb4] sm:$0xf]
        %v8152 = vld [vmem:[%s5 + $0xb8] sm:$0xf]
        %v8153 = vld [vmem:[%s5 + $0xbc] sm:$0xf]
        %v8154 = vld [vmem:[%s5 + $0xc0] sm:$0xf]
        %v8155 = vld [vmem:[%s5 + $0xc4] sm:$0xf]
        %v8156 = vld [vmem:[%s5 + $0xc8] sm:$0xf]
        %v8157 = vld [vmem:[%s5 + $0xcc] sm:$0xf]
        %v8158 = vld [vmem:[%s5 + $0xd0] sm:$0xf]
        %v8159 = vld [vmem:[%s5 + $0xd4] sm:$0xf]
        %v8160 = vld [vmem:[%s5 + $0xd8] sm:$0xf]
        %v8161 = vld [vmem:[%s5 + $0xdc] sm:$0xf]
        %v8218 = vunpack.c.l.b16 %v8106
        %v8219 = vunpack.c.l.b16 %v8107
        %v8220 = vunpack.c.l.b16 %v8108
        %v8221 = vunpack.c.l.b16 %v8109
        %v8222 = vunpack.c.l.b16 %v8110
        %v8223 = vunpack.c.l.b16 %v8111
        %v8224 = vunpack.c.l.b16 %v8112
        %v8225 = vunpack.c.l.b16 %v8113
        %v8226 = vunpack.c.l.b16 %v8114
        %v8227 = vunpack.c.l.b16 %v8115
        %v8228 = vunpack.c.l.b16 %v8116
        %v8229 = vunpack.c.l.b16 %v8117
        %v8230 = vunpack.c.l.b16 %v8118
        %v8231 = vunpack.c.l.b16 %v8119
        %v8232 = vunpack.c.l.b16 %v8120
        %v8233 = vunpack.c.l.b16 %v8121
        %v8234 = vunpack.c.l.b16 %v8122
        %v8235 = vunpack.c.l.b16 %v8123
        %v8236 = vunpack.c.l.b16 %v8124
        %v8237 = vunpack.c.l.b16 %v8125
        %v8238 = vunpack.c.l.b16 %v8126
        %v8239 = vunpack.c.l.b16 %v8127
        %v8240 = vunpack.c.l.b16 %v8128
        %v8241 = vunpack.c.l.b16 %v8129
        %v8242 = vunpack.c.l.b16 %v8130
        %v8243 = vunpack.c.l.b16 %v8131
        %v8244 = vunpack.c.l.b16 %v8132
        %v8245 = vunpack.c.l.b16 %v8133
        %v8246 = vunpack.c.l.b16 %v8134
        %v8247 = vunpack.c.l.b16 %v8135
        %v8248 = vunpack.c.l.b16 %v8136
        %v8249 = vunpack.c.l.b16 %v8137
        %v8250 = vunpack.c.l.b16 %v8138
        %v8251 = vunpack.c.l.b16 %v8139
        %v8252 = vunpack.c.l.b16 %v8140
        %v8253 = vunpack.c.l.b16 %v8141
        %v8254 = vunpack.c.l.b16 %v8142
        %v8255 = vunpack.c.l.b16 %v8143
        %v8256 = vunpack.c.l.b16 %v8144
        %v8257 = vunpack.c.l.b16 %v8145
        %v8258 = vunpack.c.l.b16 %v8146
        %v8259 = vunpack.c.l.b16 %v8147
        %v8260 = vunpack.c.l.b16 %v8148
        %v8261 = vunpack.c.l.b16 %v8149
        %v8262 = vunpack.c.l.b16 %v8150
        %v8263 = vunpack.c.l.b16 %v8151
        %v8264 = vunpack.c.l.b16 %v8152
        %v8265 = vunpack.c.l.b16 %v8153
        %v8266 = vunpack.c.l.b16 %v8154
        %v8267 = vunpack.c.l.b16 %v8155
        %v8268 = vunpack.c.l.b16 %v8156
        %v8269 = vunpack.c.l.b16 %v8157
        %v8270 = vunpack.c.l.b16 %v8158
        %v8271 = vunpack.c.l.b16 %v8159
        %v8272 = vunpack.c.l.b16 %v8160
        %v8273 = vunpack.c.l.b16 %v8161
        %v8274 = vpack.c.b16 %v8219, %v8218
        %v8275 = vpack.c.b16 %v8221, %v8220
        %v8276 = vpack.c.b16 %v8223, %v8222
        %v8277 = vpack.c.b16 %v8225, %v8224
        %v8278 = vpack.c.b16 %v8227, %v8226
        %v8279 = vpack.c.b16 %v8229, %v8228
        %v8280 = vpack.c.b16 %v8231, %v8230
        %v8281 = vpack.c.b16 %v8233, %v8232
        %v8282 = vpack.c.b16 %v8235, %v8234
        %v8283 = vpack.c.b16 %v8237, %v8236
        %v8284 = vpack.c.b16 %v8239, %v8238
        %v8285 = vpack.c.b16 %v8241, %v8240
        %v8286 = vpack.c.b16 %v8243, %v8242
        %v8287 = vpack.c.b16 %v8245, %v8244
        %v8288 = vpack.c.b16 %v8247, %v8246
        %v8289 = vpack.c.b16 %v8249, %v8248
        %v8290 = vpack.c.b16 %v8251, %v8250
        %v8291 = vpack.c.b16 %v8253, %v8252
        %v8292 = vpack.c.b16 %v8255, %v8254
        %v8293 = vpack.c.b16 %v8257, %v8256
        %v8294 = vpack.c.b16 %v8259, %v8258
        %v8295 = vpack.c.b16 %v8261, %v8260
        %v8296 = vpack.c.b16 %v8263, %v8262
        %v8297 = vpack.c.b16 %v8265, %v8264
        %v8298 = vpack.c.b16 %v8267, %v8266
        %v8299 = vpack.c.b16 %v8269, %v8268
        %v8300 = vpack.c.b16 %v8271, %v8270
        %v8301 = vpack.c.b16 %v8273, %v8272
        %vm8330 = vcmask 523264
        %v8332 = vsel %vm8330, %v8105, 0
        %8334 = vmatprep.subr.bf16.mxu0 0
        %8335 = vmatpush1.bf16.msra.mxu0 %v8274
        %8336 = vmatprep.subr.bf16.mxu0 0
        %8337 = vmatpush1.bf16.msra.mxu0 %v8275
        %8338 = vmatprep.subr.bf16.mxu0 0
        %8339 = vmatpush1.bf16.msra.mxu0 %v8276
        %8340 = vmatprep.subr.bf16.mxu0 0
        %8341 = vmatpush1.bf16.msra.mxu0 %v8277
        %8342 = vmatprep.subr.bf16.mxu0 0
        %8343 = vmatpush1.bf16.msra.mxu0 %v8278
        %8344 = vmatprep.subr.bf16.mxu0 0
        %8345 = vmatpush1.bf16.msra.mxu0 %v8279
        %8346 = vmatprep.subr.bf16.mxu0 0
        %8347 = vmatpush1.bf16.msra.mxu0 %v8280
        %8348 = vmatprep.subr.bf16.mxu0 0
        %8349 = vmatpush1.bf16.msra.mxu0 %v8281
        %8350 = vmatprep.subr.bf16.mxu0 0
        %8351 = vmatpush1.bf16.msra.mxu0 %v8282
        %8352 = vmatprep.subr.bf16.mxu0 0
        %8353 = vmatpush1.bf16.msra.mxu0 %v8283
        %8354 = vmatprep.subr.bf16.mxu0 0
        %8355 = vmatpush1.bf16.msra.mxu0 %v8284
        %8356 = vmatprep.subr.bf16.mxu0 0
        %8357 = vmatpush1.bf16.msra.mxu0 %v8285
        %8358 = vmatprep.subr.bf16.mxu0 0
        %8359 = vmatpush1.bf16.msra.mxu0 %v8286
        %8360 = vmatprep.subr.bf16.mxu0 0
        %8361 = vmatpush1.bf16.msra.mxu0 %v8287
        %8362 = vmatprep.subr.bf16.mxu0 0
        %8363 = vmatpush1.bf16.msra.mxu0 %v8288
        %8364 = vmatprep.subr.bf16.mxu0 0
        %8365 = vmatpush1.bf16.msra.mxu0 %v8289
        %8366 = vmatprep.mubr.bf16.mxu0 %v8103
        %8367 = vmatmul.mubr.bf16.gmra.mrb[0].mxu0 %v8102
        %v8368 = vpop.f32.mrb[0].mxu0
        %v8369 = vadd.f32 0.0, %v8368
        %v8370 = vpop.f32.mrb[0].mxu0
        %v8371 = vpop.f32.mrb[0].mxu0
        %v8372 = vpop.f32.mrb[0].mxu0
        %8373 = vdwg.mxu0
        %8374 = vmatprep.subr.bf16.mxu0 0
        %8375 = vmatpush1.bf16.msra.mxu0 %v8290
        %8376 = vmatprep.subr.bf16.mxu0 0
        %8377 = vmatpush1.bf16.msra.mxu0 %v8291
        %8378 = vmatprep.subr.bf16.mxu0 0
        %8379 = vmatpush1.bf16.msra.mxu0 %v8292
        %8380 = vmatprep.subr.bf16.mxu0 0
        %8381 = vmatpush1.bf16.msra.mxu0 %v8293
        %8382 = vmatprep.subr.bf16.mxu0 0
        %8383 = vmatpush1.bf16.msra.mxu0 %v8294
        %8384 = vmatprep.subr.bf16.mxu0 0
        %8385 = vmatpush1.bf16.msra.mxu0 %v8295
        %8386 = vmatprep.subr.bf16.mxu0 0
        %8387 = vmatpush1.bf16.msra.mxu0 %v8296
        %8388 = vmatprep.subr.bf16.mxu0 0
        %8389 = vmatpush1.bf16.msra.mxu0 %v8297
        %8390 = vmatprep.subr.bf16.mxu0 0
        %8391 = vmatpush1.bf16.msra.mxu0 %v8298
        %8392 = vmatprep.subr.bf16.mxu0 0
        %8393 = vmatpush1.bf16.msra.mxu0 %v8299
        %8394 = vmatprep.subr.bf16.mxu0 0
        %8395 = vmatpush1.bf16.msra.mxu0 %v8300
        %8396 = vmatprep.subr.bf16.mxu0 0
        %8397 = vmatpush1.bf16.msra.mxu0 %v8301
        %8398 = vmatprep.subr.bf16.mxu0 0
        %8399 = vmatpush1.bf16.msra.mxu0 0
        %8400 = vmatprep.subr.bf16.mxu0 0
        %8401 = vmatpush1.bf16.msra.mxu0 0
        %8402 = vmatprep.subr.bf16.mxu0 0
        %8403 = vmatpush1.bf16.msra.mxu0 0
        %8404 = vmatprep.subr.bf16.mxu0 0
        %8405 = vmatpush1.bf16.msra.mxu0 0
        %8406 = vmatprep.mubr.bf16.mxu0 %v8332
        %8407 = vmatmul.mubr.bf16.gmra.mrb[0].mxu0 %v8104
        %v8408 = vpop.f32.mrb[0].mxu0
        %v8409 = vadd.f32 %v8369, %v8408
        %v8410 = vpop.f32.mrb[0].mxu0
        %v8411 = vpop.f32.mrb[0].mxu0
        %v8412 = vpop.f32.mrb[0].mxu0
        %8413 = vdwg.mxu0
        %v8414 = vpack.c.bf16 %v8409, %v8409
        %v8415 = vld [vmem:[%s6] sm:$0xf]
        %v8416 = vld [vmem:[%s6 + $0x4] sm:$0xf]
        %v8417 = vld [vmem:[%s6 + $0x8] sm:$0xf]
        %v8418 = vld [vmem:[%s6 + $0xc] sm:$0xf]
        %v8419 = vld [vmem:[%s6 + $0x10] sm:$0xf]
        %v8420 = vld [vmem:[%s6 + $0x14] sm:$0xf]
        %v8421 = vld [vmem:[%s6 + $0x18] sm:$0xf]
        %v8422 = vld [vmem:[%s6 + $0x1c] sm:$0xf]
        %v8423 = vld [vmem:[%s6 + $0x20] sm:$0xf]
        %v8424 = vld [vmem:[%s6 + $0x24] sm:$0xf]
        %v8425 = vld [vmem:[%s6 + $0x28] sm:$0xf]
        %v8426 = vld [vmem:[%s6 + $0x2c] sm:$0xf]
        %v8427 = vld [vmem:[%s6 + $0x30] sm:$0xf]
        %v8428 = vld [vmem:[%s6 + $0x34] sm:$0xf]
        %v8429 = vld [vmem:[%s6 + $0x38] sm:$0xf]
        %v8430 = vld [vmem:[%s6 + $0x3c] sm:$0xf]
        %s8431 = scalar_lea.vmem %s6, 64
        %v8432 = vld [vmem:[%s8431] sm:$0xf]
        %v8433 = vld [vmem:[%s8431 + $0x4] sm:$0xf]
        %v8434 = vld [vmem:[%s8431 + $0x8] sm:$0xf]
        %v8435 = vld [vmem:[%s8431 + $0xc] sm:$0xf]
        %v8436 = vld [vmem:[%s8431 + $0x10] sm:$0xf]
        %v8437 = vld [vmem:[%s8431 + $0x14] sm:$0xf]
        %v8438 = vld [vmem:[%s8431 + $0x18] sm:$0xf]
        %v8439 = vld [vmem:[%s8431 + $0x1c] sm:$0xf]
        %v8440 = vld [vmem:[%s8431 + $0x20] sm:$0xf]
        %v8441 = vld [vmem:[%s8431 + $0x24] sm:$0xf]
        %v8442 = vld [vmem:[%s8431 + $0x28] sm:$0xf]
        %v8443 = vld [vmem:[%s8431 + $0x2c] sm:$0xf]
        %v8444 = vld [vmem:[%s8431 + $0x30] sm:$0xf]
        %v8445 = vld [vmem:[%s8431 + $0x34] sm:$0xf]
        %v8446 = vld [vmem:[%s8431 + $0x38] sm:$0xf]
        %v8447 = vld [vmem:[%s8431 + $0x3c] sm:$0xf]
        %v8449 = vshrl.u32 %v8414, 16
        %v8468 = vunpack.c.l.b16 %v8432
        %v8469 = vunpack.c.l.b16 %v8433
        %v8470 = vunpack.c.l.b16 %v8434
        %v8471 = vunpack.c.l.b16 %v8435
        %v8472 = vunpack.c.l.b16 %v8436
        %v8473 = vunpack.c.l.b16 %v8437
        %v8474 = vunpack.c.l.b16 %v8438
        %v8475 = vunpack.c.l.b16 %v8439
        %v8476 = vunpack.c.l.b16 %v8440
        %v8477 = vunpack.c.l.b16 %v8441
        %v8478 = vunpack.c.l.b16 %v8442
        %v8479 = vunpack.c.l.b16 %v8443
        %v8480 = vunpack.c.l.b16 %v8444
        %v8481 = vunpack.c.l.b16 %v8445
        %v8482 = vunpack.c.l.b16 %v8446
        %v8483 = vunpack.c.l.b16 %v8447
        %v8484 = vpack.c.b16 %v8469, %v8468
        %v8485 = vpack.c.b16 %v8471, %v8470
        %v8486 = vpack.c.b16 %v8473, %v8472
        %v8487 = vpack.c.b16 %v8475, %v8474
        %v8488 = vpack.c.b16 %v8477, %v8476
        %v8489 = vpack.c.b16 %v8479, %v8478
        %v8490 = vpack.c.b16 %v8481, %v8480
        %v8491 = vpack.c.b16 %v8483, %v8482
        %8500 = vmatprep.subr.bf16.mxu0 0
        %8501 = vmatpush1.bf16.msra.mxu0 %v8484
        %8502 = vmatprep.subr.bf16.mxu0 0
        %8503 = vmatpush1.bf16.msra.mxu0 %v8485
        %8504 = vmatprep.subr.bf16.mxu0 0
        %8505 = vmatpush1.bf16.msra.mxu0 %v8486
        %8506 = vmatprep.subr.bf16.mxu0 0
        %8507 = vmatpush1.bf16.msra.mxu0 %v8487
        %8508 = vmatprep.subr.bf16.mxu0 0
        %8509 = vmatpush1.bf16.msra.mxu0 %v8488
        %8510 = vmatprep.subr.bf16.mxu0 0
        %8511 = vmatpush1.bf16.msra.mxu0 %v8489
        %8512 = vmatprep.subr.bf16.mxu0 0
        %8513 = vmatpush1.bf16.msra.mxu0 %v8490
        %8514 = vmatprep.subr.bf16.mxu0 0
        %8515 = vmatpush1.bf16.msra.mxu0 %v8491
        %8516 = vmatprep.subr.bf16.mxu0 0
        %8517 = vmatpush1.bf16.msra.mxu0 0
        %8518 = vmatprep.subr.bf16.mxu0 0
        %8519 = vmatpush1.bf16.msra.mxu0 0
        %8520 = vmatprep.subr.bf16.mxu0 0
        %8521 = vmatpush1.bf16.msra.mxu0 0
        %8522 = vmatprep.subr.bf16.mxu0 0
        %8523 = vmatpush1.bf16.msra.mxu0 0
        %8524 = vmatprep.subr.bf16.mxu0 0
        %8525 = vmatpush1.bf16.msra.mxu0 0
        %8526 = vmatprep.subr.bf16.mxu0 0
        %8527 = vmatpush1.bf16.msra.mxu0 0
        %8528 = vmatprep.subr.bf16.mxu0 0
        %8529 = vmatpush1.bf16.msra.mxu0 0
        %8530 = vmatprep.subr.bf16.mxu0 0
        %8531 = vmatpush1.bf16.msra.mxu0 0
        %8532 = vmatprep.mubr.bf16.mxu0 0
        %8533 = vmatmul.mubr.bf16.gmra.mrb[0].mxu0 %v8449
        %v8534 = vpop.f32.mrb[0].mxu0
        %v8535 = vadd.f32 0.0, %v8534
        %v8536 = vpop.f32.mrb[0].mxu0
        %v8537 = vpop.f32.mrb[0].mxu0
        %v8538 = vpop.f32.mrb[0].mxu0
        %8539 = vdwg.mxu0
        %s8540 = scalar_lea.vmem %s6, 128
        %v8541 = vld [vmem:[%s8540] sm:$0xf]
        %v8542 = vld [vmem:[%s8540 + $0x4] sm:$0xf]
        %v8543 = vld [vmem:[%s8540 + $0x8] sm:$0xf]
        %v8544 = vld [vmem:[%s8540 + $0xc] sm:$0xf]
        %v8545 = vld [vmem:[%s8540 + $0x10] sm:$0xf]
        %v8546 = vld [vmem:[%s8540 + $0x14] sm:$0xf]
        %v8547 = vld [vmem:[%s8540 + $0x18] sm:$0xf]
        %v8548 = vld [vmem:[%s8540 + $0x1c] sm:$0xf]
        %v8549 = vld [vmem:[%s8540 + $0x20] sm:$0xf]
        %v8550 = vld [vmem:[%s8540 + $0x24] sm:$0xf]
        %v8551 = vld [vmem:[%s8540 + $0x28] sm:$0xf]
        %v8552 = vld [vmem:[%s8540 + $0x2c] sm:$0xf]
        %v8553 = vld [vmem:[%s8540 + $0x30] sm:$0xf]
        %v8554 = vld [vmem:[%s8540 + $0x34] sm:$0xf]
        %v8555 = vld [vmem:[%s8540 + $0x38] sm:$0xf]
        %v8556 = vld [vmem:[%s8540 + $0x3c] sm:$0xf]
        %s8557 = scalar_lea.vmem %s6, 192
        %v8558 = vld [vmem:[%s8557] sm:$0xf]
        %v8559 = vld [vmem:[%s8557 + $0x4] sm:$0xf]
        %v8560 = vld [vmem:[%s8557 + $0x8] sm:$0xf]
        %v8561 = vld [vmem:[%s8557 + $0xc] sm:$0xf]
        %v8562 = vld [vmem:[%s8557 + $0x10] sm:$0xf]
        %v8563 = vld [vmem:[%s8557 + $0x14] sm:$0xf]
        %v8564 = vld [vmem:[%s8557 + $0x18] sm:$0xf]
        %v8565 = vld [vmem:[%s8557 + $0x1c] sm:$0xf]
        %v8566 = vld [vmem:[%s8557 + $0x20] sm:$0xf]
        %v8567 = vld [vmem:[%s8557 + $0x24] sm:$0xf]
        %v8568 = vld [vmem:[%s8557 + $0x28] sm:$0xf]
        %v8569 = vld [vmem:[%s8557 + $0x2c] sm:$0xf]
        %v8570 = vld [vmem:[%s8557 + $0x30] sm:$0xf]
        %v8571 = vld [vmem:[%s8557 + $0x34] sm:$0xf]
        %v8572 = vld [vmem:[%s8557 + $0x38] sm:$0xf]
        %v8573 = vld [vmem:[%s8557 + $0x3c] sm:$0xf]
        %v8574 = vrot.slane %v8449, 1
        %v8592 = vunpack.c.l.b16 %v8558
        %v8593 = vunpack.c.l.b16 %v8559
        %v8594 = vunpack.c.l.b16 %v8560
        %v8595 = vunpack.c.l.b16 %v8561
        %v8596 = vunpack.c.l.b16 %v8562
        %v8597 = vunpack.c.l.b16 %v8563
        %v8598 = vunpack.c.l.b16 %v8564
        %v8599 = vunpack.c.l.b16 %v8565
        %v8600 = vunpack.c.l.b16 %v8566
        %v8601 = vunpack.c.l.b16 %v8567
        %v8602 = vunpack.c.l.b16 %v8568
        %v8603 = vunpack.c.l.b16 %v8569
        %v8604 = vunpack.c.l.b16 %v8570
        %v8605 = vunpack.c.l.b16 %v8571
        %v8606 = vunpack.c.l.b16 %v8572
        %v8607 = vunpack.c.l.b16 %v8573
        %v8608 = vpack.c.b16 %v8593, %v8592
        %v8609 = vpack.c.b16 %v8595, %v8594
        %v8610 = vpack.c.b16 %v8597, %v8596
        %v8611 = vpack.c.b16 %v8599, %v8598
        %v8612 = vpack.c.b16 %v8601, %v8600
        %v8613 = vpack.c.b16 %v8603, %v8602
        %v8614 = vpack.c.b16 %v8605, %v8604
        %v8615 = vpack.c.b16 %v8607, %v8606
        %8624 = vmatprep.subr.bf16.mxu0 0
        %8625 = vmatpush1.bf16.msra.mxu0 %v8608
        %8626 = vmatprep.subr.bf16.mxu0 0
        %8627 = vmatpush1.bf16.msra.mxu0 %v8609
        %8628 = vmatprep.subr.bf16.mxu0 0
        %8629 = vmatpush1.bf16.msra.mxu0 %v8610
        %8630 = vmatprep.subr.bf16.mxu0 0
        %8631 = vmatpush1.bf16.msra.mxu0 %v8611
        %8632 = vmatprep.subr.bf16.mxu0 0
        %8633 = vmatpush1.bf16.msra.mxu0 %v8612
        %8634 = vmatprep.subr.bf16.mxu0 0
        %8635 = vmatpush1.bf16.msra.mxu0 %v8613
        %8636 = vmatprep.subr.bf16.mxu0 0
        %8637 = vmatpush1.bf16.msra.mxu0 %v8614
        %8638 = vmatprep.subr.bf16.mxu0 0
        %8639 = vmatpush1.bf16.msra.mxu0 %v8615
        %8640 = vmatprep.subr.bf16.mxu0 0
        %8641 = vmatpush1.bf16.msra.mxu0 0
        %8642 = vmatprep.subr.bf16.mxu0 0
        %8643 = vmatpush1.bf16.msra.mxu0 0
        %8644 = vmatprep.subr.bf16.mxu0 0
        %8645 = vmatpush1.bf16.msra.mxu0 0
        %8646 = vmatprep.subr.bf16.mxu0 0
        %8647 = vmatpush1.bf16.msra.mxu0 0
        %8648 = vmatprep.subr.bf16.mxu0 0
        %8649 = vmatpush1.bf16.msra.mxu0 0
        %8650 = vmatprep.subr.bf16.mxu0 0
        %8651 = vmatpush1.bf16.msra.mxu0 0
        %8652 = vmatprep.subr.bf16.mxu0 0
        %8653 = vmatpush1.bf16.msra.mxu0 0
        %8654 = vmatprep.subr.bf16.mxu0 0
        %8655 = vmatpush1.bf16.msra.mxu0 0
        %8656 = vmatprep.mubr.bf16.mxu0 0
        %8657 = vmatmul.mubr.bf16.gmra.mrb[0].mxu0 %v8574
        %v8658 = vpop.f32.mrb[0].mxu0
        %v8659 = vadd.f32 0.0, %v8658
        %v8660 = vpop.f32.mrb[0].mxu0
        %v8661 = vpop.f32.mrb[0].mxu0
        %v8662 = vpop.f32.mrb[0].mxu0
        %8663 = vdwg.mxu0
        %s8664 = scalar_lea.vmem %s6, 256
        %v8665 = vld [vmem:[%s8664] sm:$0xf]
        %v8666 = vld [vmem:[%s8664 + $0x4] sm:$0xf]
        %v8667 = vld [vmem:[%s8664 + $0x8] sm:$0xf]
        %v8668 = vld [vmem:[%s8664 + $0xc] sm:$0xf]
        %v8669 = vld [vmem:[%s8664 + $0x10] sm:$0xf]
        %v8670 = vld [vmem:[%s8664 + $0x14] sm:$0xf]
        %v8671 = vld [vmem:[%s8664 + $0x18] sm:$0xf]
        %v8672 = vld [vmem:[%s8664 + $0x1c] sm:$0xf]
        %v8673 = vld [vmem:[%s8664 + $0x20] sm:$0xf]
        %v8674 = vld [vmem:[%s8664 + $0x24] sm:$0xf]
        %v8675 = vld [vmem:[%s8664 + $0x28] sm:$0xf]
        %v8676 = vld [vmem:[%s8664 + $0x2c] sm:$0xf]
        %v8677 = vld [vmem:[%s8664 + $0x30] sm:$0xf]
        %v8678 = vld [vmem:[%s8664 + $0x34] sm:$0xf]
        %v8679 = vld [vmem:[%s8664 + $0x38] sm:$0xf]
        %v8680 = vld [vmem:[%s8664 + $0x3c] sm:$0xf]
        %s8681 = scalar_lea.vmem %s6, 320
        %v8682 = vld [vmem:[%s8681] sm:$0xf]
        %v8683 = vld [vmem:[%s8681 + $0x4] sm:$0xf]
        %v8684 = vld [vmem:[%s8681 + $0x8] sm:$0xf]
        %v8685 = vld [vmem:[%s8681 + $0xc] sm:$0xf]
        %v8686 = vld [vmem:[%s8681 + $0x10] sm:$0xf]
        %v8687 = vld [vmem:[%s8681 + $0x14] sm:$0xf]
        %v8688 = vld [vmem:[%s8681 + $0x18] sm:$0xf]
        %v8689 = vld [vmem:[%s8681 + $0x1c] sm:$0xf]
        %v8690 = vld [vmem:[%s8681 + $0x20] sm:$0xf]
        %v8691 = vld [vmem:[%s8681 + $0x24] sm:$0xf]
        %v8692 = vld [vmem:[%s8681 + $0x28] sm:$0xf]
        %v8693 = vld [vmem:[%s8681 + $0x2c] sm:$0xf]
        %v8694 = vld [vmem:[%s8681 + $0x30] sm:$0xf]
        %v8695 = vld [vmem:[%s8681 + $0x34] sm:$0xf]
        %v8696 = vld [vmem:[%s8681 + $0x38] sm:$0xf]
        %v8697 = vld [vmem:[%s8681 + $0x3c] sm:$0xf]
        %v8698 = vrot.slane %v8449, 2
        %v8716 = vunpack.c.l.b16 %v8682
        %v8717 = vunpack.c.l.b16 %v8683
        %v8718 = vunpack.c.l.b16 %v8684
        %v8719 = vunpack.c.l.b16 %v8685
        %v8720 = vunpack.c.l.b16 %v8686
        %v8721 = vunpack.c.l.b16 %v8687
        %v8722 = vunpack.c.l.b16 %v8688
        %v8723 = vunpack.c.l.b16 %v8689
        %v8724 = vunpack.c.l.b16 %v8690
        %v8725 = vunpack.c.l.b16 %v8691
        %v8726 = vunpack.c.l.b16 %v8692
        %v8727 = vunpack.c.l.b16 %v8693
        %v8728 = vunpack.c.l.b16 %v8694
        %v8729 = vunpack.c.l.b16 %v8695
        %v8730 = vunpack.c.l.b16 %v8696
        %v8731 = vunpack.c.l.b16 %v8697
        %v8732 = vpack.c.b16 %v8717, %v8716
        %v8733 = vpack.c.b16 %v8719, %v8718
        %v8734 = vpack.c.b16 %v8721, %v8720
        %v8735 = vpack.c.b16 %v8723, %v8722
        %v8736 = vpack.c.b16 %v8725, %v8724
        %v8737 = vpack.c.b16 %v8727, %v8726
        %v8738 = vpack.c.b16 %v8729, %v8728
        %v8739 = vpack.c.b16 %v8731, %v8730
        %8748 = vmatprep.subr.bf16.mxu0 0
        %8749 = vmatpush1.bf16.msra.mxu0 %v8732
        %8750 = vmatprep.subr.bf16.mxu0 0
        %8751 = vmatpush1.bf16.msra.mxu0 %v8733
        %8752 = vmatprep.subr.bf16.mxu0 0
        %8753 = vmatpush1.bf16.msra.mxu0 %v8734
        %8754 = vmatprep.subr.bf16.mxu0 0
        %8755 = vmatpush1.bf16.msra.mxu0 %v8735
        %8756 = vmatprep.subr.bf16.mxu0 0
        %8757 = vmatpush1.bf16.msra.mxu0 %v8736
        %8758 = vmatprep.subr.bf16.mxu0 0
        %8759 = vmatpush1.bf16.msra.mxu0 %v8737
        %8760 = vmatprep.subr.bf16.mxu0 0
        %8761 = vmatpush1.bf16.msra.mxu0 %v8738
        %8762 = vmatprep.subr.bf16.mxu0 0
        %8763 = vmatpush1.bf16.msra.mxu0 %v8739
        %8764 = vmatprep.subr.bf16.mxu0 0
        %8765 = vmatpush1.bf16.msra.mxu0 0
        %8766 = vmatprep.subr.bf16.mxu0 0
        %8767 = vmatpush1.bf16.msra.mxu0 0
        %8768 = vmatprep.subr.bf16.mxu0 0
        %8769 = vmatpush1.bf16.msra.mxu0 0
        %8770 = vmatprep.subr.bf16.mxu0 0
        %8771 = vmatpush1.bf16.msra.mxu0 0
        %8772 = vmatprep.subr.bf16.mxu0 0
        %8773 = vmatpush1.bf16.msra.mxu0 0
        %8774 = vmatprep.subr.bf16.mxu0 0
        %8775 = vmatpush1.bf16.msra.mxu0 0
        %8776 = vmatprep.subr.bf16.mxu0 0
        %8777 = vmatpush1.bf16.msra.mxu0 0
        %8778 = vmatprep.subr.bf16.mxu0 0
        %8779 = vmatpush1.bf16.msra.mxu0 0
        %8780 = vmatprep.mubr.bf16.mxu0 0
        %8781 = vmatmul.mubr.bf16.gmra.mrb[0].mxu0 %v8698
        %v8782 = vpop.f32.mrb[0].mxu0
        %v8783 = vadd.f32 0.0, %v8782
        %v8784 = vpop.f32.mrb[0].mxu0
        %v8785 = vpop.f32.mrb[0].mxu0
        %v8786 = vpop.f32.mrb[0].mxu0
        %8787 = vdwg.mxu0
        %s8788 = scalar_lea.vmem %s6, 384
        %v8789 = vld [vmem:[%s8788] sm:$0xf]
        %v8790 = vld [vmem:[%s8788 + $0x4] sm:$0xf]
        %v8791 = vld [vmem:[%s8788 + $0x8] sm:$0xf]
        %v8792 = vld [vmem:[%s8788 + $0xc] sm:$0xf]
        %v8793 = vld [vmem:[%s8788 + $0x10] sm:$0xf]
        %v8794 = vld [vmem:[%s8788 + $0x14] sm:$0xf]
        %v8795 = vld [vmem:[%s8788 + $0x18] sm:$0xf]
        %v8796 = vld [vmem:[%s8788 + $0x1c] sm:$0xf]
        %v8797 = vld [vmem:[%s8788 + $0x20] sm:$0xf]
        %v8798 = vld [vmem:[%s8788 + $0x24] sm:$0xf]
        %v8799 = vld [vmem:[%s8788 + $0x28] sm:$0xf]
        %v8800 = vld [vmem:[%s8788 + $0x2c] sm:$0xf]
        %v8801 = vld [vmem:[%s8788 + $0x30] sm:$0xf]
        %v8802 = vld [vmem:[%s8788 + $0x34] sm:$0xf]
        %v8803 = vld [vmem:[%s8788 + $0x38] sm:$0xf]
        %v8804 = vld [vmem:[%s8788 + $0x3c] sm:$0xf]
        %s8805 = scalar_lea.vmem %s6, 448
        %v8806 = vld [vmem:[%s8805] sm:$0xf]
        %v8807 = vld [vmem:[%s8805 + $0x4] sm:$0xf]
        %v8808 = vld [vmem:[%s8805 + $0x8] sm:$0xf]
        %v8809 = vld [vmem:[%s8805 + $0xc] sm:$0xf]
        %v8810 = vld [vmem:[%s8805 + $0x10] sm:$0xf]
        %v8811 = vld [vmem:[%s8805 + $0x14] sm:$0xf]
        %v8812 = vld [vmem:[%s8805 + $0x18] sm:$0xf]
        %v8813 = vld [vmem:[%s8805 + $0x1c] sm:$0xf]
        %v8814 = vld [vmem:[%s8805 + $0x20] sm:$0xf]
        %v8815 = vld [vmem:[%s8805 + $0x24] sm:$0xf]
        %v8816 = vld [vmem:[%s8805 + $0x28] sm:$0xf]
        %v8817 = vld [vmem:[%s8805 + $0x2c] sm:$0xf]
        %v8818 = vld [vmem:[%s8805 + $0x30] sm:$0xf]
        %v8819 = vld [vmem:[%s8805 + $0x34] sm:$0xf]
        %v8820 = vld [vmem:[%s8805 + $0x38] sm:$0xf]
        %v8821 = vld [vmem:[%s8805 + $0x3c] sm:$0xf]
        %v8822 = vrot.slane %v8449, 3
        %v8840 = vunpack.c.l.b16 %v8806
        %v8841 = vunpack.c.l.b16 %v8807
        %v8842 = vunpack.c.l.b16 %v8808
        %v8843 = vunpack.c.l.b16 %v8809
        %v8844 = vunpack.c.l.b16 %v8810
        %v8845 = vunpack.c.l.b16 %v8811
        %v8846 = vunpack.c.l.b16 %v8812
        %v8847 = vunpack.c.l.b16 %v8813
        %v8848 = vunpack.c.l.b16 %v8814
        %v8849 = vunpack.c.l.b16 %v8815
        %v8850 = vunpack.c.l.b16 %v8816
        %v8851 = vunpack.c.l.b16 %v8817
        %v8852 = vunpack.c.l.b16 %v8818
        %v8853 = vunpack.c.l.b16 %v8819
        %v8854 = vunpack.c.l.b16 %v8820
        %v8855 = vunpack.c.l.b16 %v8821
        %v8856 = vpack.c.b16 %v8841, %v8840
        %v8857 = vpack.c.b16 %v8843, %v8842
        %v8858 = vpack.c.b16 %v8845, %v8844
        %v8859 = vpack.c.b16 %v8847, %v8846
        %v8860 = vpack.c.b16 %v8849, %v8848
        %v8861 = vpack.c.b16 %v8851, %v8850
        %v8862 = vpack.c.b16 %v8853, %v8852
        %v8863 = vpack.c.b16 %v8855, %v8854
        %8872 = vmatprep.subr.bf16.mxu0 0
        %8873 = vmatpush1.bf16.msra.mxu0 %v8856
        %8874 = vmatprep.subr.bf16.mxu0 0
        %8875 = vmatpush1.bf16.msra.mxu0 %v8857
        %8876 = vmatprep.subr.bf16.mxu0 0
        %8877 = vmatpush1.bf16.msra.mxu0 %v8858
        %8878 = vmatprep.subr.bf16.mxu0 0
        %8879 = vmatpush1.bf16.msra.mxu0 %v8859
        %8880 = vmatprep.subr.bf16.mxu0 0
        %8881 = vmatpush1.bf16.msra.mxu0 %v8860
        %8882 = vmatprep.subr.bf16.mxu0 0
        %8883 = vmatpush1.bf16.msra.mxu0 %v8861
        %8884 = vmatprep.subr.bf16.mxu0 0
        %8885 = vmatpush1.bf16.msra.mxu0 %v8862
        %8886 = vmatprep.subr.bf16.mxu0 0
        %8887 = vmatpush1.bf16.msra.mxu0 %v8863
        %8888 = vmatprep.subr.bf16.mxu0 0
        %8889 = vmatpush1.bf16.msra.mxu0 0
        %8890 = vmatprep.subr.bf16.mxu0 0
        %8891 = vmatpush1.bf16.msra.mxu0 0
        %8892 = vmatprep.subr.bf16.mxu0 0
        %8893 = vmatpush1.bf16.msra.mxu0 0
        %8894 = vmatprep.subr.bf16.mxu0 0
        %8895 = vmatpush1.bf16.msra.mxu0 0
        %8896 = vmatprep.subr.bf16.mxu0 0
        %8897 = vmatpush1.bf16.msra.mxu0 0
        %8898 = vmatprep.subr.bf16.mxu0 0
        %8899 = vmatpush1.bf16.msra.mxu0 0
        %8900 = vmatprep.subr.bf16.mxu0 0
        %8901 = vmatpush1.bf16.msra.mxu0 0
        %8902 = vmatprep.subr.bf16.mxu0 0
        %8903 = vmatpush1.bf16.msra.mxu0 0
        %8904 = vmatprep.mubr.bf16.mxu0 0
        %8905 = vmatmul.mubr.bf16.gmra.mrb[0].mxu0 %v8822
        %v8906 = vpop.f32.mrb[0].mxu0
        %v8907 = vadd.f32 0.0, %v8906
        %v8908 = vpop.f32.mrb[0].mxu0
        %v8909 = vpop.f32.mrb[0].mxu0
        %v8910 = vpop.f32.mrb[0].mxu0
        %8911 = vdwg.mxu0
        %v8928 = vunpack.c.l.b16 %v8415
        %v8929 = vunpack.c.l.b16 %v8416
        %v8930 = vunpack.c.l.b16 %v8417
        %v8931 = vunpack.c.l.b16 %v8418
        %v8932 = vunpack.c.l.b16 %v8419
        %v8933 = vunpack.c.l.b16 %v8420
        %v8934 = vunpack.c.l.b16 %v8421
        %v8935 = vunpack.c.l.b16 %v8422
        %v8936 = vunpack.c.l.b16 %v8423
        %v8937 = vunpack.c.l.b16 %v8424
        %v8938 = vunpack.c.l.b16 %v8425
        %v8939 = vunpack.c.l.b16 %v8426
        %v8940 = vunpack.c.l.b16 %v8427
        %v8941 = vunpack.c.l.b16 %v8428
        %v8942 = vunpack.c.l.b16 %v8429
        %v8943 = vunpack.c.l.b16 %v8430
        %v8944 = vpack.c.b16 %v8929, %v8928
        %v8945 = vpack.c.b16 %v8931, %v8930
        %v8946 = vpack.c.b16 %v8933, %v8932
        %v8947 = vpack.c.b16 %v8935, %v8934
        %v8948 = vpack.c.b16 %v8937, %v8936
        %v8949 = vpack.c.b16 %v8939, %v8938
        %v8950 = vpack.c.b16 %v8941, %v8940
        %v8951 = vpack.c.b16 %v8943, %v8942
        %8960 = vmatprep.subr.bf16.mxu0 0
        %8961 = vmatpush1.bf16.msra.mxu0 %v8944
        %8962 = vmatprep.subr.bf16.mxu0 0
        %8963 = vmatpush1.bf16.msra.mxu0 %v8945
        %8964 = vmatprep.subr.bf16.mxu0 0
        %8965 = vmatpush1.bf16.msra.mxu0 %v8946
        %8966 = vmatprep.subr.bf16.mxu0 0
        %8967 = vmatpush1.bf16.msra.mxu0 %v8947
        %8968 = vmatprep.subr.bf16.mxu0 0
        %8969 = vmatpush1.bf16.msra.mxu0 %v8948
        %8970 = vmatprep.subr.bf16.mxu0 0
        %8971 = vmatpush1.bf16.msra.mxu0 %v8949
        %8972 = vmatprep.subr.bf16.mxu0 0
        %8973 = vmatpush1.bf16.msra.mxu0 %v8950
        %8974 = vmatprep.subr.bf16.mxu0 0
        %8975 = vmatpush1.bf16.msra.mxu0 %v8951
        %8976 = vmatprep.subr.bf16.mxu0 0
        %8977 = vmatpush1.bf16.msra.mxu0 0
        %8978 = vmatprep.subr.bf16.mxu0 0
        %8979 = vmatpush1.bf16.msra.mxu0 0
        %8980 = vmatprep.subr.bf16.mxu0 0
        %8981 = vmatpush1.bf16.msra.mxu0 0
        %8982 = vmatprep.subr.bf16.mxu0 0
        %8983 = vmatpush1.bf16.msra.mxu0 0
        %8984 = vmatprep.subr.bf16.mxu0 0
        %8985 = vmatpush1.bf16.msra.mxu0 0
        %8986 = vmatprep.subr.bf16.mxu0 0
        %8987 = vmatpush1.bf16.msra.mxu0 0
        %8988 = vmatprep.subr.bf16.mxu0 0
        %8989 = vmatpush1.bf16.msra.mxu0 0
        %8990 = vmatprep.subr.bf16.mxu0 0
        %8991 = vmatpush1.bf16.msra.mxu0 0
        %8992 = vmatprep.mubr.bf16.mxu0 0
        %8993 = vmatmul.mubr.bf16.gmra.mrb[0].mxu0 %v8414
        %v8994 = vpop.f32.mrb[0].mxu0
        %v8995 = vadd.f32 %v8535, %v8994
        %v8996 = vpop.f32.mrb[0].mxu0
        %v8997 = vpop.f32.mrb[0].mxu0
        %v8998 = vpop.f32.mrb[0].mxu0
        %8999 = vdwg.mxu0
        %v9001 = vrot.slane %v8414, 1
        %v9019 = vunpack.c.l.b16 %v8541
        %v9020 = vunpack.c.l.b16 %v8542
        %v9021 = vunpack.c.l.b16 %v8543
        %v9022 = vunpack.c.l.b16 %v8544
        %v9023 = vunpack.c.l.b16 %v8545
        %v9024 = vunpack.c.l.b16 %v8546
        %v9025 = vunpack.c.l.b16 %v8547
        %v9026 = vunpack.c.l.b16 %v8548
        %v9027 = vunpack.c.l.b16 %v8549
        %v9028 = vunpack.c.l.b16 %v8550
        %v9029 = vunpack.c.l.b16 %v8551
        %v9030 = vunpack.c.l.b16 %v8552
        %v9031 = vunpack.c.l.b16 %v8553
        %v9032 = vunpack.c.l.b16 %v8554
        %v9033 = vunpack.c.l.b16 %v8555
        %v9034 = vunpack.c.l.b16 %v8556
        %v9035 = vpack.c.b16 %v9020, %v9019
        %v9036 = vpack.c.b16 %v9022, %v9021
        %v9037 = vpack.c.b16 %v9024, %v9023
        %v9038 = vpack.c.b16 %v9026, %v9025
        %v9039 = vpack.c.b16 %v9028, %v9027
        %v9040 = vpack.c.b16 %v9030, %v9029
        %v9041 = vpack.c.b16 %v9032, %v9031
        %v9042 = vpack.c.b16 %v9034, %v9033
        %9051 = vmatprep.subr.bf16.mxu0 0
        %9052 = vmatpush1.bf16.msra.mxu0 %v9035
        %9053 = vmatprep.subr.bf16.mxu0 0
        %9054 = vmatpush1.bf16.msra.mxu0 %v9036
        %9055 = vmatprep.subr.bf16.mxu0 0
        %9056 = vmatpush1.bf16.msra.mxu0 %v9037
        %9057 = vmatprep.subr.bf16.mxu0 0
        %9058 = vmatpush1.bf16.msra.mxu0 %v9038
        %9059 = vmatprep.subr.bf16.mxu0 0
        %9060 = vmatpush1.bf16.msra.mxu0 %v9039
        %9061 = vmatprep.subr.bf16.mxu0 0
        %9062 = vmatpush1.bf16.msra.mxu0 %v9040
        %9063 = vmatprep.subr.bf16.mxu0 0
        %9064 = vmatpush1.bf16.msra.mxu0 %v9041
        %9065 = vmatprep.subr.bf16.mxu0 0
        %9066 = vmatpush1.bf16.msra.mxu0 %v9042
        %9067 = vmatprep.subr.bf16.mxu0 0
        %9068 = vmatpush1.bf16.msra.mxu0 0
        %9069 = vmatprep.subr.bf16.mxu0 0
        %9070 = vmatpush1.bf16.msra.mxu0 0
        %9071 = vmatprep.subr.bf16.mxu0 0
        %9072 = vmatpush1.bf16.msra.mxu0 0
        %9073 = vmatprep.subr.bf16.mxu0 0
        %9074 = vmatpush1.bf16.msra.mxu0 0
        %9075 = vmatprep.subr.bf16.mxu0 0
        %9076 = vmatpush1.bf16.msra.mxu0 0
        %9077 = vmatprep.subr.bf16.mxu0 0
        %9078 = vmatpush1.bf16.msra.mxu0 0
        %9079 = vmatprep.subr.bf16.mxu0 0
        %9080 = vmatpush1.bf16.msra.mxu0 0
        %9081 = vmatprep.subr.bf16.mxu0 0
        %9082 = vmatpush1.bf16.msra.mxu0 0
        %9083 = vmatprep.mubr.bf16.mxu0 0
        %9084 = vmatmul.mubr.bf16.gmra.mrb[0].mxu0 %v9001
        %v9085 = vpop.f32.mrb[0].mxu0
        %v9086 = vadd.f32 %v8659, %v9085
        %v9087 = vpop.f32.mrb[0].mxu0
        %v9088 = vpop.f32.mrb[0].mxu0
        %v9089 = vpop.f32.mrb[0].mxu0
        %9090 = vdwg.mxu0
        %v9091 = vrot.slane %v8414, 2
        %v9109 = vunpack.c.l.b16 %v8665
        %v9110 = vunpack.c.l.b16 %v8666
        %v9111 = vunpack.c.l.b16 %v8667
        %v9112 = vunpack.c.l.b16 %v8668
        %v9113 = vunpack.c.l.b16 %v8669
        %v9114 = vunpack.c.l.b16 %v8670
        %v9115 = vunpack.c.l.b16 %v8671
        %v9116 = vunpack.c.l.b16 %v8672
        %v9117 = vunpack.c.l.b16 %v8673
        %v9118 = vunpack.c.l.b16 %v8674
        %v9119 = vunpack.c.l.b16 %v8675
        %v9120 = vunpack.c.l.b16 %v8676
        %v9121 = vunpack.c.l.b16 %v8677
        %v9122 = vunpack.c.l.b16 %v8678
        %v9123 = vunpack.c.l.b16 %v8679
        %v9124 = vunpack.c.l.b16 %v8680
        %v9125 = vpack.c.b16 %v9110, %v9109
        %v9126 = vpack.c.b16 %v9112, %v9111
        %v9127 = vpack.c.b16 %v9114, %v9113
        %v9128 = vpack.c.b16 %v9116, %v9115
        %v9129 = vpack.c.b16 %v9118, %v9117
        %v9130 = vpack.c.b16 %v9120, %v9119
        %v9131 = vpack.c.b16 %v9122, %v9121
        %v9132 = vpack.c.b16 %v9124, %v9123
        %9141 = vmatprep.subr.bf16.mxu0 0
        %9142 = vmatpush1.bf16.msra.mxu0 %v9125
        %9143 = vmatprep.subr.bf16.mxu0 0
        %9144 = vmatpush1.bf16.msra.mxu0 %v9126
        %9145 = vmatprep.subr.bf16.mxu0 0
        %9146 = vmatpush1.bf16.msra.mxu0 %v9127
        %9147 = vmatprep.subr.bf16.mxu0 0
        %9148 = vmatpush1.bf16.msra.mxu0 %v9128
        %9149 = vmatprep.subr.bf16.mxu0 0
        %9150 = vmatpush1.bf16.msra.mxu0 %v9129
        %9151 = vmatprep.subr.bf16.mxu0 0
        %9152 = vmatpush1.bf16.msra.mxu0 %v9130
        %9153 = vmatprep.subr.bf16.mxu0 0
        %9154 = vmatpush1.bf16.msra.mxu0 %v9131
        %9155 = vmatprep.subr.bf16.mxu0 0
        %9156 = vmatpush1.bf16.msra.mxu0 %v9132
        %9157 = vmatprep.subr.bf16.mxu0 0
        %9158 = vmatpush1.bf16.msra.mxu0 0
        %9159 = vmatprep.subr.bf16.mxu0 0
        %9160 = vmatpush1.bf16.msra.mxu0 0
        %9161 = vmatprep.subr.bf16.mxu0 0
        %9162 = vmatpush1.bf16.msra.mxu0 0
        %9163 = vmatprep.subr.bf16.mxu0 0
        %9164 = vmatpush1.bf16.msra.mxu0 0
        %9165 = vmatprep.subr.bf16.mxu0 0
        %9166 = vmatpush1.bf16.msra.mxu0 0
        %9167 = vmatprep.subr.bf16.mxu0 0
        %9168 = vmatpush1.bf16.msra.mxu0 0
        %9169 = vmatprep.subr.bf16.mxu0 0
        %9170 = vmatpush1.bf16.msra.mxu0 0
        %9171 = vmatprep.subr.bf16.mxu0 0
        %9172 = vmatpush1.bf16.msra.mxu0 0
        %9173 = vmatprep.mubr.bf16.mxu0 0
        %9174 = vmatmul.mubr.bf16.gmra.mrb[0].mxu0 %v9091
        %v9175 = vpop.f32.mrb[0].mxu0
        %v9176 = vadd.f32 %v8783, %v9175
        %v9177 = vpop.f32.mrb[0].mxu0
        %v9178 = vpop.f32.mrb[0].mxu0
        %v9179 = vpop.f32.mrb[0].mxu0
        %9180 = vdwg.mxu0
        %v9181 = vrot.slane %v8414, 3
        %v9199 = vunpack.c.l.b16 %v8789
        %v9200 = vunpack.c.l.b16 %v8790
        %v9201 = vunpack.c.l.b16 %v8791
        %v9202 = vunpack.c.l.b16 %v8792
        %v9203 = vunpack.c.l.b16 %v8793
        %v9204 = vunpack.c.l.b16 %v8794
        %v9205 = vunpack.c.l.b16 %v8795
        %v9206 = vunpack.c.l.b16 %v8796
        %v9207 = vunpack.c.l.b16 %v8797
        %v9208 = vunpack.c.l.b16 %v8798
        %v9209 = vunpack.c.l.b16 %v8799
        %v9210 = vunpack.c.l.b16 %v8800
        %v9211 = vunpack.c.l.b16 %v8801
        %v9212 = vunpack.c.l.b16 %v8802
        %v9213 = vunpack.c.l.b16 %v8803
        %v9214 = vunpack.c.l.b16 %v8804
        %v9215 = vpack.c.b16 %v9200, %v9199
        %v9216 = vpack.c.b16 %v9202, %v9201
        %v9217 = vpack.c.b16 %v9204, %v9203
        %v9218 = vpack.c.b16 %v9206, %v9205
        %v9219 = vpack.c.b16 %v9208, %v9207
        %v9220 = vpack.c.b16 %v9210, %v9209
        %v9221 = vpack.c.b16 %v9212, %v9211
        %v9222 = vpack.c.b16 %v9214, %v9213
        %9231 = vmatprep.subr.bf16.mxu0 0
        %9232 = vmatpush1.bf16.msra.mxu0 %v9215
        %9233 = vmatprep.subr.bf16.mxu0 0
        %9234 = vmatpush1.bf16.msra.mxu0 %v9216
        %9235 = vmatprep.subr.bf16.mxu0 0
        %9236 = vmatpush1.bf16.msra.mxu0 %v9217
        %9237 = vmatprep.subr.bf16.mxu0 0
        %9238 = vmatpush1.bf16.msra.mxu0 %v9218
        %9239 = vmatprep.subr.bf16.mxu0 0
        %9240 = vmatpush1.bf16.msra.mxu0 %v9219
        %9241 = vmatprep.subr.bf16.mxu0 0
        %9242 = vmatpush1.bf16.msra.mxu0 %v9220
        %9243 = vmatprep.subr.bf16.mxu0 0
        %9244 = vmatpush1.bf16.msra.mxu0 %v9221
        %9245 = vmatprep.subr.bf16.mxu0 0
        %9246 = vmatpush1.bf16.msra.mxu0 %v9222
        %9247 = vmatprep.subr.bf16.mxu0 0
        %9248 = vmatpush1.bf16.msra.mxu0 0
        %9249 = vmatprep.subr.bf16.mxu0 0
        %9250 = vmatpush1.bf16.msra.mxu0 0
        %9251 = vmatprep.subr.bf16.mxu0 0
        %9252 = vmatpush1.bf16.msra.mxu0 0
        %9253 = vmatprep.subr.bf16.mxu0 0
        %9254 = vmatpush1.bf16.msra.mxu0 0
        %9255 = vmatprep.subr.bf16.mxu0 0
        %9256 = vmatpush1.bf16.msra.mxu0 0
        %9257 = vmatprep.subr.bf16.mxu0 0
        %9258 = vmatpush1.bf16.msra.mxu0 0
        %9259 = vmatprep.subr.bf16.mxu0 0
        %9260 = vmatpush1.bf16.msra.mxu0 0
        %9261 = vmatprep.subr.bf16.mxu0 0
        %9262 = vmatpush1.bf16.msra.mxu0 0
        %9263 = vmatprep.mubr.bf16.mxu0 0
        %9264 = vmatmul.mubr.bf16.gmra.mrb[0].mxu0 %v9181
        %v9265 = vpop.f32.mrb[0].mxu0
        %v9266 = vadd.f32 %v8907, %v9265
        %v9267 = vpop.f32.mrb[0].mxu0
        %v9268 = vpop.f32.mrb[0].mxu0
        %v9269 = vpop.f32.mrb[0].mxu0
        %9270 = vdwg.mxu0
        %v9271 = vadd.f32 %v8995, %v9086
        %v9272 = vadd.f32 %v9176, %v9266
        %v9273 = vadd.f32 %v9271, %v9272
        %v9274 = vld [vmem:[%s7] sm:$0x1]
        %v9275 = vadd.f32 %v9273, %v9274
        %v9276 = vmax.f32 %v9275, 0.0
        %v9277 = vpack.c.bf16 %v9276, %v9276
        %v9278 = vld [vmem:[#allocation3] sm:$0xf]
        %v9279 = vld [vmem:[#allocation3 + $0x4] sm:$0xf]
        %v9280 = vld [vmem:[#allocation3 + $0x8] sm:$0xf]
        %v9281 = vld [vmem:[#allocation3 + $0xc] sm:$0xf]
        %v9282 = vld [vmem:[#allocation3 + $0x10] sm:$0xf]
        %v9283 = vld [vmem:[#allocation3 + $0x14] sm:$0xf]
        %v9284 = vld [vmem:[#allocation3 + $0x18] sm:$0xf]
        %v9285 = vld [vmem:[#allocation3 + $0x1c] sm:$0xf]
        %v9286 = vld [vmem:[#allocation3 + $0x20] sm:$0xf]
        %v9287 = vld [vmem:[#allocation3 + $0x24] sm:$0xf]
        %v9288 = vld [vmem:[#allocation3 + $0x28] sm:$0xf]
        %v9289 = vld [vmem:[#allocation3 + $0x2c] sm:$0xf]
        %v9290 = vld [vmem:[#allocation3 + $0x30] sm:$0xf]
        %v9291 = vld [vmem:[#allocation3 + $0x34] sm:$0xf]
        %v9292 = vld [vmem:[#allocation3 + $0x38] sm:$0xf]
        %v9293 = vld [vmem:[#allocation3 + $0x3c] sm:$0xf]
        %v9294 = vld [vmem:[%s9] sm:$0x1]
        %v9311 = vunpack.c.l.b16 %v9278
        %v9312 = vunpack.c.l.b16 %v9279
        %v9313 = vunpack.c.l.b16 %v9280
        %v9314 = vunpack.c.l.b16 %v9281
        %v9315 = vunpack.c.l.b16 %v9282
        %v9316 = vunpack.c.l.b16 %v9283
        %v9317 = vunpack.c.l.b16 %v9284
        %v9318 = vunpack.c.l.b16 %v9285
        %v9319 = vunpack.c.l.b16 %v9286
        %v9320 = vunpack.c.l.b16 %v9287
        %v9321 = vunpack.c.l.b16 %v9288
        %v9322 = vunpack.c.l.b16 %v9289
        %v9323 = vunpack.c.l.b16 %v9290
        %v9324 = vunpack.c.l.b16 %v9291
        %v9325 = vunpack.c.l.b16 %v9292
        %v9326 = vunpack.c.l.b16 %v9293
        %v9327 = vpack.c.b16 %v9312, %v9311
        %v9328 = vpack.c.b16 %v9314, %v9313
        %v9329 = vpack.c.b16 %v9316, %v9315
        %v9330 = vpack.c.b16 %v9318, %v9317
        %v9331 = vpack.c.b16 %v9320, %v9319
        %v9332 = vpack.c.b16 %v9322, %v9321
        %v9333 = vpack.c.b16 %v9324, %v9323
        %v9334 = vpack.c.b16 %v9326, %v9325
        %9343 = vmatprep.subr.bf16.mxu0 0
        %9344 = vmatpush1.bf16.msra.mxu0 %v9327
        %9345 = vmatprep.subr.bf16.mxu0 0
        %9346 = vmatpush1.bf16.msra.mxu0 %v9328
        %9347 = vmatprep.subr.bf16.mxu0 0
        %9348 = vmatpush1.bf16.msra.mxu0 %v9329
        %9349 = vmatprep.subr.bf16.mxu0 0
        %9350 = vmatpush1.bf16.msra.mxu0 %v9330
        %9351 = vmatprep.subr.bf16.mxu0 0
        %9352 = vmatpush1.bf16.msra.mxu0 %v9331
        %9353 = vmatprep.subr.bf16.mxu0 0
        %9354 = vmatpush1.bf16.msra.mxu0 %v9332
        %9355 = vmatprep.subr.bf16.mxu0 0
        %9356 = vmatpush1.bf16.msra.mxu0 %v9333
        %9357 = vmatprep.subr.bf16.mxu0 0
        %9358 = vmatpush1.bf16.msra.mxu0 %v9334
        %9359 = vmatprep.subr.bf16.mxu0 0
        %9360 = vmatpush1.bf16.msra.mxu0 0
        %9361 = vmatprep.subr.bf16.mxu0 0
        %9362 = vmatpush1.bf16.msra.mxu0 0
        %9363 = vmatprep.subr.bf16.mxu0 0
        %9364 = vmatpush1.bf16.msra.mxu0 0
        %9365 = vmatprep.subr.bf16.mxu0 0
        %9366 = vmatpush1.bf16.msra.mxu0 0
        %9367 = vmatprep.subr.bf16.mxu0 0
        %9368 = vmatpush1.bf16.msra.mxu0 0
        %9369 = vmatprep.subr.bf16.mxu0 0
        %9370 = vmatpush1.bf16.msra.mxu0 0
        %9371 = vmatprep.subr.bf16.mxu0 0
        %9372 = vmatpush1.bf16.msra.mxu0 0
        %9373 = vmatprep.subr.bf16.mxu0 0
        %9374 = vmatpush1.bf16.msra.mxu0 0
        %9375 = vmatprep.mubr.bf16.mxu0 0
        %9376 = vmatmul.mubr.bf16.gmra.mrb[0].mxu0 %v9277
        %v9377 = vpop.f32.mrb[0].mxu0
        %v9378 = vadd.f32 %v9294, %v9377
        %v9379 = vpop.f32.mrb[0].mxu0
        %v9380 = vpop.f32.mrb[0].mxu0
        %v9381 = vpop.f32.mrb[0].mxu0
        %9382 = vdwg.mxu0
        %vm9383 = vcmask 1040384
        %v9384 = vsel %vm9383, %v9378, -inf
        %9385 = vmax.xlane.f32.xlu0 %v9384
        %v9386 = vpop.xlane.xlu0 %9385
        %v9387 = vsub.f32 %v9378, %v9386
        %v9388 = vmul.f32 %v9387, 1.442695
        %v9389 = vpow.pop %v9388
        %v9390 = vsel %vm9383, %v9389, 0.0
        %9391 = vadd.xlane.f32.xlu0 %v9390
        %v9392 = vpop.xlane.xlu0 %9391
        %v9393 = vlog2.pop %v9392
        %v9394 = vmul.f32 %v9393, 0.6931472
        %v9395 = vsub.f32 %v9387, %v9394
        %9396 = vst [vmem:[%s366] sm:$0x1] %v9395
        %s9397 = sand.u32 %s248, 1
        %s9398 = scalar_lea.sflag [#allocation5], %s9397
        %s9399 = sand.u32 %s248, 1
        %s9400 = scalar_lea.vmem [#allocation6], %s9399
        // Predicated region
        $region65: #{cnn_forward.1} parent=59 // pred_check
          %p9401 = pneg %p258
        $region66: #{cnn_forward.1} parent=59 // pred_check_branch
          %9403 = sbr.rel (%p9401) target = $region68
        $region67: #{cnn_forward.1} parent=59 // pred_region
          %s9405 = ssub.s32 16, 16
          %9406 = vsyncadd %s9398, %s9405
          %s9407 = smul.addr %s25, 16
          %s9408 = scalar_lea.hbm %s10, %s9407
          %s9410 = sshll.u32 %s9400, 4
          %s9411 = int_to_ptr.vmem [resolvable:$true] %s9410
          %9413 = dma.vmem_to_hbm [thread:$0]  %s9411, 16, %s9408, %s9398
        $region68: #{cnn_forward.1} parent=59 // pred_fallthru
          _
      $region60: #{cnn_forward.1} parent=5 // pred_fallthru
        _
      %p9414 = scmp.le.s32.totalorder 2, %s20
      // Predicated region
      $region69: #{cnn_forward.1} parent=5 // pred_check
        %p9415 = pneg %p9414
      $region70: #{cnn_forward.1} parent=5 // pred_check_branch
        %9417 = sbr.rel (%p9415) target = $region72
      $region71: #{cnn_forward.1} parent=5 // pred_region
        %s9418 = ssub.s32 %s20, 2
        // Predicated region
        $region73: #{cnn_forward.1} parent=71 // pred_check
          %p9419 = pneg %p264
        $region74: #{cnn_forward.1} parent=71 // pred_check_branch
          %9421 = sbr.rel (%p9419) target = $region76
        $region75: #{cnn_forward.1} parent=71 // pred_region
          %s9422 = sand.u32 %s249, 1
          %s9423 = scalar_lea.sflag [#allocation5], %s9422
          %s9424 = sand.u32 %s249, 1
          %s9425 = scalar_lea.vmem [#allocation6], %s9424
          %9426 = dma.done %s9423, 16
        $region76: #{cnn_forward.1} parent=71 // pred_fallthru
          _
      $region72: #{cnn_forward.1} parent=5 // pred_fallthru
        _
    $region6: #{cnn_forward.1} parent=1 // loop_footer
      %s24 = sadd.s32 1, %s20
    $region7: #{cnn_forward.1} parent=1 // loop_footer_branch
      %19 = sbr.rel target = $region3
    $region8: #{cnn_forward.1} parent=1 // loop_exit
      _
    %9427 = vsyncpa [#allocation4], 1
    %s9428 = scalar_lea.sflag [#allocation4], 1
    %9429 = vsyncpa %s9428, 1
    %9430 = vsyncpa [#allocation5], 1
    %s9431 = scalar_lea.sflag [#allocation5], 1
    %9432 = vsyncpa %s9431, 1

</llo_original>
